<compile_context>
chip_gen: v7x
topology: tpu7x:2x2x1
jax: 0.10.0
libtpu: 0.0.40
codegen_flags: <defaults>
</compile_context>

<pallas_src>
import math
import functools

import jax
import jax.numpy as jnp
import numpy as np
from jax.experimental import pallas as pl
from jax.experimental.pallas import tpu as pltpu

# ----------------------------- model constants ------------------------------
D_MODEL = 64
D_K = 64
D_V = 64
D_FF = 512
N_HEADS = 1                    # not defined in the provided snippet
PEP_LEN = 15
HLA_LEN = 34
TGT_LEN = PEP_LEN + HLA_LEN    # 49
L_PAD = 64                     # sublane-aligned padded sequence length
F_PAD = L_PAD * D_MODEL        # 4096 padded flatten (real = 49*64 = 3136)
VOCAB_SIZE = 24                # synthetic vocab (original loads a .npy dict)
LN_EPS = 1e-5
BN_EPS = 1e-5
NEG_INF = -1e9                 # same constant as masked_fill_ in the original


# ----------------------------- small helpers --------------------------------
def _layer_norm(x, eps=LN_EPS):
    # PyTorch LayerNorm with weight=1, bias=0 (biased variance).
    mu = jnp.mean(x, axis=-1, keepdims=True)
    xc = x - mu
    var = jnp.mean(xc * xc, axis=-1, keepdims=True)
    return xc * jax.lax.rsqrt(var + eps)


# ----------------------------- Pallas kernels -------------------------------
def transformer_stack_kernel(x_ref, m_ref,
                             wq_ref, wk_ref, wv_ref, wo_ref, w1_ref, w2_ref,
                             dec_ref, attn_ref,
                             enc_scr, xin_scr):
    """Grid step e=0: pep encoder layer, e=1: hla encoder layer, e=2: decoder
    layer.  Activations are (B*L_PAD, D) slabs.  Encoder outputs are kept in
    the enc_scr VMEM scratch; step 2 builds its input (concat + PE) from it.
    """
    e = pl.program_id(0)
    B = m_ref.shape[1]
    Lp = m_ref.shape[2]

    # ---- stage the layer input into xin_scr -------------------------------
    # slabs 0/1 hold emb+PE (zero padded); slab 2 holds the decoder PE base.
    xin_scr[...] = x_ref[0]

    @pl.when(e == 2)
    def _():
        # decoder input = concat(pep_out[:, :15], hla_out[:, :34], pad) + PE
        for b in range(B):
            o = b * Lp
            xin_scr[o:o + PEP_LEN, :] = (
                xin_scr[o:o + PEP_LEN, :] + enc_scr[0, o:o + PEP_LEN, :])
            xin_scr[o + PEP_LEN:o + TGT_LEN, :] = (
                xin_scr[o + PEP_LEN:o + TGT_LEN, :] + enc_scr[1, o:o + HLA_LEN, :])

    x2 = xin_scr[...]                     # (B*Lp, D) f32
    key_mask = m_ref[0]                   # (B, Lp)  f32, 1.0 = masked key

    # ---- multi-head self attention (1/sqrt(d_k) folded into W_Q) ----------
    q = jnp.dot(x2, wq_ref[0], preferred_element_type=jnp.float32)
    k = jnp.dot(x2, wk_ref[0], preferred_element_type=jnp.float32)
    v = jnp.dot(x2, wv_ref[0], preferred_element_type=jnp.float32)
    wo = wo_ref[0]

    mha_blocks = []
    for b in range(B):                                  # static, B is tiny
        o = b * Lp
        mask_row = key_mask[b:b + 1, :] > 0.5           # (1, Lp) bool
        mask_full = jnp.broadcast_to(mask_row, (Lp, Lp))
        mha_b = None
        for h in range(N_HEADS):                        # static (N_HEADS == 1)
            qh = q[o:o + Lp, h * D_K:(h + 1) * D_K]
            kh = k[o:o + Lp, h * D_K:(h + 1) * D_K]
            vh = v[o:o + Lp, h * D_V:(h + 1) * D_V]
            scores = jax.lax.dot_general(
                qh, kh, (((1,), (1,)), ((), ())),
                preferred_element_type=jnp.float32)      # (Lp, Lp)
            scores = jnp.where(mask_full, jnp.float32(NEG_INF), scores)
            m_max = jnp.max(scores, axis=-1, keepdims=True)
            p = jnp.exp(scores - m_max)
            denom = jnp.sum(p, axis=-1, keepdims=True)
            attn = p * pl.reciprocal(denom, approx=True)
            attn_ref[0, b * N_HEADS + h] = attn
            ctx = jnp.dot(attn, vh, preferred_element_type=jnp.float32)
            part = jnp.dot(ctx, wo[h * D_V:(h + 1) * D_V, :],
                           preferred_element_type=jnp.float32)
            mha_b = part if mha_b is None else mha_b + part
        mha_blocks.append(mha_b)
    mha = mha_blocks[0] if B == 1 else jnp.concatenate(mha_blocks, axis=0)

    h1 = _layer_norm(mha + x2)                          # add & norm (f32)

    # ---- position-wise FFN (bf16 operands, f32 accumulation) --------------
    f = jnp.dot(h1.astype(jnp.bfloat16), w1_ref[0],
                preferred_element_type=jnp.float32)
    f = jnp.maximum(f, 0.0)
    f = jnp.dot(f.astype(jnp.bfloat16), w2_ref[0],
                preferred_element_type=jnp.float32)
    y2 = _layer_norm(f + h1)                            # add & norm (f32)

    dec_ref[...] = y2                                   # final value = decoder out

    @pl.when(e < 2)
    def _():
        enc_scr[e] = y2                                 # carry encoder output


def projection_kernel(x_ref, w1_ref, b1_ref, w2_ref, b2_ref, w3_ref, b3_ref,
                      o_ref):
    """Projection head: Linear(3136,256)+ReLU+BN(eval, folded)+Linear(256,64)
    +ReLU+Linear(64,2).  x is the padded flatten (B, 4096); padding rows of W1
    are zero so padded activations contribute nothing."""
    x = x_ref[...].astype(jnp.bfloat16)
    h = jnp.dot(x, w1_ref[...], preferred_element_type=jnp.float32) + b1_ref[...]
    h = jnp.maximum(h, 0.0)
    # BatchNorm1d eval scale is folded into w2 at prep time.
    h = jnp.dot(h, w2_ref[...], preferred_element_type=jnp.float32) + b2_ref[...]
    h = jnp.maximum(h, 0.0)
    o_ref[...] = jnp.dot(h, w3_ref[...],
                         preferred_element_type=jnp.float32) + b3_ref[...]


# ----------------------------- kernel wrappers -------------------------------
def run_transformer_stack(x_stack, m_stack, wq_s, wk_s, wv_s, wo_s, w1_s, w2_s):
    """x_stack: (3, B*L_PAD, D); m_stack: (3, B, L_PAD).
    Returns decoder output (B*L_PAD, D) and attn maps (3, B*H, L_PAD, L_PAD)."""
    B = m_stack.shape[1]
    N = B * L_PAD
    slab2 = lambda e: (e, 0, 0)
    dec_out, attn_stack = pl.pallas_call(
        transformer_stack_kernel,
        out_shape=(jax.ShapeDtypeStruct((N, D_MODEL), jnp.float32),
                   jax.ShapeDtypeStruct((3, B * N_HEADS, L_PAD, L_PAD),
                                        jnp.float32)),
        grid=(3,),
        in_specs=[
            pl.BlockSpec((1, N, D_MODEL), slab2),
            pl.BlockSpec((1, B, L_PAD), slab2),
            pl.BlockSpec((1, D_MODEL, N_HEADS * D_K), slab2),
            pl.BlockSpec((1, D_MODEL, N_HEADS * D_K), slab2),
            pl.BlockSpec((1, D_MODEL, N_HEADS * D_V), slab2),
            pl.BlockSpec((1, N_HEADS * D_V, D_MODEL), slab2),
            pl.BlockSpec((1, D_MODEL, D_FF), slab2),
            pl.BlockSpec((1, D_FF, D_MODEL), slab2),
        ],
        out_specs=(
            pl.BlockSpec((N, D_MODEL), lambda e: (0, 0)),        # revisited
            pl.BlockSpec((1, B * N_HEADS, L_PAD, L_PAD), lambda e: (e, 0, 0, 0)),
        ),
        scratch_shapes=[pltpu.VMEM((2, N, D_MODEL), jnp.float32),
                        pltpu.VMEM((N, D_MODEL), jnp.float32)],
        compiler_params=pltpu.CompilerParams(
            dimension_semantics=("arbitrary",)),   # step 2 depends on 0/1
    )(x_stack, m_stack, wq_s, wk_s, wv_s, wo_s, w1_s, w2_s)
    return dec_out, attn_stack


def run_projection(flat, w1p, b1, w2f, b2, w3, b3):
    B = flat.shape[0]
    full = lambda i: (0, 0)
    return pl.pallas_call(
        projection_kernel,
        out_shape=jax.ShapeDtypeStruct((B, 2), jnp.float32),
        grid=(1,),
        in_specs=[
            pl.BlockSpec((B, F_PAD), full),
            pl.BlockSpec((F_PAD, 256), full),
            pl.BlockSpec((1, 256), full),
            pl.BlockSpec((256, 64), full),
            pl.BlockSpec((1, 64), full),
            pl.BlockSpec((64, 2), full),
            pl.BlockSpec((1, 2), full),
        ],
        out_specs=pl.BlockSpec((B, 2), full),
    )(flat, w1p, b1, w2f, b2, w3, b3)


# ----------------------------- plain-JAX glue --------------------------------
def make_positional_encoding(max_len=128, d_model=D_MODEL):
    pe = np.zeros((max_len, d_model), dtype=np.float32)
    position = np.arange(0, max_len, dtype=np.float32)[:, None]
    div_term = np.exp(np.arange(0, d_model, 2, dtype=np.float32)
                      * (-math.log(10000.0) / d_model))
    pe[:, 0::2] = np.sin(position * div_term)
    pe[:, 1::2] = np.cos(position * div_term)
    return jnp.asarray(pe)


PE = make_positional_encoding()


def _enc_slab(tokens, emb_table, l_real):
    """tokens (B, l_real) int32 -> (B*L_PAD, D) slab and (B, L_PAD) key mask."""
    B = tokens.shape[0]
    x = jnp.take(emb_table, tokens, axis=0) + PE[:l_real][None, :, :]
    x = jnp.pad(x, ((0, 0), (0, L_PAD - l_real), (0, 0)))
    mask = jnp.pad(tokens == 0, ((0, 0), (0, L_PAD - l_real)),
                   constant_values=True).astype(jnp.float32)
    return x.reshape(B * L_PAD, D_MODEL), mask


def _prepare_layers(params):
    """Stack the three layers' weights, fold 1/sqrt(d_k) into W_Q, cast the
    FFN weights to bf16 (f32 accumulation preserves accuracy)."""
    layers = [params["pep_encoder"]["layer"],
              params["hla_encoder"]["layer"],
              params["decoder"]["layer"]]
    inv_sqrt_dk = 1.0 / math.sqrt(D_K)
    wq = jnp.stack([l["wq"] * inv_sqrt_dk for l in layers], axis=0)
    wk = jnp.stack([l["wk"] for l in layers], axis=0)
    wv = jnp.stack([l["wv"] for l in layers], axis=0)
    wo = jnp.stack([l["wo"] for l in layers], axis=0)
    w1 = jnp.stack([l["w1"] for l in layers], axis=0).astype(jnp.bfloat16)
    w2 = jnp.stack([l["w2"] for l in layers], axis=0).astype(jnp.bfloat16)
    return wq, wk, wv, wo, w1, w2


def _prepare_projection(pp):
    # Zero-pad W1 rows for the padded decoder positions (49..63) and fold the
    # eval-mode BatchNorm scale 1/sqrt(1+eps) into W2.
    w1p = jnp.pad(pp["w1"],
                  ((0, F_PAD - TGT_LEN * D_MODEL), (0, 0))).astype(jnp.bfloat16)
    w2f = pp["w2"] * (1.0 / math.sqrt(1.0 + BN_EPS))
    return w1p, w2f


def transformer_forward(params, pep_inputs, hla_inputs):
    B = pep_inputs.shape[0]

    # ---- inputs: embedding + positional encoding (eval dropout = identity) --
    x_pep, m_pep = _enc_slab(pep_inputs, params["pep_encoder"]["emb"], PEP_LEN)
    x_hla, m_hla = _enc_slab(hla_inputs, params["hla_encoder"]["emb"], HLA_LEN)
    # slab 2 = decoder positional-encoding base; key mask hides rows >= 49
    # (original decoder pad mask is all-False over its 49 real positions).
    pe_slab = jnp.tile(PE[:L_PAD], (B, 1))                       # (B*L_PAD, D)
    m_dec = jnp.broadcast_to(
        (jnp.arange(L_PAD) >= TGT_LEN)[None, :], (B, L_PAD)).astype(jnp.float32)

    x_stack = jnp.stack([x_pep, x_hla, pe_slab], axis=0)         # (3, B*Lp, D)
    m_stack = jnp.stack([m_pep, m_hla, m_dec], axis=0)           # (3, B, Lp)

    wq_s, wk_s, wv_s, wo_s, w1_s, w2_s = _prepare_layers(params)

    dec_out, attn_stack = run_transformer_stack(
        x_stack, m_stack, wq_s, wk_s, wv_s, wo_s, w1_s, w2_s)

    # ---- projection head ----------------------------------------------------
    pp = params["projection"]
    w1p, w2f = _prepare_projection(pp)
    flat = dec_out.reshape(B, F_PAD)                  # padded rows hit zero W1
    logits = run_projection(flat, w1p, pp["b1"], w2f, pp["b2"],
                            pp["w3"], pp["b3"])

    # ---- attention maps, sliced back to the unpadded sizes -------------------
    attn = attn_stack.reshape(3, B, N_HEADS, L_PAD, L_PAD)
    pep_attn = attn[0, :, :, :PEP_LEN, :PEP_LEN]
    hla_attn = attn[1, :, :, :HLA_LEN, :HLA_LEN]
    dec_attn = attn[2, :, :, :TGT_LEN, :TGT_LEN]
    return logits, [pep_attn], [hla_attn], [dec_attn]


# ----------------------------- deterministic init ----------------------------
def _uniform(key, shape, fan_in):
    bound = 1.0 / math.sqrt(fan_in)
    return jax.random.uniform(key, shape, jnp.float32, -bound, bound)


def init_layer(key):
    ks = jax.random.split(key, 6)
    return {
        "wq": _uniform(ks[0], (D_MODEL, N_HEADS * D_K), D_MODEL),
        "wk": _uniform(ks[1], (D_MODEL, N_HEADS * D_K), D_MODEL),
        "wv": _uniform(ks[2], (D_MODEL, N_HEADS * D_V), D_MODEL),
        "wo": _uniform(ks[3], (N_HEADS * D_V, D_MODEL), N_HEADS * D_V),
        "w1": _uniform(ks[4], (D_MODEL, D_FF), D_MODEL),
        "w2": _uniform(ks[5], (D_FF, D_MODEL), D_FF),
    }


def init_encoder(key):
    k_emb, k_layer = jax.random.split(key)
    return {
        "emb": jax.random.normal(k_emb, (VOCAB_SIZE, D_MODEL), jnp.float32),
        "layer": init_layer(k_layer),
    }


def init_params(key):
    k1, k2, k3, k4 = jax.random.split(key, 4)
    kp = jax.random.split(k4, 6)
    F = TGT_LEN * D_MODEL
    return {
        "pep_encoder": init_encoder(k1),
        "hla_encoder": init_encoder(k2),
        "decoder": {"layer": init_layer(k3)},
        "projection": {
            "w1": _uniform(kp[0], (F, 256), F),
            "b1": _uniform(kp[1], (1, 256), F),
            "w2": _uniform(kp[2], (256, 64), 256),
            "b2": _uniform(kp[3], (1, 64), 256),
            "w3": _uniform(kp[4], (64, 2), 64),
            "b3": _uniform(kp[5], (1, 2), 64),
        },
    }


# ----------------------------------- main ------------------------------------
if __name__ == "__main__":
    B = 2
    key = jax.random.PRNGKey(0)
    k_pep, k_hla, k_params = jax.random.split(key, 3)
    pep_inputs = jax.random.randint(k_pep, (B, PEP_LEN), 0, VOCAB_SIZE,
                                    dtype=jnp.int32)
    hla_inputs = jax.random.randint(k_hla, (B, HLA_LEN), 0, VOCAB_SIZE,
                                    dtype=jnp.int32)
    params = init_params(k_params)

    fwd = jax.jit(functools.partial(transformer_forward, params))
    logits, pep_attns, hla_attns, dec_attns = fwd(pep_inputs, hla_inputs)
    jax.block_until_ready(logits)

    assert logits.shape == (B, 2)
    assert bool(jnp.all(jnp.isfinite(logits)))
    assert pep_attns[0].shape == (B, N_HEADS, PEP_LEN, PEP_LEN)
    assert hla_attns[0].shape == (B, N_HEADS, HLA_LEN, HLA_LEN)
    assert dec_attns[0].shape == (B, N_HEADS, TGT_LEN, TGT_LEN)
    print("KERNEL_OK")
</pallas_src>

<mosaic_0001>
module attributes {stable_mosaic.version = 11 : i64} {
  func.func @transformer_stack_kernel(%arg0: i32, %arg1: memref<1x128x64xf32, #tpu.memory_space<vmem>>, %arg2: memref<1x2x64xf32, #tpu.memory_space<vmem>>, %arg3: memref<1x64x64xf32, #tpu.memory_space<vmem>>, %arg4: memref<1x64x64xf32, #tpu.memory_space<vmem>>, %arg5: memref<1x64x64xf32, #tpu.memory_space<vmem>>, %arg6: memref<1x64x64xf32, #tpu.memory_space<vmem>>, %arg7: memref<1x64x512xbf16, #tpu.memory_space<vmem>>, %arg8: memref<1x512x64xbf16, #tpu.memory_space<vmem>>, %arg9: memref<128x64xf32, #tpu.memory_space<vmem>>, %arg10: memref<1x2x64x64xf32, #tpu.memory_space<vmem>>, %arg11: memref<2x128x64xf32, #tpu.memory_space<vmem>>, %arg12: memref<128x64xf32, #tpu.memory_space<vmem>>) attributes {dimension_semantics = [#tpu.dimension_semantics<arbitrary>], iteration_bounds = array<i64: 3>, scalar_prefetch = 0 : i64, scratch_operands = 2 : i64, tpu.core_type = #tpu.core_type<tc>, window_params = [{transform_indices = @transform_0, window_bounds = array<i64: 1, 128, 64>}, {transform_indices = @transform_1, window_bounds = array<i64: 1, 2, 64>}, {transform_indices = @transform_2, window_bounds = array<i64: 1, 64, 64>}, {transform_indices = @transform_3, window_bounds = array<i64: 1, 64, 64>}, {transform_indices = @transform_4, window_bounds = array<i64: 1, 64, 64>}, {transform_indices = @transform_5, window_bounds = array<i64: 1, 64, 64>}, {transform_indices = @transform_6, window_bounds = array<i64: 1, 64, 512>}, {transform_indices = @transform_7, window_bounds = array<i64: 1, 512, 64>}, {pipeline_mode = #tpu.pipeline_mode<synchronous>, transform_indices = @transform_8, window_bounds = array<i64: 128, 64>}, {transform_indices = @transform_9, window_bounds = array<i64: 1, 2, 64, 64>}]} {
    %c0 = arith.constant 0 : index
    %c0_0 = arith.constant 0 : index
    %c0_1 = arith.constant 0 : index
    %0 = vector.load %arg1[%c0, %c0_0, %c0_1] : memref<1x128x64xf32, #tpu.memory_space<vmem>>, vector<1x128x64xf32>
    %1 = vector.shape_cast %0 : vector<1x128x64xf32> to vector<128x64xf32>
    %c0_2 = arith.constant 0 : index
    %c0_3 = arith.constant 0 : index
    %2 = vector.load %arg12[%c0_2, %c0_3] : memref<128x64xf32, #tpu.memory_space<vmem>>, vector<128x64xf32>
    tpu.vector_store %arg12[%c0_2, %c0_3], %1 {strides = array<i32>} : memref<128x64xf32, #tpu.memory_space<vmem>>, vector<128x64xf32>,
    %c2_i32 = arith.constant 2 : i32
    %3 = arith.cmpi eq, %arg0, %c2_i32 : i32
    %4 = arith.extui %3 : i1 to i32
    %c0_i32 = arith.constant 0 : i32
    %5 = arith.cmpi ne, %4, %c0_i32 : i32
    scf.if %5 {
      %c0_67 = arith.constant 0 : index
      %c0_68 = arith.constant 0 : index
      %121 = vector.load %arg12[%c0_67, %c0_68] : memref<128x64xf32, #tpu.memory_space<vmem>>, vector<15x64xf32>
      %c0_69 = arith.constant 0 : index
      %c0_70 = arith.constant 0 : index
      %c0_71 = arith.constant 0 : index
      %122 = vector.load %arg11[%c0_69, %c0_70, %c0_71] : memref<2x128x64xf32, #tpu.memory_space<vmem>>, vector<1x15x64xf32>
      %123 = vector.shape_cast %122 : vector<1x15x64xf32> to vector<15x64xf32>
      %124 = arith.addf %121, %123 : vector<15x64xf32>
      %c0_72 = arith.constant 0 : index
      %c0_73 = arith.constant 0 : index
      %125 = vector.load %arg12[%c0_72, %c0_73] : memref<128x64xf32, #tpu.memory_space<vmem>>, vector<15x64xf32>
      tpu.vector_store %arg12[%c0_72, %c0_73], %124 {strides = array<i32>} : memref<128x64xf32, #tpu.memory_space<vmem>>, vector<15x64xf32>,
      %c15 = arith.constant 15 : index
      %c0_74 = arith.constant 0 : index
      %126 = vector.load %arg12[%c15, %c0_74] : memref<128x64xf32, #tpu.memory_space<vmem>>, vector<34x64xf32>
      %c1_75 = arith.constant 1 : index
      %c0_76 = arith.constant 0 : index
      %c0_77 = arith.constant 0 : index
      %127 = vector.load %arg11[%c1_75, %c0_76, %c0_77] : memref<2x128x64xf32, #tpu.memory_space<vmem>>, vector<1x34x64xf32>
      %128 = vector.shape_cast %127 : vector<1x34x64xf32> to vector<34x64xf32>
      %129 = arith.addf %126, %128 : vector<34x64xf32>
      %c15_78 = arith.constant 15 : index
      %c0_79 = arith.constant 0 : index
      %130 = vector.load %arg12[%c15_78, %c0_79] : memref<128x64xf32, #tpu.memory_space<vmem>>, vector<34x64xf32>
      tpu.vector_store %arg12[%c15_78, %c0_79], %129 {strides = array<i32>} : memref<128x64xf32, #tpu.memory_space<vmem>>, vector<34x64xf32>,
      %c64 = arith.constant 64 : index
      %c0_80 = arith.constant 0 : index
      %131 = vector.load %arg12[%c64, %c0_80] : memref<128x64xf32, #tpu.memory_space<vmem>>, vector<15x64xf32>
      %c0_81 = arith.constant 0 : index
      %c64_82 = arith.constant 64 : index
      %c0_83 = arith.constant 0 : index
      %132 = vector.load %arg11[%c0_81, %c64_82, %c0_83] : memref<2x128x64xf32, #tpu.memory_space<vmem>>, vector<1x15x64xf32>
      %133 = vector.shape_cast %132 : vector<1x15x64xf32> to vector<15x64xf32>
      %134 = arith.addf %131, %133 : vector<15x64xf32>
      %c64_84 = arith.constant 64 : index
      %c0_85 = arith.constant 0 : index
      %135 = vector.load %arg12[%c64_84, %c0_85] : memref<128x64xf32, #tpu.memory_space<vmem>>, vector<15x64xf32>
      tpu.vector_store %arg12[%c64_84, %c0_85], %134 {strides = array<i32>} : memref<128x64xf32, #tpu.memory_space<vmem>>, vector<15x64xf32>,
      %c79 = arith.constant 79 : index
      %c0_86 = arith.constant 0 : index
      %136 = vector.load %arg12[%c79, %c0_86] : memref<128x64xf32, #tpu.memory_space<vmem>>, vector<34x64xf32>
      %c1_87 = arith.constant 1 : index
      %c64_88 = arith.constant 64 : index
      %c0_89 = arith.constant 0 : index
      %137 = vector.load %arg11[%c1_87, %c64_88, %c0_89] : memref<2x128x64xf32, #tpu.memory_space<vmem>>, vector<1x34x64xf32>
      %138 = vector.shape_cast %137 : vector<1x34x64xf32> to vector<34x64xf32>
      %139 = arith.addf %136, %138 : vector<34x64xf32>
      %c79_90 = arith.constant 79 : index
      %c0_91 = arith.constant 0 : index
      %140 = vector.load %arg12[%c79_90, %c0_91] : memref<128x64xf32, #tpu.memory_space<vmem>>, vector<34x64xf32>
      tpu.vector_store %arg12[%c79_90, %c0_91], %139 {strides = array<i32>} : memref<128x64xf32, #tpu.memory_space<vmem>>, vector<34x64xf32>,
    } else {
    }
    %c0_4 = arith.constant 0 : index
    %c0_5 = arith.constant 0 : index
    %6 = vector.load %arg12[%c0_4, %c0_5] : memref<128x64xf32, #tpu.memory_space<vmem>>, vector<128x64xf32>
    %c0_6 = arith.constant 0 : index
    %c0_7 = arith.constant 0 : index
    %c0_8 = arith.constant 0 : index
    %7 = vector.load %arg2[%c0_6, %c0_7, %c0_8] : memref<1x2x64xf32, #tpu.memory_space<vmem>>, vector<1x2x64xf32>
    %8 = vector.shape_cast %7 : vector<1x2x64xf32> to vector<2x64xf32>
    %c0_9 = arith.constant 0 : index
    %c0_10 = arith.constant 0 : index
    %c0_11 = arith.constant 0 : index
    %9 = vector.load %arg3[%c0_9, %c0_10, %c0_11] : memref<1x64x64xf32, #tpu.memory_space<vmem>>, vector<1x64x64xf32>
    %10 = vector.shape_cast %9 : vector<1x64x64xf32> to vector<64x64xf32>
    %cst = arith.constant dense<0.000000e+00> : vector<128x64xf32>
    %11 = tpu.matmul %6, %10, %cst {dimension_numbers = #tpu.dot_dimension_numbers<[1], [0], [0], [1], [0, 0, 1, 1], [], []>} : vector<128x64xf32>, vector<64x64xf32>, vector<128x64xf32> -> vector<128x64xf32>
    %c0_12 = arith.constant 0 : index
    %c0_13 = arith.constant 0 : index
    %c0_14 = arith.constant 0 : index
    %12 = vector.load %arg4[%c0_12, %c0_13, %c0_14] : memref<1x64x64xf32, #tpu.memory_space<vmem>>, vector<1x64x64xf32>
    %13 = vector.shape_cast %12 : vector<1x64x64xf32> to vector<64x64xf32>
    %cst_15 = arith.constant dense<0.000000e+00> : vector<128x64xf32>
    %14 = tpu.matmul %6, %13, %cst_15 {dimension_numbers = #tpu.dot_dimension_numbers<[1], [0], [0], [1], [0, 0, 1, 1], [], []>} : vector<128x64xf32>, vector<64x64xf32>, vector<128x64xf32> -> vector<128x64xf32>
    %c0_16 = arith.constant 0 : index
    %c0_17 = arith.constant 0 : index
    %c0_18 = arith.constant 0 : index
    %15 = vector.load %arg5[%c0_16, %c0_17, %c0_18] : memref<1x64x64xf32, #tpu.memory_space<vmem>>, vector<1x64x64xf32>
    %16 = vector.shape_cast %15 : vector<1x64x64xf32> to vector<64x64xf32>
    %cst_19 = arith.constant dense<0.000000e+00> : vector<128x64xf32>
    %17 = tpu.matmul %6, %16, %cst_19 {dimension_numbers = #tpu.dot_dimension_numbers<[1], [0], [0], [1], [0, 0, 1, 1], [], []>} : vector<128x64xf32>, vector<64x64xf32>, vector<128x64xf32> -> vector<128x64xf32>
    %c0_20 = arith.constant 0 : index
    %c0_21 = arith.constant 0 : index
    %c0_22 = arith.constant 0 : index
    %18 = vector.load %arg6[%c0_20, %c0_21, %c0_22] : memref<1x64x64xf32, #tpu.memory_space<vmem>>, vector<1x64x64xf32>
    %19 = vector.shape_cast %18 : vector<1x64x64xf32> to vector<64x64xf32>
    %20 = vector.extract_strided_slice %8 {offsets = [0, 0], sizes = [1, 64], strides = [1, 1]} : vector<2x64xf32> to vector<1x64xf32>
    %cst_23 = arith.constant 5.000000e-01 : f32
    %21 = vector.broadcast %cst_23 : f32 to vector<1x64xf32>
    %22 = arith.cmpf ogt, %20, %21 : vector<1x64xf32>
    %23 = vector.shape_cast %22 : vector<1x64xi1> to vector<1x64xi1>
    %24 = vector.broadcast %23 : vector<1x64xi1> to vector<64x64xi1>
    %25 = vector.extract_strided_slice %11 {offsets = [0, 0], sizes = [64, 64], strides = [1, 1]} : vector<128x64xf32> to vector<64x64xf32>
    %26 = vector.extract_strided_slice %14 {offsets = [0, 0], sizes = [64, 64], strides = [1, 1]} : vector<128x64xf32> to vector<64x64xf32>
    %27 = vector.extract_strided_slice %17 {offsets = [0, 0], sizes = [64, 64], strides = [1, 1]} : vector<128x64xf32> to vector<64x64xf32>
    %cst_24 = arith.constant dense<0.000000e+00> : vector<64x64xf32>
    %28 = tpu.matmul %25, %26, %cst_24 {dimension_numbers = #tpu.dot_dimension_numbers<[1], [1], [0], [0], [0, 0, 1, 0], [], []>} : vector<64x64xf32>, vector<64x64xf32>, vector<64x64xf32> -> vector<64x64xf32>
    %cst_25 = arith.constant -1.000000e+09 : f32
    %29 = vector.broadcast %cst_25 : f32 to vector<64x64xf32>
    %30 = arith.select %24, %29, %28 : vector<64x64xi1>, vector<64x64xf32>
    %cst_26 = arith.constant dense<0xFF800000> : vector<64xf32>
    %31 = vector.multi_reduction <maximumf>, %30, %cst_26 [1] : vector<64x64xf32> to vector<64xf32>
    %32 = vector.shape_cast %31 : vector<64xf32> to vector<64x1xf32>
    %33 = vector.broadcast %32 : vector<64x1xf32> to vector<64x64xf32>
    %34 = arith.subf %30, %33 : vector<64x64xf32>
    %35 = math.exp %34 : vector<64x64xf32>
    %cst_27 = arith.constant dense<0.000000e+00> : vector<64xf32>
    %36 = vector.multi_reduction <add>, %35, %cst_27 [1] : vector<64x64xf32> to vector<64xf32>
    %37 = vector.shape_cast %36 : vector<64xf32> to vector<64x1xf32>
    %38 = tpu.reciprocal %37 {approx = true} : vector<64x1xf32> -> vector<64x1xf32>
    %39 = vector.broadcast %38 : vector<64x1xf32> to vector<64x64xf32>
    %40 = arith.mulf %35, %39 : vector<64x64xf32>
    %c0_28 = arith.constant 0 : index
    %c0_29 = arith.constant 0 : index
    %c0_30 = arith.constant 0 : index
    %c0_31 = arith.constant 0 : index
    %41 = vector.load %arg10[%c0_28, %c0_29, %c0_30, %c0_31] : memref<1x2x64x64xf32, #tpu.memory_space<vmem>>, vector<1x1x64x64xf32>
    %42 = vector.shape_cast %41 : vector<1x1x64x64xf32> to vector<64x64xf32>
    %43 = vector.shape_cast %40 : vector<64x64xf32> to vector<1x1x64x64xf32>
    tpu.vector_store %arg10[%c0_28, %c0_29, %c0_30, %c0_31], %43 {strides = array<i32>} : memref<1x2x64x64xf32, #tpu.memory_space<vmem>>, vector<1x1x64x64xf32>,
    %cst_32 = arith.constant dense<0.000000e+00> : vector<64x64xf32>
    %44 = tpu.matmul %40, %27, %cst_32 {dimension_numbers = #tpu.dot_dimension_numbers<[1], [0], [0], [1], [0, 0, 1, 1], [], []>} : vector<64x64xf32>, vector<64x64xf32>, vector<64x64xf32> -> vector<64x64xf32>
    %cst_33 = arith.constant dense<0.000000e+00> : vector<64x64xf32>
    %45 = tpu.matmul %44, %19, %cst_33 {dimension_numbers = #tpu.dot_dimension_numbers<[1], [0], [0], [1], [0, 0, 1, 1], [], []>} : vector<64x64xf32>, vector<64x64xf32>, vector<64x64xf32> -> vector<64x64xf32>
    %46 = vector.extract_strided_slice %8 {offsets = [1, 0], sizes = [1, 64], strides = [1, 1]} : vector<2x64xf32> to vector<1x64xf32>
    %cst_34 = arith.constant 5.000000e-01 : f32
    %47 = vector.broadcast %cst_34 : f32 to vector<1x64xf32>
    %48 = arith.cmpf ogt, %46, %47 : vector<1x64xf32>
    %49 = vector.shape_cast %48 : vector<1x64xi1> to vector<1x64xi1>
    %50 = vector.broadcast %49 : vector<1x64xi1> to vector<64x64xi1>
    %51 = vector.extract_strided_slice %11 {offsets = [64, 0], sizes = [64, 64], strides = [1, 1]} : vector<128x64xf32> to vector<64x64xf32>
    %52 = vector.extract_strided_slice %14 {offsets = [64, 0], sizes = [64, 64], strides = [1, 1]} : vector<128x64xf32> to vector<64x64xf32>
    %53 = vector.extract_strided_slice %17 {offsets = [64, 0], sizes = [64, 64], strides = [1, 1]} : vector<128x64xf32> to vector<64x64xf32>
    %cst_35 = arith.constant dense<0.000000e+00> : vector<64x64xf32>
    %54 = tpu.matmul %51, %52, %cst_35 {dimension_numbers = #tpu.dot_dimension_numbers<[1], [1], [0], [0], [0, 0, 1, 0], [], []>} : vector<64x64xf32>, vector<64x64xf32>, vector<64x64xf32> -> vector<64x64xf32>
    %cst_36 = arith.constant -1.000000e+09 : f32
    %55 = vector.broadcast %cst_36 : f32 to vector<64x64xf32>
    %56 = arith.select %50, %55, %54 : vector<64x64xi1>, vector<64x64xf32>
    %cst_37 = arith.constant dense<0xFF800000> : vector<64xf32>
    %57 = vector.multi_reduction <maximumf>, %56, %cst_37 [1] : vector<64x64xf32> to vector<64xf32>
    %58 = vector.shape_cast %57 : vector<64xf32> to vector<64x1xf32>
    %59 = vector.broadcast %58 : vector<64x1xf32> to vector<64x64xf32>
    %60 = arith.subf %56, %59 : vector<64x64xf32>
    %61 = math.exp %60 : vector<64x64xf32>
    %cst_38 = arith.constant dense<0.000000e+00> : vector<64xf32>
    %62 = vector.multi_reduction <add>, %61, %cst_38 [1] : vector<64x64xf32> to vector<64xf32>
    %63 = vector.shape_cast %62 : vector<64xf32> to vector<64x1xf32>
    %64 = tpu.reciprocal %63 {approx = true} : vector<64x1xf32> -> vector<64x1xf32>
    %65 = vector.broadcast %64 : vector<64x1xf32> to vector<64x64xf32>
    %66 = arith.mulf %61, %65 : vector<64x64xf32>
    %c0_39 = arith.constant 0 : index
    %c1 = arith.constant 1 : index
    %c0_40 = arith.constant 0 : index
    %c0_41 = arith.constant 0 : index
    %67 = vector.load %arg10[%c0_39, %c1, %c0_40, %c0_41] : memref<1x2x64x64xf32, #tpu.memory_space<vmem>>, vector<1x1x64x64xf32>
    %68 = vector.shape_cast %67 : vector<1x1x64x64xf32> to vector<64x64xf32>
    %69 = vector.shape_cast %66 : vector<64x64xf32> to vector<1x1x64x64xf32>
    tpu.vector_store %arg10[%c0_39, %c1, %c0_40, %c0_41], %69 {strides = array<i32>} : memref<1x2x64x64xf32, #tpu.memory_space<vmem>>, vector<1x1x64x64xf32>,
    %cst_42 = arith.constant dense<0.000000e+00> : vector<64x64xf32>
    %70 = tpu.matmul %66, %53, %cst_42 {dimension_numbers = #tpu.dot_dimension_numbers<[1], [0], [0], [1], [0, 0, 1, 1], [], []>} : vector<64x64xf32>, vector<64x64xf32>, vector<64x64xf32> -> vector<64x64xf32>
    %cst_43 = arith.constant dense<0.000000e+00> : vector<64x64xf32>
    %71 = tpu.matmul %70, %19, %cst_43 {dimension_numbers = #tpu.dot_dimension_numbers<[1], [0], [0], [1], [0, 0, 1, 1], [], []>} : vector<64x64xf32>, vector<64x64xf32>, vector<64x64xf32> -> vector<64x64xf32>
    %72 = tpu.concatenate %45, %71 in 0 : vector<64x64xf32>, vector<64x64xf32> -> vector<128x64xf32>
    %73 = arith.addf %72, %6 : vector<128x64xf32>
    %cst_44 = arith.constant dense<0.000000e+00> : vector<128xf32>
    %74 = vector.multi_reduction <add>, %73, %cst_44 [1] : vector<128x64xf32> to vector<128xf32>
    %75 = vector.shape_cast %74 : vector<128xf32> to vector<128x1xf32>
    %cst_45 = arith.constant 6.400000e+01 : f32
    %76 = vector.broadcast %cst_45 : f32 to vector<128x1xf32>
    %77 = arith.divf %75, %76 : vector<128x1xf32>
    %78 = vector.broadcast %77 : vector<128x1xf32> to vector<128x64xf32>
    %79 = arith.subf %73, %78 : vector<128x64xf32>
    %80 = arith.mulf %79, %79 : vector<128x64xf32>
    %cst_46 = arith.constant dense<0.000000e+00> : vector<128xf32>
    %81 = vector.multi_reduction <add>, %80, %cst_46 [1] : vector<128x64xf32> to vector<128xf32>
    %82 = vector.shape_cast %81 : vector<128xf32> to vector<128x1xf32>
    %cst_47 = arith.constant 6.400000e+01 : f32
    %83 = vector.broadcast %cst_47 : f32 to vector<128x1xf32>
    %84 = arith.divf %82, %83 : vector<128x1xf32>
    %cst_48 = arith.constant 9.99999974E-6 : f32
    %85 = vector.broadcast %cst_48 : f32 to vector<128x1xf32>
    %86 = arith.addf %84, %85 : vector<128x1xf32>
    %87 = math.rsqrt %86 : vector<128x1xf32>
    %88 = vector.broadcast %87 : vector<128x1xf32> to vector<128x64xf32>
    %89 = arith.mulf %79, %88 : vector<128x64xf32>
    %90 = arith.truncf %89 : vector<128x64xf32> to vector<128x64xbf16>
    %c0_49 = arith.constant 0 : index
    %c0_50 = arith.constant 0 : index
    %c0_51 = arith.constant 0 : index
    %91 = vector.load %arg7[%c0_49, %c0_50, %c0_51] : memref<1x64x512xbf16, #tpu.memory_space<vmem>>, vector<1x64x512xbf16>
    %92 = vector.shape_cast %91 : vector<1x64x512xbf16> to vector<64x512xbf16>
    %cst_52 = arith.constant dense<0.000000e+00> : vector<128x512xf32>
    %93 = tpu.matmul %90, %92, %cst_52 {dimension_numbers = #tpu.dot_dimension_numbers<[1], [0], [0], [1], [0, 0, 1, 1], [], []>} : vector<128x64xbf16>, vector<64x512xbf16>, vector<128x512xf32> -> vector<128x512xf32>
    %cst_53 = arith.constant 0.000000e+00 : f32
    %94 = vector.broadcast %cst_53 : f32 to vector<128x512xf32>
    %95 = arith.maximumf %93, %94 : vector<128x512xf32>
    %96 = arith.truncf %95 : vector<128x512xf32> to vector<128x512xbf16>
    %c0_54 = arith.constant 0 : index
    %c0_55 = arith.constant 0 : index
    %c0_56 = arith.constant 0 : index
    %97 = vector.load %arg8[%c0_54, %c0_55, %c0_56] : memref<1x512x64xbf16, #tpu.memory_space<vmem>>, vector<1x512x64xbf16>
    %98 = vector.shape_cast %97 : vector<1x512x64xbf16> to vector<512x64xbf16>
    %cst_57 = arith.constant dense<0.000000e+00> : vector<128x64xf32>
    %99 = tpu.matmul %96, %98, %cst_57 {dimension_numbers = #tpu.dot_dimension_numbers<[1], [0], [0], [1], [0, 0, 1, 1], [], []>} : vector<128x512xbf16>, vector<512x64xbf16>, vector<128x64xf32> -> vector<128x64xf32>
    %100 = arith.addf %99, %89 : vector<128x64xf32>
    %cst_58 = arith.constant dense<0.000000e+00> : vector<128xf32>
    %101 = vector.multi_reduction <add>, %100, %cst_58 [1] : vector<128x64xf32> to vector<128xf32>
    %102 = vector.shape_cast %101 : vector<128xf32> to vector<128x1xf32>
    %cst_59 = arith.constant 6.400000e+01 : f32
    %103 = vector.broadcast %cst_59 : f32 to vector<128x1xf32>
    %104 = arith.divf %102, %103 : vector<128x1xf32>
    %105 = vector.broadcast %104 : vector<128x1xf32> to vector<128x64xf32>
    %106 = arith.subf %100, %105 : vector<128x64xf32>
    %107 = arith.mulf %106, %106 : vector<128x64xf32>
    %cst_60 = arith.constant dense<0.000000e+00> : vector<128xf32>
    %108 = vector.multi_reduction <add>, %107, %cst_60 [1] : vector<128x64xf32> to vector<128xf32>
    %109 = vector.shape_cast %108 : vector<128xf32> to vector<128x1xf32>
    %cst_61 = arith.constant 6.400000e+01 : f32
    %110 = vector.broadcast %cst_61 : f32 to vector<128x1xf32>
    %111 = arith.divf %109, %110 : vector<128x1xf32>
    %cst_62 = arith.constant 9.99999974E-6 : f32
    %112 = vector.broadcast %cst_62 : f32 to vector<128x1xf32>
    %113 = arith.addf %111, %112 : vector<128x1xf32>
    %114 = math.rsqrt %113 : vector<128x1xf32>
    %115 = vector.broadcast %114 : vector<128x1xf32> to vector<128x64xf32>
    %116 = arith.mulf %106, %115 : vector<128x64xf32>
    %c0_63 = arith.constant 0 : index
    %c0_64 = arith.constant 0 : index
    %117 = vector.load %arg9[%c0_63, %c0_64] : memref<128x64xf32, #tpu.memory_space<vmem>>, vector<128x64xf32>
    tpu.vector_store %arg9[%c0_63, %c0_64], %116 {strides = array<i32>} : memref<128x64xf32, #tpu.memory_space<vmem>>, vector<128x64xf32>,
    %c2_i32_65 = arith.constant 2 : i32
    %118 = arith.cmpi slt, %arg0, %c2_i32_65 : i32
    %119 = arith.extui %118 : i1 to i32
    %c0_i32_66 = arith.constant 0 : i32
    %120 = arith.cmpi ne, %119, %c0_i32_66 : i32
    scf.if %120 {
      %121 = arith.index_cast %arg0 : i32 to index
      %c0_67 = arith.constant 0 : index
      %c0_68 = arith.constant 0 : index
      %122 = vector.load %arg11[%121, %c0_67, %c0_68] : memref<2x128x64xf32, #tpu.memory_space<vmem>>, vector<1x128x64xf32>
      %123 = vector.shape_cast %122 : vector<1x128x64xf32> to vector<128x64xf32>
      %124 = vector.shape_cast %116 : vector<128x64xf32> to vector<1x128x64xf32>
      tpu.vector_store %arg11[%121, %c0_67, %c0_68], %124 {strides = array<i32>} : memref<2x128x64xf32, #tpu.memory_space<vmem>>, vector<1x128x64xf32>,
    } else {
    }
    return
  }
  func.func @transform_0(%arg0: i32) -> (i32, i32, i32) {
    %c0_i32 = arith.constant 0 : i32
    %c0_i32_0 = arith.constant 0 : i32
    %c0_i32_1 = arith.constant 0 : i32
    return %arg0, %c0_i32, %c0_i32_0 : i32, i32, i32
  }
  func.func @transform_1(%arg0: i32) -> (i32, i32, i32) {
    %c0_i32 = arith.constant 0 : i32
    %c0_i32_0 = arith.constant 0 : i32
    %c0_i32_1 = arith.constant 0 : i32
    return %arg0, %c0_i32, %c0_i32_0 : i32, i32, i32
  }
  func.func @transform_2(%arg0: i32) -> (i32, i32, i32) {
    %c0_i32 = arith.constant 0 : i32
    %c0_i32_0 = arith.constant 0 : i32
    %c0_i32_1 = arith.constant 0 : i32
    return %arg0, %c0_i32, %c0_i32_0 : i32, i32, i32
  }
  func.func @transform_3(%arg0: i32) -> (i32, i32, i32) {
    %c0_i32 = arith.constant 0 : i32
    %c0_i32_0 = arith.constant 0 : i32
    %c0_i32_1 = arith.constant 0 : i32
    return %arg0, %c0_i32, %c0_i32_0 : i32, i32, i32
  }
  func.func @transform_4(%arg0: i32) -> (i32, i32, i32) {
    %c0_i32 = arith.constant 0 : i32
    %c0_i32_0 = arith.constant 0 : i32
    %c0_i32_1 = arith.constant 0 : i32
    return %arg0, %c0_i32, %c0_i32_0 : i32, i32, i32
  }
  func.func @transform_5(%arg0: i32) -> (i32, i32, i32) {
    %c0_i32 = arith.constant 0 : i32
    %c0_i32_0 = arith.constant 0 : i32
    %c0_i32_1 = arith.constant 0 : i32
    return %arg0, %c0_i32, %c0_i32_0 : i32, i32, i32
  }
  func.func @transform_6(%arg0: i32) -> (i32, i32, i32) {
    %c0_i32 = arith.constant 0 : i32
    %c0_i32_0 = arith.constant 0 : i32
    %c0_i32_1 = arith.constant 0 : i32
    return %arg0, %c0_i32, %c0_i32_0 : i32, i32, i32
  }
  func.func @transform_7(%arg0: i32) -> (i32, i32, i32) {
    %c0_i32 = arith.constant 0 : i32
    %c0_i32_0 = arith.constant 0 : i32
    %c0_i32_1 = arith.constant 0 : i32
    return %arg0, %c0_i32, %c0_i32_0 : i32, i32, i32
  }
  func.func @transform_8(%arg0: i32) -> (i32, i32) {
    %c0_i32 = arith.constant 0 : i32
    %c0_i32_0 = arith.constant 0 : i32
    %c0_i32_1 = arith.constant 0 : i32
    return %c0_i32, %c0_i32_0 : i32, i32
  }
  func.func @transform_9(%arg0: i32) -> (i32, i32, i32, i32) {
    %c0_i32 = arith.constant 0 : i32
    %c0_i32_0 = arith.constant 0 : i32
    %c0_i32_1 = arith.constant 0 : i32
    %c0_i32_2 = arith.constant 0 : i32
    return %arg0, %c0_i32, %c0_i32_0, %c0_i32_1 : i32, i32, i32, i32
  }
}

module attributes {stable_mosaic.version = 11 : i64} {
  func.func @projection_kernel(%arg0: i32, %arg1: memref<2x4096xf32, #tpu.memory_space<vmem>>, %arg2: memref<4096x256xbf16, #tpu.memory_space<vmem>>, %arg3: memref<1x256xf32, #tpu.memory_space<vmem>>, %arg4: memref<256x64xf32, #tpu.memory_space<vmem>>, %arg5: memref<1x64xf32, #tpu.memory_space<vmem>>, %arg6: memref<64x2xf32, #tpu.memory_space<vmem>>, %arg7: memref<1x2xf32, #tpu.memory_space<vmem>>, %arg8: memref<2x2xf32, #tpu.memory_space<vmem>>) attributes {dimension_semantics = [#tpu.dimension_semantics<arbitrary>], iteration_bounds = array<i64: 1>, scalar_prefetch = 0 : i64, scratch_operands = 0 : i64, tpu.core_type = #tpu.core_type<tc>, window_params = [{pipeline_mode = #tpu.pipeline_mode<synchronous>, transform_indices = @transform_0, window_bounds = array<i64: 2, 4096>}, {pipeline_mode = #tpu.pipeline_mode<synchronous>, transform_indices = @transform_1, window_bounds = array<i64: 4096, 256>}, {pipeline_mode = #tpu.pipeline_mode<synchronous>, transform_indices = @transform_2, window_bounds = array<i64: 1, 256>}, {pipeline_mode = #tpu.pipeline_mode<synchronous>, transform_indices = @transform_3, window_bounds = array<i64: 256, 64>}, {pipeline_mode = #tpu.pipeline_mode<synchronous>, transform_indices = @transform_4, window_bounds = array<i64: 1, 64>}, {pipeline_mode = #tpu.pipeline_mode<synchronous>, transform_indices = @transform_5, window_bounds = array<i64: 64, 2>}, {pipeline_mode = #tpu.pipeline_mode<synchronous>, transform_indices = @transform_6, window_bounds = array<i64: 1, 2>}, {pipeline_mode = #tpu.pipeline_mode<synchronous>, transform_indices = @transform_7, window_bounds = array<i64: 2, 2>}]} {
    %c0 = arith.constant 0 : index
    %c0_0 = arith.constant 0 : index
    %0 = vector.load %arg1[%c0, %c0_0] : memref<2x4096xf32, #tpu.memory_space<vmem>>, vector<2x4096xf32>
    %1 = arith.truncf %0 : vector<2x4096xf32> to vector<2x4096xbf16>
    %c0_1 = arith.constant 0 : index
    %c0_2 = arith.constant 0 : index
    %2 = vector.load %arg2[%c0_1, %c0_2] : memref<4096x256xbf16, #tpu.memory_space<vmem>>, vector<4096x256xbf16>
    %cst = arith.constant dense<0.000000e+00> : vector<2x256xf32>
    %3 = tpu.matmul %1, %2, %cst {dimension_numbers = #tpu.dot_dimension_numbers<[1], [0], [0], [1], [0, 0, 1, 1], [], []>} : vector<2x4096xbf16>, vector<4096x256xbf16>, vector<2x256xf32> -> vector<2x256xf32>
    %c0_3 = arith.constant 0 : index
    %c0_4 = arith.constant 0 : index
    %4 = vector.load %arg3[%c0_3, %c0_4] : memref<1x256xf32, #tpu.memory_space<vmem>>, vector<1x256xf32>
    %5 = vector.broadcast %4 : vector<1x256xf32> to vector<2x256xf32>
    %6 = arith.addf %3, %5 : vector<2x256xf32>
    %cst_5 = arith.constant 0.000000e+00 : f32
    %7 = vector.broadcast %cst_5 : f32 to vector<2x256xf32>
    %8 = arith.maximumf %6, %7 : vector<2x256xf32>
    %c0_6 = arith.constant 0 : index
    %c0_7 = arith.constant 0 : index
    %9 = vector.load %arg4[%c0_6, %c0_7] : memref<256x64xf32, #tpu.memory_space<vmem>>, vector<256x64xf32>
    %cst_8 = arith.constant dense<0.000000e+00> : vector<2x64xf32>
    %10 = tpu.matmul %8, %9, %cst_8 {dimension_numbers = #tpu.dot_dimension_numbers<[1], [0], [0], [1], [0, 0, 1, 1], [], []>} : vector<2x256xf32>, vector<256x64xf32>, vector<2x64xf32> -> vector<2x64xf32>
    %c0_9 = arith.constant 0 : index
    %c0_10 = arith.constant 0 : index
    %11 = vector.load %arg5[%c0_9, %c0_10] : memref<1x64xf32, #tpu.memory_space<vmem>>, vector<1x64xf32>
    %12 = vector.broadcast %11 : vector<1x64xf32> to vector<2x64xf32>
    %13 = arith.addf %10, %12 : vector<2x64xf32>
    %cst_11 = arith.constant 0.000000e+00 : f32
    %14 = vector.broadcast %cst_11 : f32 to vector<2x64xf32>
    %15 = arith.maximumf %13, %14 : vector<2x64xf32>
    %c0_12 = arith.constant 0 : index
    %c0_13 = arith.constant 0 : index
    %16 = vector.load %arg6[%c0_12, %c0_13] : memref<64x2xf32, #tpu.memory_space<vmem>>, vector<64x2xf32>
    %cst_14 = arith.constant dense<0.000000e+00> : vector<2x2xf32>
    %17 = tpu.matmul %15, %16, %cst_14 {dimension_numbers = #tpu.dot_dimension_numbers<[1], [0], [0], [1], [0, 0, 1, 1], [], []>} : vector<2x64xf32>, vector<64x2xf32>, vector<2x2xf32> -> vector<2x2xf32>
    %c0_15 = arith.constant 0 : index
    %c0_16 = arith.constant 0 : index
    %18 = vector.load %arg7[%c0_15, %c0_16] : memref<1x2xf32, #tpu.memory_space<vmem>>, vector<1x2xf32>
    %19 = vector.broadcast %18 : vector<1x2xf32> to vector<2x2xf32>
    %20 = arith.addf %17, %19 : vector<2x2xf32>
    %c0_17 = arith.constant 0 : index
    %c0_18 = arith.constant 0 : index
    %21 = vector.load %arg8[%c0_17, %c0_18] : memref<2x2xf32, #tpu.memory_space<vmem>>, vector<2x2xf32>
    tpu.vector_store %arg8[%c0_17, %c0_18], %20 {strides = array<i32>} : memref<2x2xf32, #tpu.memory_space<vmem>>, vector<2x2xf32>,
    return
  }
  func.func @transform_0(%arg0: i32) -> (i32, i32) {
    %c0_i32 = arith.constant 0 : i32
    %c0_i32_0 = arith.constant 0 : i32
    %c0_i32_1 = arith.constant 0 : i32
    return %c0_i32, %c0_i32_0 : i32, i32
  }
  func.func @transform_1(%arg0: i32) -> (i32, i32) {
    %c0_i32 = arith.constant 0 : i32
    %c0_i32_0 = arith.constant 0 : i32
    %c0_i32_1 = arith.constant 0 : i32
    return %c0_i32, %c0_i32_0 : i32, i32
  }
  func.func @transform_2(%arg0: i32) -> (i32, i32) {
    %c0_i32 = arith.constant 0 : i32
    %c0_i32_0 = arith.constant 0 : i32
    %c0_i32_1 = arith.constant 0 : i32
    return %c0_i32, %c0_i32_0 : i32, i32
  }
  func.func @transform_3(%arg0: i32) -> (i32, i32) {
    %c0_i32 = arith.constant 0 : i32
    %c0_i32_0 = arith.constant 0 : i32
    %c0_i32_1 = arith.constant 0 : i32
    return %c0_i32, %c0_i32_0 : i32, i32
  }
  func.func @transform_4(%arg0: i32) -> (i32, i32) {
    %c0_i32 = arith.constant 0 : i32
    %c0_i32_0 = arith.constant 0 : i32
    %c0_i32_1 = arith.constant 0 : i32
    return %c0_i32, %c0_i32_0 : i32, i32
  }
  func.func @transform_5(%arg0: i32) -> (i32, i32) {
    %c0_i32 = arith.constant 0 : i32
    %c0_i32_0 = arith.constant 0 : i32
    %c0_i32_1 = arith.constant 0 : i32
    return %c0_i32, %c0_i32_0 : i32, i32
  }
  func.func @transform_6(%arg0: i32) -> (i32, i32) {
    %c0_i32 = arith.constant 0 : i32
    %c0_i32_0 = arith.constant 0 : i32
    %c0_i32_1 = arith.constant 0 : i32
    return %c0_i32, %c0_i32_0 : i32, i32
  }
  func.func @transform_7(%arg0: i32) -> (i32, i32) {
    %c0_i32 = arith.constant 0 : i32
    %c0_i32_0 = arith.constant 0 : i32
    %c0_i32_1 = arith.constant 0 : i32
    return %c0_i32, %c0_i32_0 : i32, i32
  }
}

</mosaic_0001>

<llo_original>
// kernel: transformer_forward.2
$region0: #{transformer_forward.2}
  #allocation0 [shape = 'u32[]', space=smem, size = 0x4, offset = 0x4, fixed_abs, tag = 'smem constant byte address 0x4 - core index']
  #allocation1 [shape = 'u32[144,128]{1,0:T(1,128)}', space=vmem, size = 0x12000, scoped, tag = 'internal scratch']
  #allocation2 [shape = 'f32[2,128,64]{2,1,0:T(8,128)}', space=vmem, size = 0x20000, scoped, tag = 'scratch operand']
  #allocation3 [shape = 'f32[128,64]{1,0:T(8,128)}', space=vmem, size = 0x10000, scoped, tag = 'scratch operand']
  %s0 = inlined_call_operand.vmem [shape: f32[3,128,64], index: 0, kind: input, shape index: {}]
  %s1 = inlined_call_operand.vmem [shape: f32[3,2,64], index: 1, kind: input, shape index: {}]
  %s2 = inlined_call_operand.hbm [shape: f32[3,64,64], index: 2, kind: input, shape index: {}]
  %s3 = inlined_call_operand.hbm [shape: f32[3,64,64], index: 3, kind: input, shape index: {}]
  %s4 = inlined_call_operand.hbm [shape: f32[3,64,64], index: 4, kind: input, shape index: {}]
  %s5 = inlined_call_operand.hbm [shape: f32[3,64,64], index: 5, kind: input, shape index: {}]
  %s6 = inlined_call_operand.vmem [shape: bf16[3,64,512], index: 6, kind: input, shape index: {}]
  %s7 = inlined_call_operand.vmem [shape: bf16[3,512,64], index: 7, kind: input, shape index: {}]
  %s8 = inlined_call_operand.vmem [shape: f32[128,64], index: 8, kind: output, shape index: {0}]
  %s9 = inlined_call_operand.vmem [shape: f32[3,2,64,64], index: 9, kind: output, shape index: {1}]
  %10 = xla_tuple %s8, %s9
  %s11 = sld [smem:[#allocation0]]
  $region97: #{transformer_forward.2} parent=0
    _
  %s13 = ssub.s32 1, %s11
  %s14 = scalar_select 0, %s13, %s11
  $region1: #{transformer_forward.2} parent=0
    #allocation4 [shape = 'u8[65536]{0}', space=vmem, size = 0x10000, scoped, tag = 'input window, operand 2']
    #allocation5 [shape = 's32[2]{0}', space=sflag, size = 0x8, scoped, tag = 'scoped memory for transformer_forward.2']
    #allocation6 [shape = 'u8[65536]{0}', space=vmem, size = 0x10000, scoped, tag = 'input window, operand 3']
    #allocation7 [shape = 's32[2]{0}', space=sflag, size = 0x8, scoped, tag = 'scoped memory for transformer_forward.2']
    #allocation8 [shape = 'u8[65536]{0}', space=vmem, size = 0x10000, scoped, tag = 'input window, operand 4']
    #allocation9 [shape = 'u8[65536]{0}', space=vmem, size = 0x10000, scoped, tag = 'input window, operand 5']
    #allocation10 [shape = 's32[2]{0}', space=sflag, size = 0x8, scoped, tag = 'scoped memory for transformer_forward.2']
    %15 = vsyncpa [#allocation5], 0
    %s16 = scalar_lea.sflag [#allocation5], 1
    %17 = vsyncpa %s16, 0
    %18 = vsyncpa [#allocation7], 0
    %s19 = scalar_lea.sflag [#allocation7], 1
    %20 = vsyncpa %s19, 0
    %21 = vsyncpa [#allocation10], 0
    %s22 = scalar_lea.sflag [#allocation10], 1
    %23 = vsyncpa %s22, 0
    loop: start=0, step=1, limit=5
    $region2: #{transformer_forward.2} parent=1 // loop_pre_header
      _
    $region3: #{transformer_forward.2} parent=1 // loop_header
      %s25 = sphi 0, %s29
      %p26 = scmp.ge.s32.totalorder %s25, 5
      %s35 = sphi 0, %s37
      %s38 = sphi 0, %s35
      %s39 = sphi 0, %s38
      %s55 = sphi 0, %s39
      %s61 = sphi 0, %s63
      %s64 = sphi 0, %s61
      %s65 = sphi 0, %s64
      %s81 = sphi 0, %s65
      %s87 = sphi 0, %s89
      %s90 = sphi 0, %s87
      %s91 = sphi 0, %s90
      %s107 = sphi 0, %s91
      %s113 = sphi 0, %s115
      %s116 = sphi 0, %s113
      %s117 = sphi 0, %s116
      %s133 = sphi 0, %s117
      %s139 = sphi 0, %s141
      %s142 = sphi 0, %s139
      %s143 = sphi 0, %s142
      %s159 = sphi 0, %s143
      %s165 = sphi 0, %s167
      %s168 = sphi 0, %s165
      %s169 = sphi 0, %s168
      %s185 = sphi 0, %s169
      %s191 = sphi 0, %s193
      %s194 = sphi 0, %s191
      %s195 = sphi 0, %s194
      %s211 = sphi 0, %s195
      %s217 = sphi 0, %s219
      %s220 = sphi 0, %s217
      %s221 = sphi 0, %s220
      %s237 = sphi 0, %s221
      %s241 = sphi 0, %s241
      %s243 = sphi 0, %s241
      %s244 = sphi 0, %s243
      %s258 = sphi 0, %s244
      %s264 = sphi 0, %s266
      %s267 = sphi 0, %s264
      %s268 = sphi 0, %s267
      %s284 = sphi 0, %s268
    $region4: #{transformer_forward.2} parent=1 // loop_header_branch
      %28 = sbr.rel (%p26) target = $region8
    $region5: #{transformer_forward.2} parent=1 // loop_body
      %s30 = ssub.s32 %s25, 1
      %s31 = ssub.s32 %s25, 2
      %s32 = sadd.s32 %s25, 1
      %s33 = ssub.s32 %s25, %s32
      %p34 = scmp.eq.s32.totalorder %s33, 0
      %s36 = sadd.s32 %s35, 1
      %s37 = scalar_select %p34, %s35, %s36
      %p40 = pneg %p34
      %p41 = scmp.eq.s32.totalorder %s25, 2
      %p42 = por %p40, %p41
      %p43 = scmp.ne.s32.totalorder %s35, %s38
      %p44 = scmp.eq.s32.totalorder %s25, 0
      %p45 = por %p43, %p44
      %p46 = scmp.ne.s32.totalorder %s35, %s38
      %p47 = scmp.eq.s32.totalorder %s30, 2
      %p48 = por %p46, %p47
      %p49 = scmp.ne.s32.totalorder %s38, %s39
      %p50 = scmp.eq.s32.totalorder %s30, 0
      %p51 = por %p49, %p50
      %p52 = scmp.ne.s32.totalorder %s38, %s39
      %p53 = scmp.eq.s32.totalorder %s31, 2
      %p54 = por %p52, %p53
      %p56 = scmp.ne.s32.totalorder %s39, %s55
      %p57 = scmp.eq.s32.totalorder %s31, 0
      %p58 = por %p56, %p57
      %s59 = ssub.s32 %s25, %s32
      %p60 = scmp.eq.s32.totalorder %s59, 0
      %s62 = sadd.s32 %s61, 1
      %s63 = scalar_select %p60, %s61, %s62
      %p66 = pneg %p60
      %p67 = scmp.eq.s32.totalorder %s25, 2
      %p68 = por %p66, %p67
      %p69 = scmp.ne.s32.totalorder %s61, %s64
      %p70 = scmp.eq.s32.totalorder %s25, 0
      %p71 = por %p69, %p70
      %p72 = scmp.ne.s32.totalorder %s61, %s64
      %p73 = scmp.eq.s32.totalorder %s30, 2
      %p74 = por %p72, %p73
      %p75 = scmp.ne.s32.totalorder %s64, %s65
      %p76 = scmp.eq.s32.totalorder %s30, 0
      %p77 = por %p75, %p76
      %p78 = scmp.ne.s32.totalorder %s64, %s65
      %p79 = scmp.eq.s32.totalorder %s31, 2
      %p80 = por %p78, %p79
      %p82 = scmp.ne.s32.totalorder %s65, %s81
      %p83 = scmp.eq.s32.totalorder %s31, 0
      %p84 = por %p82, %p83
      %s85 = ssub.s32 %s25, %s32
      %p86 = scmp.eq.s32.totalorder %s85, 0
      %s88 = sadd.s32 %s87, 1
      %s89 = scalar_select %p86, %s87, %s88
      %p92 = pneg %p86
      %p93 = scmp.eq.s32.totalorder %s25, 2
      %p94 = por %p92, %p93
      %p95 = scmp.ne.s32.totalorder %s87, %s90
      %p96 = scmp.eq.s32.totalorder %s25, 0
      %p97 = por %p95, %p96
      %p98 = scmp.ne.s32.totalorder %s87, %s90
      %p99 = scmp.eq.s32.totalorder %s30, 2
      %p100 = por %p98, %p99
      %p101 = scmp.ne.s32.totalorder %s90, %s91
      %p102 = scmp.eq.s32.totalorder %s30, 0
      %p103 = por %p101, %p102
      %p104 = scmp.ne.s32.totalorder %s90, %s91
      %p105 = scmp.eq.s32.totalorder %s31, 2
      %p106 = por %p104, %p105
      %p108 = scmp.ne.s32.totalorder %s91, %s107
      %p109 = scmp.eq.s32.totalorder %s31, 0
      %p110 = por %p108, %p109
      %s111 = ssub.s32 %s25, %s32
      %p112 = scmp.eq.s32.totalorder %s111, 0
      %s114 = sadd.s32 %s113, 1
      %s115 = scalar_select %p112, %s113, %s114
      %p118 = pneg %p112
      %p119 = scmp.eq.s32.totalorder %s25, 2
      %p120 = por %p118, %p119
      %p121 = scmp.ne.s32.totalorder %s113, %s116
      %p122 = scmp.eq.s32.totalorder %s25, 0
      %p123 = por %p121, %p122
      %p124 = scmp.ne.s32.totalorder %s113, %s116
      %p125 = scmp.eq.s32.totalorder %s30, 2
      %p126 = por %p124, %p125
      %p127 = scmp.ne.s32.totalorder %s116, %s117
      %p128 = scmp.eq.s32.totalorder %s30, 0
      %p129 = por %p127, %p128
      %p130 = scmp.ne.s32.totalorder %s116, %s117
      %p131 = scmp.eq.s32.totalorder %s31, 2
      %p132 = por %p130, %p131
      %p134 = scmp.ne.s32.totalorder %s117, %s133
      %p135 = scmp.eq.s32.totalorder %s31, 0
      %p136 = por %p134, %p135
      %s137 = ssub.s32 %s25, %s32
      %p138 = scmp.eq.s32.totalorder %s137, 0
      %s140 = sadd.s32 %s139, 1
      %s141 = scalar_select %p138, %s139, %s140
      %p144 = pneg %p138
      %p145 = scmp.eq.s32.totalorder %s25, 2
      %p146 = por %p144, %p145
      %p147 = scmp.ne.s32.totalorder %s139, %s142
      %p148 = scmp.eq.s32.totalorder %s25, 0
      %p149 = por %p147, %p148
      %p150 = scmp.ne.s32.totalorder %s139, %s142
      %p151 = scmp.eq.s32.totalorder %s30, 2
      %p152 = por %p150, %p151
      %p153 = scmp.ne.s32.totalorder %s142, %s143
      %p154 = scmp.eq.s32.totalorder %s30, 0
      %p155 = por %p153, %p154
      %p156 = scmp.ne.s32.totalorder %s142, %s143
      %p157 = scmp.eq.s32.totalorder %s31, 2
      %p158 = por %p156, %p157
      %p160 = scmp.ne.s32.totalorder %s143, %s159
      %p161 = scmp.eq.s32.totalorder %s31, 0
      %p162 = por %p160, %p161
      %s163 = ssub.s32 %s25, %s32
      %p164 = scmp.eq.s32.totalorder %s163, 0
      %s166 = sadd.s32 %s165, 1
      %s167 = scalar_select %p164, %s165, %s166
      %p170 = pneg %p164
      %p171 = scmp.eq.s32.totalorder %s25, 2
      %p172 = por %p170, %p171
      %p173 = scmp.ne.s32.totalorder %s165, %s168
      %p174 = scmp.eq.s32.totalorder %s25, 0
      %p175 = por %p173, %p174
      %p176 = scmp.ne.s32.totalorder %s165, %s168
      %p177 = scmp.eq.s32.totalorder %s30, 2
      %p178 = por %p176, %p177
      %p179 = scmp.ne.s32.totalorder %s168, %s169
      %p180 = scmp.eq.s32.totalorder %s30, 0
      %p181 = por %p179, %p180
      %p182 = scmp.ne.s32.totalorder %s168, %s169
      %p183 = scmp.eq.s32.totalorder %s31, 2
      %p184 = por %p182, %p183
      %p186 = scmp.ne.s32.totalorder %s169, %s185
      %p187 = scmp.eq.s32.totalorder %s31, 0
      %p188 = por %p186, %p187
      %s189 = ssub.s32 %s25, %s32
      %p190 = scmp.eq.s32.totalorder %s189, 0
      %s192 = sadd.s32 %s191, 1
      %s193 = scalar_select %p190, %s191, %s192
      %p196 = pneg %p190
      %p197 = scmp.eq.s32.totalorder %s25, 2
      %p198 = por %p196, %p197
      %p199 = scmp.ne.s32.totalorder %s191, %s194
      %p200 = scmp.eq.s32.totalorder %s25, 0
      %p201 = por %p199, %p200
      %p202 = scmp.ne.s32.totalorder %s191, %s194
      %p203 = scmp.eq.s32.totalorder %s30, 2
      %p204 = por %p202, %p203
      %p205 = scmp.ne.s32.totalorder %s194, %s195
      %p206 = scmp.eq.s32.totalorder %s30, 0
      %p207 = por %p205, %p206
      %p208 = scmp.ne.s32.totalorder %s194, %s195
      %p209 = scmp.eq.s32.totalorder %s31, 2
      %p210 = por %p208, %p209
      %p212 = scmp.ne.s32.totalorder %s195, %s211
      %p213 = scmp.eq.s32.totalorder %s31, 0
      %p214 = por %p212, %p213
      %s215 = ssub.s32 %s25, %s32
      %p216 = scmp.eq.s32.totalorder %s215, 0
      %s218 = sadd.s32 %s217, 1
      %s219 = scalar_select %p216, %s217, %s218
      %p222 = pneg %p216
      %p223 = scmp.eq.s32.totalorder %s25, 2
      %p224 = por %p222, %p223
      %p225 = scmp.ne.s32.totalorder %s217, %s220
      %p226 = scmp.eq.s32.totalorder %s25, 0
      %p227 = por %p225, %p226
      %p228 = scmp.ne.s32.totalorder %s217, %s220
      %p229 = scmp.eq.s32.totalorder %s30, 2
      %p230 = por %p228, %p229
      %p231 = scmp.ne.s32.totalorder %s220, %s221
      %p232 = scmp.eq.s32.totalorder %s30, 0
      %p233 = por %p231, %p232
      %p234 = scmp.ne.s32.totalorder %s220, %s221
      %p235 = scmp.eq.s32.totalorder %s31, 2
      %p236 = por %p234, %p235
      %p238 = scmp.ne.s32.totalorder %s221, %s237
      %p239 = scmp.eq.s32.totalorder %s31, 0
      %p240 = por %p238, %p239
      %s242 = sadd.s32 %s241, 1
      %p245 = scmp.eq.s32.totalorder %s25, 2
      %p246 = scmp.ne.s32.totalorder %s241, %s243
      %p247 = scmp.eq.s32.totalorder %s25, 0
      %p248 = por %p246, %p247
      %p249 = scmp.ne.s32.totalorder %s241, %s243
      %p250 = scmp.eq.s32.totalorder %s30, 2
      %p251 = por %p249, %p250
      %p252 = scmp.ne.s32.totalorder %s243, %s244
      %p253 = scmp.eq.s32.totalorder %s30, 0
      %p254 = por %p252, %p253
      %p255 = scmp.ne.s32.totalorder %s243, %s244
      %p256 = scmp.eq.s32.totalorder %s31, 2
      %p257 = por %p255, %p256
      %p259 = scmp.ne.s32.totalorder %s244, %s258
      %p260 = scmp.eq.s32.totalorder %s31, 0
      %p261 = por %p259, %p260
      %s262 = ssub.s32 %s25, %s32
      %p263 = scmp.eq.s32.totalorder %s262, 0
      %s265 = sadd.s32 %s264, 1
      %s266 = scalar_select %p263, %s264, %s265
      %p269 = pneg %p263
      %p270 = scmp.eq.s32.totalorder %s25, 2
      %p271 = por %p269, %p270
      %p272 = scmp.ne.s32.totalorder %s264, %s267
      %p273 = scmp.eq.s32.totalorder %s25, 0
      %p274 = por %p272, %p273
      %p275 = scmp.ne.s32.totalorder %s264, %s267
      %p276 = scmp.eq.s32.totalorder %s30, 2
      %p277 = por %p275, %p276
      %p278 = scmp.ne.s32.totalorder %s267, %s268
      %p279 = scmp.eq.s32.totalorder %s30, 0
      %p280 = por %p278, %p279
      %p281 = scmp.ne.s32.totalorder %s267, %s268
      %p282 = scmp.eq.s32.totalorder %s31, 2
      %p283 = por %p281, %p282
      %p285 = scmp.ne.s32.totalorder %s268, %s284
      %p286 = scmp.eq.s32.totalorder %s31, 0
      %p287 = por %p285, %p286
      %p288 = scmp.le.s32.totalorder 1, %s25
      %p289 = scmp.lt.s32.totalorder %s25, 4
      %p290 = pnand %p288, %p289
      %p291 = pneg %p290
      // Predicated region
      $region9: #{transformer_forward.2} parent=5 // pred_check
        _
      $region10: #{transformer_forward.2} parent=5 // pred_check_branch
        %293 = sbr.rel (%p290) target = $region12
      $region11: #{transformer_forward.2} parent=5 // pred_region
        %s294 = ssub.s32 %s25, 1
      $region12: #{transformer_forward.2} parent=5 // pred_fallthru
        _
      %p295 = scmp.lt.s32.totalorder %s25, 3
      // Predicated region
      $region13: #{transformer_forward.2} parent=5 // pred_check
        %p296 = pneg %p295
      $region14: #{transformer_forward.2} parent=5 // pred_check_branch
        %298 = sbr.rel (%p296) target = $region16
      $region15: #{transformer_forward.2} parent=5 // pred_region
        // Predicated region
        $region17: #{transformer_forward.2} parent=15 // pred_check
          %p299 = pneg %p45
        $region18: #{transformer_forward.2} parent=15 // pred_check_branch
          %301 = sbr.rel (%p299) target = $region20
        $region19: #{transformer_forward.2} parent=15 // pred_region
          %p302 = scmp.lt.s32.totalorder %s25, 2
          %s303 = scalar_select %p302, %s25, 2
          %s304 = smul.addr %s303, 16
          %s305 = smul.addr %s304, 8
          %s306 = scalar_lea.vmem %s0, %s305
        $region20: #{transformer_forward.2} parent=15 // pred_fallthru
          _
        // Predicated region
        $region21: #{transformer_forward.2} parent=15 // pred_check
          %p307 = pneg %p71
        $region22: #{transformer_forward.2} parent=15 // pred_check_branch
          %309 = sbr.rel (%p307) target = $region24
        $region23: #{transformer_forward.2} parent=15 // pred_region
          %p310 = scmp.lt.s32.totalorder %s25, 2
          %s311 = scalar_select %p310, %s25, 2
          %s312 = smul.addr %s311, 2
          %s313 = scalar_lea.vmem %s1, %s312
        $region24: #{transformer_forward.2} parent=15 // pred_fallthru
          _
        // Predicated region
        $region25: #{transformer_forward.2} parent=15 // pred_check
          %p314 = pneg %p97
        $region26: #{transformer_forward.2} parent=15 // pred_check_branch
          %316 = sbr.rel (%p314) target = $region28
        $region27: #{transformer_forward.2} parent=15 // pred_region
          %s317 = sand.u32 %s87, 1
          %s318 = scalar_lea.sflag [#allocation5], %s317
          %s319 = sand.u32 %s87, 1
          %s320 = smul.addr %s319, 64
          %s321 = scalar_lea.vmem [#allocation4], %s320
          %s323 = ssub.s32 1024, 1024
          %324 = vsyncadd %s318, %s323
          %s325 = smul.addr %s25, 8
          %s326 = smul.addr %s325, 128
          %s327 = scalar_lea.hbm %s2, %s326
          %s328 = sshll.u32 %s321, 4
          %s329 = int_to_ptr.vmem [resolvable:$true] %s328
          %334 = dma.hbm_to_vmem [thread:$0]  %s327, 1024, %s329, %s318, 128, 128, 8
        $region28: #{transformer_forward.2} parent=15 // pred_fallthru
          _
        // Predicated region
        $region29: #{transformer_forward.2} parent=15 // pred_check
          %p335 = pneg %p123
        $region30: #{transformer_forward.2} parent=15 // pred_check_branch
          %337 = sbr.rel (%p335) target = $region32
        $region31: #{transformer_forward.2} parent=15 // pred_region
          %s338 = sand.u32 %s25, 1
          %s339 = scalar_lea.sflag [#allocation7], %s338
          %s340 = sand.u32 %s113, 1
          %s341 = smul.addr %s340, 64
          %s342 = scalar_lea.vmem [#allocation6], %s341
          %s344 = ssub.s32 1024, 1024
          %345 = vsyncadd %s339, %s344
          %s346 = smul.addr %s25, 8
          %s347 = smul.addr %s346, 128
          %s348 = scalar_lea.hbm %s3, %s347
          %s349 = sshll.u32 %s342, 4
          %s350 = int_to_ptr.vmem [resolvable:$true] %s349
          %355 = dma.hbm_to_vmem [thread:$0]  %s348, 1024, %s350, %s339, 128, 128, 8
        $region32: #{transformer_forward.2} parent=15 // pred_fallthru
          _
        // Predicated region
        $region33: #{transformer_forward.2} parent=15 // pred_check
          %p356 = pneg %p149
        $region34: #{transformer_forward.2} parent=15 // pred_check_branch
          %358 = sbr.rel (%p356) target = $region36
        $region35: #{transformer_forward.2} parent=15 // pred_region
          %s359 = sand.u32 %s25, 1
          %s360 = scalar_lea.sflag [#allocation7], %s359
          %s361 = sand.u32 %s139, 1
          %s362 = smul.addr %s361, 64
          %s363 = scalar_lea.vmem [#allocation8], %s362
          %s365 = ssub.s32 1024, 1024
          %366 = vsyncadd %s360, %s365
          %s367 = smul.addr %s25, 8
          %s368 = smul.addr %s367, 128
          %s369 = scalar_lea.hbm %s4, %s368
          %s370 = sshll.u32 %s363, 4
          %s371 = int_to_ptr.vmem [resolvable:$true] %s370
          %376 = dma.hbm_to_vmem [thread:$0]  %s369, 1024, %s371, %s360, 128, 128, 8
        $region36: #{transformer_forward.2} parent=15 // pred_fallthru
          _
        // Predicated region
        $region37: #{transformer_forward.2} parent=15 // pred_check
          %p377 = pneg %p175
        $region38: #{transformer_forward.2} parent=15 // pred_check_branch
          %379 = sbr.rel (%p377) target = $region40
        $region39: #{transformer_forward.2} parent=15 // pred_region
          %s380 = sand.u32 %s165, 1
          %s381 = scalar_lea.sflag [#allocation10], %s380
          %s382 = sand.u32 %s165, 1
          %s383 = smul.addr %s382, 64
          %s384 = scalar_lea.vmem [#allocation9], %s383
          %s386 = ssub.s32 1024, 1024
          %387 = vsyncadd %s381, %s386
          %s388 = smul.addr %s25, 8
          %s389 = smul.addr %s388, 128
          %s390 = scalar_lea.hbm %s5, %s389
          %s391 = sshll.u32 %s384, 4
          %s392 = int_to_ptr.vmem [resolvable:$true] %s391
          %397 = dma.hbm_to_vmem [thread:$0]  %s390, 1024, %s392, %s381, 128, 128, 8
        $region40: #{transformer_forward.2} parent=15 // pred_fallthru
          _
        // Predicated region
        $region41: #{transformer_forward.2} parent=15 // pred_check
          %p398 = pneg %p201
        $region42: #{transformer_forward.2} parent=15 // pred_check_branch
          %400 = sbr.rel (%p398) target = $region44
        $region43: #{transformer_forward.2} parent=15 // pred_region
          %p401 = scmp.lt.s32.totalorder %s25, 2
          %s402 = scalar_select %p401, %s25, 2
          %s403 = smul.addr %s402, 32
          %s404 = smul.addr %s403, 4
          %s405 = scalar_lea.vmem %s6, %s404
        $region44: #{transformer_forward.2} parent=15 // pred_fallthru
          _
        // Predicated region
        $region45: #{transformer_forward.2} parent=15 // pred_check
          %p406 = pneg %p227
        $region46: #{transformer_forward.2} parent=15 // pred_check_branch
          %408 = sbr.rel (%p406) target = $region48
        $region47: #{transformer_forward.2} parent=15 // pred_region
          %p409 = scmp.lt.s32.totalorder %s25, 2
          %s410 = scalar_select %p409, %s25, 2
          %s411 = smul.addr %s410, 64
          %s412 = smul.addr %s411, 4
          %s413 = scalar_lea.vmem %s7, %s412
        $region48: #{transformer_forward.2} parent=15 // pred_fallthru
          _
      $region16: #{transformer_forward.2} parent=5 // pred_fallthru
        _
      %p414 = scmp.le.s32.totalorder 1, %s25
      %p415 = scmp.lt.s32.totalorder %s25, 4
      %p416 = pnand %p414, %p415
      %p417 = pneg %p416
      // Predicated region
      $region49: #{transformer_forward.2} parent=5 // pred_check
        _
      $region50: #{transformer_forward.2} parent=5 // pred_check_branch
        %419 = sbr.rel (%p416) target = $region52
      $region51: #{transformer_forward.2} parent=5 // pred_region
        %s420 = ssub.s32 %s25, 1
        %s421 = sand.u32 %s90, 1
        %s422 = scalar_lea.sflag [#allocation5], %s421
        %s423 = sand.u32 %s90, 1
        %s424 = smul.addr %s423, 64
        %s425 = scalar_lea.vmem [#allocation4], %s424
        // Predicated region
        $region53: #{transformer_forward.2} parent=51 // pred_check
          %p426 = pneg %p103
        $region54: #{transformer_forward.2} parent=51 // pred_check_branch
          %428 = sbr.rel (%p426) target = $region56
        $region55: #{transformer_forward.2} parent=51 // pred_region
          %429 = dma.done %s422, 1024
        $region56: #{transformer_forward.2} parent=51 // pred_fallthru
          _
        %s430 = sand.u32 %s30, 1
        %s431 = scalar_lea.sflag [#allocation7], %s430
        %s432 = sand.u32 %s116, 1
        %s433 = smul.addr %s432, 64
        %s434 = scalar_lea.vmem [#allocation6], %s433
        // Predicated region
        $region57: #{transformer_forward.2} parent=51 // pred_check
          %p435 = pneg %p129
        $region58: #{transformer_forward.2} parent=51 // pred_check_branch
          %437 = sbr.rel (%p435) target = $region60
        $region59: #{transformer_forward.2} parent=51 // pred_region
          %438 = dma.done %s431, 1024
        $region60: #{transformer_forward.2} parent=51 // pred_fallthru
          _
        %s439 = sand.u32 %s30, 1
        %s440 = scalar_lea.sflag [#allocation7], %s439
        %s441 = sand.u32 %s142, 1
        %s442 = smul.addr %s441, 64
        %s443 = scalar_lea.vmem [#allocation8], %s442
        // Predicated region
        $region61: #{transformer_forward.2} parent=51 // pred_check
          %p444 = pneg %p155
        $region62: #{transformer_forward.2} parent=51 // pred_check_branch
          %446 = sbr.rel (%p444) target = $region64
        $region63: #{transformer_forward.2} parent=51 // pred_region
          %447 = dma.done %s440, 1024
        $region64: #{transformer_forward.2} parent=51 // pred_fallthru
          _
        %s448 = sand.u32 %s168, 1
        %s449 = scalar_lea.sflag [#allocation10], %s448
        %s450 = sand.u32 %s168, 1
        %s451 = smul.addr %s450, 64
        %s452 = scalar_lea.vmem [#allocation9], %s451
        // Predicated region
        $region65: #{transformer_forward.2} parent=51 // pred_check
          %p453 = pneg %p181
        $region66: #{transformer_forward.2} parent=51 // pred_check_branch
          %455 = sbr.rel (%p453) target = $region68
        $region67: #{transformer_forward.2} parent=51 // pred_region
          %456 = dma.done %s449, 1024
        $region68: #{transformer_forward.2} parent=51 // pred_fallthru
          _
        %p457 = scmp.lt.s32.totalorder %s30, 2
        %s458 = scalar_select %p457, %s30, 2
        %s459 = smul.addr %s458, 16
        %s460 = smul.addr %s459, 8
        %s461 = scalar_lea.vmem %s0, %s460
        %p462 = pneg %p51
        %p463 = pneg %p48
        %p464 = scmp.lt.s32.totalorder %s30, 2
        %s465 = scalar_select %p464, %s30, 2
        %s466 = smul.addr %s465, 2
        %s467 = scalar_lea.vmem %s1, %s466
        %p468 = pneg %p77
        %p469 = pneg %p74
        %s470 = sand.u32 %s90, 1
        %s471 = scalar_lea.sflag [#allocation5], %s470
        %s472 = sand.u32 %s90, 1
        %s473 = smul.addr %s472, 64
        %s474 = scalar_lea.vmem [#allocation4], %s473
        %p475 = pneg %p103
        %p476 = pneg %p100
        %s477 = sand.u32 %s30, 1
        %s478 = scalar_lea.sflag [#allocation7], %s477
        %s479 = sand.u32 %s116, 1
        %s480 = smul.addr %s479, 64
        %s481 = scalar_lea.vmem [#allocation6], %s480
        %p482 = pneg %p129
        %p483 = pneg %p126
        %s484 = sand.u32 %s30, 1
        %s485 = scalar_lea.sflag [#allocation7], %s484
        %s486 = sand.u32 %s142, 1
        %s487 = smul.addr %s486, 64
        %s488 = scalar_lea.vmem [#allocation8], %s487
        %p489 = pneg %p155
        %p490 = pneg %p152
        %s491 = sand.u32 %s168, 1
        %s492 = scalar_lea.sflag [#allocation10], %s491
        %s493 = sand.u32 %s168, 1
        %s494 = smul.addr %s493, 64
        %s495 = scalar_lea.vmem [#allocation9], %s494
        %p496 = pneg %p181
        %p497 = pneg %p178
        %p498 = scmp.lt.s32.totalorder %s30, 2
        %s499 = scalar_select %p498, %s30, 2
        %s500 = smul.addr %s499, 32
        %s501 = smul.addr %s500, 4
        %s502 = scalar_lea.vmem %s6, %s501
        %p503 = pneg %p207
        %p504 = pneg %p204
        %p505 = scmp.lt.s32.totalorder %s30, 2
        %s506 = scalar_select %p505, %s30, 2
        %s507 = smul.addr %s506, 64
        %s508 = smul.addr %s507, 4
        %s509 = scalar_lea.vmem %s7, %s508
        %p510 = pneg %p233
        %p511 = pneg %p230
        %p512 = pneg %p254
        %p513 = pneg %p251
        %p514 = pneg %p280
        %p515 = pneg %p277
        %p516 = scmp.lt.s32.totalorder %s30, 2
        %s517 = scalar_select %p516, %s30, 2
        %s518 = smul.addr %s517, 16
        %s519 = smul.addr %s518, 8
        %s520 = scalar_lea.vmem %s9, %s519
        %p521 = scmp.lt.s32.totalorder %s30, 2
        %s522 = scalar_select %p521, %s30, 2
        %s523 = smul.addr %s522, 16
        %s524 = smul.addr %s523, 8
        %s525 = scalar_lea.vmem %s0, %s524
        %p526 = scmp.lt.s32.totalorder %s30, 2
        %s527 = scalar_select %p526, %s30, 2
        %s528 = smul.addr %s527, 2
        %s529 = scalar_lea.vmem %s1, %s528
        %p530 = scmp.lt.s32.totalorder %s30, 2
        %s531 = scalar_select %p530, %s30, 2
        %s532 = smul.addr %s531, 32
        %s533 = smul.addr %s532, 4
        %s534 = scalar_lea.vmem %s6, %s533
        %p535 = scmp.lt.s32.totalorder %s30, 2
        %s536 = scalar_select %p535, %s30, 2
        %s537 = smul.addr %s536, 64
        %s538 = smul.addr %s537, 4
        %s539 = scalar_lea.vmem %s7, %s538
        %p540 = scmp.lt.s32.totalorder %s30, 2
        %s541 = scalar_select %p540, %s30, 2
        %s542 = smul.addr %s541, 16
        %s543 = smul.addr %s542, 8
        %s544 = scalar_lea.vmem %s9, %s543
        %v546 = vld [vmem:[%s525] sm:$0xff]
        %v547 = vld [vmem:[%s525 + $0x8] sm:$0xff]
        %v548 = vld [vmem:[%s525 + $0x10] sm:$0xff]
        %v549 = vld [vmem:[%s525 + $0x18] sm:$0xff]
        %v550 = vld [vmem:[%s525 + $0x20] sm:$0xff]
        %v551 = vld [vmem:[%s525 + $0x28] sm:$0xff]
        %v552 = vld [vmem:[%s525 + $0x30] sm:$0xff]
        %v553 = vld [vmem:[%s525 + $0x38] sm:$0xff]
        %v554 = vld [vmem:[%s525 + $0x40] sm:$0xff]
        %v555 = vld [vmem:[%s525 + $0x48] sm:$0xff]
        %v556 = vld [vmem:[%s525 + $0x50] sm:$0xff]
        %v557 = vld [vmem:[%s525 + $0x58] sm:$0xff]
        %v558 = vld [vmem:[%s525 + $0x60] sm:$0xff]
        %v559 = vld [vmem:[%s525 + $0x68] sm:$0xff]
        %v560 = vld [vmem:[%s525 + $0x70] sm:$0xff]
        %v561 = vld [vmem:[%s525 + $0x78] sm:$0xff]
        %vm562 = vcmask 523264
        %563 = vst.msk [vmem:[#allocation3] sm:$0xff] %vm562, %v546
        %564 = vst.msk [vmem:[#allocation3 + $0x8] sm:$0xff] %vm562, %v547
        %565 = vst.msk [vmem:[#allocation3 + $0x10] sm:$0xff] %vm562, %v548
        %566 = vst.msk [vmem:[#allocation3 + $0x18] sm:$0xff] %vm562, %v549
        %567 = vst.msk [vmem:[#allocation3 + $0x20] sm:$0xff] %vm562, %v550
        %568 = vst.msk [vmem:[#allocation3 + $0x28] sm:$0xff] %vm562, %v551
        %569 = vst.msk [vmem:[#allocation3 + $0x30] sm:$0xff] %vm562, %v552
        %570 = vst.msk [vmem:[#allocation3 + $0x38] sm:$0xff] %vm562, %v553
        %571 = vst.msk [vmem:[#allocation3 + $0x40] sm:$0xff] %vm562, %v554
        %572 = vst.msk [vmem:[#allocation3 + $0x48] sm:$0xff] %vm562, %v555
        %573 = vst.msk [vmem:[#allocation3 + $0x50] sm:$0xff] %vm562, %v556
        %574 = vst.msk [vmem:[#allocation3 + $0x58] sm:$0xff] %vm562, %v557
        %575 = vst.msk [vmem:[#allocation3 + $0x60] sm:$0xff] %vm562, %v558
        %576 = vst.msk [vmem:[#allocation3 + $0x68] sm:$0xff] %vm562, %v559
        %577 = vst.msk [vmem:[#allocation3 + $0x70] sm:$0xff] %vm562, %v560
        %578 = vst.msk [vmem:[#allocation3 + $0x78] sm:$0xff] %vm562, %v561
        %p579 = scmp.eq.s32.totalorder %s30, 2
        // Predicated region
        $region69: #{transformer_forward.2} parent=51 // pred_check
          %p580 = pneg %p579
        $region70: #{transformer_forward.2} parent=51 // pred_check_branch
          %582 = sbr.rel (%p580) target = $region72
        $region71: #{transformer_forward.2} parent=51 // pred_region
          %v583 = vld [vmem:[#allocation3] sm:$0xff]
          %v584 = vld [vmem:[#allocation3 + $0x8] sm:$0x7f]
          %v585 = vld [vmem:[#allocation2] sm:$0xff]
          %v586 = vld [vmem:[#allocation2 + $0x8] sm:$0x7f]
          %v587 = vadd.f32 %v583, %v585
          %v588 = vadd.f32 %v584, %v586
          %589 = vst.msk [vmem:[#allocation3] sm:$0xff] %vm562, %v587
          %vm590 = vcmask 522240
          %591 = vst.msk [vmem:[#allocation3 + $0x8] sm:$0x7f] %vm590, %v588
          %v592 = vld [vmem:[#allocation3 + $0xf] sm:$0xff]
          %v593 = vld [vmem:[#allocation3 + $0x17] sm:$0xff]
          %v594 = vld [vmem:[#allocation3 + $0x1f] sm:$0xff]
          %v595 = vld [vmem:[#allocation3 + $0x27] sm:$0xff]
          %v596 = vld [vmem:[#allocation3 + $0x2f] sm:$0x3]
          %s597 = scalar_lea.vmem [#allocation2], 128
          %v598 = vld [vmem:[%s597] sm:$0xff]
          %v599 = vld [vmem:[%s597 + $0x8] sm:$0xff]
          %v600 = vld [vmem:[%s597 + $0x10] sm:$0xff]
          %v601 = vld [vmem:[%s597 + $0x18] sm:$0xff]
          %v602 = vld [vmem:[%s597 + $0x20] sm:$0x3]
          %v603 = vadd.f32 %v592, %v598
          %v604 = vadd.f32 %v593, %v599
          %v605 = vadd.f32 %v594, %v600
          %v606 = vadd.f32 %v595, %v601
          %v607 = vadd.f32 %v596, %v602
          %608 = vst.msk [vmem:[#allocation3 + $0xf] sm:$0xff] %vm562, %v603
          %609 = vst.msk [vmem:[#allocation3 + $0x17] sm:$0xff] %vm562, %v604
          %610 = vst.msk [vmem:[#allocation3 + $0x1f] sm:$0xff] %vm562, %v605
          %611 = vst.msk [vmem:[#allocation3 + $0x27] sm:$0xff] %vm562, %v606
          %vm612 = vcmask 517120
          %613 = vst.msk [vmem:[#allocation3 + $0x2f] sm:$0x3] %vm612, %v607
          %v614 = vld [vmem:[#allocation3 + $0x40] sm:$0xff]
          %v615 = vld [vmem:[#allocation3 + $0x48] sm:$0x7f]
          %v616 = vld [vmem:[#allocation2 + $0x40] sm:$0xff]
          %v617 = vld [vmem:[#allocation2 + $0x48] sm:$0x7f]
          %v618 = vadd.f32 %v614, %v616
          %v619 = vadd.f32 %v615, %v617
          %620 = vst.msk [vmem:[#allocation3 + $0x40] sm:$0xff] %vm562, %v618
          %621 = vst.msk [vmem:[#allocation3 + $0x48] sm:$0x7f] %vm590, %v619
          %v622 = vld [vmem:[#allocation3 + $0x4f] sm:$0xff]
          %v623 = vld [vmem:[#allocation3 + $0x57] sm:$0xff]
          %v624 = vld [vmem:[#allocation3 + $0x5f] sm:$0xff]
          %v625 = vld [vmem:[#allocation3 + $0x67] sm:$0xff]
          %v626 = vld [vmem:[#allocation3 + $0x6f] sm:$0x3]
          %v627 = vld [vmem:[%s597 + $0x40] sm:$0xff]
          %v628 = vld [vmem:[%s597 + $0x48] sm:$0xff]
          %v629 = vld [vmem:[%s597 + $0x50] sm:$0xff]
          %v630 = vld [vmem:[%s597 + $0x58] sm:$0xff]
          %v631 = vld [vmem:[%s597 + $0x60] sm:$0x3]
          %v632 = vadd.f32 %v622, %v627
          %v633 = vadd.f32 %v623, %v628
          %v634 = vadd.f32 %v624, %v629
          %v635 = vadd.f32 %v625, %v630
          %v636 = vadd.f32 %v626, %v631
          %637 = vst.msk [vmem:[#allocation3 + $0x4f] sm:$0xff] %vm562, %v632
          %638 = vst.msk [vmem:[#allocation3 + $0x57] sm:$0xff] %vm562, %v633
          %639 = vst.msk [vmem:[#allocation3 + $0x5f] sm:$0xff] %vm562, %v634
          %640 = vst.msk [vmem:[#allocation3 + $0x67] sm:$0xff] %vm562, %v635
          %641 = vst.msk [vmem:[#allocation3 + $0x6f] sm:$0x3] %vm612, %v636
        $region72: #{transformer_forward.2} parent=51 // pred_fallthru
          _
        %v642 = vld [vmem:[#allocation3] sm:$0xff]
        %v643 = vld [vmem:[#allocation3 + $0x8] sm:$0xff]
        %v644 = vld [vmem:[#allocation3 + $0x10] sm:$0xff]
        %v645 = vld [vmem:[#allocation3 + $0x18] sm:$0xff]
        %v646 = vld [vmem:[#allocation3 + $0x20] sm:$0xff]
        %v647 = vld [vmem:[#allocation3 + $0x28] sm:$0xff]
        %v648 = vld [vmem:[#allocation3 + $0x30] sm:$0xff]
        %v649 = vld [vmem:[#allocation3 + $0x38] sm:$0xff]
        %v650 = vld [vmem:[#allocation3 + $0x40] sm:$0xff]
        %v651 = vld [vmem:[#allocation3 + $0x48] sm:$0xff]
        %v652 = vld [vmem:[#allocation3 + $0x50] sm:$0xff]
        %v653 = vld [vmem:[#allocation3 + $0x58] sm:$0xff]
        %v654 = vld [vmem:[#allocation3 + $0x60] sm:$0xff]
        %v655 = vld [vmem:[#allocation3 + $0x68] sm:$0xff]
        %v656 = vld [vmem:[#allocation3 + $0x70] sm:$0xff]
        %v657 = vld [vmem:[#allocation3 + $0x78] sm:$0xff]
        %v658 = vld [vmem:[%s529] sm:$0x3]
        %v659 = vld [vmem:[%s425] sm:$0xff]
        %v660 = vld [vmem:[%s425 + $0x8] sm:$0xff]
        %v661 = vld [vmem:[%s425 + $0x10] sm:$0xff]
        %v662 = vld [vmem:[%s425 + $0x18] sm:$0xff]
        %v663 = vld [vmem:[%s425 + $0x20] sm:$0xff]
        %v664 = vld [vmem:[%s425 + $0x28] sm:$0xff]
        %v665 = vld [vmem:[%s425 + $0x30] sm:$0xff]
        %v666 = vld [vmem:[%s425 + $0x38] sm:$0xff]
        %v668 = vsel %vm562, %v642, 0
        %v671 = vsel %vm562, %v643, 0
        %v674 = vsel %vm562, %v644, 0
        %v677 = vsel %vm562, %v645, 0
        %v680 = vsel %vm562, %v646, 0
        %v683 = vsel %vm562, %v647, 0
        %v686 = vsel %vm562, %v648, 0
        %v689 = vsel %vm562, %v649, 0
        %v692 = vsel %vm562, %v650, 0
        %v695 = vsel %vm562, %v651, 0
        %v698 = vsel %vm562, %v652, 0
        %v701 = vsel %vm562, %v653, 0
        %v704 = vsel %vm562, %v654, 0
        %v707 = vsel %vm562, %v655, 0
        %v710 = vsel %vm562, %v656, 0
        %v713 = vsel %vm562, %v657, 0
        %715 = vmatprep.subr.mxu0 0.0
        %716 = vmatpush1.msra.mxu0 %v659
        %717 = vmatprep.subr.mxu0 0.0
        %718 = vmatpush1.msra.mxu0 %v660
        %719 = vmatprep.subr.mxu0 0.0
        %720 = vmatpush1.msra.mxu0 %v661
        %721 = vmatprep.subr.mxu0 0.0
        %722 = vmatpush1.msra.mxu0 %v662
        %723 = vmatprep.subr.mxu0 0.0
        %724 = vmatpush1.msra.mxu0 %v663
        %725 = vmatprep.subr.mxu0 0.0
        %726 = vmatpush1.msra.mxu0 %v664
        %727 = vmatprep.subr.mxu0 0.0
        %728 = vmatpush1.msra.mxu0 %v665
        %729 = vmatprep.subr.mxu0 0.0
        %730 = vmatpush1.msra.mxu0 %v666
        %731 = vmatprep.subr.mxu0 0.0
        %732 = vmatpush1.msra.mxu0 0.0
        %733 = vmatprep.subr.mxu0 0.0
        %734 = vmatpush1.msra.mxu0 0.0
        %735 = vmatprep.subr.mxu0 0.0
        %736 = vmatpush1.msra.mxu0 0.0
        %737 = vmatprep.subr.mxu0 0.0
        %738 = vmatpush1.msra.mxu0 0.0
        %739 = vmatprep.subr.mxu0 0.0
        %740 = vmatpush1.msra.mxu0 0.0
        %741 = vmatprep.subr.mxu0 0.0
        %742 = vmatpush1.msra.mxu0 0.0
        %743 = vmatprep.subr.mxu0 0.0
        %744 = vmatpush1.msra.mxu0 0.0
        %745 = vmatprep.subr.mxu0 0.0
        %746 = vmatpush1.msra.mxu0 0.0
        %747 = vmatprep.subr.mxu0 0.0
        %748 = vmatpush1.msra.mxu0 0.0
        %749 = vmatprep.subr.mxu0 0.0
        %750 = vmatpush1.msra.mxu0 0.0
        %751 = vmatprep.subr.mxu0 0.0
        %752 = vmatpush1.msra.mxu0 0.0
        %753 = vmatprep.subr.mxu0 0.0
        %754 = vmatpush1.msra.mxu0 0.0
        %755 = vmatprep.subr.mxu0 0.0
        %756 = vmatpush1.msra.mxu0 0.0
        %757 = vmatprep.subr.mxu0 0.0
        %758 = vmatpush1.msra.mxu0 0.0
        %759 = vmatprep.subr.mxu0 0.0
        %760 = vmatpush1.msra.mxu0 0.0
        %761 = vmatprep.subr.mxu0 0.0
        %762 = vmatpush1.msra.mxu0 0.0
        %763 = vmatprep.subr.mxu0 0.0
        %764 = vmatpush1.msra.mxu0 0.0
        %765 = vmatprep.subr.mxu0 0.0
        %766 = vmatpush1.msra.mxu0 0.0
        %767 = vmatprep.subr.mxu0 0.0
        %768 = vmatpush1.msra.mxu0 0.0
        %769 = vmatprep.subr.mxu0 0.0
        %770 = vmatpush1.msra.mxu0 0.0
        %771 = vmatprep.subr.mxu0 0.0
        %772 = vmatpush1.msra.mxu0 0.0
        %773 = vmatprep.subr.mxu0 0.0
        %774 = vmatpush1.msra.mxu0 0.0
        %775 = vmatprep.subr.mxu0 0.0
        %776 = vmatpush1.msra.mxu0 0.0
        %777 = vmatprep.subr.mxu0 0.0
        %778 = vmatpush1.msra.mxu0 0.0
        %779 = vmatprep.mubr.f32.mxu0 0.0
        %780 = vmatmul.mubr.f32.gmra.mrb[0].mxu0 %v668
        %v781 = vpop.f32.mrb[0].mxu0
        %v782 = vadd.f32 0.0, %v781
        %v783 = vpop.f32.mrb[0].mxu0
        %784 = vmatprep.mubr.f32.mxu0 0.0
        %785 = vmatmul.mubr.f32.gmra.mrb[0].mxu0 %v671
        %v786 = vpop.f32.mrb[0].mxu0
        %v787 = vadd.f32 0.0, %v786
        %v788 = vpop.f32.mrb[0].mxu0
        %789 = vmatprep.mubr.f32.mxu0 0.0
        %790 = vmatmul.mubr.f32.gmra.mrb[0].mxu0 %v674
        %v791 = vpop.f32.mrb[0].mxu0
        %v792 = vadd.f32 0.0, %v791
        %v793 = vpop.f32.mrb[0].mxu0
        %794 = vmatprep.mubr.f32.mxu0 0.0
        %795 = vmatmul.mubr.f32.gmra.mrb[0].mxu0 %v677
        %v796 = vpop.f32.mrb[0].mxu0
        %v797 = vadd.f32 0.0, %v796
        %v798 = vpop.f32.mrb[0].mxu0
        %799 = vmatprep.mubr.f32.mxu0 0.0
        %800 = vmatmul.mubr.f32.gmra.mrb[0].mxu0 %v680
        %v801 = vpop.f32.mrb[0].mxu0
        %v802 = vadd.f32 0.0, %v801
        %v803 = vpop.f32.mrb[0].mxu0
        %804 = vmatprep.mubr.f32.mxu0 0.0
        %805 = vmatmul.mubr.f32.gmra.mrb[0].mxu0 %v683
        %v806 = vpop.f32.mrb[0].mxu0
        %v807 = vadd.f32 0.0, %v806
        %v808 = vpop.f32.mrb[0].mxu0
        %809 = vmatprep.mubr.f32.mxu0 0.0
        %810 = vmatmul.mubr.f32.gmra.mrb[0].mxu0 %v686
        %v811 = vpop.f32.mrb[0].mxu0
        %v812 = vadd.f32 0.0, %v811
        %v813 = vpop.f32.mrb[0].mxu0
        %814 = vmatprep.mubr.f32.mxu0 0.0
        %815 = vmatmul.mubr.f32.gmra.mrb[0].mxu0 %v689
        %v816 = vpop.f32.mrb[0].mxu0
        %v817 = vadd.f32 0.0, %v816
        %v818 = vpop.f32.mrb[0].mxu0
        %819 = vmatprep.mubr.f32.mxu0 0.0
        %820 = vmatmul.mubr.f32.gmra.mrb[0].mxu0 %v692
        %v821 = vpop.f32.mrb[0].mxu0
        %v822 = vadd.f32 0.0, %v821
        %v823 = vpop.f32.mrb[0].mxu0
        %824 = vmatprep.mubr.f32.mxu0 0.0
        %825 = vmatmul.mubr.f32.gmra.mrb[0].mxu0 %v695
        %v826 = vpop.f32.mrb[0].mxu0
        %v827 = vadd.f32 0.0, %v826
        %v828 = vpop.f32.mrb[0].mxu0
        %829 = vmatprep.mubr.f32.mxu0 0.0
        %830 = vmatmul.mubr.f32.gmra.mrb[0].mxu0 %v698
        %v831 = vpop.f32.mrb[0].mxu0
        %v832 = vadd.f32 0.0, %v831
        %v833 = vpop.f32.mrb[0].mxu0
        %834 = vmatprep.mubr.f32.mxu0 0.0
        %835 = vmatmul.mubr.f32.gmra.mrb[0].mxu0 %v701
        %v836 = vpop.f32.mrb[0].mxu0
        %v837 = vadd.f32 0.0, %v836
        %v838 = vpop.f32.mrb[0].mxu0
        %839 = vmatprep.mubr.f32.mxu0 0.0
        %840 = vmatmul.mubr.f32.gmra.mrb[0].mxu0 %v704
        %v841 = vpop.f32.mrb[0].mxu0
        %v842 = vadd.f32 0.0, %v841
        %v843 = vpop.f32.mrb[0].mxu0
        %844 = vmatprep.mubr.f32.mxu0 0.0
        %845 = vmatmul.mubr.f32.gmra.mrb[0].mxu0 %v707
        %v846 = vpop.f32.mrb[0].mxu0
        %v847 = vadd.f32 0.0, %v846
        %v848 = vpop.f32.mrb[0].mxu0
        %849 = vmatprep.mubr.f32.mxu0 0.0
        %850 = vmatmul.mubr.f32.gmra.mrb[0].mxu0 %v710
        %v851 = vpop.f32.mrb[0].mxu0
        %v852 = vadd.f32 0.0, %v851
        %v853 = vpop.f32.mrb[0].mxu0
        %854 = vmatprep.mubr.f32.mxu0 0.0
        %855 = vmatmul.mubr.f32.gmra.mrb[0].mxu0 %v713
        %v856 = vpop.f32.mrb[0].mxu0
        %v857 = vadd.f32 0.0, %v856
        %v858 = vpop.f32.mrb[0].mxu0
        %859 = vdwg.mxu0
        %v860 = vld [vmem:[%s434] sm:$0xff]
        %v861 = vld [vmem:[%s434 + $0x8] sm:$0xff]
        %v862 = vld [vmem:[%s434 + $0x10] sm:$0xff]
        %v863 = vld [vmem:[%s434 + $0x18] sm:$0xff]
        %v864 = vld [vmem:[%s434 + $0x20] sm:$0xff]
        %v865 = vld [vmem:[%s434 + $0x28] sm:$0xff]
        %v866 = vld [vmem:[%s434 + $0x30] sm:$0xff]
        %v867 = vld [vmem:[%s434 + $0x38] sm:$0xff]
        %868 = vmatprep.subr.mxu0 0.0
        %869 = vmatpush1.msra.mxu0 %v860
        %870 = vmatprep.subr.mxu0 0.0
        %871 = vmatpush1.msra.mxu0 %v861
        %872 = vmatprep.subr.mxu0 0.0
        %873 = vmatpush1.msra.mxu0 %v862
        %874 = vmatprep.subr.mxu0 0.0
        %875 = vmatpush1.msra.mxu0 %v863
        %876 = vmatprep.subr.mxu0 0.0
        %877 = vmatpush1.msra.mxu0 %v864
        %878 = vmatprep.subr.mxu0 0.0
        %879 = vmatpush1.msra.mxu0 %v865
        %880 = vmatprep.subr.mxu0 0.0
        %881 = vmatpush1.msra.mxu0 %v866
        %882 = vmatprep.subr.mxu0 0.0
        %883 = vmatpush1.msra.mxu0 %v867
        %884 = vmatprep.subr.mxu0 0.0
        %885 = vmatpush1.msra.mxu0 0.0
        %886 = vmatprep.subr.mxu0 0.0
        %887 = vmatpush1.msra.mxu0 0.0
        %888 = vmatprep.subr.mxu0 0.0
        %889 = vmatpush1.msra.mxu0 0.0
        %890 = vmatprep.subr.mxu0 0.0
        %891 = vmatpush1.msra.mxu0 0.0
        %892 = vmatprep.subr.mxu0 0.0
        %893 = vmatpush1.msra.mxu0 0.0
        %894 = vmatprep.subr.mxu0 0.0
        %895 = vmatpush1.msra.mxu0 0.0
        %896 = vmatprep.subr.mxu0 0.0
        %897 = vmatpush1.msra.mxu0 0.0
        %898 = vmatprep.subr.mxu0 0.0
        %899 = vmatpush1.msra.mxu0 0.0
        %900 = vmatprep.subr.mxu0 0.0
        %901 = vmatpush1.msra.mxu0 0.0
        %902 = vmatprep.subr.mxu0 0.0
        %903 = vmatpush1.msra.mxu0 0.0
        %904 = vmatprep.subr.mxu0 0.0
        %905 = vmatpush1.msra.mxu0 0.0
        %906 = vmatprep.subr.mxu0 0.0
        %907 = vmatpush1.msra.mxu0 0.0
        %908 = vmatprep.subr.mxu0 0.0
        %909 = vmatpush1.msra.mxu0 0.0
        %910 = vmatprep.subr.mxu0 0.0
        %911 = vmatpush1.msra.mxu0 0.0
        %912 = vmatprep.subr.mxu0 0.0
        %913 = vmatpush1.msra.mxu0 0.0
        %914 = vmatprep.subr.mxu0 0.0
        %915 = vmatpush1.msra.mxu0 0.0
        %916 = vmatprep.subr.mxu0 0.0
        %917 = vmatpush1.msra.mxu0 0.0
        %918 = vmatprep.subr.mxu0 0.0
        %919 = vmatpush1.msra.mxu0 0.0
        %920 = vmatprep.subr.mxu0 0.0
        %921 = vmatpush1.msra.mxu0 0.0
        %922 = vmatprep.subr.mxu0 0.0
        %923 = vmatpush1.msra.mxu0 0.0
        %924 = vmatprep.subr.mxu0 0.0
        %925 = vmatpush1.msra.mxu0 0.0
        %926 = vmatprep.subr.mxu0 0.0
        %927 = vmatpush1.msra.mxu0 0.0
        %928 = vmatprep.subr.mxu0 0.0
        %929 = vmatpush1.msra.mxu0 0.0
        %930 = vmatprep.subr.mxu0 0.0
        %931 = vmatpush1.msra.mxu0 0.0
        %932 = vmatprep.mubr.f32.mxu0 0.0
        %933 = vmatmul.mubr.f32.gmra.mrb[0].mxu0 %v668
        %v934 = vpop.f32.mrb[0].mxu0
        %v935 = vadd.f32 0.0, %v934
        %v936 = vpop.f32.mrb[0].mxu0
        %937 = vmatprep.mubr.f32.mxu0 0.0
        %938 = vmatmul.mubr.f32.gmra.mrb[0].mxu0 %v671
        %v939 = vpop.f32.mrb[0].mxu0
        %v940 = vadd.f32 0.0, %v939
        %v941 = vpop.f32.mrb[0].mxu0
        %942 = vmatprep.mubr.f32.mxu0 0.0
        %943 = vmatmul.mubr.f32.gmra.mrb[0].mxu0 %v674
        %v944 = vpop.f32.mrb[0].mxu0
        %v945 = vadd.f32 0.0, %v944
        %v946 = vpop.f32.mrb[0].mxu0
        %947 = vmatprep.mubr.f32.mxu0 0.0
        %948 = vmatmul.mubr.f32.gmra.mrb[0].mxu0 %v677
        %v949 = vpop.f32.mrb[0].mxu0
        %v950 = vadd.f32 0.0, %v949
        %v951 = vpop.f32.mrb[0].mxu0
        %952 = vmatprep.mubr.f32.mxu0 0.0
        %953 = vmatmul.mubr.f32.gmra.mrb[0].mxu0 %v680
        %v954 = vpop.f32.mrb[0].mxu0
        %v955 = vadd.f32 0.0, %v954
        %v956 = vpop.f32.mrb[0].mxu0
        %957 = vmatprep.mubr.f32.mxu0 0.0
        %958 = vmatmul.mubr.f32.gmra.mrb[0].mxu0 %v683
        %v959 = vpop.f32.mrb[0].mxu0
        %v960 = vadd.f32 0.0, %v959
        %v961 = vpop.f32.mrb[0].mxu0
        %962 = vmatprep.mubr.f32.mxu0 0.0
        %963 = vmatmul.mubr.f32.gmra.mrb[0].mxu0 %v686
        %v964 = vpop.f32.mrb[0].mxu0
        %v965 = vadd.f32 0.0, %v964
        %v966 = vpop.f32.mrb[0].mxu0
        %967 = vmatprep.mubr.f32.mxu0 0.0
        %968 = vmatmul.mubr.f32.gmra.mrb[0].mxu0 %v689
        %v969 = vpop.f32.mrb[0].mxu0
        %v970 = vadd.f32 0.0, %v969
        %v971 = vpop.f32.mrb[0].mxu0
        %972 = vmatprep.mubr.f32.mxu0 0.0
        %973 = vmatmul.mubr.f32.gmra.mrb[0].mxu0 %v692
        %v974 = vpop.f32.mrb[0].mxu0
        %v975 = vadd.f32 0.0, %v974
        %v976 = vpop.f32.mrb[0].mxu0
        %977 = vmatprep.mubr.f32.mxu0 0.0
        %978 = vmatmul.mubr.f32.gmra.mrb[0].mxu0 %v695
        %v979 = vpop.f32.mrb[0].mxu0
        %v980 = vadd.f32 0.0, %v979
        %v981 = vpop.f32.mrb[0].mxu0
        %982 = vmatprep.mubr.f32.mxu0 0.0
        %983 = vmatmul.mubr.f32.gmra.mrb[0].mxu0 %v698
        %v984 = vpop.f32.mrb[0].mxu0
        %v985 = vadd.f32 0.0, %v984
        %v986 = vpop.f32.mrb[0].mxu0
        %987 = vmatprep.mubr.f32.mxu0 0.0
        %988 = vmatmul.mubr.f32.gmra.mrb[0].mxu0 %v701
        %v989 = vpop.f32.mrb[0].mxu0
        %v990 = vadd.f32 0.0, %v989
        %v991 = vpop.f32.mrb[0].mxu0
        %992 = vmatprep.mubr.f32.mxu0 0.0
        %993 = vmatmul.mubr.f32.gmra.mrb[0].mxu0 %v704
        %v994 = vpop.f32.mrb[0].mxu0
        %v995 = vadd.f32 0.0, %v994
        %v996 = vpop.f32.mrb[0].mxu0
        %997 = vmatprep.mubr.f32.mxu0 0.0
        %998 = vmatmul.mubr.f32.gmra.mrb[0].mxu0 %v707
        %v999 = vpop.f32.mrb[0].mxu0
        %v1000 = vadd.f32 0.0, %v999
        %v1001 = vpop.f32.mrb[0].mxu0
        %1002 = vmatprep.mubr.f32.mxu0 0.0
        %1003 = vmatmul.mubr.f32.gmra.mrb[0].mxu0 %v710
        %v1004 = vpop.f32.mrb[0].mxu0
        %v1005 = vadd.f32 0.0, %v1004
        %v1006 = vpop.f32.mrb[0].mxu0
        %1007 = vmatprep.mubr.f32.mxu0 0.0
        %1008 = vmatmul.mubr.f32.gmra.mrb[0].mxu0 %v713
        %v1009 = vpop.f32.mrb[0].mxu0
        %v1010 = vadd.f32 0.0, %v1009
        %v1011 = vpop.f32.mrb[0].mxu0
        %1012 = vdwg.mxu0
        %v1013 = vld [vmem:[%s443] sm:$0xff]
        %v1014 = vld [vmem:[%s443 + $0x8] sm:$0xff]
        %v1015 = vld [vmem:[%s443 + $0x10] sm:$0xff]
        %v1016 = vld [vmem:[%s443 + $0x18] sm:$0xff]
        %v1017 = vld [vmem:[%s443 + $0x20] sm:$0xff]
        %v1018 = vld [vmem:[%s443 + $0x28] sm:$0xff]
        %v1019 = vld [vmem:[%s443 + $0x30] sm:$0xff]
        %v1020 = vld [vmem:[%s443 + $0x38] sm:$0xff]
        %1021 = vmatprep.subr.mxu0 0.0
        %1022 = vmatpush1.msra.mxu0 %v1013
        %1023 = vmatprep.subr.mxu0 0.0
        %1024 = vmatpush1.msra.mxu0 %v1014
        %1025 = vmatprep.subr.mxu0 0.0
        %1026 = vmatpush1.msra.mxu0 %v1015
        %1027 = vmatprep.subr.mxu0 0.0
        %1028 = vmatpush1.msra.mxu0 %v1016
        %1029 = vmatprep.subr.mxu0 0.0
        %1030 = vmatpush1.msra.mxu0 %v1017
        %1031 = vmatprep.subr.mxu0 0.0
        %1032 = vmatpush1.msra.mxu0 %v1018
        %1033 = vmatprep.subr.mxu0 0.0
        %1034 = vmatpush1.msra.mxu0 %v1019
        %1035 = vmatprep.subr.mxu0 0.0
        %1036 = vmatpush1.msra.mxu0 %v1020
        %1037 = vmatprep.subr.mxu0 0.0
        %1038 = vmatpush1.msra.mxu0 0.0
        %1039 = vmatprep.subr.mxu0 0.0
        %1040 = vmatpush1.msra.mxu0 0.0
        %1041 = vmatprep.subr.mxu0 0.0
        %1042 = vmatpush1.msra.mxu0 0.0
        %1043 = vmatprep.subr.mxu0 0.0
        %1044 = vmatpush1.msra.mxu0 0.0
        %1045 = vmatprep.subr.mxu0 0.0
        %1046 = vmatpush1.msra.mxu0 0.0
        %1047 = vmatprep.subr.mxu0 0.0
        %1048 = vmatpush1.msra.mxu0 0.0
        %1049 = vmatprep.subr.mxu0 0.0
        %1050 = vmatpush1.msra.mxu0 0.0
        %1051 = vmatprep.subr.mxu0 0.0
        %1052 = vmatpush1.msra.mxu0 0.0
        %1053 = vmatprep.subr.mxu0 0.0
        %1054 = vmatpush1.msra.mxu0 0.0
        %1055 = vmatprep.subr.mxu0 0.0
        %1056 = vmatpush1.msra.mxu0 0.0
        %1057 = vmatprep.subr.mxu0 0.0
        %1058 = vmatpush1.msra.mxu0 0.0
        %1059 = vmatprep.subr.mxu0 0.0
        %1060 = vmatpush1.msra.mxu0 0.0
        %1061 = vmatprep.subr.mxu0 0.0
        %1062 = vmatpush1.msra.mxu0 0.0
        %1063 = vmatprep.subr.mxu0 0.0
        %1064 = vmatpush1.msra.mxu0 0.0
        %1065 = vmatprep.subr.mxu0 0.0
        %1066 = vmatpush1.msra.mxu0 0.0
        %1067 = vmatprep.subr.mxu0 0.0
        %1068 = vmatpush1.msra.mxu0 0.0
        %1069 = vmatprep.subr.mxu0 0.0
        %1070 = vmatpush1.msra.mxu0 0.0
        %1071 = vmatprep.subr.mxu0 0.0
        %1072 = vmatpush1.msra.mxu0 0.0
        %1073 = vmatprep.subr.mxu0 0.0
        %1074 = vmatpush1.msra.mxu0 0.0
        %1075 = vmatprep.subr.mxu0 0.0
        %1076 = vmatpush1.msra.mxu0 0.0
        %1077 = vmatprep.subr.mxu0 0.0
        %1078 = vmatpush1.msra.mxu0 0.0
        %1079 = vmatprep.subr.mxu0 0.0
        %1080 = vmatpush1.msra.mxu0 0.0
        %1081 = vmatprep.subr.mxu0 0.0
        %1082 = vmatpush1.msra.mxu0 0.0
        %1083 = vmatprep.subr.mxu0 0.0
        %1084 = vmatpush1.msra.mxu0 0.0
        %1085 = vmatprep.mubr.f32.mxu0 0.0
        %1086 = vmatmul.mubr.f32.gmra.mrb[0].mxu0 %v668
        %v1087 = vpop.f32.mrb[0].mxu0
        %v1088 = vadd.f32 0.0, %v1087
        %v1089 = vpop.f32.mrb[0].mxu0
        %1090 = vmatprep.mubr.f32.mxu0 0.0
        %1091 = vmatmul.mubr.f32.gmra.mrb[0].mxu0 %v671
        %v1092 = vpop.f32.mrb[0].mxu0
        %v1093 = vadd.f32 0.0, %v1092
        %v1094 = vpop.f32.mrb[0].mxu0
        %1095 = vmatprep.mubr.f32.mxu0 0.0
        %1096 = vmatmul.mubr.f32.gmra.mrb[0].mxu0 %v674
        %v1097 = vpop.f32.mrb[0].mxu0
        %v1098 = vadd.f32 0.0, %v1097
        %v1099 = vpop.f32.mrb[0].mxu0
        %1100 = vmatprep.mubr.f32.mxu0 0.0
        %1101 = vmatmul.mubr.f32.gmra.mrb[0].mxu0 %v677
        %v1102 = vpop.f32.mrb[0].mxu0
        %v1103 = vadd.f32 0.0, %v1102
        %v1104 = vpop.f32.mrb[0].mxu0
        %1105 = vmatprep.mubr.f32.mxu0 0.0
        %1106 = vmatmul.mubr.f32.gmra.mrb[0].mxu0 %v680
        %v1107 = vpop.f32.mrb[0].mxu0
        %v1108 = vadd.f32 0.0, %v1107
        %v1109 = vpop.f32.mrb[0].mxu0
        %1110 = vmatprep.mubr.f32.mxu0 0.0
        %1111 = vmatmul.mubr.f32.gmra.mrb[0].mxu0 %v683
        %v1112 = vpop.f32.mrb[0].mxu0
        %v1113 = vadd.f32 0.0, %v1112
        %v1114 = vpop.f32.mrb[0].mxu0
        %1115 = vmatprep.mubr.f32.mxu0 0.0
        %1116 = vmatmul.mubr.f32.gmra.mrb[0].mxu0 %v686
        %v1117 = vpop.f32.mrb[0].mxu0
        %v1118 = vadd.f32 0.0, %v1117
        %v1119 = vpop.f32.mrb[0].mxu0
        %1120 = vmatprep.mubr.f32.mxu0 0.0
        %1121 = vmatmul.mubr.f32.gmra.mrb[0].mxu0 %v689
        %v1122 = vpop.f32.mrb[0].mxu0
        %v1123 = vadd.f32 0.0, %v1122
        %v1124 = vpop.f32.mrb[0].mxu0
        %1125 = vmatprep.mubr.f32.mxu0 0.0
        %1126 = vmatmul.mubr.f32.gmra.mrb[0].mxu0 %v692
        %v1127 = vpop.f32.mrb[0].mxu0
        %v1128 = vadd.f32 0.0, %v1127
        %v1129 = vpop.f32.mrb[0].mxu0
        %1130 = vmatprep.mubr.f32.mxu0 0.0
        %1131 = vmatmul.mubr.f32.gmra.mrb[0].mxu0 %v695
        %v1132 = vpop.f32.mrb[0].mxu0
        %v1133 = vadd.f32 0.0, %v1132
        %v1134 = vpop.f32.mrb[0].mxu0
        %1135 = vmatprep.mubr.f32.mxu0 0.0
        %1136 = vmatmul.mubr.f32.gmra.mrb[0].mxu0 %v698
        %v1137 = vpop.f32.mrb[0].mxu0
        %v1138 = vadd.f32 0.0, %v1137
        %v1139 = vpop.f32.mrb[0].mxu0
        %1140 = vmatprep.mubr.f32.mxu0 0.0
        %1141 = vmatmul.mubr.f32.gmra.mrb[0].mxu0 %v701
        %v1142 = vpop.f32.mrb[0].mxu0
        %v1143 = vadd.f32 0.0, %v1142
        %v1144 = vpop.f32.mrb[0].mxu0
        %1145 = vmatprep.mubr.f32.mxu0 0.0
        %1146 = vmatmul.mubr.f32.gmra.mrb[0].mxu0 %v704
        %v1147 = vpop.f32.mrb[0].mxu0
        %v1148 = vadd.f32 0.0, %v1147
        %v1149 = vpop.f32.mrb[0].mxu0
        %1150 = vmatprep.mubr.f32.mxu0 0.0
        %1151 = vmatmul.mubr.f32.gmra.mrb[0].mxu0 %v707
        %v1152 = vpop.f32.mrb[0].mxu0
        %v1153 = vadd.f32 0.0, %v1152
        %v1154 = vpop.f32.mrb[0].mxu0
        %1155 = vmatprep.mubr.f32.mxu0 0.0
        %1156 = vmatmul.mubr.f32.gmra.mrb[0].mxu0 %v710
        %v1157 = vpop.f32.mrb[0].mxu0
        %v1158 = vadd.f32 0.0, %v1157
        %v1159 = vpop.f32.mrb[0].mxu0
        %1160 = vmatprep.mubr.f32.mxu0 0.0
        %1161 = vmatmul.mubr.f32.gmra.mrb[0].mxu0 %v713
        %v1162 = vpop.f32.mrb[0].mxu0
        %v1163 = vadd.f32 0.0, %v1162
        %v1164 = vpop.f32.mrb[0].mxu0
        %1165 = vdwg.mxu0
        %v1166 = vld [vmem:[%s452] sm:$0xff]
        %v1167 = vld [vmem:[%s452 + $0x8] sm:$0xff]
        %v1168 = vld [vmem:[%s452 + $0x10] sm:$0xff]
        %v1169 = vld [vmem:[%s452 + $0x18] sm:$0xff]
        %v1170 = vld [vmem:[%s452 + $0x20] sm:$0xff]
        %v1171 = vld [vmem:[%s452 + $0x28] sm:$0xff]
        %v1172 = vld [vmem:[%s452 + $0x30] sm:$0xff]
        %v1173 = vld [vmem:[%s452 + $0x38] sm:$0xff]
        %vm1174 = vcmp.gt.f32.partialorder %v658, 0.5
        %v1175 = vsel %vm1174, 1, 0
        %v1176 = vlaneseq
        %v1177 = vshrl.u32 %v1176, 7
        %v1178 = vsub.s32 0, %v1177
        %v1179 = vrot.slane %v1175, %v1178
        %vm1180 = vcmp.eq.s32.totalorder %v1179, 1
        %v1182 = vsel %vm562, %v782, 0
        %v1185 = vsel %vm562, %v787, 0
        %v1188 = vsel %vm562, %v792, 0
        %v1191 = vsel %vm562, %v797, 0
        %v1194 = vsel %vm562, %v802, 0
        %v1197 = vsel %vm562, %v807, 0
        %v1200 = vsel %vm562, %v812, 0
        %v1203 = vsel %vm562, %v817, 0
        %v1206 = vsel %vm562, %v935, 0
        %v1209 = vsel %vm562, %v940, 0
        %v1212 = vsel %vm562, %v945, 0
        %v1215 = vsel %vm562, %v950, 0
        %v1218 = vsel %vm562, %v955, 0
        %v1221 = vsel %vm562, %v960, 0
        %v1224 = vsel %vm562, %v965, 0
        %v1227 = vsel %vm562, %v970, 0
        %1229 = vmatprep.subr.mxu0 0.0
        %1230 = vmatpush1.xpose.msra.mxu0 %v1206
        %1231 = vmatprep.subr.mxu0 0.0
        %1232 = vmatpush1.xpose.msra.mxu0 %v1209
        %1233 = vmatprep.subr.mxu0 0.0
        %1234 = vmatpush1.xpose.msra.mxu0 %v1212
        %1235 = vmatprep.subr.mxu0 0.0
        %1236 = vmatpush1.xpose.msra.mxu0 %v1215
        %1237 = vmatprep.subr.mxu0 0.0
        %1238 = vmatpush1.xpose.msra.mxu0 %v1218
        %1239 = vmatprep.subr.mxu0 0.0
        %1240 = vmatpush1.xpose.msra.mxu0 %v1221
        %1241 = vmatprep.subr.mxu0 0.0
        %1242 = vmatpush1.xpose.msra.mxu0 %v1224
        %1243 = vmatprep.subr.mxu0 0.0
        %1244 = vmatpush1.xpose.msra.mxu0 %v1227
        %1245 = vmatprep.subr.mxu0 0.0
        %1246 = vmatpush1.xpose.msra.mxu0 0.0
        %1247 = vmatprep.subr.mxu0 0.0
        %1248 = vmatpush1.xpose.msra.mxu0 0.0
        %1249 = vmatprep.subr.mxu0 0.0
        %1250 = vmatpush1.xpose.msra.mxu0 0.0
        %1251 = vmatprep.subr.mxu0 0.0
        %1252 = vmatpush1.xpose.msra.mxu0 0.0
        %1253 = vmatprep.subr.mxu0 0.0
        %1254 = vmatpush1.xpose.msra.mxu0 0.0
        %1255 = vmatprep.subr.mxu0 0.0
        %1256 = vmatpush1.xpose.msra.mxu0 0.0
        %1257 = vmatprep.subr.mxu0 0.0
        %1258 = vmatpush1.xpose.msra.mxu0 0.0
        %1259 = vmatprep.subr.mxu0 0.0
        %1260 = vmatpush1.xpose.msra.mxu0 0.0
        %1261 = vmatprep.subr.mxu0 0.0
        %1262 = vmatpush1.xpose.msra.mxu0 0.0
        %1263 = vmatprep.subr.mxu0 0.0
        %1264 = vmatpush1.xpose.msra.mxu0 0.0
        %1265 = vmatprep.subr.mxu0 0.0
        %1266 = vmatpush1.xpose.msra.mxu0 0.0
        %1267 = vmatprep.subr.mxu0 0.0
        %1268 = vmatpush1.xpose.msra.mxu0 0.0
        %1269 = vmatprep.subr.mxu0 0.0
        %1270 = vmatpush1.xpose.msra.mxu0 0.0
        %1271 = vmatprep.subr.mxu0 0.0
        %1272 = vmatpush1.xpose.msra.mxu0 0.0
        %1273 = vmatprep.subr.mxu0 0.0
        %1274 = vmatpush1.xpose.msra.mxu0 0.0
        %1275 = vmatprep.subr.mxu0 0.0
        %1276 = vmatpush1.xpose.msra.mxu0 0.0
        %1277 = vmatprep.subr.mxu0 0.0
        %1278 = vmatpush1.xpose.msra.mxu0 0.0
        %1279 = vmatprep.subr.mxu0 0.0
        %1280 = vmatpush1.xpose.msra.mxu0 0.0
        %1281 = vmatprep.subr.mxu0 0.0
        %1282 = vmatpush1.xpose.msra.mxu0 0.0
        %1283 = vmatprep.subr.mxu0 0.0
        %1284 = vmatpush1.xpose.msra.mxu0 0.0
        %1285 = vmatprep.subr.mxu0 0.0
        %1286 = vmatpush1.xpose.msra.mxu0 0.0
        %1287 = vmatprep.subr.mxu0 0.0
        %1288 = vmatpush1.xpose.msra.mxu0 0.0
        %1289 = vmatprep.subr.mxu0 0.0
        %1290 = vmatpush1.xpose.msra.mxu0 0.0
        %1291 = vmatprep.subr.mxu0 0.0
        %1292 = vmatpush1.xpose.msra.mxu0 0.0
        %1293 = vmatprep.mubr.f32.mxu0 0.0
        %1294 = vmatmul.mubr.f32.gmra.mrb[0].mxu0 %v1182
        %v1295 = vpop.f32.mrb[0].mxu0
        %v1296 = vadd.f32 0.0, %v1295
        %v1297 = vpop.f32.mrb[0].mxu0
        %1298 = vmatprep.mubr.f32.mxu0 0.0
        %1299 = vmatmul.mubr.f32.gmra.mrb[0].mxu0 %v1185
        %v1300 = vpop.f32.mrb[0].mxu0
        %v1301 = vadd.f32 0.0, %v1300
        %v1302 = vpop.f32.mrb[0].mxu0
        %1303 = vmatprep.mubr.f32.mxu0 0.0
        %1304 = vmatmul.mubr.f32.gmra.mrb[0].mxu0 %v1188
        %v1305 = vpop.f32.mrb[0].mxu0
        %v1306 = vadd.f32 0.0, %v1305
        %v1307 = vpop.f32.mrb[0].mxu0
        %1308 = vmatprep.mubr.f32.mxu0 0.0
        %1309 = vmatmul.mubr.f32.gmra.mrb[0].mxu0 %v1191
        %v1310 = vpop.f32.mrb[0].mxu0
        %v1311 = vadd.f32 0.0, %v1310
        %v1312 = vpop.f32.mrb[0].mxu0
        %1313 = vmatprep.mubr.f32.mxu0 0.0
        %1314 = vmatmul.mubr.f32.gmra.mrb[0].mxu0 %v1194
        %v1315 = vpop.f32.mrb[0].mxu0
        %v1316 = vadd.f32 0.0, %v1315
        %v1317 = vpop.f32.mrb[0].mxu0
        %1318 = vmatprep.mubr.f32.mxu0 0.0
        %1319 = vmatmul.mubr.f32.gmra.mrb[0].mxu0 %v1197
        %v1320 = vpop.f32.mrb[0].mxu0
        %v1321 = vadd.f32 0.0, %v1320
        %v1322 = vpop.f32.mrb[0].mxu0
        %1323 = vmatprep.mubr.f32.mxu0 0.0
        %1324 = vmatmul.mubr.f32.gmra.mrb[0].mxu0 %v1200
        %v1325 = vpop.f32.mrb[0].mxu0
        %v1326 = vadd.f32 0.0, %v1325
        %v1327 = vpop.f32.mrb[0].mxu0
        %1328 = vmatprep.mubr.f32.mxu0 0.0
        %1329 = vmatmul.mubr.f32.gmra.mrb[0].mxu0 %v1203
        %v1330 = vpop.f32.mrb[0].mxu0
        %v1331 = vadd.f32 0.0, %v1330
        %v1332 = vpop.f32.mrb[0].mxu0
        %1333 = vdwg.mxu0
        %v1334 = vsel %vm1180, -1e+09, %v1296
        %v1335 = vsel %vm1180, -1e+09, %v1301
        %v1336 = vsel %vm1180, -1e+09, %v1306
        %v1337 = vsel %vm1180, -1e+09, %v1311
        %v1338 = vsel %vm1180, -1e+09, %v1316
        %v1339 = vsel %vm1180, -1e+09, %v1321
        %v1340 = vsel %vm1180, -1e+09, %v1326
        %v1341 = vsel %vm1180, -1e+09, %v1331
        %v1342 = vsel %vm562, %v1334, -inf
        %1343 = vmax.xlane.f32.xlu0 %v1342
        %v1344 = vpop.xlane.xlu0 %1343
        %v1345 = vsel %vm562, %v1335, -inf
        %1346 = vmax.xlane.f32.xlu0 %v1345
        %v1347 = vpop.xlane.xlu0 %1346
        %v1348 = vsel %vm562, %v1336, -inf
        %1349 = vmax.xlane.f32.xlu0 %v1348
        %v1350 = vpop.xlane.xlu0 %1349
        %v1351 = vsel %vm562, %v1337, -inf
        %1352 = vmax.xlane.f32.xlu0 %v1351
        %v1353 = vpop.xlane.xlu0 %1352
        %v1354 = vsel %vm562, %v1338, -inf
        %1355 = vmax.xlane.f32.xlu0 %v1354
        %v1356 = vpop.xlane.xlu0 %1355
        %v1357 = vsel %vm562, %v1339, -inf
        %1358 = vmax.xlane.f32.xlu0 %v1357
        %v1359 = vpop.xlane.xlu0 %1358
        %v1360 = vsel %vm562, %v1340, -inf
        %1361 = vmax.xlane.f32.xlu0 %v1360
        %v1362 = vpop.xlane.xlu0 %1361
        %v1363 = vsel %vm562, %v1341, -inf
        %1364 = vmax.xlane.f32.xlu0 %v1363
        %v1365 = vpop.xlane.xlu0 %1364
        %v1366 = vsub.f32 %v1334, %v1344
        %v1367 = vsub.f32 %v1335, %v1347
        %v1368 = vsub.f32 %v1336, %v1350
        %v1369 = vsub.f32 %v1337, %v1353
        %v1370 = vsub.f32 %v1338, %v1356
        %v1371 = vsub.f32 %v1339, %v1359
        %v1372 = vsub.f32 %v1340, %v1362
        %v1373 = vsub.f32 %v1341, %v1365
        %v1374 = vmul.f32 %v1366, 1.442695
        %v1375 = vpow.pop %v1374
        %v1376 = vmul.f32 %v1367, 1.442695
        %v1377 = vpow.pop %v1376
        %v1378 = vmul.f32 %v1368, 1.442695
        %v1379 = vpow.pop %v1378
        %v1380 = vmul.f32 %v1369, 1.442695
        %v1381 = vpow.pop %v1380
        %v1382 = vmul.f32 %v1370, 1.442695
        %v1383 = vpow.pop %v1382
        %v1384 = vmul.f32 %v1371, 1.442695
        %v1385 = vpow.pop %v1384
        %v1386 = vmul.f32 %v1372, 1.442695
        %v1387 = vpow.pop %v1386
        %v1388 = vmul.f32 %v1373, 1.442695
        %v1389 = vpow.pop %v1388
        %v1390 = vsel %vm562, %v1375, 0.0
        %1391 = vadd.xlane.f32.xlu0 %v1390
        %v1392 = vpop.xlane.xlu0 %1391
        %v1393 = vsel %vm562, %v1377, 0.0
        %1394 = vadd.xlane.f32.xlu0 %v1393
        %v1395 = vpop.xlane.xlu0 %1394
        %v1396 = vsel %vm562, %v1379, 0.0
        %1397 = vadd.xlane.f32.xlu0 %v1396
        %v1398 = vpop.xlane.xlu0 %1397
        %v1399 = vsel %vm562, %v1381, 0.0
        %1400 = vadd.xlane.f32.xlu0 %v1399
        %v1401 = vpop.xlane.xlu0 %1400
        %v1402 = vsel %vm562, %v1383, 0.0
        %1403 = vadd.xlane.f32.xlu0 %v1402
        %v1404 = vpop.xlane.xlu0 %1403
        %v1405 = vsel %vm562, %v1385, 0.0
        %1406 = vadd.xlane.f32.xlu0 %v1405
        %v1407 = vpop.xlane.xlu0 %1406
        %v1408 = vsel %vm562, %v1387, 0.0
        %1409 = vadd.xlane.f32.xlu0 %v1408
        %v1410 = vpop.xlane.xlu0 %1409
        %v1411 = vsel %vm562, %v1389, 0.0
        %1412 = vadd.xlane.f32.xlu0 %v1411
        %v1413 = vpop.xlane.xlu0 %1412
        %v1414 = vrcp.pop %v1392
        %v1415 = vrcp.pop %v1395
        %v1416 = vrcp.pop %v1398
        %v1417 = vrcp.pop %v1401
        %v1418 = vrcp.pop %v1404
        %v1419 = vrcp.pop %v1407
        %v1420 = vrcp.pop %v1410
        %v1421 = vrcp.pop %v1413
        %v1422 = vmul.f32 %v1375, %v1414
        %v1423 = vmul.f32 %v1377, %v1415
        %v1424 = vmul.f32 %v1379, %v1416
        %v1425 = vmul.f32 %v1381, %v1417
        %v1426 = vmul.f32 %v1383, %v1418
        %v1427 = vmul.f32 %v1385, %v1419
        %v1428 = vmul.f32 %v1387, %v1420
        %v1429 = vmul.f32 %v1389, %v1421
        %1430 = vst.msk [vmem:[%s544] sm:$0xff] %vm562, %v1422
        %1431 = vst.msk [vmem:[%s544 + $0x8] sm:$0xff] %vm562, %v1423
        %1432 = vst.msk [vmem:[%s544 + $0x10] sm:$0xff] %vm562, %v1424
        %1433 = vst.msk [vmem:[%s544 + $0x18] sm:$0xff] %vm562, %v1425
        %1434 = vst.msk [vmem:[%s544 + $0x20] sm:$0xff] %vm562, %v1426
        %1435 = vst.msk [vmem:[%s544 + $0x28] sm:$0xff] %vm562, %v1427
        %1436 = vst.msk [vmem:[%s544 + $0x30] sm:$0xff] %vm562, %v1428
        %1437 = vst.msk [vmem:[%s544 + $0x38] sm:$0xff] %vm562, %v1429
        %v1439 = vsel %vm562, %v1422, 0
        %v1442 = vsel %vm562, %v1423, 0
        %v1445 = vsel %vm562, %v1424, 0
        %v1448 = vsel %vm562, %v1425, 0
        %v1451 = vsel %vm562, %v1426, 0
        %v1454 = vsel %vm562, %v1427, 0
        %v1457 = vsel %vm562, %v1428, 0
        %v1460 = vsel %vm562, %v1429, 0
        %1462 = vmatprep.subr.mxu0 0.0
        %1463 = vmatpush1.msra.mxu0 %v1088
        %1464 = vmatprep.subr.mxu0 0.0
        %1465 = vmatpush1.msra.mxu0 %v1093
        %1466 = vmatprep.subr.mxu0 0.0
        %1467 = vmatpush1.msra.mxu0 %v1098
        %1468 = vmatprep.subr.mxu0 0.0
        %1469 = vmatpush1.msra.mxu0 %v1103
        %1470 = vmatprep.subr.mxu0 0.0
        %1471 = vmatpush1.msra.mxu0 %v1108
        %1472 = vmatprep.subr.mxu0 0.0
        %1473 = vmatpush1.msra.mxu0 %v1113
        %1474 = vmatprep.subr.mxu0 0.0
        %1475 = vmatpush1.msra.mxu0 %v1118
        %1476 = vmatprep.subr.mxu0 0.0
        %1477 = vmatpush1.msra.mxu0 %v1123
        %1478 = vmatprep.subr.mxu0 0.0
        %1479 = vmatpush1.msra.mxu0 0.0
        %1480 = vmatprep.subr.mxu0 0.0
        %1481 = vmatpush1.msra.mxu0 0.0
        %1482 = vmatprep.subr.mxu0 0.0
        %1483 = vmatpush1.msra.mxu0 0.0
        %1484 = vmatprep.subr.mxu0 0.0
        %1485 = vmatpush1.msra.mxu0 0.0
        %1486 = vmatprep.subr.mxu0 0.0
        %1487 = vmatpush1.msra.mxu0 0.0
        %1488 = vmatprep.subr.mxu0 0.0
        %1489 = vmatpush1.msra.mxu0 0.0
        %1490 = vmatprep.subr.mxu0 0.0
        %1491 = vmatpush1.msra.mxu0 0.0
        %1492 = vmatprep.subr.mxu0 0.0
        %1493 = vmatpush1.msra.mxu0 0.0
        %1494 = vmatprep.subr.mxu0 0.0
        %1495 = vmatpush1.msra.mxu0 0.0
        %1496 = vmatprep.subr.mxu0 0.0
        %1497 = vmatpush1.msra.mxu0 0.0
        %1498 = vmatprep.subr.mxu0 0.0
        %1499 = vmatpush1.msra.mxu0 0.0
        %1500 = vmatprep.subr.mxu0 0.0
        %1501 = vmatpush1.msra.mxu0 0.0
        %1502 = vmatprep.subr.mxu0 0.0
        %1503 = vmatpush1.msra.mxu0 0.0
        %1504 = vmatprep.subr.mxu0 0.0
        %1505 = vmatpush1.msra.mxu0 0.0
        %1506 = vmatprep.subr.mxu0 0.0
        %1507 = vmatpush1.msra.mxu0 0.0
        %1508 = vmatprep.subr.mxu0 0.0
        %1509 = vmatpush1.msra.mxu0 0.0
        %1510 = vmatprep.subr.mxu0 0.0
        %1511 = vmatpush1.msra.mxu0 0.0
        %1512 = vmatprep.subr.mxu0 0.0
        %1513 = vmatpush1.msra.mxu0 0.0
        %1514 = vmatprep.subr.mxu0 0.0
        %1515 = vmatpush1.msra.mxu0 0.0
        %1516 = vmatprep.subr.mxu0 0.0
        %1517 = vmatpush1.msra.mxu0 0.0
        %1518 = vmatprep.subr.mxu0 0.0
        %1519 = vmatpush1.msra.mxu0 0.0
        %1520 = vmatprep.subr.mxu0 0.0
        %1521 = vmatpush1.msra.mxu0 0.0
        %1522 = vmatprep.subr.mxu0 0.0
        %1523 = vmatpush1.msra.mxu0 0.0
        %1524 = vmatprep.subr.mxu0 0.0
        %1525 = vmatpush1.msra.mxu0 0.0
        %1526 = vmatprep.mubr.f32.mxu0 0.0
        %1527 = vmatmul.mubr.f32.gmra.mrb[0].mxu0 %v1439
        %v1528 = vpop.f32.mrb[0].mxu0
        %v1529 = vadd.f32 0.0, %v1528
        %v1530 = vpop.f32.mrb[0].mxu0
        %1531 = vmatprep.mubr.f32.mxu0 0.0
        %1532 = vmatmul.mubr.f32.gmra.mrb[0].mxu0 %v1442
        %v1533 = vpop.f32.mrb[0].mxu0
        %v1534 = vadd.f32 0.0, %v1533
        %v1535 = vpop.f32.mrb[0].mxu0
        %1536 = vmatprep.mubr.f32.mxu0 0.0
        %1537 = vmatmul.mubr.f32.gmra.mrb[0].mxu0 %v1445
        %v1538 = vpop.f32.mrb[0].mxu0
        %v1539 = vadd.f32 0.0, %v1538
        %v1540 = vpop.f32.mrb[0].mxu0
        %1541 = vmatprep.mubr.f32.mxu0 0.0
        %1542 = vmatmul.mubr.f32.gmra.mrb[0].mxu0 %v1448
        %v1543 = vpop.f32.mrb[0].mxu0
        %v1544 = vadd.f32 0.0, %v1543
        %v1545 = vpop.f32.mrb[0].mxu0
        %1546 = vmatprep.mubr.f32.mxu0 0.0
        %1547 = vmatmul.mubr.f32.gmra.mrb[0].mxu0 %v1451
        %v1548 = vpop.f32.mrb[0].mxu0
        %v1549 = vadd.f32 0.0, %v1548
        %v1550 = vpop.f32.mrb[0].mxu0
        %1551 = vmatprep.mubr.f32.mxu0 0.0
        %1552 = vmatmul.mubr.f32.gmra.mrb[0].mxu0 %v1454
        %v1553 = vpop.f32.mrb[0].mxu0
        %v1554 = vadd.f32 0.0, %v1553
        %v1555 = vpop.f32.mrb[0].mxu0
        %1556 = vmatprep.mubr.f32.mxu0 0.0
        %1557 = vmatmul.mubr.f32.gmra.mrb[0].mxu0 %v1457
        %v1558 = vpop.f32.mrb[0].mxu0
        %v1559 = vadd.f32 0.0, %v1558
        %v1560 = vpop.f32.mrb[0].mxu0
        %1561 = vmatprep.mubr.f32.mxu0 0.0
        %1562 = vmatmul.mubr.f32.gmra.mrb[0].mxu0 %v1460
        %v1563 = vpop.f32.mrb[0].mxu0
        %v1564 = vadd.f32 0.0, %v1563
        %v1565 = vpop.f32.mrb[0].mxu0
        %1566 = vdwg.mxu0
        %v1568 = vsel %vm562, %v1529, 0
        %v1571 = vsel %vm562, %v1534, 0
        %v1574 = vsel %vm562, %v1539, 0
        %v1577 = vsel %vm562, %v1544, 0
        %v1580 = vsel %vm562, %v1549, 0
        %v1583 = vsel %vm562, %v1554, 0
        %v1586 = vsel %vm562, %v1559, 0
        %v1589 = vsel %vm562, %v1564, 0
        %1591 = vmatprep.subr.mxu0 0.0
        %1592 = vmatpush1.msra.mxu0 %v1166
        %1593 = vmatprep.subr.mxu0 0.0
        %1594 = vmatpush1.msra.mxu0 %v1167
        %1595 = vmatprep.subr.mxu0 0.0
        %1596 = vmatpush1.msra.mxu0 %v1168
        %1597 = vmatprep.subr.mxu0 0.0
        %1598 = vmatpush1.msra.mxu0 %v1169
        %1599 = vmatprep.subr.mxu0 0.0
        %1600 = vmatpush1.msra.mxu0 %v1170
        %1601 = vmatprep.subr.mxu0 0.0
        %1602 = vmatpush1.msra.mxu0 %v1171
        %1603 = vmatprep.subr.mxu0 0.0
        %1604 = vmatpush1.msra.mxu0 %v1172
        %1605 = vmatprep.subr.mxu0 0.0
        %1606 = vmatpush1.msra.mxu0 %v1173
        %1607 = vmatprep.subr.mxu0 0.0
        %1608 = vmatpush1.msra.mxu0 0.0
        %1609 = vmatprep.subr.mxu0 0.0
        %1610 = vmatpush1.msra.mxu0 0.0
        %1611 = vmatprep.subr.mxu0 0.0
        %1612 = vmatpush1.msra.mxu0 0.0
        %1613 = vmatprep.subr.mxu0 0.0
        %1614 = vmatpush1.msra.mxu0 0.0
        %1615 = vmatprep.subr.mxu0 0.0
        %1616 = vmatpush1.msra.mxu0 0.0
        %1617 = vmatprep.subr.mxu0 0.0
        %1618 = vmatpush1.msra.mxu0 0.0
        %1619 = vmatprep.subr.mxu0 0.0
        %1620 = vmatpush1.msra.mxu0 0.0
        %1621 = vmatprep.subr.mxu0 0.0
        %1622 = vmatpush1.msra.mxu0 0.0
        %1623 = vmatprep.subr.mxu0 0.0
        %1624 = vmatpush1.msra.mxu0 0.0
        %1625 = vmatprep.subr.mxu0 0.0
        %1626 = vmatpush1.msra.mxu0 0.0
        %1627 = vmatprep.subr.mxu0 0.0
        %1628 = vmatpush1.msra.mxu0 0.0
        %1629 = vmatprep.subr.mxu0 0.0
        %1630 = vmatpush1.msra.mxu0 0.0
        %1631 = vmatprep.subr.mxu0 0.0
        %1632 = vmatpush1.msra.mxu0 0.0
        %1633 = vmatprep.subr.mxu0 0.0
        %1634 = vmatpush1.msra.mxu0 0.0
        %1635 = vmatprep.subr.mxu0 0.0
        %1636 = vmatpush1.msra.mxu0 0.0
        %1637 = vmatprep.subr.mxu0 0.0
        %1638 = vmatpush1.msra.mxu0 0.0
        %1639 = vmatprep.subr.mxu0 0.0
        %1640 = vmatpush1.msra.mxu0 0.0
        %1641 = vmatprep.subr.mxu0 0.0
        %1642 = vmatpush1.msra.mxu0 0.0
        %1643 = vmatprep.subr.mxu0 0.0
        %1644 = vmatpush1.msra.mxu0 0.0
        %1645 = vmatprep.subr.mxu0 0.0
        %1646 = vmatpush1.msra.mxu0 0.0
        %1647 = vmatprep.subr.mxu0 0.0
        %1648 = vmatpush1.msra.mxu0 0.0
        %1649 = vmatprep.subr.mxu0 0.0
        %1650 = vmatpush1.msra.mxu0 0.0
        %1651 = vmatprep.subr.mxu0 0.0
        %1652 = vmatpush1.msra.mxu0 0.0
        %1653 = vmatprep.subr.mxu0 0.0
        %1654 = vmatpush1.msra.mxu0 0.0
        %1655 = vmatprep.mubr.f32.mxu0 0.0
        %1656 = vmatmul.mubr.f32.gmra.mrb[0].mxu0 %v1568
        %v1657 = vpop.f32.mrb[0].mxu0
        %v1658 = vadd.f32 0.0, %v1657
        %v1659 = vpop.f32.mrb[0].mxu0
        %1660 = vmatprep.mubr.f32.mxu0 0.0
        %1661 = vmatmul.mubr.f32.gmra.mrb[0].mxu0 %v1571
        %v1662 = vpop.f32.mrb[0].mxu0
        %v1663 = vadd.f32 0.0, %v1662
        %v1664 = vpop.f32.mrb[0].mxu0
        %1665 = vmatprep.mubr.f32.mxu0 0.0
        %1666 = vmatmul.mubr.f32.gmra.mrb[0].mxu0 %v1574
        %v1667 = vpop.f32.mrb[0].mxu0
        %v1668 = vadd.f32 0.0, %v1667
        %v1669 = vpop.f32.mrb[0].mxu0
        %1670 = vmatprep.mubr.f32.mxu0 0.0
        %1671 = vmatmul.mubr.f32.gmra.mrb[0].mxu0 %v1577
        %v1672 = vpop.f32.mrb[0].mxu0
        %v1673 = vadd.f32 0.0, %v1672
        %v1674 = vpop.f32.mrb[0].mxu0
        %1675 = vmatprep.mubr.f32.mxu0 0.0
        %1676 = vmatmul.mubr.f32.gmra.mrb[0].mxu0 %v1580
        %v1677 = vpop.f32.mrb[0].mxu0
        %v1678 = vadd.f32 0.0, %v1677
        %v1679 = vpop.f32.mrb[0].mxu0
        %1680 = vmatprep.mubr.f32.mxu0 0.0
        %1681 = vmatmul.mubr.f32.gmra.mrb[0].mxu0 %v1583
        %v1682 = vpop.f32.mrb[0].mxu0
        %v1683 = vadd.f32 0.0, %v1682
        %v1684 = vpop.f32.mrb[0].mxu0
        %1685 = vmatprep.mubr.f32.mxu0 0.0
        %1686 = vmatmul.mubr.f32.gmra.mrb[0].mxu0 %v1586
        %v1687 = vpop.f32.mrb[0].mxu0
        %v1688 = vadd.f32 0.0, %v1687
        %v1689 = vpop.f32.mrb[0].mxu0
        %1690 = vmatprep.mubr.f32.mxu0 0.0
        %1691 = vmatmul.mubr.f32.gmra.mrb[0].mxu0 %v1589
        %v1692 = vpop.f32.mrb[0].mxu0
        %v1693 = vadd.f32 0.0, %v1692
        %v1694 = vpop.f32.mrb[0].mxu0
        %1695 = vdwg.mxu0
        %v1696 = vlaneseq
        %v1697 = vshrl.u32 %v1696, 7
        %v1698 = vsub.s32 1, %v1697
        %v1699 = vrot.slane %v1175, %v1698
        %vm1700 = vcmp.eq.s32.totalorder %v1699, 1
        %v1702 = vsel %vm562, %v822, 0
        %v1705 = vsel %vm562, %v827, 0
        %v1708 = vsel %vm562, %v832, 0
        %v1711 = vsel %vm562, %v837, 0
        %v1714 = vsel %vm562, %v842, 0
        %v1717 = vsel %vm562, %v847, 0
        %v1720 = vsel %vm562, %v852, 0
        %v1723 = vsel %vm562, %v857, 0
        %v1726 = vsel %vm562, %v975, 0
        %v1729 = vsel %vm562, %v980, 0
        %v1732 = vsel %vm562, %v985, 0
        %v1735 = vsel %vm562, %v990, 0
        %v1738 = vsel %vm562, %v995, 0
        %v1741 = vsel %vm562, %v1000, 0
        %v1744 = vsel %vm562, %v1005, 0
        %v1747 = vsel %vm562, %v1010, 0
        %1749 = vmatprep.subr.mxu0 0.0
        %1750 = vmatpush1.xpose.msra.mxu0 %v1726
        %1751 = vmatprep.subr.mxu0 0.0
        %1752 = vmatpush1.xpose.msra.mxu0 %v1729
        %1753 = vmatprep.subr.mxu0 0.0
        %1754 = vmatpush1.xpose.msra.mxu0 %v1732
        %1755 = vmatprep.subr.mxu0 0.0
        %1756 = vmatpush1.xpose.msra.mxu0 %v1735
        %1757 = vmatprep.subr.mxu0 0.0
        %1758 = vmatpush1.xpose.msra.mxu0 %v1738
        %1759 = vmatprep.subr.mxu0 0.0
        %1760 = vmatpush1.xpose.msra.mxu0 %v1741
        %1761 = vmatprep.subr.mxu0 0.0
        %1762 = vmatpush1.xpose.msra.mxu0 %v1744
        %1763 = vmatprep.subr.mxu0 0.0
        %1764 = vmatpush1.xpose.msra.mxu0 %v1747
        %1765 = vmatprep.subr.mxu0 0.0
        %1766 = vmatpush1.xpose.msra.mxu0 0.0
        %1767 = vmatprep.subr.mxu0 0.0
        %1768 = vmatpush1.xpose.msra.mxu0 0.0
        %1769 = vmatprep.subr.mxu0 0.0
        %1770 = vmatpush1.xpose.msra.mxu0 0.0
        %1771 = vmatprep.subr.mxu0 0.0
        %1772 = vmatpush1.xpose.msra.mxu0 0.0
        %1773 = vmatprep.subr.mxu0 0.0
        %1774 = vmatpush1.xpose.msra.mxu0 0.0
        %1775 = vmatprep.subr.mxu0 0.0
        %1776 = vmatpush1.xpose.msra.mxu0 0.0
        %1777 = vmatprep.subr.mxu0 0.0
        %1778 = vmatpush1.xpose.msra.mxu0 0.0
        %1779 = vmatprep.subr.mxu0 0.0
        %1780 = vmatpush1.xpose.msra.mxu0 0.0
        %1781 = vmatprep.subr.mxu0 0.0
        %1782 = vmatpush1.xpose.msra.mxu0 0.0
        %1783 = vmatprep.subr.mxu0 0.0
        %1784 = vmatpush1.xpose.msra.mxu0 0.0
        %1785 = vmatprep.subr.mxu0 0.0
        %1786 = vmatpush1.xpose.msra.mxu0 0.0
        %1787 = vmatprep.subr.mxu0 0.0
        %1788 = vmatpush1.xpose.msra.mxu0 0.0
        %1789 = vmatprep.subr.mxu0 0.0
        %1790 = vmatpush1.xpose.msra.mxu0 0.0
        %1791 = vmatprep.subr.mxu0 0.0
        %1792 = vmatpush1.xpose.msra.mxu0 0.0
        %1793 = vmatprep.subr.mxu0 0.0
        %1794 = vmatpush1.xpose.msra.mxu0 0.0
        %1795 = vmatprep.subr.mxu0 0.0
        %1796 = vmatpush1.xpose.msra.mxu0 0.0
        %1797 = vmatprep.subr.mxu0 0.0
        %1798 = vmatpush1.xpose.msra.mxu0 0.0
        %1799 = vmatprep.subr.mxu0 0.0
        %1800 = vmatpush1.xpose.msra.mxu0 0.0
        %1801 = vmatprep.subr.mxu0 0.0
        %1802 = vmatpush1.xpose.msra.mxu0 0.0
        %1803 = vmatprep.subr.mxu0 0.0
        %1804 = vmatpush1.xpose.msra.mxu0 0.0
        %1805 = vmatprep.subr.mxu0 0.0
        %1806 = vmatpush1.xpose.msra.mxu0 0.0
        %1807 = vmatprep.subr.mxu0 0.0
        %1808 = vmatpush1.xpose.msra.mxu0 0.0
        %1809 = vmatprep.subr.mxu0 0.0
        %1810 = vmatpush1.xpose.msra.mxu0 0.0
        %1811 = vmatprep.subr.mxu0 0.0
        %1812 = vmatpush1.xpose.msra.mxu0 0.0
        %1813 = vmatprep.mubr.f32.mxu0 0.0
        %1814 = vmatmul.mubr.f32.gmra.mrb[0].mxu0 %v1702
        %v1815 = vpop.f32.mrb[0].mxu0
        %v1816 = vadd.f32 0.0, %v1815
        %v1817 = vpop.f32.mrb[0].mxu0
        %1818 = vmatprep.mubr.f32.mxu0 0.0
        %1819 = vmatmul.mubr.f32.gmra.mrb[0].mxu0 %v1705
        %v1820 = vpop.f32.mrb[0].mxu0
        %v1821 = vadd.f32 0.0, %v1820
        %v1822 = vpop.f32.mrb[0].mxu0
        %1823 = vmatprep.mubr.f32.mxu0 0.0
        %1824 = vmatmul.mubr.f32.gmra.mrb[0].mxu0 %v1708
        %v1825 = vpop.f32.mrb[0].mxu0
        %v1826 = vadd.f32 0.0, %v1825
        %v1827 = vpop.f32.mrb[0].mxu0
        %1828 = vmatprep.mubr.f32.mxu0 0.0
        %1829 = vmatmul.mubr.f32.gmra.mrb[0].mxu0 %v1711
        %v1830 = vpop.f32.mrb[0].mxu0
        %v1831 = vadd.f32 0.0, %v1830
        %v1832 = vpop.f32.mrb[0].mxu0
        %1833 = vmatprep.mubr.f32.mxu0 0.0
        %1834 = vmatmul.mubr.f32.gmra.mrb[0].mxu0 %v1714
        %v1835 = vpop.f32.mrb[0].mxu0
        %v1836 = vadd.f32 0.0, %v1835
        %v1837 = vpop.f32.mrb[0].mxu0
        %1838 = vmatprep.mubr.f32.mxu0 0.0
        %1839 = vmatmul.mubr.f32.gmra.mrb[0].mxu0 %v1717
        %v1840 = vpop.f32.mrb[0].mxu0
        %v1841 = vadd.f32 0.0, %v1840
        %v1842 = vpop.f32.mrb[0].mxu0
        %1843 = vmatprep.mubr.f32.mxu0 0.0
        %1844 = vmatmul.mubr.f32.gmra.mrb[0].mxu0 %v1720
        %v1845 = vpop.f32.mrb[0].mxu0
        %v1846 = vadd.f32 0.0, %v1845
        %v1847 = vpop.f32.mrb[0].mxu0
        %1848 = vmatprep.mubr.f32.mxu0 0.0
        %1849 = vmatmul.mubr.f32.gmra.mrb[0].mxu0 %v1723
        %v1850 = vpop.f32.mrb[0].mxu0
        %v1851 = vadd.f32 0.0, %v1850
        %v1852 = vpop.f32.mrb[0].mxu0
        %1853 = vdwg.mxu0
        %v1854 = vsel %vm1700, -1e+09, %v1816
        %v1855 = vsel %vm1700, -1e+09, %v1821
        %v1856 = vsel %vm1700, -1e+09, %v1826
        %v1857 = vsel %vm1700, -1e+09, %v1831
        %v1858 = vsel %vm1700, -1e+09, %v1836
        %v1859 = vsel %vm1700, -1e+09, %v1841
        %v1860 = vsel %vm1700, -1e+09, %v1846
        %v1861 = vsel %vm1700, -1e+09, %v1851
        %v1862 = vsel %vm562, %v1854, -inf
        %1863 = vmax.xlane.f32.xlu0 %v1862
        %v1864 = vpop.xlane.xlu0 %1863
        %v1865 = vsel %vm562, %v1855, -inf
        %1866 = vmax.xlane.f32.xlu0 %v1865
        %v1867 = vpop.xlane.xlu0 %1866
        %v1868 = vsel %vm562, %v1856, -inf
        %1869 = vmax.xlane.f32.xlu0 %v1868
        %v1870 = vpop.xlane.xlu0 %1869
        %v1871 = vsel %vm562, %v1857, -inf
        %1872 = vmax.xlane.f32.xlu0 %v1871
        %v1873 = vpop.xlane.xlu0 %1872
        %v1874 = vsel %vm562, %v1858, -inf
        %1875 = vmax.xlane.f32.xlu0 %v1874
        %v1876 = vpop.xlane.xlu0 %1875
        %v1877 = vsel %vm562, %v1859, -inf
        %1878 = vmax.xlane.f32.xlu0 %v1877
        %v1879 = vpop.xlane.xlu0 %1878
        %v1880 = vsel %vm562, %v1860, -inf
        %1881 = vmax.xlane.f32.xlu0 %v1880
        %v1882 = vpop.xlane.xlu0 %1881
        %v1883 = vsel %vm562, %v1861, -inf
        %1884 = vmax.xlane.f32.xlu0 %v1883
        %v1885 = vpop.xlane.xlu0 %1884
        %v1886 = vsub.f32 %v1854, %v1864
        %v1887 = vsub.f32 %v1855, %v1867
        %v1888 = vsub.f32 %v1856, %v1870
        %v1889 = vsub.f32 %v1857, %v1873
        %v1890 = vsub.f32 %v1858, %v1876
        %v1891 = vsub.f32 %v1859, %v1879
        %v1892 = vsub.f32 %v1860, %v1882
        %v1893 = vsub.f32 %v1861, %v1885
        %v1894 = vmul.f32 %v1886, 1.442695
        %v1895 = vpow.pop %v1894
        %v1896 = vmul.f32 %v1887, 1.442695
        %v1897 = vpow.pop %v1896
        %v1898 = vmul.f32 %v1888, 1.442695
        %v1899 = vpow.pop %v1898
        %v1900 = vmul.f32 %v1889, 1.442695
        %v1901 = vpow.pop %v1900
        %v1902 = vmul.f32 %v1890, 1.442695
        %v1903 = vpow.pop %v1902
        %v1904 = vmul.f32 %v1891, 1.442695
        %v1905 = vpow.pop %v1904
        %v1906 = vmul.f32 %v1892, 1.442695
        %v1907 = vpow.pop %v1906
        %v1908 = vmul.f32 %v1893, 1.442695
        %v1909 = vpow.pop %v1908
        %v1910 = vsel %vm562, %v1895, 0.0
        %1911 = vadd.xlane.f32.xlu0 %v1910
        %v1912 = vpop.xlane.xlu0 %1911
        %v1913 = vsel %vm562, %v1897, 0.0
        %1914 = vadd.xlane.f32.xlu0 %v1913
        %v1915 = vpop.xlane.xlu0 %1914
        %v1916 = vsel %vm562, %v1899, 0.0
        %1917 = vadd.xlane.f32.xlu0 %v1916
        %v1918 = vpop.xlane.xlu0 %1917
        %v1919 = vsel %vm562, %v1901, 0.0
        %1920 = vadd.xlane.f32.xlu0 %v1919
        %v1921 = vpop.xlane.xlu0 %1920
        %v1922 = vsel %vm562, %v1903, 0.0
        %1923 = vadd.xlane.f32.xlu0 %v1922
        %v1924 = vpop.xlane.xlu0 %1923
        %v1925 = vsel %vm562, %v1905, 0.0
        %1926 = vadd.xlane.f32.xlu0 %v1925
        %v1927 = vpop.xlane.xlu0 %1926
        %v1928 = vsel %vm562, %v1907, 0.0
        %1929 = vadd.xlane.f32.xlu0 %v1928
        %v1930 = vpop.xlane.xlu0 %1929
        %v1931 = vsel %vm562, %v1909, 0.0
        %1932 = vadd.xlane.f32.xlu0 %v1931
        %v1933 = vpop.xlane.xlu0 %1932
        %v1934 = vrcp.pop %v1912
        %v1935 = vrcp.pop %v1915
        %v1936 = vrcp.pop %v1918
        %v1937 = vrcp.pop %v1921
        %v1938 = vrcp.pop %v1924
        %v1939 = vrcp.pop %v1927
        %v1940 = vrcp.pop %v1930
        %v1941 = vrcp.pop %v1933
        %v1942 = vmul.f32 %v1895, %v1934
        %v1943 = vmul.f32 %v1897, %v1935
        %v1944 = vmul.f32 %v1899, %v1936
        %v1945 = vmul.f32 %v1901, %v1937
        %v1946 = vmul.f32 %v1903, %v1938
        %v1947 = vmul.f32 %v1905, %v1939
        %v1948 = vmul.f32 %v1907, %v1940
        %v1949 = vmul.f32 %v1909, %v1941
        %s1950 = scalar_lea.vmem %s544, 64
        %1951 = vst.msk [vmem:[%s1950] sm:$0xff] %vm562, %v1942
        %1952 = vst.msk [vmem:[%s1950 + $0x8] sm:$0xff] %vm562, %v1943
        %1953 = vst.msk [vmem:[%s1950 + $0x10] sm:$0xff] %vm562, %v1944
        %1954 = vst.msk [vmem:[%s1950 + $0x18] sm:$0xff] %vm562, %v1945
        %1955 = vst.msk [vmem:[%s1950 + $0x20] sm:$0xff] %vm562, %v1946
        %1956 = vst.msk [vmem:[%s1950 + $0x28] sm:$0xff] %vm562, %v1947
        %1957 = vst.msk [vmem:[%s1950 + $0x30] sm:$0xff] %vm562, %v1948
        %1958 = vst.msk [vmem:[%s1950 + $0x38] sm:$0xff] %vm562, %v1949
        %v1960 = vsel %vm562, %v1942, 0
        %v1963 = vsel %vm562, %v1943, 0
        %v1966 = vsel %vm562, %v1944, 0
        %v1969 = vsel %vm562, %v1945, 0
        %v1972 = vsel %vm562, %v1946, 0
        %v1975 = vsel %vm562, %v1947, 0
        %v1978 = vsel %vm562, %v1948, 0
        %v1981 = vsel %vm562, %v1949, 0
        %1983 = vmatprep.subr.mxu0 0.0
        %1984 = vmatpush1.msra.mxu0 %v1128
        %1985 = vmatprep.subr.mxu0 0.0
        %1986 = vmatpush1.msra.mxu0 %v1133
        %1987 = vmatprep.subr.mxu0 0.0
        %1988 = vmatpush1.msra.mxu0 %v1138
        %1989 = vmatprep.subr.mxu0 0.0
        %1990 = vmatpush1.msra.mxu0 %v1143
        %1991 = vmatprep.subr.mxu0 0.0
        %1992 = vmatpush1.msra.mxu0 %v1148
        %1993 = vmatprep.subr.mxu0 0.0
        %1994 = vmatpush1.msra.mxu0 %v1153
        %1995 = vmatprep.subr.mxu0 0.0
        %1996 = vmatpush1.msra.mxu0 %v1158
        %1997 = vmatprep.subr.mxu0 0.0
        %1998 = vmatpush1.msra.mxu0 %v1163
        %1999 = vmatprep.subr.mxu0 0.0
        %2000 = vmatpush1.msra.mxu0 0.0
        %2001 = vmatprep.subr.mxu0 0.0
        %2002 = vmatpush1.msra.mxu0 0.0
        %2003 = vmatprep.subr.mxu0 0.0
        %2004 = vmatpush1.msra.mxu0 0.0
        %2005 = vmatprep.subr.mxu0 0.0
        %2006 = vmatpush1.msra.mxu0 0.0
        %2007 = vmatprep.subr.mxu0 0.0
        %2008 = vmatpush1.msra.mxu0 0.0
        %2009 = vmatprep.subr.mxu0 0.0
        %2010 = vmatpush1.msra.mxu0 0.0
        %2011 = vmatprep.subr.mxu0 0.0
        %2012 = vmatpush1.msra.mxu0 0.0
        %2013 = vmatprep.subr.mxu0 0.0
        %2014 = vmatpush1.msra.mxu0 0.0
        %2015 = vmatprep.subr.mxu0 0.0
        %2016 = vmatpush1.msra.mxu0 0.0
        %2017 = vmatprep.subr.mxu0 0.0
        %2018 = vmatpush1.msra.mxu0 0.0
        %2019 = vmatprep.subr.mxu0 0.0
        %2020 = vmatpush1.msra.mxu0 0.0
        %2021 = vmatprep.subr.mxu0 0.0
        %2022 = vmatpush1.msra.mxu0 0.0
        %2023 = vmatprep.subr.mxu0 0.0
        %2024 = vmatpush1.msra.mxu0 0.0
        %2025 = vmatprep.subr.mxu0 0.0
        %2026 = vmatpush1.msra.mxu0 0.0
        %2027 = vmatprep.subr.mxu0 0.0
        %2028 = vmatpush1.msra.mxu0 0.0
        %2029 = vmatprep.subr.mxu0 0.0
        %2030 = vmatpush1.msra.mxu0 0.0
        %2031 = vmatprep.subr.mxu0 0.0
        %2032 = vmatpush1.msra.mxu0 0.0
        %2033 = vmatprep.subr.mxu0 0.0
        %2034 = vmatpush1.msra.mxu0 0.0
        %2035 = vmatprep.subr.mxu0 0.0
        %2036 = vmatpush1.msra.mxu0 0.0
        %2037 = vmatprep.subr.mxu0 0.0
        %2038 = vmatpush1.msra.mxu0 0.0
        %2039 = vmatprep.subr.mxu0 0.0
        %2040 = vmatpush1.msra.mxu0 0.0
        %2041 = vmatprep.subr.mxu0 0.0
        %2042 = vmatpush1.msra.mxu0 0.0
        %2043 = vmatprep.subr.mxu0 0.0
        %2044 = vmatpush1.msra.mxu0 0.0
        %2045 = vmatprep.subr.mxu0 0.0
        %2046 = vmatpush1.msra.mxu0 0.0
        %2047 = vmatprep.mubr.f32.mxu0 0.0
        %2048 = vmatmul.mubr.f32.gmra.mrb[0].mxu0 %v1960
        %v2049 = vpop.f32.mrb[0].mxu0
        %v2050 = vadd.f32 0.0, %v2049
        %v2051 = vpop.f32.mrb[0].mxu0
        %2052 = vmatprep.mubr.f32.mxu0 0.0
        %2053 = vmatmul.mubr.f32.gmra.mrb[0].mxu0 %v1963
        %v2054 = vpop.f32.mrb[0].mxu0
        %v2055 = vadd.f32 0.0, %v2054
        %v2056 = vpop.f32.mrb[0].mxu0
        %2057 = vmatprep.mubr.f32.mxu0 0.0
        %2058 = vmatmul.mubr.f32.gmra.mrb[0].mxu0 %v1966
        %v2059 = vpop.f32.mrb[0].mxu0
        %v2060 = vadd.f32 0.0, %v2059
        %v2061 = vpop.f32.mrb[0].mxu0
        %2062 = vmatprep.mubr.f32.mxu0 0.0
        %2063 = vmatmul.mubr.f32.gmra.mrb[0].mxu0 %v1969
        %v2064 = vpop.f32.mrb[0].mxu0
        %v2065 = vadd.f32 0.0, %v2064
        %v2066 = vpop.f32.mrb[0].mxu0
        %2067 = vmatprep.mubr.f32.mxu0 0.0
        %2068 = vmatmul.mubr.f32.gmra.mrb[0].mxu0 %v1972
        %v2069 = vpop.f32.mrb[0].mxu0
        %v2070 = vadd.f32 0.0, %v2069
        %v2071 = vpop.f32.mrb[0].mxu0
        %2072 = vmatprep.mubr.f32.mxu0 0.0
        %2073 = vmatmul.mubr.f32.gmra.mrb[0].mxu0 %v1975
        %v2074 = vpop.f32.mrb[0].mxu0
        %v2075 = vadd.f32 0.0, %v2074
        %v2076 = vpop.f32.mrb[0].mxu0
        %2077 = vmatprep.mubr.f32.mxu0 0.0
        %2078 = vmatmul.mubr.f32.gmra.mrb[0].mxu0 %v1978
        %v2079 = vpop.f32.mrb[0].mxu0
        %v2080 = vadd.f32 0.0, %v2079
        %v2081 = vpop.f32.mrb[0].mxu0
        %2082 = vmatprep.mubr.f32.mxu0 0.0
        %2083 = vmatmul.mubr.f32.gmra.mrb[0].mxu0 %v1981
        %v2084 = vpop.f32.mrb[0].mxu0
        %v2085 = vadd.f32 0.0, %v2084
        %v2086 = vpop.f32.mrb[0].mxu0
        %2087 = vdwg.mxu0
        %v2089 = vsel %vm562, %v2050, 0
        %v2092 = vsel %vm562, %v2055, 0
        %v2095 = vsel %vm562, %v2060, 0
        %v2098 = vsel %vm562, %v2065, 0
        %v2101 = vsel %vm562, %v2070, 0
        %v2104 = vsel %vm562, %v2075, 0
        %v2107 = vsel %vm562, %v2080, 0
        %v2110 = vsel %vm562, %v2085, 0
        %2112 = vmatprep.subr.mxu0 0.0
        %2113 = vmatpush1.msra.mxu0 %v1166
        %2114 = vmatprep.subr.mxu0 0.0
        %2115 = vmatpush1.msra.mxu0 %v1167
        %2116 = vmatprep.subr.mxu0 0.0
        %2117 = vmatpush1.msra.mxu0 %v1168
        %2118 = vmatprep.subr.mxu0 0.0
        %2119 = vmatpush1.msra.mxu0 %v1169
        %2120 = vmatprep.subr.mxu0 0.0
        %2121 = vmatpush1.msra.mxu0 %v1170
        %2122 = vmatprep.subr.mxu0 0.0
        %2123 = vmatpush1.msra.mxu0 %v1171
        %2124 = vmatprep.subr.mxu0 0.0
        %2125 = vmatpush1.msra.mxu0 %v1172
        %2126 = vmatprep.subr.mxu0 0.0
        %2127 = vmatpush1.msra.mxu0 %v1173
        %2128 = vmatprep.subr.mxu0 0.0
        %2129 = vmatpush1.msra.mxu0 0.0
        %2130 = vmatprep.subr.mxu0 0.0
        %2131 = vmatpush1.msra.mxu0 0.0
        %2132 = vmatprep.subr.mxu0 0.0
        %2133 = vmatpush1.msra.mxu0 0.0
        %2134 = vmatprep.subr.mxu0 0.0
        %2135 = vmatpush1.msra.mxu0 0.0
        %2136 = vmatprep.subr.mxu0 0.0
        %2137 = vmatpush1.msra.mxu0 0.0
        %2138 = vmatprep.subr.mxu0 0.0
        %2139 = vmatpush1.msra.mxu0 0.0
        %2140 = vmatprep.subr.mxu0 0.0
        %2141 = vmatpush1.msra.mxu0 0.0
        %2142 = vmatprep.subr.mxu0 0.0
        %2143 = vmatpush1.msra.mxu0 0.0
        %2144 = vmatprep.subr.mxu0 0.0
        %2145 = vmatpush1.msra.mxu0 0.0
        %2146 = vmatprep.subr.mxu0 0.0
        %2147 = vmatpush1.msra.mxu0 0.0
        %2148 = vmatprep.subr.mxu0 0.0
        %2149 = vmatpush1.msra.mxu0 0.0
        %2150 = vmatprep.subr.mxu0 0.0
        %2151 = vmatpush1.msra.mxu0 0.0
        %2152 = vmatprep.subr.mxu0 0.0
        %2153 = vmatpush1.msra.mxu0 0.0
        %2154 = vmatprep.subr.mxu0 0.0
        %2155 = vmatpush1.msra.mxu0 0.0
        %2156 = vmatprep.subr.mxu0 0.0
        %2157 = vmatpush1.msra.mxu0 0.0
        %2158 = vmatprep.subr.mxu0 0.0
        %2159 = vmatpush1.msra.mxu0 0.0
        %2160 = vmatprep.subr.mxu0 0.0
        %2161 = vmatpush1.msra.mxu0 0.0
        %2162 = vmatprep.subr.mxu0 0.0
        %2163 = vmatpush1.msra.mxu0 0.0
        %2164 = vmatprep.subr.mxu0 0.0
        %2165 = vmatpush1.msra.mxu0 0.0
        %2166 = vmatprep.subr.mxu0 0.0
        %2167 = vmatpush1.msra.mxu0 0.0
        %2168 = vmatprep.subr.mxu0 0.0
        %2169 = vmatpush1.msra.mxu0 0.0
        %2170 = vmatprep.subr.mxu0 0.0
        %2171 = vmatpush1.msra.mxu0 0.0
        %2172 = vmatprep.subr.mxu0 0.0
        %2173 = vmatpush1.msra.mxu0 0.0
        %2174 = vmatprep.subr.mxu0 0.0
        %2175 = vmatpush1.msra.mxu0 0.0
        %2176 = vmatprep.mubr.f32.mxu0 0.0
        %2177 = vmatmul.mubr.f32.gmra.mrb[0].mxu0 %v2089
        %v2178 = vpop.f32.mrb[0].mxu0
        %v2179 = vadd.f32 0.0, %v2178
        %v2180 = vpop.f32.mrb[0].mxu0
        %2181 = vmatprep.mubr.f32.mxu0 0.0
        %2182 = vmatmul.mubr.f32.gmra.mrb[0].mxu0 %v2092
        %v2183 = vpop.f32.mrb[0].mxu0
        %v2184 = vadd.f32 0.0, %v2183
        %v2185 = vpop.f32.mrb[0].mxu0
        %2186 = vmatprep.mubr.f32.mxu0 0.0
        %2187 = vmatmul.mubr.f32.gmra.mrb[0].mxu0 %v2095
        %v2188 = vpop.f32.mrb[0].mxu0
        %v2189 = vadd.f32 0.0, %v2188
        %v2190 = vpop.f32.mrb[0].mxu0
        %2191 = vmatprep.mubr.f32.mxu0 0.0
        %2192 = vmatmul.mubr.f32.gmra.mrb[0].mxu0 %v2098
        %v2193 = vpop.f32.mrb[0].mxu0
        %v2194 = vadd.f32 0.0, %v2193
        %v2195 = vpop.f32.mrb[0].mxu0
        %2196 = vmatprep.mubr.f32.mxu0 0.0
        %2197 = vmatmul.mubr.f32.gmra.mrb[0].mxu0 %v2101
        %v2198 = vpop.f32.mrb[0].mxu0
        %v2199 = vadd.f32 0.0, %v2198
        %v2200 = vpop.f32.mrb[0].mxu0
        %2201 = vmatprep.mubr.f32.mxu0 0.0
        %2202 = vmatmul.mubr.f32.gmra.mrb[0].mxu0 %v2104
        %v2203 = vpop.f32.mrb[0].mxu0
        %v2204 = vadd.f32 0.0, %v2203
        %v2205 = vpop.f32.mrb[0].mxu0
        %2206 = vmatprep.mubr.f32.mxu0 0.0
        %2207 = vmatmul.mubr.f32.gmra.mrb[0].mxu0 %v2107
        %v2208 = vpop.f32.mrb[0].mxu0
        %v2209 = vadd.f32 0.0, %v2208
        %v2210 = vpop.f32.mrb[0].mxu0
        %2211 = vmatprep.mubr.f32.mxu0 0.0
        %2212 = vmatmul.mubr.f32.gmra.mrb[0].mxu0 %v2110
        %v2213 = vpop.f32.mrb[0].mxu0
        %v2214 = vadd.f32 0.0, %v2213
        %v2215 = vpop.f32.mrb[0].mxu0
        %2216 = vdwg.mxu0
        %v2217 = vadd.f32 %v1658, %v642
        %v2218 = vadd.f32 %v1663, %v643
        %v2219 = vadd.f32 %v1668, %v644
        %v2220 = vadd.f32 %v1673, %v645
        %v2221 = vadd.f32 %v1678, %v646
        %v2222 = vadd.f32 %v1683, %v647
        %v2223 = vadd.f32 %v1688, %v648
        %v2224 = vadd.f32 %v1693, %v649
        %v2225 = vadd.f32 %v2179, %v650
        %v2226 = vadd.f32 %v2184, %v651
        %v2227 = vadd.f32 %v2189, %v652
        %v2228 = vadd.f32 %v2194, %v653
        %v2229 = vadd.f32 %v2199, %v654
        %v2230 = vadd.f32 %v2204, %v655
        %v2231 = vadd.f32 %v2209, %v656
        %v2232 = vadd.f32 %v2214, %v657
        %v2233 = vsel %vm562, %v2217, 0.0
        %2234 = vadd.xlane.f32.xlu0 %v2233
        %v2235 = vpop.xlane.xlu0 %2234
        %v2236 = vsel %vm562, %v2218, 0.0
        %2237 = vadd.xlane.f32.xlu0 %v2236
        %v2238 = vpop.xlane.xlu0 %2237
        %v2239 = vsel %vm562, %v2219, 0.0
        %2240 = vadd.xlane.f32.xlu0 %v2239
        %v2241 = vpop.xlane.xlu0 %2240
        %v2242 = vsel %vm562, %v2220, 0.0
        %2243 = vadd.xlane.f32.xlu0 %v2242
        %v2244 = vpop.xlane.xlu0 %2243
        %v2245 = vsel %vm562, %v2221, 0.0
        %2246 = vadd.xlane.f32.xlu0 %v2245
        %v2247 = vpop.xlane.xlu0 %2246
        %v2248 = vsel %vm562, %v2222, 0.0
        %2249 = vadd.xlane.f32.xlu0 %v2248
        %v2250 = vpop.xlane.xlu0 %2249
        %v2251 = vsel %vm562, %v2223, 0.0
        %2252 = vadd.xlane.f32.xlu0 %v2251
        %v2253 = vpop.xlane.xlu0 %2252
        %v2254 = vsel %vm562, %v2224, 0.0
        %2255 = vadd.xlane.f32.xlu0 %v2254
        %v2256 = vpop.xlane.xlu0 %2255
        %v2257 = vsel %vm562, %v2225, 0.0
        %2258 = vadd.xlane.f32.xlu0 %v2257
        %v2259 = vpop.xlane.xlu0 %2258
        %v2260 = vsel %vm562, %v2226, 0.0
        %2261 = vadd.xlane.f32.xlu0 %v2260
        %v2262 = vpop.xlane.xlu0 %2261
        %v2263 = vsel %vm562, %v2227, 0.0
        %2264 = vadd.xlane.f32.xlu0 %v2263
        %v2265 = vpop.xlane.xlu0 %2264
        %v2266 = vsel %vm562, %v2228, 0.0
        %2267 = vadd.xlane.f32.xlu0 %v2266
        %v2268 = vpop.xlane.xlu0 %2267
        %v2269 = vsel %vm562, %v2229, 0.0
        %2270 = vadd.xlane.f32.xlu0 %v2269
        %v2271 = vpop.xlane.xlu0 %2270
        %v2272 = vsel %vm562, %v2230, 0.0
        %2273 = vadd.xlane.f32.xlu0 %v2272
        %v2274 = vpop.xlane.xlu0 %2273
        %v2275 = vsel %vm562, %v2231, 0.0
        %2276 = vadd.xlane.f32.xlu0 %v2275
        %v2277 = vpop.xlane.xlu0 %2276
        %v2278 = vsel %vm562, %v2232, 0.0
        %2279 = vadd.xlane.f32.xlu0 %v2278
        %v2280 = vpop.xlane.xlu0 %2279
        %v2281 = vrcp.pop 64.0
        %v2282 = vmul.f32 %v2235, %v2281
        %v2283 = vmul.f32 %v2238, %v2281
        %v2284 = vmul.f32 %v2241, %v2281
        %v2285 = vmul.f32 %v2244, %v2281
        %v2286 = vmul.f32 %v2247, %v2281
        %v2287 = vmul.f32 %v2250, %v2281
        %v2288 = vmul.f32 %v2253, %v2281
        %v2289 = vmul.f32 %v2256, %v2281
        %v2290 = vmul.f32 %v2259, %v2281
        %v2291 = vmul.f32 %v2262, %v2281
        %v2292 = vmul.f32 %v2265, %v2281
        %v2293 = vmul.f32 %v2268, %v2281
        %v2294 = vmul.f32 %v2271, %v2281
        %v2295 = vmul.f32 %v2274, %v2281
        %v2296 = vmul.f32 %v2277, %v2281
        %v2297 = vmul.f32 %v2280, %v2281
        %v2298 = vsub.f32 %v2217, %v2282
        %v2299 = vsub.f32 %v2218, %v2283
        %v2300 = vsub.f32 %v2219, %v2284
        %v2301 = vsub.f32 %v2220, %v2285
        %v2302 = vsub.f32 %v2221, %v2286
        %v2303 = vsub.f32 %v2222, %v2287
        %v2304 = vsub.f32 %v2223, %v2288
        %v2305 = vsub.f32 %v2224, %v2289
        %v2306 = vsub.f32 %v2225, %v2290
        %v2307 = vsub.f32 %v2226, %v2291
        %v2308 = vsub.f32 %v2227, %v2292
        %v2309 = vsub.f32 %v2228, %v2293
        %v2310 = vsub.f32 %v2229, %v2294
        %v2311 = vsub.f32 %v2230, %v2295
        %v2312 = vsub.f32 %v2231, %v2296
        %v2313 = vsub.f32 %v2232, %v2297
        %v2314 = vmul.f32 %v2298, %v2298
        %v2315 = vmul.f32 %v2299, %v2299
        %v2316 = vmul.f32 %v2300, %v2300
        %v2317 = vmul.f32 %v2301, %v2301
        %v2318 = vmul.f32 %v2302, %v2302
        %v2319 = vmul.f32 %v2303, %v2303
        %v2320 = vmul.f32 %v2304, %v2304
        %v2321 = vmul.f32 %v2305, %v2305
        %v2322 = vmul.f32 %v2306, %v2306
        %v2323 = vmul.f32 %v2307, %v2307
        %v2324 = vmul.f32 %v2308, %v2308
        %v2325 = vmul.f32 %v2309, %v2309
        %v2326 = vmul.f32 %v2310, %v2310
        %v2327 = vmul.f32 %v2311, %v2311
        %v2328 = vmul.f32 %v2312, %v2312
        %v2329 = vmul.f32 %v2313, %v2313
        %v2330 = vsel %vm562, %v2314, 0.0
        %2331 = vadd.xlane.f32.xlu0 %v2330
        %v2332 = vpop.xlane.xlu0 %2331
        %v2333 = vsel %vm562, %v2315, 0.0
        %2334 = vadd.xlane.f32.xlu0 %v2333
        %v2335 = vpop.xlane.xlu0 %2334
        %v2336 = vsel %vm562, %v2316, 0.0
        %2337 = vadd.xlane.f32.xlu0 %v2336
        %v2338 = vpop.xlane.xlu0 %2337
        %v2339 = vsel %vm562, %v2317, 0.0
        %2340 = vadd.xlane.f32.xlu0 %v2339
        %v2341 = vpop.xlane.xlu0 %2340
        %v2342 = vsel %vm562, %v2318, 0.0
        %2343 = vadd.xlane.f32.xlu0 %v2342
        %v2344 = vpop.xlane.xlu0 %2343
        %v2345 = vsel %vm562, %v2319, 0.0
        %2346 = vadd.xlane.f32.xlu0 %v2345
        %v2347 = vpop.xlane.xlu0 %2346
        %v2348 = vsel %vm562, %v2320, 0.0
        %2349 = vadd.xlane.f32.xlu0 %v2348
        %v2350 = vpop.xlane.xlu0 %2349
        %v2351 = vsel %vm562, %v2321, 0.0
        %2352 = vadd.xlane.f32.xlu0 %v2351
        %v2353 = vpop.xlane.xlu0 %2352
        %v2354 = vsel %vm562, %v2322, 0.0
        %2355 = vadd.xlane.f32.xlu0 %v2354
        %v2356 = vpop.xlane.xlu0 %2355
        %v2357 = vsel %vm562, %v2323, 0.0
        %2358 = vadd.xlane.f32.xlu0 %v2357
        %v2359 = vpop.xlane.xlu0 %2358
        %v2360 = vsel %vm562, %v2324, 0.0
        %2361 = vadd.xlane.f32.xlu0 %v2360
        %v2362 = vpop.xlane.xlu0 %2361
        %v2363 = vsel %vm562, %v2325, 0.0
        %2364 = vadd.xlane.f32.xlu0 %v2363
        %v2365 = vpop.xlane.xlu0 %2364
        %v2366 = vsel %vm562, %v2326, 0.0
        %2367 = vadd.xlane.f32.xlu0 %v2366
        %v2368 = vpop.xlane.xlu0 %2367
        %v2369 = vsel %vm562, %v2327, 0.0
        %2370 = vadd.xlane.f32.xlu0 %v2369
        %v2371 = vpop.xlane.xlu0 %2370
        %v2372 = vsel %vm562, %v2328, 0.0
        %2373 = vadd.xlane.f32.xlu0 %v2372
        %v2374 = vpop.xlane.xlu0 %2373
        %v2375 = vsel %vm562, %v2329, 0.0
        %2376 = vadd.xlane.f32.xlu0 %v2375
        %v2377 = vpop.xlane.xlu0 %2376
        %v2378 = vmul.f32 %v2332, %v2281
        %v2379 = vmul.f32 %v2335, %v2281
        %v2380 = vmul.f32 %v2338, %v2281
        %v2381 = vmul.f32 %v2341, %v2281
        %v2382 = vmul.f32 %v2344, %v2281
        %v2383 = vmul.f32 %v2347, %v2281
        %v2384 = vmul.f32 %v2350, %v2281
        %v2385 = vmul.f32 %v2353, %v2281
        %v2386 = vmul.f32 %v2356, %v2281
        %v2387 = vmul.f32 %v2359, %v2281
        %v2388 = vmul.f32 %v2362, %v2281
        %v2389 = vmul.f32 %v2365, %v2281
        %v2390 = vmul.f32 %v2368, %v2281
        %v2391 = vmul.f32 %v2371, %v2281
        %v2392 = vmul.f32 %v2374, %v2281
        %v2393 = vmul.f32 %v2377, %v2281
        %v2394 = vadd.f32 %v2378, 1e-05
        %v2395 = vadd.f32 %v2379, 1e-05
        %v2396 = vadd.f32 %v2380, 1e-05
        %v2397 = vadd.f32 %v2381, 1e-05
        %v2398 = vadd.f32 %v2382, 1e-05
        %v2399 = vadd.f32 %v2383, 1e-05
        %v2400 = vadd.f32 %v2384, 1e-05
        %v2401 = vadd.f32 %v2385, 1e-05
        %v2402 = vadd.f32 %v2386, 1e-05
        %v2403 = vadd.f32 %v2387, 1e-05
        %v2404 = vadd.f32 %v2388, 1e-05
        %v2405 = vadd.f32 %v2389, 1e-05
        %v2406 = vadd.f32 %v2390, 1e-05
        %v2407 = vadd.f32 %v2391, 1e-05
        %v2408 = vadd.f32 %v2392, 1e-05
        %v2409 = vadd.f32 %v2393, 1e-05
        %v2410 = vrsqrt.pop %v2394
        %v2411 = vrsqrt.pop %v2395
        %v2412 = vrsqrt.pop %v2396
        %v2413 = vrsqrt.pop %v2397
        %v2414 = vrsqrt.pop %v2398
        %v2415 = vrsqrt.pop %v2399
        %v2416 = vrsqrt.pop %v2400
        %v2417 = vrsqrt.pop %v2401
        %v2418 = vrsqrt.pop %v2402
        %v2419 = vrsqrt.pop %v2403
        %v2420 = vrsqrt.pop %v2404
        %v2421 = vrsqrt.pop %v2405
        %v2422 = vrsqrt.pop %v2406
        %v2423 = vrsqrt.pop %v2407
        %v2424 = vrsqrt.pop %v2408
        %v2425 = vrsqrt.pop %v2409
        %v2426 = vmul.f32 %v2298, %v2410
        %v2427 = vmul.f32 %v2299, %v2411
        %v2428 = vmul.f32 %v2300, %v2412
        %v2429 = vmul.f32 %v2301, %v2413
        %v2430 = vmul.f32 %v2302, %v2414
        %v2431 = vmul.f32 %v2303, %v2415
        %v2432 = vmul.f32 %v2304, %v2416
        %v2433 = vmul.f32 %v2305, %v2417
        %v2434 = vmul.f32 %v2306, %v2418
        %v2435 = vmul.f32 %v2307, %v2419
        %v2436 = vmul.f32 %v2308, %v2420
        %v2437 = vmul.f32 %v2309, %v2421
        %v2438 = vmul.f32 %v2310, %v2422
        %v2439 = vmul.f32 %v2311, %v2423
        %v2440 = vmul.f32 %v2312, %v2424
        %v2441 = vmul.f32 %v2313, %v2425
        %v2442 = vpack.c.bf16 %v2427, %v2426
        %v2443 = vpack.c.bf16 %v2429, %v2428
        %v2444 = vpack.c.bf16 %v2431, %v2430
        %v2445 = vpack.c.bf16 %v2433, %v2432
        %v2446 = vpack.c.bf16 %v2435, %v2434
        %v2447 = vpack.c.bf16 %v2437, %v2436
        %v2448 = vpack.c.bf16 %v2439, %v2438
        %v2449 = vpack.c.bf16 %v2441, %v2440
        %v2450 = vld [vmem:[%s534] sm:$0xff]
        %v2451 = vld [vmem:[%s534 + $0x8] sm:$0xff]
        %v2452 = vld [vmem:[%s534 + $0x10] sm:$0xff]
        %v2453 = vld [vmem:[%s534 + $0x18] sm:$0xff]
        %v2454 = vld [vmem:[%s534 + $0x20] sm:$0xff]
        %v2455 = vld [vmem:[%s534 + $0x28] sm:$0xff]
        %v2456 = vld [vmem:[%s534 + $0x30] sm:$0xff]
        %v2457 = vld [vmem:[%s534 + $0x38] sm:$0xff]
        %v2458 = vld [vmem:[%s534 + $0x40] sm:$0xff]
        %v2459 = vld [vmem:[%s534 + $0x48] sm:$0xff]
        %v2460 = vld [vmem:[%s534 + $0x50] sm:$0xff]
        %v2461 = vld [vmem:[%s534 + $0x58] sm:$0xff]
        %v2462 = vld [vmem:[%s534 + $0x60] sm:$0xff]
        %v2463 = vld [vmem:[%s534 + $0x68] sm:$0xff]
        %v2464 = vld [vmem:[%s534 + $0x70] sm:$0xff]
        %v2465 = vld [vmem:[%s534 + $0x78] sm:$0xff]
        %v2482 = vunpack.c.l.b16 %v2450
        %v2483 = vunpack.c.h.b16 %v2450
        %v2484 = vunpack.c.l.b16 %v2451
        %v2485 = vunpack.c.h.b16 %v2451
        %v2486 = vunpack.c.l.b16 %v2452
        %v2487 = vunpack.c.h.b16 %v2452
        %v2488 = vunpack.c.l.b16 %v2453
        %v2489 = vunpack.c.h.b16 %v2453
        %v2490 = vunpack.c.l.b16 %v2454
        %v2491 = vunpack.c.h.b16 %v2454
        %v2492 = vunpack.c.l.b16 %v2455
        %v2493 = vunpack.c.h.b16 %v2455
        %v2494 = vunpack.c.l.b16 %v2456
        %v2495 = vunpack.c.h.b16 %v2456
        %v2496 = vunpack.c.l.b16 %v2457
        %v2497 = vunpack.c.h.b16 %v2457
        %v2498 = vunpack.c.l.b16 %v2458
        %v2499 = vunpack.c.h.b16 %v2458
        %v2500 = vunpack.c.l.b16 %v2459
        %v2501 = vunpack.c.h.b16 %v2459
        %v2502 = vunpack.c.l.b16 %v2460
        %v2503 = vunpack.c.h.b16 %v2460
        %v2504 = vunpack.c.l.b16 %v2461
        %v2505 = vunpack.c.h.b16 %v2461
        %v2506 = vunpack.c.l.b16 %v2462
        %v2507 = vunpack.c.h.b16 %v2462
        %v2508 = vunpack.c.l.b16 %v2463
        %v2509 = vunpack.c.h.b16 %v2463
        %v2510 = vunpack.c.l.b16 %v2464
        %v2511 = vunpack.c.h.b16 %v2464
        %v2512 = vunpack.c.l.b16 %v2465
        %v2513 = vunpack.c.h.b16 %v2465
        %v2514 = vpack.c.b16 %v2486, %v2482
        %v2515 = vpack.c.b16 %v2487, %v2483
        %v2516 = vpack.c.b16 %v2488, %v2484
        %v2517 = vpack.c.b16 %v2489, %v2485
        %v2518 = vpack.c.b16 %v2494, %v2490
        %v2519 = vpack.c.b16 %v2495, %v2491
        %v2520 = vpack.c.b16 %v2496, %v2492
        %v2521 = vpack.c.b16 %v2497, %v2493
        %v2522 = vpack.c.b16 %v2502, %v2498
        %v2523 = vpack.c.b16 %v2503, %v2499
        %v2524 = vpack.c.b16 %v2504, %v2500
        %v2525 = vpack.c.b16 %v2505, %v2501
        %v2526 = vpack.c.b16 %v2510, %v2506
        %v2527 = vpack.c.b16 %v2511, %v2507
        %v2528 = vpack.c.b16 %v2512, %v2508
        %v2529 = vpack.c.b16 %v2513, %v2509
        %v2547 = vsel %vm562, %v2442, 0
        %v2550 = vsel %vm562, %v2443, 0
        %v2553 = vsel %vm562, %v2444, 0
        %v2556 = vsel %vm562, %v2445, 0
        %v2559 = vsel %vm562, %v2446, 0
        %v2562 = vsel %vm562, %v2447, 0
        %v2565 = vsel %vm562, %v2448, 0
        %v2568 = vsel %vm562, %v2449, 0
        %2570 = vmatprep.subr.bf16.mxu0 %v2515
        %2571 = vmatpush1.bf16.msra.mxu0 %v2514
        %2572 = vmatprep.subr.bf16.mxu0 %v2519
        %2573 = vmatpush1.bf16.msra.mxu0 %v2518
        %2574 = vmatprep.subr.bf16.mxu0 %v2523
        %2575 = vmatpush1.bf16.msra.mxu0 %v2522
        %2576 = vmatprep.subr.bf16.mxu0 %v2527
        %2577 = vmatpush1.bf16.msra.mxu0 %v2526
        %2578 = vmatprep.subr.bf16.mxu0 0
        %2579 = vmatpush1.bf16.msra.mxu0 0
        %2580 = vmatprep.subr.bf16.mxu0 0
        %2581 = vmatpush1.bf16.msra.mxu0 0
        %2582 = vmatprep.subr.bf16.mxu0 0
        %2583 = vmatpush1.bf16.msra.mxu0 0
        %2584 = vmatprep.subr.bf16.mxu0 0
        %2585 = vmatpush1.bf16.msra.mxu0 0
        %2586 = vmatprep.subr.bf16.mxu0 0
        %2587 = vmatpush1.bf16.msra.mxu0 0
        %2588 = vmatprep.subr.bf16.mxu0 0
        %2589 = vmatpush1.bf16.msra.mxu0 0
        %2590 = vmatprep.subr.bf16.mxu0 0
        %2591 = vmatpush1.bf16.msra.mxu0 0
        %2592 = vmatprep.subr.bf16.mxu0 0
        %2593 = vmatpush1.bf16.msra.mxu0 0
        %2594 = vmatprep.subr.bf16.mxu0 0
        %2595 = vmatpush1.bf16.msra.mxu0 0
        %2596 = vmatprep.subr.bf16.mxu0 0
        %2597 = vmatpush1.bf16.msra.mxu0 0
        %2598 = vmatprep.subr.bf16.mxu0 0
        %2599 = vmatpush1.bf16.msra.mxu0 0
        %2600 = vmatprep.subr.bf16.mxu0 0
        %2601 = vmatpush1.bf16.msra.mxu0 0
        %2602 = vmatprep.mubr.bf16.mxu0 0
        %2603 = vmatmul.mubr.bf16.gmra.mrb[0].mxu0 %v2547
        %v2604 = vpop.f32.mrb[0].mxu0
        %v2605 = vadd.f32 0.0, %v2604
        %v2606 = vpop.f32.mrb[0].mxu0
        %v2607 = vadd.f32 0.0, %v2606
        %v2608 = vpop.f32.mrb[0].mxu0
        %v2609 = vadd.f32 0.0, %v2608
        %v2610 = vpop.f32.mrb[0].mxu0
        %v2611 = vadd.f32 0.0, %v2610
        %2612 = vmatprep.mubr.bf16.mxu0 0
        %2613 = vmatmul.mubr.bf16.gmra.mrb[0].mxu0 %v2550
        %v2614 = vpop.f32.mrb[0].mxu0
        %v2615 = vadd.f32 0.0, %v2614
        %v2616 = vpop.f32.mrb[0].mxu0
        %v2617 = vadd.f32 0.0, %v2616
        %v2618 = vpop.f32.mrb[0].mxu0
        %v2619 = vadd.f32 0.0, %v2618
        %v2620 = vpop.f32.mrb[0].mxu0
        %v2621 = vadd.f32 0.0, %v2620
        %2622 = vmatprep.mubr.bf16.mxu0 0
        %2623 = vmatmul.mubr.bf16.gmra.mrb[0].mxu0 %v2553
        %v2624 = vpop.f32.mrb[0].mxu0
        %v2625 = vadd.f32 0.0, %v2624
        %v2626 = vpop.f32.mrb[0].mxu0
        %v2627 = vadd.f32 0.0, %v2626
        %v2628 = vpop.f32.mrb[0].mxu0
        %v2629 = vadd.f32 0.0, %v2628
        %v2630 = vpop.f32.mrb[0].mxu0
        %v2631 = vadd.f32 0.0, %v2630
        %2632 = vmatprep.mubr.bf16.mxu0 0
        %2633 = vmatmul.mubr.bf16.gmra.mrb[0].mxu0 %v2556
        %v2634 = vpop.f32.mrb[0].mxu0
        %v2635 = vadd.f32 0.0, %v2634
        %v2636 = vpop.f32.mrb[0].mxu0
        %v2637 = vadd.f32 0.0, %v2636
        %v2638 = vpop.f32.mrb[0].mxu0
        %v2639 = vadd.f32 0.0, %v2638
        %v2640 = vpop.f32.mrb[0].mxu0
        %v2641 = vadd.f32 0.0, %v2640
        %2642 = vmatprep.mubr.bf16.mxu0 0
        %2643 = vmatmul.mubr.bf16.gmra.mrb[0].mxu0 %v2559
        %v2644 = vpop.f32.mrb[0].mxu0
        %v2645 = vadd.f32 0.0, %v2644
        %v2646 = vpop.f32.mrb[0].mxu0
        %v2647 = vadd.f32 0.0, %v2646
        %v2648 = vpop.f32.mrb[0].mxu0
        %v2649 = vadd.f32 0.0, %v2648
        %v2650 = vpop.f32.mrb[0].mxu0
        %v2651 = vadd.f32 0.0, %v2650
        %2652 = vmatprep.mubr.bf16.mxu0 0
        %2653 = vmatmul.mubr.bf16.gmra.mrb[0].mxu0 %v2562
        %v2654 = vpop.f32.mrb[0].mxu0
        %v2655 = vadd.f32 0.0, %v2654
        %v2656 = vpop.f32.mrb[0].mxu0
        %v2657 = vadd.f32 0.0, %v2656
        %v2658 = vpop.f32.mrb[0].mxu0
        %v2659 = vadd.f32 0.0, %v2658
        %v2660 = vpop.f32.mrb[0].mxu0
        %v2661 = vadd.f32 0.0, %v2660
        %2662 = vmatprep.mubr.bf16.mxu0 0
        %2663 = vmatmul.mubr.bf16.gmra.mrb[0].mxu0 %v2565
        %v2664 = vpop.f32.mrb[0].mxu0
        %v2665 = vadd.f32 0.0, %v2664
        %v2666 = vpop.f32.mrb[0].mxu0
        %v2667 = vadd.f32 0.0, %v2666
        %v2668 = vpop.f32.mrb[0].mxu0
        %v2669 = vadd.f32 0.0, %v2668
        %v2670 = vpop.f32.mrb[0].mxu0
        %v2671 = vadd.f32 0.0, %v2670
        %2672 = vmatprep.mubr.bf16.mxu0 0
        %2673 = vmatmul.mubr.bf16.gmra.mrb[0].mxu0 %v2568
        %v2674 = vpop.f32.mrb[0].mxu0
        %v2675 = vadd.f32 0.0, %v2674
        %v2676 = vpop.f32.mrb[0].mxu0
        %v2677 = vadd.f32 0.0, %v2676
        %v2678 = vpop.f32.mrb[0].mxu0
        %v2679 = vadd.f32 0.0, %v2678
        %v2680 = vpop.f32.mrb[0].mxu0
        %v2681 = vadd.f32 0.0, %v2680
        %2682 = vdwg.mxu0
        %2683 = vmatprep.subr.bf16.mxu0 %v2517
        %2684 = vmatpush1.bf16.msra.mxu0 %v2516
        %2685 = vmatprep.subr.bf16.mxu0 %v2521
        %2686 = vmatpush1.bf16.msra.mxu0 %v2520
        %2687 = vmatprep.subr.bf16.mxu0 %v2525
        %2688 = vmatpush1.bf16.msra.mxu0 %v2524
        %2689 = vmatprep.subr.bf16.mxu0 %v2529
        %2690 = vmatpush1.bf16.msra.mxu0 %v2528
        %2691 = vmatprep.subr.bf16.mxu0 0
        %2692 = vmatpush1.bf16.msra.mxu0 0
        %2693 = vmatprep.subr.bf16.mxu0 0
        %2694 = vmatpush1.bf16.msra.mxu0 0
        %2695 = vmatprep.subr.bf16.mxu0 0
        %2696 = vmatpush1.bf16.msra.mxu0 0
        %2697 = vmatprep.subr.bf16.mxu0 0
        %2698 = vmatpush1.bf16.msra.mxu0 0
        %2699 = vmatprep.subr.bf16.mxu0 0
        %2700 = vmatpush1.bf16.msra.mxu0 0
        %2701 = vmatprep.subr.bf16.mxu0 0
        %2702 = vmatpush1.bf16.msra.mxu0 0
        %2703 = vmatprep.subr.bf16.mxu0 0
        %2704 = vmatpush1.bf16.msra.mxu0 0
        %2705 = vmatprep.subr.bf16.mxu0 0
        %2706 = vmatpush1.bf16.msra.mxu0 0
        %2707 = vmatprep.subr.bf16.mxu0 0
        %2708 = vmatpush1.bf16.msra.mxu0 0
        %2709 = vmatprep.subr.bf16.mxu0 0
        %2710 = vmatpush1.bf16.msra.mxu0 0
        %2711 = vmatprep.subr.bf16.mxu0 0
        %2712 = vmatpush1.bf16.msra.mxu0 0
        %2713 = vmatprep.subr.bf16.mxu0 0
        %2714 = vmatpush1.bf16.msra.mxu0 0
        %2715 = vmatprep.mubr.bf16.mxu0 0
        %2716 = vmatmul.mubr.bf16.gmra.mrb[0].mxu0 %v2547
        %v2717 = vpop.f32.mrb[0].mxu0
        %v2718 = vadd.f32 0.0, %v2717
        %v2719 = vpop.f32.mrb[0].mxu0
        %v2720 = vadd.f32 0.0, %v2719
        %v2721 = vpop.f32.mrb[0].mxu0
        %v2722 = vadd.f32 0.0, %v2721
        %v2723 = vpop.f32.mrb[0].mxu0
        %v2724 = vadd.f32 0.0, %v2723
        %2725 = vmatprep.mubr.bf16.mxu0 0
        %2726 = vmatmul.mubr.bf16.gmra.mrb[0].mxu0 %v2550
        %v2727 = vpop.f32.mrb[0].mxu0
        %v2728 = vadd.f32 0.0, %v2727
        %v2729 = vpop.f32.mrb[0].mxu0
        %v2730 = vadd.f32 0.0, %v2729
        %v2731 = vpop.f32.mrb[0].mxu0
        %v2732 = vadd.f32 0.0, %v2731
        %v2733 = vpop.f32.mrb[0].mxu0
        %v2734 = vadd.f32 0.0, %v2733
        %2735 = vmatprep.mubr.bf16.mxu0 0
        %2736 = vmatmul.mubr.bf16.gmra.mrb[0].mxu0 %v2553
        %v2737 = vpop.f32.mrb[0].mxu0
        %v2738 = vadd.f32 0.0, %v2737
        %v2739 = vpop.f32.mrb[0].mxu0
        %v2740 = vadd.f32 0.0, %v2739
        %v2741 = vpop.f32.mrb[0].mxu0
        %v2742 = vadd.f32 0.0, %v2741
        %v2743 = vpop.f32.mrb[0].mxu0
        %v2744 = vadd.f32 0.0, %v2743
        %2745 = vmatprep.mubr.bf16.mxu0 0
        %2746 = vmatmul.mubr.bf16.gmra.mrb[0].mxu0 %v2556
        %v2747 = vpop.f32.mrb[0].mxu0
        %v2748 = vadd.f32 0.0, %v2747
        %v2749 = vpop.f32.mrb[0].mxu0
        %v2750 = vadd.f32 0.0, %v2749
        %v2751 = vpop.f32.mrb[0].mxu0
        %v2752 = vadd.f32 0.0, %v2751
        %v2753 = vpop.f32.mrb[0].mxu0
        %v2754 = vadd.f32 0.0, %v2753
        %2755 = vmatprep.mubr.bf16.mxu0 0
        %2756 = vmatmul.mubr.bf16.gmra.mrb[0].mxu0 %v2559
        %v2757 = vpop.f32.mrb[0].mxu0
        %v2758 = vadd.f32 0.0, %v2757
        %v2759 = vpop.f32.mrb[0].mxu0
        %v2760 = vadd.f32 0.0, %v2759
        %v2761 = vpop.f32.mrb[0].mxu0
        %v2762 = vadd.f32 0.0, %v2761
        %v2763 = vpop.f32.mrb[0].mxu0
        %v2764 = vadd.f32 0.0, %v2763
        %2765 = vmatprep.mubr.bf16.mxu0 0
        %2766 = vmatmul.mubr.bf16.gmra.mrb[0].mxu0 %v2562
        %v2767 = vpop.f32.mrb[0].mxu0
        %v2768 = vadd.f32 0.0, %v2767
        %v2769 = vpop.f32.mrb[0].mxu0
        %v2770 = vadd.f32 0.0, %v2769
        %v2771 = vpop.f32.mrb[0].mxu0
        %v2772 = vadd.f32 0.0, %v2771
        %v2773 = vpop.f32.mrb[0].mxu0
        %v2774 = vadd.f32 0.0, %v2773
        %2775 = vmatprep.mubr.bf16.mxu0 0
        %2776 = vmatmul.mubr.bf16.gmra.mrb[0].mxu0 %v2565
        %v2777 = vpop.f32.mrb[0].mxu0
        %v2778 = vadd.f32 0.0, %v2777
        %v2779 = vpop.f32.mrb[0].mxu0
        %v2780 = vadd.f32 0.0, %v2779
        %v2781 = vpop.f32.mrb[0].mxu0
        %v2782 = vadd.f32 0.0, %v2781
        %v2783 = vpop.f32.mrb[0].mxu0
        %v2784 = vadd.f32 0.0, %v2783
        %2785 = vmatprep.mubr.bf16.mxu0 0
        %2786 = vmatmul.mubr.bf16.gmra.mrb[0].mxu0 %v2568
        %v2787 = vpop.f32.mrb[0].mxu0
        %v2788 = vadd.f32 0.0, %v2787
        %v2789 = vpop.f32.mrb[0].mxu0
        %v2790 = vadd.f32 0.0, %v2789
        %v2791 = vpop.f32.mrb[0].mxu0
        %v2792 = vadd.f32 0.0, %v2791
        %v2793 = vpop.f32.mrb[0].mxu0
        %v2794 = vadd.f32 0.0, %v2793
        %2795 = vdwg.mxu0
        %v2796 = vmax.f32 %v2605, 0.0
        %v2797 = vmax.f32 %v2607, 0.0
        %v2798 = vmax.f32 %v2718, 0.0
        %v2799 = vmax.f32 %v2720, 0.0
        %v2800 = vmax.f32 %v2609, 0.0
        %v2801 = vmax.f32 %v2611, 0.0
        %v2802 = vmax.f32 %v2722, 0.0
        %v2803 = vmax.f32 %v2724, 0.0
        %v2804 = vmax.f32 %v2615, 0.0
        %v2805 = vmax.f32 %v2617, 0.0
        %v2806 = vmax.f32 %v2728, 0.0
        %v2807 = vmax.f32 %v2730, 0.0
        %v2808 = vmax.f32 %v2619, 0.0
        %v2809 = vmax.f32 %v2621, 0.0
        %v2810 = vmax.f32 %v2732, 0.0
        %v2811 = vmax.f32 %v2734, 0.0
        %v2812 = vmax.f32 %v2625, 0.0
        %v2813 = vmax.f32 %v2627, 0.0
        %v2814 = vmax.f32 %v2738, 0.0
        %v2815 = vmax.f32 %v2740, 0.0
        %v2816 = vmax.f32 %v2629, 0.0
        %v2817 = vmax.f32 %v2631, 0.0
        %v2818 = vmax.f32 %v2742, 0.0
        %v2819 = vmax.f32 %v2744, 0.0
        %v2820 = vmax.f32 %v2635, 0.0
        %v2821 = vmax.f32 %v2637, 0.0
        %v2822 = vmax.f32 %v2748, 0.0
        %v2823 = vmax.f32 %v2750, 0.0
        %v2824 = vmax.f32 %v2639, 0.0
        %v2825 = vmax.f32 %v2641, 0.0
        %v2826 = vmax.f32 %v2752, 0.0
        %v2827 = vmax.f32 %v2754, 0.0
        %v2828 = vmax.f32 %v2645, 0.0
        %v2829 = vmax.f32 %v2647, 0.0
        %v2830 = vmax.f32 %v2758, 0.0
        %v2831 = vmax.f32 %v2760, 0.0
        %v2832 = vmax.f32 %v2649, 0.0
        %v2833 = vmax.f32 %v2651, 0.0
        %v2834 = vmax.f32 %v2762, 0.0
        %v2835 = vmax.f32 %v2764, 0.0
        %v2836 = vmax.f32 %v2655, 0.0
        %v2837 = vmax.f32 %v2657, 0.0
        %v2838 = vmax.f32 %v2768, 0.0
        %v2839 = vmax.f32 %v2770, 0.0
        %v2840 = vmax.f32 %v2659, 0.0
        %v2841 = vmax.f32 %v2661, 0.0
        %v2842 = vmax.f32 %v2772, 0.0
        %v2843 = vmax.f32 %v2774, 0.0
        %v2844 = vmax.f32 %v2665, 0.0
        %v2845 = vmax.f32 %v2667, 0.0
        %v2846 = vmax.f32 %v2778, 0.0
        %v2847 = vmax.f32 %v2780, 0.0
        %v2848 = vmax.f32 %v2669, 0.0
        %v2849 = vmax.f32 %v2671, 0.0
        %v2850 = vmax.f32 %v2782, 0.0
        %v2851 = vmax.f32 %v2784, 0.0
        %v2852 = vmax.f32 %v2675, 0.0
        %v2853 = vmax.f32 %v2677, 0.0
        %v2854 = vmax.f32 %v2788, 0.0
        %v2855 = vmax.f32 %v2790, 0.0
        %v2856 = vmax.f32 %v2679, 0.0
        %v2857 = vmax.f32 %v2681, 0.0
        %v2858 = vmax.f32 %v2792, 0.0
        %v2859 = vmax.f32 %v2794, 0.0
        %v2860 = vpack.c.bf16 %v2800, %v2796
        %v2861 = vpack.c.bf16 %v2801, %v2797
        %v2862 = vpack.c.bf16 %v2802, %v2798
        %v2863 = vpack.c.bf16 %v2803, %v2799
        %v2864 = vpack.c.bf16 %v2808, %v2804
        %v2865 = vpack.c.bf16 %v2809, %v2805
        %v2866 = vpack.c.bf16 %v2810, %v2806
        %v2867 = vpack.c.bf16 %v2811, %v2807
        %v2868 = vpack.c.bf16 %v2816, %v2812
        %v2869 = vpack.c.bf16 %v2817, %v2813
        %v2870 = vpack.c.bf16 %v2818, %v2814
        %v2871 = vpack.c.bf16 %v2819, %v2815
        %v2872 = vpack.c.bf16 %v2824, %v2820
        %v2873 = vpack.c.bf16 %v2825, %v2821
        %v2874 = vpack.c.bf16 %v2826, %v2822
        %v2875 = vpack.c.bf16 %v2827, %v2823
        %v2876 = vpack.c.bf16 %v2832, %v2828
        %v2877 = vpack.c.bf16 %v2833, %v2829
        %v2878 = vpack.c.bf16 %v2834, %v2830
        %v2879 = vpack.c.bf16 %v2835, %v2831
        %v2880 = vpack.c.bf16 %v2840, %v2836
        %v2881 = vpack.c.bf16 %v2841, %v2837
        %v2882 = vpack.c.bf16 %v2842, %v2838
        %v2883 = vpack.c.bf16 %v2843, %v2839
        %v2884 = vpack.c.bf16 %v2848, %v2844
        %v2885 = vpack.c.bf16 %v2849, %v2845
        %v2886 = vpack.c.bf16 %v2850, %v2846
        %v2887 = vpack.c.bf16 %v2851, %v2847
        %v2888 = vpack.c.bf16 %v2856, %v2852
        %v2889 = vpack.c.bf16 %v2857, %v2853
        %v2890 = vpack.c.bf16 %v2858, %v2854
        %v2891 = vpack.c.bf16 %v2859, %v2855
        %v2892 = vld [vmem:[%s539] sm:$0xf]
        %v2893 = vld [vmem:[%s539 + $0x4] sm:$0xf]
        %v2894 = vld [vmem:[%s539 + $0x8] sm:$0xf]
        %v2895 = vld [vmem:[%s539 + $0xc] sm:$0xf]
        %v2896 = vld [vmem:[%s539 + $0x10] sm:$0xf]
        %v2897 = vld [vmem:[%s539 + $0x14] sm:$0xf]
        %v2898 = vld [vmem:[%s539 + $0x18] sm:$0xf]
        %v2899 = vld [vmem:[%s539 + $0x1c] sm:$0xf]
        %v2900 = vld [vmem:[%s539 + $0x20] sm:$0xf]
        %v2901 = vld [vmem:[%s539 + $0x24] sm:$0xf]
        %v2902 = vld [vmem:[%s539 + $0x28] sm:$0xf]
        %v2903 = vld [vmem:[%s539 + $0x2c] sm:$0xf]
        %v2904 = vld [vmem:[%s539 + $0x30] sm:$0xf]
        %v2905 = vld [vmem:[%s539 + $0x34] sm:$0xf]
        %v2906 = vld [vmem:[%s539 + $0x38] sm:$0xf]
        %v2907 = vld [vmem:[%s539 + $0x3c] sm:$0xf]
        %v2908 = vld [vmem:[%s539 + $0x40] sm:$0xf]
        %v2909 = vld [vmem:[%s539 + $0x44] sm:$0xf]
        %v2910 = vld [vmem:[%s539 + $0x48] sm:$0xf]
        %v2911 = vld [vmem:[%s539 + $0x4c] sm:$0xf]
        %v2912 = vld [vmem:[%s539 + $0x50] sm:$0xf]
        %v2913 = vld [vmem:[%s539 + $0x54] sm:$0xf]
        %v2914 = vld [vmem:[%s539 + $0x58] sm:$0xf]
        %v2915 = vld [vmem:[%s539 + $0x5c] sm:$0xf]
        %v2916 = vld [vmem:[%s539 + $0x60] sm:$0xf]
        %v2917 = vld [vmem:[%s539 + $0x64] sm:$0xf]
        %v2918 = vld [vmem:[%s539 + $0x68] sm:$0xf]
        %v2919 = vld [vmem:[%s539 + $0x6c] sm:$0xf]
        %v2920 = vld [vmem:[%s539 + $0x70] sm:$0xf]
        %v2921 = vld [vmem:[%s539 + $0x74] sm:$0xf]
        %v2922 = vld [vmem:[%s539 + $0x78] sm:$0xf]
        %v2923 = vld [vmem:[%s539 + $0x7c] sm:$0xf]
        %v2924 = vld [vmem:[%s539 + $0x80] sm:$0xf]
        %v2925 = vld [vmem:[%s539 + $0x84] sm:$0xf]
        %v2926 = vld [vmem:[%s539 + $0x88] sm:$0xf]
        %v2927 = vld [vmem:[%s539 + $0x8c] sm:$0xf]
        %v2928 = vld [vmem:[%s539 + $0x90] sm:$0xf]
        %v2929 = vld [vmem:[%s539 + $0x94] sm:$0xf]
        %v2930 = vld [vmem:[%s539 + $0x98] sm:$0xf]
        %v2931 = vld [vmem:[%s539 + $0x9c] sm:$0xf]
        %v2932 = vld [vmem:[%s539 + $0xa0] sm:$0xf]
        %v2933 = vld [vmem:[%s539 + $0xa4] sm:$0xf]
        %v2934 = vld [vmem:[%s539 + $0xa8] sm:$0xf]
        %v2935 = vld [vmem:[%s539 + $0xac] sm:$0xf]
        %v2936 = vld [vmem:[%s539 + $0xb0] sm:$0xf]
        %v2937 = vld [vmem:[%s539 + $0xb4] sm:$0xf]
        %v2938 = vld [vmem:[%s539 + $0xb8] sm:$0xf]
        %v2939 = vld [vmem:[%s539 + $0xbc] sm:$0xf]
        %v2940 = vld [vmem:[%s539 + $0xc0] sm:$0xf]
        %v2941 = vld [vmem:[%s539 + $0xc4] sm:$0xf]
        %v2942 = vld [vmem:[%s539 + $0xc8] sm:$0xf]
        %v2943 = vld [vmem:[%s539 + $0xcc] sm:$0xf]
        %v2944 = vld [vmem:[%s539 + $0xd0] sm:$0xf]
        %v2945 = vld [vmem:[%s539 + $0xd4] sm:$0xf]
        %v2946 = vld [vmem:[%s539 + $0xd8] sm:$0xf]
        %v2947 = vld [vmem:[%s539 + $0xdc] sm:$0xf]
        %v2948 = vld [vmem:[%s539 + $0xe0] sm:$0xf]
        %v2949 = vld [vmem:[%s539 + $0xe4] sm:$0xf]
        %v2950 = vld [vmem:[%s539 + $0xe8] sm:$0xf]
        %v2951 = vld [vmem:[%s539 + $0xec] sm:$0xf]
        %v2952 = vld [vmem:[%s539 + $0xf0] sm:$0xf]
        %v2953 = vld [vmem:[%s539 + $0xf4] sm:$0xf]
        %v2954 = vld [vmem:[%s539 + $0xf8] sm:$0xf]
        %v2955 = vld [vmem:[%s539 + $0xfc] sm:$0xf]
        %v3020 = vunpack.c.l.b16 %v2892
        %v3021 = vunpack.c.l.b16 %v2893
        %v3022 = vunpack.c.l.b16 %v2894
        %v3023 = vunpack.c.l.b16 %v2895
        %v3024 = vunpack.c.l.b16 %v2896
        %v3025 = vunpack.c.l.b16 %v2897
        %v3026 = vunpack.c.l.b16 %v2898
        %v3027 = vunpack.c.l.b16 %v2899
        %v3028 = vunpack.c.l.b16 %v2900
        %v3029 = vunpack.c.l.b16 %v2901
        %v3030 = vunpack.c.l.b16 %v2902
        %v3031 = vunpack.c.l.b16 %v2903
        %v3032 = vunpack.c.l.b16 %v2904
        %v3033 = vunpack.c.l.b16 %v2905
        %v3034 = vunpack.c.l.b16 %v2906
        %v3035 = vunpack.c.l.b16 %v2907
        %v3036 = vunpack.c.l.b16 %v2908
        %v3037 = vunpack.c.l.b16 %v2909
        %v3038 = vunpack.c.l.b16 %v2910
        %v3039 = vunpack.c.l.b16 %v2911
        %v3040 = vunpack.c.l.b16 %v2912
        %v3041 = vunpack.c.l.b16 %v2913
        %v3042 = vunpack.c.l.b16 %v2914
        %v3043 = vunpack.c.l.b16 %v2915
        %v3044 = vunpack.c.l.b16 %v2916
        %v3045 = vunpack.c.l.b16 %v2917
        %v3046 = vunpack.c.l.b16 %v2918
        %v3047 = vunpack.c.l.b16 %v2919
        %v3048 = vunpack.c.l.b16 %v2920
        %v3049 = vunpack.c.l.b16 %v2921
        %v3050 = vunpack.c.l.b16 %v2922
        %v3051 = vunpack.c.l.b16 %v2923
        %v3052 = vunpack.c.l.b16 %v2924
        %v3053 = vunpack.c.l.b16 %v2925
        %v3054 = vunpack.c.l.b16 %v2926
        %v3055 = vunpack.c.l.b16 %v2927
        %v3056 = vunpack.c.l.b16 %v2928
        %v3057 = vunpack.c.l.b16 %v2929
        %v3058 = vunpack.c.l.b16 %v2930
        %v3059 = vunpack.c.l.b16 %v2931
        %v3060 = vunpack.c.l.b16 %v2932
        %v3061 = vunpack.c.l.b16 %v2933
        %v3062 = vunpack.c.l.b16 %v2934
        %v3063 = vunpack.c.l.b16 %v2935
        %v3064 = vunpack.c.l.b16 %v2936
        %v3065 = vunpack.c.l.b16 %v2937
        %v3066 = vunpack.c.l.b16 %v2938
        %v3067 = vunpack.c.l.b16 %v2939
        %v3068 = vunpack.c.l.b16 %v2940
        %v3069 = vunpack.c.l.b16 %v2941
        %v3070 = vunpack.c.l.b16 %v2942
        %v3071 = vunpack.c.l.b16 %v2943
        %v3072 = vunpack.c.l.b16 %v2944
        %v3073 = vunpack.c.l.b16 %v2945
        %v3074 = vunpack.c.l.b16 %v2946
        %v3075 = vunpack.c.l.b16 %v2947
        %v3076 = vunpack.c.l.b16 %v2948
        %v3077 = vunpack.c.l.b16 %v2949
        %v3078 = vunpack.c.l.b16 %v2950
        %v3079 = vunpack.c.l.b16 %v2951
        %v3080 = vunpack.c.l.b16 %v2952
        %v3081 = vunpack.c.l.b16 %v2953
        %v3082 = vunpack.c.l.b16 %v2954
        %v3083 = vunpack.c.l.b16 %v2955
        %v3084 = vpack.c.b16 %v3021, %v3020
        %v3085 = vpack.c.b16 %v3023, %v3022
        %v3086 = vpack.c.b16 %v3025, %v3024
        %v3087 = vpack.c.b16 %v3027, %v3026
        %v3088 = vpack.c.b16 %v3029, %v3028
        %v3089 = vpack.c.b16 %v3031, %v3030
        %v3090 = vpack.c.b16 %v3033, %v3032
        %v3091 = vpack.c.b16 %v3035, %v3034
        %v3092 = vpack.c.b16 %v3037, %v3036
        %v3093 = vpack.c.b16 %v3039, %v3038
        %v3094 = vpack.c.b16 %v3041, %v3040
        %v3095 = vpack.c.b16 %v3043, %v3042
        %v3096 = vpack.c.b16 %v3045, %v3044
        %v3097 = vpack.c.b16 %v3047, %v3046
        %v3098 = vpack.c.b16 %v3049, %v3048
        %v3099 = vpack.c.b16 %v3051, %v3050
        %v3100 = vpack.c.b16 %v3053, %v3052
        %v3101 = vpack.c.b16 %v3055, %v3054
        %v3102 = vpack.c.b16 %v3057, %v3056
        %v3103 = vpack.c.b16 %v3059, %v3058
        %v3104 = vpack.c.b16 %v3061, %v3060
        %v3105 = vpack.c.b16 %v3063, %v3062
        %v3106 = vpack.c.b16 %v3065, %v3064
        %v3107 = vpack.c.b16 %v3067, %v3066
        %v3108 = vpack.c.b16 %v3069, %v3068
        %v3109 = vpack.c.b16 %v3071, %v3070
        %v3110 = vpack.c.b16 %v3073, %v3072
        %v3111 = vpack.c.b16 %v3075, %v3074
        %v3112 = vpack.c.b16 %v3077, %v3076
        %v3113 = vpack.c.b16 %v3079, %v3078
        %v3114 = vpack.c.b16 %v3081, %v3080
        %v3115 = vpack.c.b16 %v3083, %v3082
        %3148 = vmatprep.subr.bf16.mxu0 0
        %3149 = vmatpush1.bf16.msra.mxu0 %v3084
        %3150 = vmatprep.subr.bf16.mxu0 0
        %3151 = vmatpush1.bf16.msra.mxu0 %v3085
        %3152 = vmatprep.subr.bf16.mxu0 0
        %3153 = vmatpush1.bf16.msra.mxu0 %v3086
        %3154 = vmatprep.subr.bf16.mxu0 0
        %3155 = vmatpush1.bf16.msra.mxu0 %v3087
        %3156 = vmatprep.subr.bf16.mxu0 0
        %3157 = vmatpush1.bf16.msra.mxu0 %v3088
        %3158 = vmatprep.subr.bf16.mxu0 0
        %3159 = vmatpush1.bf16.msra.mxu0 %v3089
        %3160 = vmatprep.subr.bf16.mxu0 0
        %3161 = vmatpush1.bf16.msra.mxu0 %v3090
        %3162 = vmatprep.subr.bf16.mxu0 0
        %3163 = vmatpush1.bf16.msra.mxu0 %v3091
        %3164 = vmatprep.subr.bf16.mxu0 0
        %3165 = vmatpush1.bf16.msra.mxu0 %v3092
        %3166 = vmatprep.subr.bf16.mxu0 0
        %3167 = vmatpush1.bf16.msra.mxu0 %v3093
        %3168 = vmatprep.subr.bf16.mxu0 0
        %3169 = vmatpush1.bf16.msra.mxu0 %v3094
        %3170 = vmatprep.subr.bf16.mxu0 0
        %3171 = vmatpush1.bf16.msra.mxu0 %v3095
        %3172 = vmatprep.subr.bf16.mxu0 0
        %3173 = vmatpush1.bf16.msra.mxu0 %v3096
        %3174 = vmatprep.subr.bf16.mxu0 0
        %3175 = vmatpush1.bf16.msra.mxu0 %v3097
        %3176 = vmatprep.subr.bf16.mxu0 0
        %3177 = vmatpush1.bf16.msra.mxu0 %v3098
        %3178 = vmatprep.subr.bf16.mxu0 0
        %3179 = vmatpush1.bf16.msra.mxu0 %v3099
        %3180 = vmatprep.mubr.bf16.mxu0 %v2861
        %3181 = vmatmul.mubr.bf16.gmra.mrb[0].mxu0 %v2860
        %v3182 = vpop.f32.mrb[0].mxu0
        %v3183 = vadd.f32 %v2426, %v3182
        %v3184 = vpop.f32.mrb[0].mxu0
        %v3185 = vpop.f32.mrb[0].mxu0
        %v3186 = vadd.f32 %v2427, %v3185
        %v3187 = vpop.f32.mrb[0].mxu0
        %3188 = vmatprep.mubr.bf16.mxu0 %v2865
        %3189 = vmatmul.mubr.bf16.gmra.mrb[0].mxu0 %v2864
        %v3190 = vpop.f32.mrb[0].mxu0
        %v3191 = vadd.f32 %v2428, %v3190
        %v3192 = vpop.f32.mrb[0].mxu0
        %v3193 = vpop.f32.mrb[0].mxu0
        %v3194 = vadd.f32 %v2429, %v3193
        %v3195 = vpop.f32.mrb[0].mxu0
        %3196 = vmatprep.mubr.bf16.mxu0 %v2869
        %3197 = vmatmul.mubr.bf16.gmra.mrb[0].mxu0 %v2868
        %v3198 = vpop.f32.mrb[0].mxu0
        %v3199 = vadd.f32 %v2430, %v3198
        %v3200 = vpop.f32.mrb[0].mxu0
        %v3201 = vpop.f32.mrb[0].mxu0
        %v3202 = vadd.f32 %v2431, %v3201
        %v3203 = vpop.f32.mrb[0].mxu0
        %3204 = vmatprep.mubr.bf16.mxu0 %v2873
        %3205 = vmatmul.mubr.bf16.gmra.mrb[0].mxu0 %v2872
        %v3206 = vpop.f32.mrb[0].mxu0
        %v3207 = vadd.f32 %v2432, %v3206
        %v3208 = vpop.f32.mrb[0].mxu0
        %v3209 = vpop.f32.mrb[0].mxu0
        %v3210 = vadd.f32 %v2433, %v3209
        %v3211 = vpop.f32.mrb[0].mxu0
        %3212 = vmatprep.mubr.bf16.mxu0 %v2877
        %3213 = vmatmul.mubr.bf16.gmra.mrb[0].mxu0 %v2876
        %v3214 = vpop.f32.mrb[0].mxu0
        %v3215 = vadd.f32 %v2434, %v3214
        %v3216 = vpop.f32.mrb[0].mxu0
        %v3217 = vpop.f32.mrb[0].mxu0
        %v3218 = vadd.f32 %v2435, %v3217
        %v3219 = vpop.f32.mrb[0].mxu0
        %3220 = vmatprep.mubr.bf16.mxu0 %v2881
        %3221 = vmatmul.mubr.bf16.gmra.mrb[0].mxu0 %v2880
        %v3222 = vpop.f32.mrb[0].mxu0
        %v3223 = vadd.f32 %v2436, %v3222
        %v3224 = vpop.f32.mrb[0].mxu0
        %v3225 = vpop.f32.mrb[0].mxu0
        %v3226 = vadd.f32 %v2437, %v3225
        %v3227 = vpop.f32.mrb[0].mxu0
        %3228 = vmatprep.mubr.bf16.mxu0 %v2885
        %3229 = vmatmul.mubr.bf16.gmra.mrb[0].mxu0 %v2884
        %v3230 = vpop.f32.mrb[0].mxu0
        %v3231 = vadd.f32 %v2438, %v3230
        %v3232 = vpop.f32.mrb[0].mxu0
        %v3233 = vpop.f32.mrb[0].mxu0
        %v3234 = vadd.f32 %v2439, %v3233
        %v3235 = vpop.f32.mrb[0].mxu0
        %3236 = vmatprep.mubr.bf16.mxu0 %v2889
        %3237 = vmatmul.mubr.bf16.gmra.mrb[0].mxu0 %v2888
        %v3238 = vpop.f32.mrb[0].mxu0
        %v3239 = vadd.f32 %v2440, %v3238
        %v3240 = vpop.f32.mrb[0].mxu0
        %v3241 = vpop.f32.mrb[0].mxu0
        %v3242 = vadd.f32 %v2441, %v3241
        %v3243 = vpop.f32.mrb[0].mxu0
        %3244 = vdwg.mxu0
        %3245 = vmatprep.subr.bf16.mxu0 0
        %3246 = vmatpush1.bf16.msra.mxu0 %v3100
        %3247 = vmatprep.subr.bf16.mxu0 0
        %3248 = vmatpush1.bf16.msra.mxu0 %v3101
        %3249 = vmatprep.subr.bf16.mxu0 0
        %3250 = vmatpush1.bf16.msra.mxu0 %v3102
        %3251 = vmatprep.subr.bf16.mxu0 0
        %3252 = vmatpush1.bf16.msra.mxu0 %v3103
        %3253 = vmatprep.subr.bf16.mxu0 0
        %3254 = vmatpush1.bf16.msra.mxu0 %v3104
        %3255 = vmatprep.subr.bf16.mxu0 0
        %3256 = vmatpush1.bf16.msra.mxu0 %v3105
        %3257 = vmatprep.subr.bf16.mxu0 0
        %3258 = vmatpush1.bf16.msra.mxu0 %v3106
        %3259 = vmatprep.subr.bf16.mxu0 0
        %3260 = vmatpush1.bf16.msra.mxu0 %v3107
        %3261 = vmatprep.subr.bf16.mxu0 0
        %3262 = vmatpush1.bf16.msra.mxu0 %v3108
        %3263 = vmatprep.subr.bf16.mxu0 0
        %3264 = vmatpush1.bf16.msra.mxu0 %v3109
        %3265 = vmatprep.subr.bf16.mxu0 0
        %3266 = vmatpush1.bf16.msra.mxu0 %v3110
        %3267 = vmatprep.subr.bf16.mxu0 0
        %3268 = vmatpush1.bf16.msra.mxu0 %v3111
        %3269 = vmatprep.subr.bf16.mxu0 0
        %3270 = vmatpush1.bf16.msra.mxu0 %v3112
        %3271 = vmatprep.subr.bf16.mxu0 0
        %3272 = vmatpush1.bf16.msra.mxu0 %v3113
        %3273 = vmatprep.subr.bf16.mxu0 0
        %3274 = vmatpush1.bf16.msra.mxu0 %v3114
        %3275 = vmatprep.subr.bf16.mxu0 0
        %3276 = vmatpush1.bf16.msra.mxu0 %v3115
        %3277 = vmatprep.mubr.bf16.mxu0 %v2863
        %3278 = vmatmul.mubr.bf16.gmra.mrb[0].mxu0 %v2862
        %v3279 = vpop.f32.mrb[0].mxu0
        %v3280 = vadd.f32 %v3183, %v3279
        %v3281 = vpop.f32.mrb[0].mxu0
        %v3282 = vpop.f32.mrb[0].mxu0
        %v3283 = vadd.f32 %v3186, %v3282
        %v3284 = vpop.f32.mrb[0].mxu0
        %3285 = vmatprep.mubr.bf16.mxu0 %v2867
        %3286 = vmatmul.mubr.bf16.gmra.mrb[0].mxu0 %v2866
        %v3287 = vpop.f32.mrb[0].mxu0
        %v3288 = vadd.f32 %v3191, %v3287
        %v3289 = vpop.f32.mrb[0].mxu0
        %v3290 = vpop.f32.mrb[0].mxu0
        %v3291 = vadd.f32 %v3194, %v3290
        %v3292 = vpop.f32.mrb[0].mxu0
        %3293 = vmatprep.mubr.bf16.mxu0 %v2871
        %3294 = vmatmul.mubr.bf16.gmra.mrb[0].mxu0 %v2870
        %v3295 = vpop.f32.mrb[0].mxu0
        %v3296 = vadd.f32 %v3199, %v3295
        %v3297 = vpop.f32.mrb[0].mxu0
        %v3298 = vpop.f32.mrb[0].mxu0
        %v3299 = vadd.f32 %v3202, %v3298
        %v3300 = vpop.f32.mrb[0].mxu0
        %3301 = vmatprep.mubr.bf16.mxu0 %v2875
        %3302 = vmatmul.mubr.bf16.gmra.mrb[0].mxu0 %v2874
        %v3303 = vpop.f32.mrb[0].mxu0
        %v3304 = vadd.f32 %v3207, %v3303
        %v3305 = vpop.f32.mrb[0].mxu0
        %v3306 = vpop.f32.mrb[0].mxu0
        %v3307 = vadd.f32 %v3210, %v3306
        %v3308 = vpop.f32.mrb[0].mxu0
        %3309 = vmatprep.mubr.bf16.mxu0 %v2879
        %3310 = vmatmul.mubr.bf16.gmra.mrb[0].mxu0 %v2878
        %v3311 = vpop.f32.mrb[0].mxu0
        %v3312 = vadd.f32 %v3215, %v3311
        %v3313 = vpop.f32.mrb[0].mxu0
        %v3314 = vpop.f32.mrb[0].mxu0
        %v3315 = vadd.f32 %v3218, %v3314
        %v3316 = vpop.f32.mrb[0].mxu0
        %3317 = vmatprep.mubr.bf16.mxu0 %v2883
        %3318 = vmatmul.mubr.bf16.gmra.mrb[0].mxu0 %v2882
        %v3319 = vpop.f32.mrb[0].mxu0
        %v3320 = vadd.f32 %v3223, %v3319
        %v3321 = vpop.f32.mrb[0].mxu0
        %v3322 = vpop.f32.mrb[0].mxu0
        %v3323 = vadd.f32 %v3226, %v3322
        %v3324 = vpop.f32.mrb[0].mxu0
        %3325 = vmatprep.mubr.bf16.mxu0 %v2887
        %3326 = vmatmul.mubr.bf16.gmra.mrb[0].mxu0 %v2886
        %v3327 = vpop.f32.mrb[0].mxu0
        %v3328 = vadd.f32 %v3231, %v3327
        %v3329 = vpop.f32.mrb[0].mxu0
        %v3330 = vpop.f32.mrb[0].mxu0
        %v3331 = vadd.f32 %v3234, %v3330
        %v3332 = vpop.f32.mrb[0].mxu0
        %3333 = vmatprep.mubr.bf16.mxu0 %v2891
        %3334 = vmatmul.mubr.bf16.gmra.mrb[0].mxu0 %v2890
        %v3335 = vpop.f32.mrb[0].mxu0
        %v3336 = vadd.f32 %v3239, %v3335
        %v3337 = vpop.f32.mrb[0].mxu0
        %v3338 = vpop.f32.mrb[0].mxu0
        %v3339 = vadd.f32 %v3242, %v3338
        %v3340 = vpop.f32.mrb[0].mxu0
        %3341 = vdwg.mxu0
        %v3342 = vsel %vm562, %v3280, 0.0
        %3343 = vadd.xlane.f32.xlu0 %v3342
        %v3344 = vpop.xlane.xlu0 %3343
        %v3345 = vsel %vm562, %v3283, 0.0
        %3346 = vadd.xlane.f32.xlu0 %v3345
        %v3347 = vpop.xlane.xlu0 %3346
        %v3348 = vsel %vm562, %v3288, 0.0
        %3349 = vadd.xlane.f32.xlu0 %v3348
        %v3350 = vpop.xlane.xlu0 %3349
        %v3351 = vsel %vm562, %v3291, 0.0
        %3352 = vadd.xlane.f32.xlu0 %v3351
        %v3353 = vpop.xlane.xlu0 %3352
        %v3354 = vsel %vm562, %v3296, 0.0
        %3355 = vadd.xlane.f32.xlu0 %v3354
        %v3356 = vpop.xlane.xlu0 %3355
        %v3357 = vsel %vm562, %v3299, 0.0
        %3358 = vadd.xlane.f32.xlu0 %v3357
        %v3359 = vpop.xlane.xlu0 %3358
        %v3360 = vsel %vm562, %v3304, 0.0
        %3361 = vadd.xlane.f32.xlu0 %v3360
        %v3362 = vpop.xlane.xlu0 %3361
        %v3363 = vsel %vm562, %v3307, 0.0
        %3364 = vadd.xlane.f32.xlu0 %v3363
        %v3365 = vpop.xlane.xlu0 %3364
        %v3366 = vsel %vm562, %v3312, 0.0
        %3367 = vadd.xlane.f32.xlu0 %v3366
        %v3368 = vpop.xlane.xlu0 %3367
        %v3369 = vsel %vm562, %v3315, 0.0
        %3370 = vadd.xlane.f32.xlu0 %v3369
        %v3371 = vpop.xlane.xlu0 %3370
        %v3372 = vsel %vm562, %v3320, 0.0
        %3373 = vadd.xlane.f32.xlu0 %v3372
        %v3374 = vpop.xlane.xlu0 %3373
        %v3375 = vsel %vm562, %v3323, 0.0
        %3376 = vadd.xlane.f32.xlu0 %v3375
        %v3377 = vpop.xlane.xlu0 %3376
        %v3378 = vsel %vm562, %v3328, 0.0
        %3379 = vadd.xlane.f32.xlu0 %v3378
        %v3380 = vpop.xlane.xlu0 %3379
        %v3381 = vsel %vm562, %v3331, 0.0
        %3382 = vadd.xlane.f32.xlu0 %v3381
        %v3383 = vpop.xlane.xlu0 %3382
        %v3384 = vsel %vm562, %v3336, 0.0
        %3385 = vadd.xlane.f32.xlu0 %v3384
        %v3386 = vpop.xlane.xlu0 %3385
        %v3387 = vsel %vm562, %v3339, 0.0
        %3388 = vadd.xlane.f32.xlu0 %v3387
        %v3389 = vpop.xlane.xlu0 %3388
        %v3390 = vmul.f32 %v3344, %v2281
        %v3391 = vmul.f32 %v3347, %v2281
        %v3392 = vmul.f32 %v3350, %v2281
        %v3393 = vmul.f32 %v3353, %v2281
        %v3394 = vmul.f32 %v3356, %v2281
        %v3395 = vmul.f32 %v3359, %v2281
        %v3396 = vmul.f32 %v3362, %v2281
        %v3397 = vmul.f32 %v3365, %v2281
        %v3398 = vmul.f32 %v3368, %v2281
        %v3399 = vmul.f32 %v3371, %v2281
        %v3400 = vmul.f32 %v3374, %v2281
        %v3401 = vmul.f32 %v3377, %v2281
        %v3402 = vmul.f32 %v3380, %v2281
        %v3403 = vmul.f32 %v3383, %v2281
        %v3404 = vmul.f32 %v3386, %v2281
        %v3405 = vmul.f32 %v3389, %v2281
        %v3406 = vsub.f32 %v3280, %v3390
        %v3407 = vsub.f32 %v3283, %v3391
        %v3408 = vsub.f32 %v3288, %v3392
        %v3409 = vsub.f32 %v3291, %v3393
        %v3410 = vsub.f32 %v3296, %v3394
        %v3411 = vsub.f32 %v3299, %v3395
        %v3412 = vsub.f32 %v3304, %v3396
        %v3413 = vsub.f32 %v3307, %v3397
        %v3414 = vsub.f32 %v3312, %v3398
        %v3415 = vsub.f32 %v3315, %v3399
        %v3416 = vsub.f32 %v3320, %v3400
        %v3417 = vsub.f32 %v3323, %v3401
        %v3418 = vsub.f32 %v3328, %v3402
        %v3419 = vsub.f32 %v3331, %v3403
        %v3420 = vsub.f32 %v3336, %v3404
        %v3421 = vsub.f32 %v3339, %v3405
        %v3422 = vmul.f32 %v3406, %v3406
        %v3423 = vmul.f32 %v3407, %v3407
        %v3424 = vmul.f32 %v3408, %v3408
        %v3425 = vmul.f32 %v3409, %v3409
        %v3426 = vmul.f32 %v3410, %v3410
        %v3427 = vmul.f32 %v3411, %v3411
        %v3428 = vmul.f32 %v3412, %v3412
        %v3429 = vmul.f32 %v3413, %v3413
        %v3430 = vmul.f32 %v3414, %v3414
        %v3431 = vmul.f32 %v3415, %v3415
        %v3432 = vmul.f32 %v3416, %v3416
        %v3433 = vmul.f32 %v3417, %v3417
        %v3434 = vmul.f32 %v3418, %v3418
        %v3435 = vmul.f32 %v3419, %v3419
        %v3436 = vmul.f32 %v3420, %v3420
        %v3437 = vmul.f32 %v3421, %v3421
        %v3438 = vsel %vm562, %v3422, 0.0
        %3439 = vadd.xlane.f32.xlu0 %v3438
        %v3440 = vpop.xlane.xlu0 %3439
        %v3441 = vsel %vm562, %v3423, 0.0
        %3442 = vadd.xlane.f32.xlu0 %v3441
        %v3443 = vpop.xlane.xlu0 %3442
        %v3444 = vsel %vm562, %v3424, 0.0
        %3445 = vadd.xlane.f32.xlu0 %v3444
        %v3446 = vpop.xlane.xlu0 %3445
        %v3447 = vsel %vm562, %v3425, 0.0
        %3448 = vadd.xlane.f32.xlu0 %v3447
        %v3449 = vpop.xlane.xlu0 %3448
        %v3450 = vsel %vm562, %v3426, 0.0
        %3451 = vadd.xlane.f32.xlu0 %v3450
        %v3452 = vpop.xlane.xlu0 %3451
        %v3453 = vsel %vm562, %v3427, 0.0
        %3454 = vadd.xlane.f32.xlu0 %v3453
        %v3455 = vpop.xlane.xlu0 %3454
        %v3456 = vsel %vm562, %v3428, 0.0
        %3457 = vadd.xlane.f32.xlu0 %v3456
        %v3458 = vpop.xlane.xlu0 %3457
        %v3459 = vsel %vm562, %v3429, 0.0
        %3460 = vadd.xlane.f32.xlu0 %v3459
        %v3461 = vpop.xlane.xlu0 %3460
        %v3462 = vsel %vm562, %v3430, 0.0
        %3463 = vadd.xlane.f32.xlu0 %v3462
        %v3464 = vpop.xlane.xlu0 %3463
        %v3465 = vsel %vm562, %v3431, 0.0
        %3466 = vadd.xlane.f32.xlu0 %v3465
        %v3467 = vpop.xlane.xlu0 %3466
        %v3468 = vsel %vm562, %v3432, 0.0
        %3469 = vadd.xlane.f32.xlu0 %v3468
        %v3470 = vpop.xlane.xlu0 %3469
        %v3471 = vsel %vm562, %v3433, 0.0
        %3472 = vadd.xlane.f32.xlu0 %v3471
        %v3473 = vpop.xlane.xlu0 %3472
        %v3474 = vsel %vm562, %v3434, 0.0
        %3475 = vadd.xlane.f32.xlu0 %v3474
        %v3476 = vpop.xlane.xlu0 %3475
        %v3477 = vsel %vm562, %v3435, 0.0
        %3478 = vadd.xlane.f32.xlu0 %v3477
        %v3479 = vpop.xlane.xlu0 %3478
        %v3480 = vsel %vm562, %v3436, 0.0
        %3481 = vadd.xlane.f32.xlu0 %v3480
        %v3482 = vpop.xlane.xlu0 %3481
        %v3483 = vsel %vm562, %v3437, 0.0
        %3484 = vadd.xlane.f32.xlu0 %v3483
        %v3485 = vpop.xlane.xlu0 %3484
        %v3486 = vmul.f32 %v3440, %v2281
        %v3487 = vmul.f32 %v3443, %v2281
        %v3488 = vmul.f32 %v3446, %v2281
        %v3489 = vmul.f32 %v3449, %v2281
        %v3490 = vmul.f32 %v3452, %v2281
        %v3491 = vmul.f32 %v3455, %v2281
        %v3492 = vmul.f32 %v3458, %v2281
        %v3493 = vmul.f32 %v3461, %v2281
        %v3494 = vmul.f32 %v3464, %v2281
        %v3495 = vmul.f32 %v3467, %v2281
        %v3496 = vmul.f32 %v3470, %v2281
        %v3497 = vmul.f32 %v3473, %v2281
        %v3498 = vmul.f32 %v3476, %v2281
        %v3499 = vmul.f32 %v3479, %v2281
        %v3500 = vmul.f32 %v3482, %v2281
        %v3501 = vmul.f32 %v3485, %v2281
        %v3502 = vadd.f32 %v3486, 1e-05
        %v3503 = vadd.f32 %v3487, 1e-05
        %v3504 = vadd.f32 %v3488, 1e-05
        %v3505 = vadd.f32 %v3489, 1e-05
        %v3506 = vadd.f32 %v3490, 1e-05
        %v3507 = vadd.f32 %v3491, 1e-05
        %v3508 = vadd.f32 %v3492, 1e-05
        %v3509 = vadd.f32 %v3493, 1e-05
        %v3510 = vadd.f32 %v3494, 1e-05
        %v3511 = vadd.f32 %v3495, 1e-05
        %v3512 = vadd.f32 %v3496, 1e-05
        %v3513 = vadd.f32 %v3497, 1e-05
        %v3514 = vadd.f32 %v3498, 1e-05
        %v3515 = vadd.f32 %v3499, 1e-05
        %v3516 = vadd.f32 %v3500, 1e-05
        %v3517 = vadd.f32 %v3501, 1e-05
        %v3518 = vrsqrt.pop %v3502
        %v3519 = vrsqrt.pop %v3503
        %v3520 = vrsqrt.pop %v3504
        %v3521 = vrsqrt.pop %v3505
        %v3522 = vrsqrt.pop %v3506
        %v3523 = vrsqrt.pop %v3507
        %v3524 = vrsqrt.pop %v3508
        %v3525 = vrsqrt.pop %v3509
        %v3526 = vrsqrt.pop %v3510
        %v3527 = vrsqrt.pop %v3511
        %v3528 = vrsqrt.pop %v3512
        %v3529 = vrsqrt.pop %v3513
        %v3530 = vrsqrt.pop %v3514
        %v3531 = vrsqrt.pop %v3515
        %v3532 = vrsqrt.pop %v3516
        %v3533 = vrsqrt.pop %v3517
        %v3534 = vmul.f32 %v3406, %v3518
        %v3535 = vmul.f32 %v3407, %v3519
        %v3536 = vmul.f32 %v3408, %v3520
        %v3537 = vmul.f32 %v3409, %v3521
        %v3538 = vmul.f32 %v3410, %v3522
        %v3539 = vmul.f32 %v3411, %v3523
        %v3540 = vmul.f32 %v3412, %v3524
        %v3541 = vmul.f32 %v3413, %v3525
        %v3542 = vmul.f32 %v3414, %v3526
        %v3543 = vmul.f32 %v3415, %v3527
        %v3544 = vmul.f32 %v3416, %v3528
        %v3545 = vmul.f32 %v3417, %v3529
        %v3546 = vmul.f32 %v3418, %v3530
        %v3547 = vmul.f32 %v3419, %v3531
        %v3548 = vmul.f32 %v3420, %v3532
        %v3549 = vmul.f32 %v3421, %v3533
        %3550 = vst.msk [vmem:[%s8] sm:$0xff] %vm562, %v3534
        %3551 = vst.msk [vmem:[%s8 + $0x8] sm:$0xff] %vm562, %v3535
        %3552 = vst.msk [vmem:[%s8 + $0x10] sm:$0xff] %vm562, %v3536
        %3553 = vst.msk [vmem:[%s8 + $0x18] sm:$0xff] %vm562, %v3537
        %3554 = vst.msk [vmem:[%s8 + $0x20] sm:$0xff] %vm562, %v3538
        %3555 = vst.msk [vmem:[%s8 + $0x28] sm:$0xff] %vm562, %v3539
        %3556 = vst.msk [vmem:[%s8 + $0x30] sm:$0xff] %vm562, %v3540
        %3557 = vst.msk [vmem:[%s8 + $0x38] sm:$0xff] %vm562, %v3541
        %3558 = vst.msk [vmem:[%s8 + $0x40] sm:$0xff] %vm562, %v3542
        %3559 = vst.msk [vmem:[%s8 + $0x48] sm:$0xff] %vm562, %v3543
        %3560 = vst.msk [vmem:[%s8 + $0x50] sm:$0xff] %vm562, %v3544
        %3561 = vst.msk [vmem:[%s8 + $0x58] sm:$0xff] %vm562, %v3545
        %3562 = vst.msk [vmem:[%s8 + $0x60] sm:$0xff] %vm562, %v3546
        %3563 = vst.msk [vmem:[%s8 + $0x68] sm:$0xff] %vm562, %v3547
        %3564 = vst.msk [vmem:[%s8 + $0x70] sm:$0xff] %vm562, %v3548
        %3565 = vst.msk [vmem:[%s8 + $0x78] sm:$0xff] %vm562, %v3549
        %p3566 = scmp.lt.s32.totalorder %s30, 2
        // Predicated region
        $region73: #{transformer_forward.2} parent=51 // pred_check
          %p3567 = pneg %p3566
        $region74: #{transformer_forward.2} parent=51 // pred_check_branch
          %3569 = sbr.rel (%p3567) target = $region76
        $region75: #{transformer_forward.2} parent=51 // pred_region
          %s3570 = smul.u32 %s30, 128
          %s3571 = scalar_lea.vmem [#allocation2], %s3570
          %3572 = vst.msk [vmem:[%s3571] sm:$0xff] %vm562, %v3534
          %3573 = vst.msk [vmem:[%s3571 + $0x8] sm:$0xff] %vm562, %v3535
          %3574 = vst.msk [vmem:[%s3571 + $0x10] sm:$0xff] %vm562, %v3536
          %3575 = vst.msk [vmem:[%s3571 + $0x18] sm:$0xff] %vm562, %v3537
          %3576 = vst.msk [vmem:[%s3571 + $0x20] sm:$0xff] %vm562, %v3538
          %3577 = vst.msk [vmem:[%s3571 + $0x28] sm:$0xff] %vm562, %v3539
          %3578 = vst.msk [vmem:[%s3571 + $0x30] sm:$0xff] %vm562, %v3540
          %3579 = vst.msk [vmem:[%s3571 + $0x38] sm:$0xff] %vm562, %v3541
          %3580 = vst.msk [vmem:[%s3571 + $0x40] sm:$0xff] %vm562, %v3542
          %3581 = vst.msk [vmem:[%s3571 + $0x48] sm:$0xff] %vm562, %v3543
          %3582 = vst.msk [vmem:[%s3571 + $0x50] sm:$0xff] %vm562, %v3544
          %3583 = vst.msk [vmem:[%s3571 + $0x58] sm:$0xff] %vm562, %v3545
          %3584 = vst.msk [vmem:[%s3571 + $0x60] sm:$0xff] %vm562, %v3546
          %3585 = vst.msk [vmem:[%s3571 + $0x68] sm:$0xff] %vm562, %v3547
          %3586 = vst.msk [vmem:[%s3571 + $0x70] sm:$0xff] %vm562, %v3548
          %3587 = vst.msk [vmem:[%s3571 + $0x78] sm:$0xff] %vm562, %v3549
        $region76: #{transformer_forward.2} parent=51 // pred_fallthru
          _
        %p3588 = scmp.lt.s32.totalorder %s30, 2
        %s3589 = scalar_select %p3588, %s30, 2
        %s3590 = smul.addr %s3589, 16
        %s3591 = smul.addr %s3590, 8
        %s3592 = scalar_lea.vmem %s9, %s3591
        // Predicated region
        $region77: #{transformer_forward.2} parent=51 // pred_check
          %p3593 = pneg %p251
        $region78: #{transformer_forward.2} parent=51 // pred_check_branch
          %3595 = sbr.rel (%p3593) target = $region80
        $region79: #{transformer_forward.2} parent=51 // pred_region
          _
        $region80: #{transformer_forward.2} parent=51 // pred_fallthru
          _
        // Predicated region
        $region81: #{transformer_forward.2} parent=51 // pred_check
          %p3596 = pneg %p277
        $region82: #{transformer_forward.2} parent=51 // pred_check_branch
          %3598 = sbr.rel (%p3596) target = $region84
        $region83: #{transformer_forward.2} parent=51 // pred_region
          _
        $region84: #{transformer_forward.2} parent=51 // pred_fallthru
          _
        // Predicated region
        $region85: #{transformer_forward.2} parent=51 // pred_check
          %p3599 = pneg %p251
        $region86: #{transformer_forward.2} parent=51 // pred_check_branch
          %3601 = sbr.rel (%p3599) target = $region88
        $region87: #{transformer_forward.2} parent=51 // pred_region
          _
        $region88: #{transformer_forward.2} parent=51 // pred_fallthru
          _
      $region52: #{transformer_forward.2} parent=5 // pred_fallthru
        _
      %p3602 = scmp.le.s32.totalorder 2, %s25
      // Predicated region
      $region89: #{transformer_forward.2} parent=5 // pred_check
        %p3603 = pneg %p3602
      $region90: #{transformer_forward.2} parent=5 // pred_check_branch
        %3605 = sbr.rel (%p3603) target = $region92
      $region91: #{transformer_forward.2} parent=5 // pred_region
        %s3606 = ssub.s32 %s25, 2
        // Predicated region
        $region93: #{transformer_forward.2} parent=91 // pred_check
          %p3607 = pneg %p283
        $region94: #{transformer_forward.2} parent=91 // pred_check_branch
          %3609 = sbr.rel (%p3607) target = $region96
        $region95: #{transformer_forward.2} parent=91 // pred_region
          %p3610 = scmp.lt.s32.totalorder %s31, 2
          %s3611 = scalar_select %p3610, %s31, 2
          %s3612 = smul.addr %s3611, 16
          %s3613 = smul.addr %s3612, 8
          %s3614 = scalar_lea.vmem %s9, %s3613
        $region96: #{transformer_forward.2} parent=91 // pred_fallthru
          _
      $region92: #{transformer_forward.2} parent=5 // pred_fallthru
        _
    $region6: #{transformer_forward.2} parent=1 // loop_footer
      %s29 = sadd.s32 1, %s25
    $region7: #{transformer_forward.2} parent=1 // loop_footer_branch
      %24 = sbr.rel target = $region3
    $region8: #{transformer_forward.2} parent=1 // loop_exit
      _
    %3615 = vsyncpa [#allocation5], 1
    %s3616 = scalar_lea.sflag [#allocation5], 1
    %3617 = vsyncpa %s3616, 1
    %3618 = vsyncpa [#allocation7], 1
    %s3619 = scalar_lea.sflag [#allocation7], 1
    %3620 = vsyncpa %s3619, 1
    %3621 = vsyncpa [#allocation10], 1
    %s3622 = scalar_lea.sflag [#allocation10], 1
    %3623 = vsyncpa %s3622, 1

// kernel: transformer_forward.3
$region0: #{transformer_forward.3}
  #allocation0 [shape = 'u32[]', space=smem, size = 0x4, offset = 0x4, fixed_abs, tag = 'smem constant byte address 0x4 - core index']
  #allocation1 [shape = 'u32[144,128]{1,0:T(1,128)}', space=vmem, size = 0x12000, scoped, tag = 'internal scratch']
  %s0 = inlined_call_operand.vmem [shape: f32[2,4096], index: 0, kind: input, shape index: {}]
  %s1 = inlined_call_operand.vmem [shape: bf16[4096,256], index: 1, kind: input, shape index: {}]
  %s2 = inlined_call_operand.vmem [shape: f32[1,256], index: 2, kind: input, shape index: {}]
  %s3 = inlined_call_operand.vmem [shape: f32[256,64], index: 3, kind: input, shape index: {}]
  %s4 = inlined_call_operand.vmem [shape: f32[1,64], index: 4, kind: input, shape index: {}]
  %s5 = inlined_call_operand.vmem [shape: f32[64,2], index: 5, kind: input, shape index: {}]
  %s6 = inlined_call_operand.vmem [shape: f32[1,2], index: 6, kind: input, shape index: {}]
  %s7 = inlined_call_operand.hbm [shape: f32[2,2], index: 7, kind: output, shape index: {}]
  %s8 = sld [smem:[#allocation0]]
  $region38: #{transformer_forward.3} parent=0
    _
  %s10 = ssub.s32 1, %s8
  %s11 = scalar_select 0, %s10, %s8
  $region1: #{transformer_forward.3} parent=0
    #allocation2 [shape = 'u8[1024]{0}', space=vmem, size = 0x400, scoped, tag = 'output window, operand 0, single buffered']
    #allocation3 [shape = 's32[1]{0}', space=sflag, size = 0x4, scoped, tag = 'scoped memory for transformer_forward.3']
    %12 = vsyncpa [#allocation3], 0
    // Predicated region
    $region2: #{transformer_forward.3} parent=1 // pred_check
      _
    $region3: #{transformer_forward.3} parent=1 // pred_check_branch
      %14 = sbr.rel (0) target = $region5
    $region4: #{transformer_forward.3} parent=1 // pred_region
      _
    $region5: #{transformer_forward.3} parent=1 // pred_fallthru
      _
    // Predicated region
    $region6: #{transformer_forward.3} parent=1 // pred_check
      _
    $region7: #{transformer_forward.3} parent=1 // pred_check_branch
      %16 = sbr.rel (0) target = $region9
    $region8: #{transformer_forward.3} parent=1 // pred_region
      _
    $region9: #{transformer_forward.3} parent=1 // pred_fallthru
      _
    // Predicated region
    $region10: #{transformer_forward.3} parent=1 // pred_check
      _
    $region11: #{transformer_forward.3} parent=1 // pred_check_branch
      %18 = sbr.rel (0) target = $region13
    $region12: #{transformer_forward.3} parent=1 // pred_region
      _
    $region13: #{transformer_forward.3} parent=1 // pred_fallthru
      _
    // Predicated region
    $region14: #{transformer_forward.3} parent=1 // pred_check
      _
    $region15: #{transformer_forward.3} parent=1 // pred_check_branch
      %20 = sbr.rel (0) target = $region17
    $region16: #{transformer_forward.3} parent=1 // pred_region
      _
    $region17: #{transformer_forward.3} parent=1 // pred_fallthru
      _
    // Predicated region
    $region18: #{transformer_forward.3} parent=1 // pred_check
      _
    $region19: #{transformer_forward.3} parent=1 // pred_check_branch
      %22 = sbr.rel (0) target = $region21
    $region20: #{transformer_forward.3} parent=1 // pred_region
      _
    $region21: #{transformer_forward.3} parent=1 // pred_fallthru
      _
    // Predicated region
    $region22: #{transformer_forward.3} parent=1 // pred_check
      _
    $region23: #{transformer_forward.3} parent=1 // pred_check_branch
      %24 = sbr.rel (0) target = $region25
    $region24: #{transformer_forward.3} parent=1 // pred_region
      _
    $region25: #{transformer_forward.3} parent=1 // pred_fallthru
      _
    // Predicated region
    $region26: #{transformer_forward.3} parent=1 // pred_check
      _
    $region27: #{transformer_forward.3} parent=1 // pred_check_branch
      %26 = sbr.rel (0) target = $region29
    $region28: #{transformer_forward.3} parent=1 // pred_region
      _
    $region29: #{transformer_forward.3} parent=1 // pred_fallthru
      _
    %v27 = vld [vmem:[%s0] sm:$0xff]
    %v28 = vld [vmem:[%s0 + $0x8] sm:$0xff]
    %v29 = vld [vmem:[%s0 + $0x10] sm:$0xff]
    %v30 = vld [vmem:[%s0 + $0x18] sm:$0xff]
    %v31 = vld [vmem:[%s0 + $0x20] sm:$0xff]
    %v32 = vld [vmem:[%s0 + $0x28] sm:$0xff]
    %v33 = vld [vmem:[%s0 + $0x30] sm:$0xff]
    %v34 = vld [vmem:[%s0 + $0x38] sm:$0xff]
    %v43 = vcombine.high %v27, %v27
    %v45 = vunpack.c.l.s4 1983009808
    %v46 = vunpack.c.0.s8 %v45
    %v47 = vlaneseq
    %v48 = vshrl.u32 %v47, 7
    %v49 = vsub.s32 %v46, %v48
    %v50 = vrot.slane %v27, %v49
    %v52 = vunpack.c.l.s4 1983009808
    %v53 = vunpack.c.0.s8 %v52
    %v54 = vlaneseq
    %v55 = vshrl.u32 %v54, 7
    %v56 = vsub.s32 %v53, %v55
    %v57 = vrot.slane %v43, %v56
    %v58 = vcombine.high %v50, %v50
    %v59 = vcombine.high %v57, %v57
    %v60 = vcombine.high %v28, %v28
    %v62 = vunpack.c.l.s4 1983009808
    %v63 = vunpack.c.0.s8 %v62
    %v64 = vlaneseq
    %v65 = vshrl.u32 %v64, 7
    %v66 = vsub.s32 %v63, %v65
    %v67 = vrot.slane %v28, %v66
    %v69 = vunpack.c.l.s4 1983009808
    %v70 = vunpack.c.0.s8 %v69
    %v71 = vlaneseq
    %v72 = vshrl.u32 %v71, 7
    %v73 = vsub.s32 %v70, %v72
    %v74 = vrot.slane %v60, %v73
    %v75 = vcombine.high %v67, %v67
    %v76 = vcombine.high %v74, %v74
    %v77 = vcombine.high %v29, %v29
    %v79 = vunpack.c.l.s4 1983009808
    %v80 = vunpack.c.0.s8 %v79
    %v81 = vlaneseq
    %v82 = vshrl.u32 %v81, 7
    %v83 = vsub.s32 %v80, %v82
    %v84 = vrot.slane %v29, %v83
    %v86 = vunpack.c.l.s4 1983009808
    %v87 = vunpack.c.0.s8 %v86
    %v88 = vlaneseq
    %v89 = vshrl.u32 %v88, 7
    %v90 = vsub.s32 %v87, %v89
    %v91 = vrot.slane %v77, %v90
    %v92 = vcombine.high %v84, %v84
    %v93 = vcombine.high %v91, %v91
    %v94 = vcombine.high %v30, %v30
    %v96 = vunpack.c.l.s4 1983009808
    %v97 = vunpack.c.0.s8 %v96
    %v98 = vlaneseq
    %v99 = vshrl.u32 %v98, 7
    %v100 = vsub.s32 %v97, %v99
    %v101 = vrot.slane %v30, %v100
    %v103 = vunpack.c.l.s4 1983009808
    %v104 = vunpack.c.0.s8 %v103
    %v105 = vlaneseq
    %v106 = vshrl.u32 %v105, 7
    %v107 = vsub.s32 %v104, %v106
    %v108 = vrot.slane %v94, %v107
    %v109 = vcombine.high %v101, %v101
    %v110 = vcombine.high %v108, %v108
    %v111 = vcombine.high %v31, %v31
    %v113 = vunpack.c.l.s4 1983009808
    %v114 = vunpack.c.0.s8 %v113
    %v115 = vlaneseq
    %v116 = vshrl.u32 %v115, 7
    %v117 = vsub.s32 %v114, %v116
    %v118 = vrot.slane %v31, %v117
    %v120 = vunpack.c.l.s4 1983009808
    %v121 = vunpack.c.0.s8 %v120
    %v122 = vlaneseq
    %v123 = vshrl.u32 %v122, 7
    %v124 = vsub.s32 %v121, %v123
    %v125 = vrot.slane %v111, %v124
    %v126 = vcombine.high %v118, %v118
    %v127 = vcombine.high %v125, %v125
    %v128 = vcombine.high %v32, %v32
    %v130 = vunpack.c.l.s4 1983009808
    %v131 = vunpack.c.0.s8 %v130
    %v132 = vlaneseq
    %v133 = vshrl.u32 %v132, 7
    %v134 = vsub.s32 %v131, %v133
    %v135 = vrot.slane %v32, %v134
    %v137 = vunpack.c.l.s4 1983009808
    %v138 = vunpack.c.0.s8 %v137
    %v139 = vlaneseq
    %v140 = vshrl.u32 %v139, 7
    %v141 = vsub.s32 %v138, %v140
    %v142 = vrot.slane %v128, %v141
    %v143 = vcombine.high %v135, %v135
    %v144 = vcombine.high %v142, %v142
    %v145 = vcombine.high %v33, %v33
    %v147 = vunpack.c.l.s4 1983009808
    %v148 = vunpack.c.0.s8 %v147
    %v149 = vlaneseq
    %v150 = vshrl.u32 %v149, 7
    %v151 = vsub.s32 %v148, %v150
    %v152 = vrot.slane %v33, %v151
    %v154 = vunpack.c.l.s4 1983009808
    %v155 = vunpack.c.0.s8 %v154
    %v156 = vlaneseq
    %v157 = vshrl.u32 %v156, 7
    %v158 = vsub.s32 %v155, %v157
    %v159 = vrot.slane %v145, %v158
    %v160 = vcombine.high %v152, %v152
    %v161 = vcombine.high %v159, %v159
    %v162 = vcombine.high %v34, %v34
    %v164 = vunpack.c.l.s4 1983009808
    %v165 = vunpack.c.0.s8 %v164
    %v166 = vlaneseq
    %v167 = vshrl.u32 %v166, 7
    %v168 = vsub.s32 %v165, %v167
    %v169 = vrot.slane %v34, %v168
    %v171 = vunpack.c.l.s4 1983009808
    %v172 = vunpack.c.0.s8 %v171
    %v173 = vlaneseq
    %v174 = vshrl.u32 %v173, 7
    %v175 = vsub.s32 %v172, %v174
    %v176 = vrot.slane %v162, %v175
    %v177 = vcombine.high %v169, %v169
    %v178 = vcombine.high %v176, %v176
    %v211 = vpack.c.bf16 %v50, %v50
    %v212 = vpack.c.bf16 %v58, %v58
    %v213 = vpack.c.bf16 %v57, %v57
    %v214 = vpack.c.bf16 %v59, %v59
    %v215 = vpack.c.bf16 %v67, %v67
    %v216 = vpack.c.bf16 %v75, %v75
    %v217 = vpack.c.bf16 %v74, %v74
    %v218 = vpack.c.bf16 %v76, %v76
    %v219 = vpack.c.bf16 %v84, %v84
    %v220 = vpack.c.bf16 %v92, %v92
    %v221 = vpack.c.bf16 %v91, %v91
    %v222 = vpack.c.bf16 %v93, %v93
    %v223 = vpack.c.bf16 %v101, %v101
    %v224 = vpack.c.bf16 %v109, %v109
    %v225 = vpack.c.bf16 %v108, %v108
    %v226 = vpack.c.bf16 %v110, %v110
    %v227 = vpack.c.bf16 %v118, %v118
    %v228 = vpack.c.bf16 %v126, %v126
    %v229 = vpack.c.bf16 %v125, %v125
    %v230 = vpack.c.bf16 %v127, %v127
    %v231 = vpack.c.bf16 %v135, %v135
    %v232 = vpack.c.bf16 %v143, %v143
    %v233 = vpack.c.bf16 %v142, %v142
    %v234 = vpack.c.bf16 %v144, %v144
    %v235 = vpack.c.bf16 %v152, %v152
    %v236 = vpack.c.bf16 %v160, %v160
    %v237 = vpack.c.bf16 %v159, %v159
    %v238 = vpack.c.bf16 %v161, %v161
    %v239 = vpack.c.bf16 %v169, %v169
    %v240 = vpack.c.bf16 %v177, %v177
    %v241 = vpack.c.bf16 %v176, %v176
    %v242 = vpack.c.bf16 %v178, %v178
    %v243 = vld [vmem:[%s1] sm:$0xff]
    %v244 = vld [vmem:[%s1 + $0x8] sm:$0xff]
    %v245 = vld [vmem:[%s1 + $0x10] sm:$0xff]
    %v246 = vld [vmem:[%s1 + $0x18] sm:$0xff]
    %v247 = vld [vmem:[%s1 + $0x20] sm:$0xff]
    %v248 = vld [vmem:[%s1 + $0x28] sm:$0xff]
    %v249 = vld [vmem:[%s1 + $0x30] sm:$0xff]
    %v250 = vld [vmem:[%s1 + $0x38] sm:$0xff]
    %v251 = vld [vmem:[%s1 + $0x40] sm:$0xff]
    %v252 = vld [vmem:[%s1 + $0x48] sm:$0xff]
    %v253 = vld [vmem:[%s1 + $0x50] sm:$0xff]
    %v254 = vld [vmem:[%s1 + $0x58] sm:$0xff]
    %v255 = vld [vmem:[%s1 + $0x60] sm:$0xff]
    %v256 = vld [vmem:[%s1 + $0x68] sm:$0xff]
    %v257 = vld [vmem:[%s1 + $0x70] sm:$0xff]
    %v258 = vld [vmem:[%s1 + $0x78] sm:$0xff]
    %v259 = vld [vmem:[%s1 + $0x80] sm:$0xff]
    %v260 = vld [vmem:[%s1 + $0x88] sm:$0xff]
    %v261 = vld [vmem:[%s1 + $0x90] sm:$0xff]
    %v262 = vld [vmem:[%s1 + $0x98] sm:$0xff]
    %v263 = vld [vmem:[%s1 + $0xa0] sm:$0xff]
    %v264 = vld [vmem:[%s1 + $0xa8] sm:$0xff]
    %v265 = vld [vmem:[%s1 + $0xb0] sm:$0xff]
    %v266 = vld [vmem:[%s1 + $0xb8] sm:$0xff]
    %v267 = vld [vmem:[%s1 + $0xc0] sm:$0xff]
    %v268 = vld [vmem:[%s1 + $0xc8] sm:$0xff]
    %v269 = vld [vmem:[%s1 + $0xd0] sm:$0xff]
    %v270 = vld [vmem:[%s1 + $0xd8] sm:$0xff]
    %v271 = vld [vmem:[%s1 + $0xe0] sm:$0xff]
    %v272 = vld [vmem:[%s1 + $0xe8] sm:$0xff]
    %v273 = vld [vmem:[%s1 + $0xf0] sm:$0xff]
    %v274 = vld [vmem:[%s1 + $0xf8] sm:$0xff]
    %v275 = vld [vmem:[%s1 + $0x100] sm:$0xff]
    %v276 = vld [vmem:[%s1 + $0x108] sm:$0xff]
    %v277 = vld [vmem:[%s1 + $0x110] sm:$0xff]
    %v278 = vld [vmem:[%s1 + $0x118] sm:$0xff]
    %v279 = vld [vmem:[%s1 + $0x120] sm:$0xff]
    %v280 = vld [vmem:[%s1 + $0x128] sm:$0xff]
    %v281 = vld [vmem:[%s1 + $0x130] sm:$0xff]
    %v282 = vld [vmem:[%s1 + $0x138] sm:$0xff]
    %v283 = vld [vmem:[%s1 + $0x140] sm:$0xff]
    %v284 = vld [vmem:[%s1 + $0x148] sm:$0xff]
    %v285 = vld [vmem:[%s1 + $0x150] sm:$0xff]
    %v286 = vld [vmem:[%s1 + $0x158] sm:$0xff]
    %v287 = vld [vmem:[%s1 + $0x160] sm:$0xff]
    %v288 = vld [vmem:[%s1 + $0x168] sm:$0xff]
    %v289 = vld [vmem:[%s1 + $0x170] sm:$0xff]
    %v290 = vld [vmem:[%s1 + $0x178] sm:$0xff]
    %v291 = vld [vmem:[%s1 + $0x180] sm:$0xff]
    %v292 = vld [vmem:[%s1 + $0x188] sm:$0xff]
    %v293 = vld [vmem:[%s1 + $0x190] sm:$0xff]
    %v294 = vld [vmem:[%s1 + $0x198] sm:$0xff]
    %v295 = vld [vmem:[%s1 + $0x1a0] sm:$0xff]
    %v296 = vld [vmem:[%s1 + $0x1a8] sm:$0xff]
    %v297 = vld [vmem:[%s1 + $0x1b0] sm:$0xff]
    %v298 = vld [vmem:[%s1 + $0x1b8] sm:$0xff]
    %v299 = vld [vmem:[%s1 + $0x1c0] sm:$0xff]
    %v300 = vld [vmem:[%s1 + $0x1c8] sm:$0xff]
    %v301 = vld [vmem:[%s1 + $0x1d0] sm:$0xff]
    %v302 = vld [vmem:[%s1 + $0x1d8] sm:$0xff]
    %v303 = vld [vmem:[%s1 + $0x1e0] sm:$0xff]
    %v304 = vld [vmem:[%s1 + $0x1e8] sm:$0xff]
    %v305 = vld [vmem:[%s1 + $0x1f0] sm:$0xff]
    %v306 = vld [vmem:[%s1 + $0x1f8] sm:$0xff]
    %v307 = vld [vmem:[%s1 + $0x200] sm:$0xff]
    %v308 = vld [vmem:[%s1 + $0x208] sm:$0xff]
    %v309 = vld [vmem:[%s1 + $0x210] sm:$0xff]
    %v310 = vld [vmem:[%s1 + $0x218] sm:$0xff]
    %v311 = vld [vmem:[%s1 + $0x220] sm:$0xff]
    %v312 = vld [vmem:[%s1 + $0x228] sm:$0xff]
    %v313 = vld [vmem:[%s1 + $0x230] sm:$0xff]
    %v314 = vld [vmem:[%s1 + $0x238] sm:$0xff]
    %v315 = vld [vmem:[%s1 + $0x240] sm:$0xff]
    %v316 = vld [vmem:[%s1 + $0x248] sm:$0xff]
    %v317 = vld [vmem:[%s1 + $0x250] sm:$0xff]
    %v318 = vld [vmem:[%s1 + $0x258] sm:$0xff]
    %v319 = vld [vmem:[%s1 + $0x260] sm:$0xff]
    %v320 = vld [vmem:[%s1 + $0x268] sm:$0xff]
    %v321 = vld [vmem:[%s1 + $0x270] sm:$0xff]
    %v322 = vld [vmem:[%s1 + $0x278] sm:$0xff]
    %v323 = vld [vmem:[%s1 + $0x280] sm:$0xff]
    %v324 = vld [vmem:[%s1 + $0x288] sm:$0xff]
    %v325 = vld [vmem:[%s1 + $0x290] sm:$0xff]
    %v326 = vld [vmem:[%s1 + $0x298] sm:$0xff]
    %v327 = vld [vmem:[%s1 + $0x2a0] sm:$0xff]
    %v328 = vld [vmem:[%s1 + $0x2a8] sm:$0xff]
    %v329 = vld [vmem:[%s1 + $0x2b0] sm:$0xff]
    %v330 = vld [vmem:[%s1 + $0x2b8] sm:$0xff]
    %v331 = vld [vmem:[%s1 + $0x2c0] sm:$0xff]
    %v332 = vld [vmem:[%s1 + $0x2c8] sm:$0xff]
    %v333 = vld [vmem:[%s1 + $0x2d0] sm:$0xff]
    %v334 = vld [vmem:[%s1 + $0x2d8] sm:$0xff]
    %v335 = vld [vmem:[%s1 + $0x2e0] sm:$0xff]
    %v336 = vld [vmem:[%s1 + $0x2e8] sm:$0xff]
    %v337 = vld [vmem:[%s1 + $0x2f0] sm:$0xff]
    %v338 = vld [vmem:[%s1 + $0x2f8] sm:$0xff]
    %v339 = vld [vmem:[%s1 + $0x300] sm:$0xff]
    %v340 = vld [vmem:[%s1 + $0x308] sm:$0xff]
    %v341 = vld [vmem:[%s1 + $0x310] sm:$0xff]
    %v342 = vld [vmem:[%s1 + $0x318] sm:$0xff]
    %v343 = vld [vmem:[%s1 + $0x320] sm:$0xff]
    %v344 = vld [vmem:[%s1 + $0x328] sm:$0xff]
    %v345 = vld [vmem:[%s1 + $0x330] sm:$0xff]
    %v346 = vld [vmem:[%s1 + $0x338] sm:$0xff]
    %v347 = vld [vmem:[%s1 + $0x340] sm:$0xff]
    %v348 = vld [vmem:[%s1 + $0x348] sm:$0xff]
    %v349 = vld [vmem:[%s1 + $0x350] sm:$0xff]
    %v350 = vld [vmem:[%s1 + $0x358] sm:$0xff]
    %v351 = vld [vmem:[%s1 + $0x360] sm:$0xff]
    %v352 = vld [vmem:[%s1 + $0x368] sm:$0xff]
    %v353 = vld [vmem:[%s1 + $0x370] sm:$0xff]
    %v354 = vld [vmem:[%s1 + $0x378] sm:$0xff]
    %v355 = vld [vmem:[%s1 + $0x380] sm:$0xff]
    %v356 = vld [vmem:[%s1 + $0x388] sm:$0xff]
    %v357 = vld [vmem:[%s1 + $0x390] sm:$0xff]
    %v358 = vld [vmem:[%s1 + $0x398] sm:$0xff]
    %v359 = vld [vmem:[%s1 + $0x3a0] sm:$0xff]
    %v360 = vld [vmem:[%s1 + $0x3a8] sm:$0xff]
    %v361 = vld [vmem:[%s1 + $0x3b0] sm:$0xff]
    %v362 = vld [vmem:[%s1 + $0x3b8] sm:$0xff]
    %v363 = vld [vmem:[%s1 + $0x3c0] sm:$0xff]
    %v364 = vld [vmem:[%s1 + $0x3c8] sm:$0xff]
    %v365 = vld [vmem:[%s1 + $0x3d0] sm:$0xff]
    %v366 = vld [vmem:[%s1 + $0x3d8] sm:$0xff]
    %v367 = vld [vmem:[%s1 + $0x3e0] sm:$0xff]
    %v368 = vld [vmem:[%s1 + $0x3e8] sm:$0xff]
    %v369 = vld [vmem:[%s1 + $0x3f0] sm:$0xff]
    %v370 = vld [vmem:[%s1 + $0x3f8] sm:$0xff]
    %v371 = vld [vmem:[%s1 + $0x400] sm:$0xff]
    %v372 = vld [vmem:[%s1 + $0x408] sm:$0xff]
    %v373 = vld [vmem:[%s1 + $0x410] sm:$0xff]
    %v374 = vld [vmem:[%s1 + $0x418] sm:$0xff]
    %v375 = vld [vmem:[%s1 + $0x420] sm:$0xff]
    %v376 = vld [vmem:[%s1 + $0x428] sm:$0xff]
    %v377 = vld [vmem:[%s1 + $0x430] sm:$0xff]
    %v378 = vld [vmem:[%s1 + $0x438] sm:$0xff]
    %v379 = vld [vmem:[%s1 + $0x440] sm:$0xff]
    %v380 = vld [vmem:[%s1 + $0x448] sm:$0xff]
    %v381 = vld [vmem:[%s1 + $0x450] sm:$0xff]
    %v382 = vld [vmem:[%s1 + $0x458] sm:$0xff]
    %v383 = vld [vmem:[%s1 + $0x460] sm:$0xff]
    %v384 = vld [vmem:[%s1 + $0x468] sm:$0xff]
    %v385 = vld [vmem:[%s1 + $0x470] sm:$0xff]
    %v386 = vld [vmem:[%s1 + $0x478] sm:$0xff]
    %v387 = vld [vmem:[%s1 + $0x480] sm:$0xff]
    %v388 = vld [vmem:[%s1 + $0x488] sm:$0xff]
    %v389 = vld [vmem:[%s1 + $0x490] sm:$0xff]
    %v390 = vld [vmem:[%s1 + $0x498] sm:$0xff]
    %v391 = vld [vmem:[%s1 + $0x4a0] sm:$0xff]
    %v392 = vld [vmem:[%s1 + $0x4a8] sm:$0xff]
    %v393 = vld [vmem:[%s1 + $0x4b0] sm:$0xff]
    %v394 = vld [vmem:[%s1 + $0x4b8] sm:$0xff]
    %v395 = vld [vmem:[%s1 + $0x4c0] sm:$0xff]
    %v396 = vld [vmem:[%s1 + $0x4c8] sm:$0xff]
    %v397 = vld [vmem:[%s1 + $0x4d0] sm:$0xff]
    %v398 = vld [vmem:[%s1 + $0x4d8] sm:$0xff]
    %v399 = vld [vmem:[%s1 + $0x4e0] sm:$0xff]
    %v400 = vld [vmem:[%s1 + $0x4e8] sm:$0xff]
    %v401 = vld [vmem:[%s1 + $0x4f0] sm:$0xff]
    %v402 = vld [vmem:[%s1 + $0x4f8] sm:$0xff]
    %v403 = vld [vmem:[%s1 + $0x500] sm:$0xff]
    %v404 = vld [vmem:[%s1 + $0x508] sm:$0xff]
    %v405 = vld [vmem:[%s1 + $0x510] sm:$0xff]
    %v406 = vld [vmem:[%s1 + $0x518] sm:$0xff]
    %v407 = vld [vmem:[%s1 + $0x520] sm:$0xff]
    %v408 = vld [vmem:[%s1 + $0x528] sm:$0xff]
    %v409 = vld [vmem:[%s1 + $0x530] sm:$0xff]
    %v410 = vld [vmem:[%s1 + $0x538] sm:$0xff]
    %v411 = vld [vmem:[%s1 + $0x540] sm:$0xff]
    %v412 = vld [vmem:[%s1 + $0x548] sm:$0xff]
    %v413 = vld [vmem:[%s1 + $0x550] sm:$0xff]
    %v414 = vld [vmem:[%s1 + $0x558] sm:$0xff]
    %v415 = vld [vmem:[%s1 + $0x560] sm:$0xff]
    %v416 = vld [vmem:[%s1 + $0x568] sm:$0xff]
    %v417 = vld [vmem:[%s1 + $0x570] sm:$0xff]
    %v418 = vld [vmem:[%s1 + $0x578] sm:$0xff]
    %v419 = vld [vmem:[%s1 + $0x580] sm:$0xff]
    %v420 = vld [vmem:[%s1 + $0x588] sm:$0xff]
    %v421 = vld [vmem:[%s1 + $0x590] sm:$0xff]
    %v422 = vld [vmem:[%s1 + $0x598] sm:$0xff]
    %v423 = vld [vmem:[%s1 + $0x5a0] sm:$0xff]
    %v424 = vld [vmem:[%s1 + $0x5a8] sm:$0xff]
    %v425 = vld [vmem:[%s1 + $0x5b0] sm:$0xff]
    %v426 = vld [vmem:[%s1 + $0x5b8] sm:$0xff]
    %v427 = vld [vmem:[%s1 + $0x5c0] sm:$0xff]
    %v428 = vld [vmem:[%s1 + $0x5c8] sm:$0xff]
    %v429 = vld [vmem:[%s1 + $0x5d0] sm:$0xff]
    %v430 = vld [vmem:[%s1 + $0x5d8] sm:$0xff]
    %v431 = vld [vmem:[%s1 + $0x5e0] sm:$0xff]
    %v432 = vld [vmem:[%s1 + $0x5e8] sm:$0xff]
    %v433 = vld [vmem:[%s1 + $0x5f0] sm:$0xff]
    %v434 = vld [vmem:[%s1 + $0x5f8] sm:$0xff]
    %v435 = vld [vmem:[%s1 + $0x600] sm:$0xff]
    %v436 = vld [vmem:[%s1 + $0x608] sm:$0xff]
    %v437 = vld [vmem:[%s1 + $0x610] sm:$0xff]
    %v438 = vld [vmem:[%s1 + $0x618] sm:$0xff]
    %v439 = vld [vmem:[%s1 + $0x620] sm:$0xff]
    %v440 = vld [vmem:[%s1 + $0x628] sm:$0xff]
    %v441 = vld [vmem:[%s1 + $0x630] sm:$0xff]
    %v442 = vld [vmem:[%s1 + $0x638] sm:$0xff]
    %v443 = vld [vmem:[%s1 + $0x640] sm:$0xff]
    %v444 = vld [vmem:[%s1 + $0x648] sm:$0xff]
    %v445 = vld [vmem:[%s1 + $0x650] sm:$0xff]
    %v446 = vld [vmem:[%s1 + $0x658] sm:$0xff]
    %v447 = vld [vmem:[%s1 + $0x660] sm:$0xff]
    %v448 = vld [vmem:[%s1 + $0x668] sm:$0xff]
    %v449 = vld [vmem:[%s1 + $0x670] sm:$0xff]
    %v450 = vld [vmem:[%s1 + $0x678] sm:$0xff]
    %v451 = vld [vmem:[%s1 + $0x680] sm:$0xff]
    %v452 = vld [vmem:[%s1 + $0x688] sm:$0xff]
    %v453 = vld [vmem:[%s1 + $0x690] sm:$0xff]
    %v454 = vld [vmem:[%s1 + $0x698] sm:$0xff]
    %v455 = vld [vmem:[%s1 + $0x6a0] sm:$0xff]
    %v456 = vld [vmem:[%s1 + $0x6a8] sm:$0xff]
    %v457 = vld [vmem:[%s1 + $0x6b0] sm:$0xff]
    %v458 = vld [vmem:[%s1 + $0x6b8] sm:$0xff]
    %v459 = vld [vmem:[%s1 + $0x6c0] sm:$0xff]
    %v460 = vld [vmem:[%s1 + $0x6c8] sm:$0xff]
    %v461 = vld [vmem:[%s1 + $0x6d0] sm:$0xff]
    %v462 = vld [vmem:[%s1 + $0x6d8] sm:$0xff]
    %v463 = vld [vmem:[%s1 + $0x6e0] sm:$0xff]
    %v464 = vld [vmem:[%s1 + $0x6e8] sm:$0xff]
    %v465 = vld [vmem:[%s1 + $0x6f0] sm:$0xff]
    %v466 = vld [vmem:[%s1 + $0x6f8] sm:$0xff]
    %v467 = vld [vmem:[%s1 + $0x700] sm:$0xff]
    %v468 = vld [vmem:[%s1 + $0x708] sm:$0xff]
    %v469 = vld [vmem:[%s1 + $0x710] sm:$0xff]
    %v470 = vld [vmem:[%s1 + $0x718] sm:$0xff]
    %v471 = vld [vmem:[%s1 + $0x720] sm:$0xff]
    %v472 = vld [vmem:[%s1 + $0x728] sm:$0xff]
    %v473 = vld [vmem:[%s1 + $0x730] sm:$0xff]
    %v474 = vld [vmem:[%s1 + $0x738] sm:$0xff]
    %v475 = vld [vmem:[%s1 + $0x740] sm:$0xff]
    %v476 = vld [vmem:[%s1 + $0x748] sm:$0xff]
    %v477 = vld [vmem:[%s1 + $0x750] sm:$0xff]
    %v478 = vld [vmem:[%s1 + $0x758] sm:$0xff]
    %v479 = vld [vmem:[%s1 + $0x760] sm:$0xff]
    %v480 = vld [vmem:[%s1 + $0x768] sm:$0xff]
    %v481 = vld [vmem:[%s1 + $0x770] sm:$0xff]
    %v482 = vld [vmem:[%s1 + $0x778] sm:$0xff]
    %v483 = vld [vmem:[%s1 + $0x780] sm:$0xff]
    %v484 = vld [vmem:[%s1 + $0x788] sm:$0xff]
    %v485 = vld [vmem:[%s1 + $0x790] sm:$0xff]
    %v486 = vld [vmem:[%s1 + $0x798] sm:$0xff]
    %v487 = vld [vmem:[%s1 + $0x7a0] sm:$0xff]
    %v488 = vld [vmem:[%s1 + $0x7a8] sm:$0xff]
    %v489 = vld [vmem:[%s1 + $0x7b0] sm:$0xff]
    %v490 = vld [vmem:[%s1 + $0x7b8] sm:$0xff]
    %v491 = vld [vmem:[%s1 + $0x7c0] sm:$0xff]
    %v492 = vld [vmem:[%s1 + $0x7c8] sm:$0xff]
    %v493 = vld [vmem:[%s1 + $0x7d0] sm:$0xff]
    %v494 = vld [vmem:[%s1 + $0x7d8] sm:$0xff]
    %v495 = vld [vmem:[%s1 + $0x7e0] sm:$0xff]
    %v496 = vld [vmem:[%s1 + $0x7e8] sm:$0xff]
    %v497 = vld [vmem:[%s1 + $0x7f0] sm:$0xff]
    %v498 = vld [vmem:[%s1 + $0x7f8] sm:$0xff]
    %v499 = vld [vmem:[%s1 + $0x800] sm:$0xff]
    %v500 = vld [vmem:[%s1 + $0x808] sm:$0xff]
    %v501 = vld [vmem:[%s1 + $0x810] sm:$0xff]
    %v502 = vld [vmem:[%s1 + $0x818] sm:$0xff]
    %v503 = vld [vmem:[%s1 + $0x820] sm:$0xff]
    %v504 = vld [vmem:[%s1 + $0x828] sm:$0xff]
    %v505 = vld [vmem:[%s1 + $0x830] sm:$0xff]
    %v506 = vld [vmem:[%s1 + $0x838] sm:$0xff]
    %v507 = vld [vmem:[%s1 + $0x840] sm:$0xff]
    %v508 = vld [vmem:[%s1 + $0x848] sm:$0xff]
    %v509 = vld [vmem:[%s1 + $0x850] sm:$0xff]
    %v510 = vld [vmem:[%s1 + $0x858] sm:$0xff]
    %v511 = vld [vmem:[%s1 + $0x860] sm:$0xff]
    %v512 = vld [vmem:[%s1 + $0x868] sm:$0xff]
    %v513 = vld [vmem:[%s1 + $0x870] sm:$0xff]
    %v514 = vld [vmem:[%s1 + $0x878] sm:$0xff]
    %v515 = vld [vmem:[%s1 + $0x880] sm:$0xff]
    %v516 = vld [vmem:[%s1 + $0x888] sm:$0xff]
    %v517 = vld [vmem:[%s1 + $0x890] sm:$0xff]
    %v518 = vld [vmem:[%s1 + $0x898] sm:$0xff]
    %v519 = vld [vmem:[%s1 + $0x8a0] sm:$0xff]
    %v520 = vld [vmem:[%s1 + $0x8a8] sm:$0xff]
    %v521 = vld [vmem:[%s1 + $0x8b0] sm:$0xff]
    %v522 = vld [vmem:[%s1 + $0x8b8] sm:$0xff]
    %v523 = vld [vmem:[%s1 + $0x8c0] sm:$0xff]
    %v524 = vld [vmem:[%s1 + $0x8c8] sm:$0xff]
    %v525 = vld [vmem:[%s1 + $0x8d0] sm:$0xff]
    %v526 = vld [vmem:[%s1 + $0x8d8] sm:$0xff]
    %v527 = vld [vmem:[%s1 + $0x8e0] sm:$0xff]
    %v528 = vld [vmem:[%s1 + $0x8e8] sm:$0xff]
    %v529 = vld [vmem:[%s1 + $0x8f0] sm:$0xff]
    %v530 = vld [vmem:[%s1 + $0x8f8] sm:$0xff]
    %v531 = vld [vmem:[%s1 + $0x900] sm:$0xff]
    %v532 = vld [vmem:[%s1 + $0x908] sm:$0xff]
    %v533 = vld [vmem:[%s1 + $0x910] sm:$0xff]
    %v534 = vld [vmem:[%s1 + $0x918] sm:$0xff]
    %v535 = vld [vmem:[%s1 + $0x920] sm:$0xff]
    %v536 = vld [vmem:[%s1 + $0x928] sm:$0xff]
    %v537 = vld [vmem:[%s1 + $0x930] sm:$0xff]
    %v538 = vld [vmem:[%s1 + $0x938] sm:$0xff]
    %v539 = vld [vmem:[%s1 + $0x940] sm:$0xff]
    %v540 = vld [vmem:[%s1 + $0x948] sm:$0xff]
    %v541 = vld [vmem:[%s1 + $0x950] sm:$0xff]
    %v542 = vld [vmem:[%s1 + $0x958] sm:$0xff]
    %v543 = vld [vmem:[%s1 + $0x960] sm:$0xff]
    %v544 = vld [vmem:[%s1 + $0x968] sm:$0xff]
    %v545 = vld [vmem:[%s1 + $0x970] sm:$0xff]
    %v546 = vld [vmem:[%s1 + $0x978] sm:$0xff]
    %v547 = vld [vmem:[%s1 + $0x980] sm:$0xff]
    %v548 = vld [vmem:[%s1 + $0x988] sm:$0xff]
    %v549 = vld [vmem:[%s1 + $0x990] sm:$0xff]
    %v550 = vld [vmem:[%s1 + $0x998] sm:$0xff]
    %v551 = vld [vmem:[%s1 + $0x9a0] sm:$0xff]
    %v552 = vld [vmem:[%s1 + $0x9a8] sm:$0xff]
    %v553 = vld [vmem:[%s1 + $0x9b0] sm:$0xff]
    %v554 = vld [vmem:[%s1 + $0x9b8] sm:$0xff]
    %v555 = vld [vmem:[%s1 + $0x9c0] sm:$0xff]
    %v556 = vld [vmem:[%s1 + $0x9c8] sm:$0xff]
    %v557 = vld [vmem:[%s1 + $0x9d0] sm:$0xff]
    %v558 = vld [vmem:[%s1 + $0x9d8] sm:$0xff]
    %v559 = vld [vmem:[%s1 + $0x9e0] sm:$0xff]
    %v560 = vld [vmem:[%s1 + $0x9e8] sm:$0xff]
    %v561 = vld [vmem:[%s1 + $0x9f0] sm:$0xff]
    %v562 = vld [vmem:[%s1 + $0x9f8] sm:$0xff]
    %v563 = vld [vmem:[%s1 + $0xa00] sm:$0xff]
    %v564 = vld [vmem:[%s1 + $0xa08] sm:$0xff]
    %v565 = vld [vmem:[%s1 + $0xa10] sm:$0xff]
    %v566 = vld [vmem:[%s1 + $0xa18] sm:$0xff]
    %v567 = vld [vmem:[%s1 + $0xa20] sm:$0xff]
    %v568 = vld [vmem:[%s1 + $0xa28] sm:$0xff]
    %v569 = vld [vmem:[%s1 + $0xa30] sm:$0xff]
    %v570 = vld [vmem:[%s1 + $0xa38] sm:$0xff]
    %v571 = vld [vmem:[%s1 + $0xa40] sm:$0xff]
    %v572 = vld [vmem:[%s1 + $0xa48] sm:$0xff]
    %v573 = vld [vmem:[%s1 + $0xa50] sm:$0xff]
    %v574 = vld [vmem:[%s1 + $0xa58] sm:$0xff]
    %v575 = vld [vmem:[%s1 + $0xa60] sm:$0xff]
    %v576 = vld [vmem:[%s1 + $0xa68] sm:$0xff]
    %v577 = vld [vmem:[%s1 + $0xa70] sm:$0xff]
    %v578 = vld [vmem:[%s1 + $0xa78] sm:$0xff]
    %v579 = vld [vmem:[%s1 + $0xa80] sm:$0xff]
    %v580 = vld [vmem:[%s1 + $0xa88] sm:$0xff]
    %v581 = vld [vmem:[%s1 + $0xa90] sm:$0xff]
    %v582 = vld [vmem:[%s1 + $0xa98] sm:$0xff]
    %v583 = vld [vmem:[%s1 + $0xaa0] sm:$0xff]
    %v584 = vld [vmem:[%s1 + $0xaa8] sm:$0xff]
    %v585 = vld [vmem:[%s1 + $0xab0] sm:$0xff]
    %v586 = vld [vmem:[%s1 + $0xab8] sm:$0xff]
    %v587 = vld [vmem:[%s1 + $0xac0] sm:$0xff]
    %v588 = vld [vmem:[%s1 + $0xac8] sm:$0xff]
    %v589 = vld [vmem:[%s1 + $0xad0] sm:$0xff]
    %v590 = vld [vmem:[%s1 + $0xad8] sm:$0xff]
    %v591 = vld [vmem:[%s1 + $0xae0] sm:$0xff]
    %v592 = vld [vmem:[%s1 + $0xae8] sm:$0xff]
    %v593 = vld [vmem:[%s1 + $0xaf0] sm:$0xff]
    %v594 = vld [vmem:[%s1 + $0xaf8] sm:$0xff]
    %v595 = vld [vmem:[%s1 + $0xb00] sm:$0xff]
    %v596 = vld [vmem:[%s1 + $0xb08] sm:$0xff]
    %v597 = vld [vmem:[%s1 + $0xb10] sm:$0xff]
    %v598 = vld [vmem:[%s1 + $0xb18] sm:$0xff]
    %v599 = vld [vmem:[%s1 + $0xb20] sm:$0xff]
    %v600 = vld [vmem:[%s1 + $0xb28] sm:$0xff]
    %v601 = vld [vmem:[%s1 + $0xb30] sm:$0xff]
    %v602 = vld [vmem:[%s1 + $0xb38] sm:$0xff]
    %v603 = vld [vmem:[%s1 + $0xb40] sm:$0xff]
    %v604 = vld [vmem:[%s1 + $0xb48] sm:$0xff]
    %v605 = vld [vmem:[%s1 + $0xb50] sm:$0xff]
    %v606 = vld [vmem:[%s1 + $0xb58] sm:$0xff]
    %v607 = vld [vmem:[%s1 + $0xb60] sm:$0xff]
    %v608 = vld [vmem:[%s1 + $0xb68] sm:$0xff]
    %v609 = vld [vmem:[%s1 + $0xb70] sm:$0xff]
    %v610 = vld [vmem:[%s1 + $0xb78] sm:$0xff]
    %v611 = vld [vmem:[%s1 + $0xb80] sm:$0xff]
    %v612 = vld [vmem:[%s1 + $0xb88] sm:$0xff]
    %v613 = vld [vmem:[%s1 + $0xb90] sm:$0xff]
    %v614 = vld [vmem:[%s1 + $0xb98] sm:$0xff]
    %v615 = vld [vmem:[%s1 + $0xba0] sm:$0xff]
    %v616 = vld [vmem:[%s1 + $0xba8] sm:$0xff]
    %v617 = vld [vmem:[%s1 + $0xbb0] sm:$0xff]
    %v618 = vld [vmem:[%s1 + $0xbb8] sm:$0xff]
    %v619 = vld [vmem:[%s1 + $0xbc0] sm:$0xff]
    %v620 = vld [vmem:[%s1 + $0xbc8] sm:$0xff]
    %v621 = vld [vmem:[%s1 + $0xbd0] sm:$0xff]
    %v622 = vld [vmem:[%s1 + $0xbd8] sm:$0xff]
    %v623 = vld [vmem:[%s1 + $0xbe0] sm:$0xff]
    %v624 = vld [vmem:[%s1 + $0xbe8] sm:$0xff]
    %v625 = vld [vmem:[%s1 + $0xbf0] sm:$0xff]
    %v626 = vld [vmem:[%s1 + $0xbf8] sm:$0xff]
    %v627 = vld [vmem:[%s1 + $0xc00] sm:$0xff]
    %v628 = vld [vmem:[%s1 + $0xc08] sm:$0xff]
    %v629 = vld [vmem:[%s1 + $0xc10] sm:$0xff]
    %v630 = vld [vmem:[%s1 + $0xc18] sm:$0xff]
    %v631 = vld [vmem:[%s1 + $0xc20] sm:$0xff]
    %v632 = vld [vmem:[%s1 + $0xc28] sm:$0xff]
    %v633 = vld [vmem:[%s1 + $0xc30] sm:$0xff]
    %v634 = vld [vmem:[%s1 + $0xc38] sm:$0xff]
    %v635 = vld [vmem:[%s1 + $0xc40] sm:$0xff]
    %v636 = vld [vmem:[%s1 + $0xc48] sm:$0xff]
    %v637 = vld [vmem:[%s1 + $0xc50] sm:$0xff]
    %v638 = vld [vmem:[%s1 + $0xc58] sm:$0xff]
    %v639 = vld [vmem:[%s1 + $0xc60] sm:$0xff]
    %v640 = vld [vmem:[%s1 + $0xc68] sm:$0xff]
    %v641 = vld [vmem:[%s1 + $0xc70] sm:$0xff]
    %v642 = vld [vmem:[%s1 + $0xc78] sm:$0xff]
    %v643 = vld [vmem:[%s1 + $0xc80] sm:$0xff]
    %v644 = vld [vmem:[%s1 + $0xc88] sm:$0xff]
    %v645 = vld [vmem:[%s1 + $0xc90] sm:$0xff]
    %v646 = vld [vmem:[%s1 + $0xc98] sm:$0xff]
    %v647 = vld [vmem:[%s1 + $0xca0] sm:$0xff]
    %v648 = vld [vmem:[%s1 + $0xca8] sm:$0xff]
    %v649 = vld [vmem:[%s1 + $0xcb0] sm:$0xff]
    %v650 = vld [vmem:[%s1 + $0xcb8] sm:$0xff]
    %v651 = vld [vmem:[%s1 + $0xcc0] sm:$0xff]
    %v652 = vld [vmem:[%s1 + $0xcc8] sm:$0xff]
    %v653 = vld [vmem:[%s1 + $0xcd0] sm:$0xff]
    %v654 = vld [vmem:[%s1 + $0xcd8] sm:$0xff]
    %v655 = vld [vmem:[%s1 + $0xce0] sm:$0xff]
    %v656 = vld [vmem:[%s1 + $0xce8] sm:$0xff]
    %v657 = vld [vmem:[%s1 + $0xcf0] sm:$0xff]
    %v658 = vld [vmem:[%s1 + $0xcf8] sm:$0xff]
    %v659 = vld [vmem:[%s1 + $0xd00] sm:$0xff]
    %v660 = vld [vmem:[%s1 + $0xd08] sm:$0xff]
    %v661 = vld [vmem:[%s1 + $0xd10] sm:$0xff]
    %v662 = vld [vmem:[%s1 + $0xd18] sm:$0xff]
    %v663 = vld [vmem:[%s1 + $0xd20] sm:$0xff]
    %v664 = vld [vmem:[%s1 + $0xd28] sm:$0xff]
    %v665 = vld [vmem:[%s1 + $0xd30] sm:$0xff]
    %v666 = vld [vmem:[%s1 + $0xd38] sm:$0xff]
    %v667 = vld [vmem:[%s1 + $0xd40] sm:$0xff]
    %v668 = vld [vmem:[%s1 + $0xd48] sm:$0xff]
    %v669 = vld [vmem:[%s1 + $0xd50] sm:$0xff]
    %v670 = vld [vmem:[%s1 + $0xd58] sm:$0xff]
    %v671 = vld [vmem:[%s1 + $0xd60] sm:$0xff]
    %v672 = vld [vmem:[%s1 + $0xd68] sm:$0xff]
    %v673 = vld [vmem:[%s1 + $0xd70] sm:$0xff]
    %v674 = vld [vmem:[%s1 + $0xd78] sm:$0xff]
    %v675 = vld [vmem:[%s1 + $0xd80] sm:$0xff]
    %v676 = vld [vmem:[%s1 + $0xd88] sm:$0xff]
    %v677 = vld [vmem:[%s1 + $0xd90] sm:$0xff]
    %v678 = vld [vmem:[%s1 + $0xd98] sm:$0xff]
    %v679 = vld [vmem:[%s1 + $0xda0] sm:$0xff]
    %v680 = vld [vmem:[%s1 + $0xda8] sm:$0xff]
    %v681 = vld [vmem:[%s1 + $0xdb0] sm:$0xff]
    %v682 = vld [vmem:[%s1 + $0xdb8] sm:$0xff]
    %v683 = vld [vmem:[%s1 + $0xdc0] sm:$0xff]
    %v684 = vld [vmem:[%s1 + $0xdc8] sm:$0xff]
    %v685 = vld [vmem:[%s1 + $0xdd0] sm:$0xff]
    %v686 = vld [vmem:[%s1 + $0xdd8] sm:$0xff]
    %v687 = vld [vmem:[%s1 + $0xde0] sm:$0xff]
    %v688 = vld [vmem:[%s1 + $0xde8] sm:$0xff]
    %v689 = vld [vmem:[%s1 + $0xdf0] sm:$0xff]
    %v690 = vld [vmem:[%s1 + $0xdf8] sm:$0xff]
    %v691 = vld [vmem:[%s1 + $0xe00] sm:$0xff]
    %v692 = vld [vmem:[%s1 + $0xe08] sm:$0xff]
    %v693 = vld [vmem:[%s1 + $0xe10] sm:$0xff]
    %v694 = vld [vmem:[%s1 + $0xe18] sm:$0xff]
    %v695 = vld [vmem:[%s1 + $0xe20] sm:$0xff]
    %v696 = vld [vmem:[%s1 + $0xe28] sm:$0xff]
    %v697 = vld [vmem:[%s1 + $0xe30] sm:$0xff]
    %v698 = vld [vmem:[%s1 + $0xe38] sm:$0xff]
    %v699 = vld [vmem:[%s1 + $0xe40] sm:$0xff]
    %v700 = vld [vmem:[%s1 + $0xe48] sm:$0xff]
    %v701 = vld [vmem:[%s1 + $0xe50] sm:$0xff]
    %v702 = vld [vmem:[%s1 + $0xe58] sm:$0xff]
    %v703 = vld [vmem:[%s1 + $0xe60] sm:$0xff]
    %v704 = vld [vmem:[%s1 + $0xe68] sm:$0xff]
    %v705 = vld [vmem:[%s1 + $0xe70] sm:$0xff]
    %v706 = vld [vmem:[%s1 + $0xe78] sm:$0xff]
    %v707 = vld [vmem:[%s1 + $0xe80] sm:$0xff]
    %v708 = vld [vmem:[%s1 + $0xe88] sm:$0xff]
    %v709 = vld [vmem:[%s1 + $0xe90] sm:$0xff]
    %v710 = vld [vmem:[%s1 + $0xe98] sm:$0xff]
    %v711 = vld [vmem:[%s1 + $0xea0] sm:$0xff]
    %v712 = vld [vmem:[%s1 + $0xea8] sm:$0xff]
    %v713 = vld [vmem:[%s1 + $0xeb0] sm:$0xff]
    %v714 = vld [vmem:[%s1 + $0xeb8] sm:$0xff]
    %v715 = vld [vmem:[%s1 + $0xec0] sm:$0xff]
    %v716 = vld [vmem:[%s1 + $0xec8] sm:$0xff]
    %v717 = vld [vmem:[%s1 + $0xed0] sm:$0xff]
    %v718 = vld [vmem:[%s1 + $0xed8] sm:$0xff]
    %v719 = vld [vmem:[%s1 + $0xee0] sm:$0xff]
    %v720 = vld [vmem:[%s1 + $0xee8] sm:$0xff]
    %v721 = vld [vmem:[%s1 + $0xef0] sm:$0xff]
    %v722 = vld [vmem:[%s1 + $0xef8] sm:$0xff]
    %v723 = vld [vmem:[%s1 + $0xf00] sm:$0xff]
    %v724 = vld [vmem:[%s1 + $0xf08] sm:$0xff]
    %v725 = vld [vmem:[%s1 + $0xf10] sm:$0xff]
    %v726 = vld [vmem:[%s1 + $0xf18] sm:$0xff]
    %v727 = vld [vmem:[%s1 + $0xf20] sm:$0xff]
    %v728 = vld [vmem:[%s1 + $0xf28] sm:$0xff]
    %v729 = vld [vmem:[%s1 + $0xf30] sm:$0xff]
    %v730 = vld [vmem:[%s1 + $0xf38] sm:$0xff]
    %v731 = vld [vmem:[%s1 + $0xf40] sm:$0xff]
    %v732 = vld [vmem:[%s1 + $0xf48] sm:$0xff]
    %v733 = vld [vmem:[%s1 + $0xf50] sm:$0xff]
    %v734 = vld [vmem:[%s1 + $0xf58] sm:$0xff]
    %v735 = vld [vmem:[%s1 + $0xf60] sm:$0xff]
    %v736 = vld [vmem:[%s1 + $0xf68] sm:$0xff]
    %v737 = vld [vmem:[%s1 + $0xf70] sm:$0xff]
    %v738 = vld [vmem:[%s1 + $0xf78] sm:$0xff]
    %v739 = vld [vmem:[%s1 + $0xf80] sm:$0xff]
    %v740 = vld [vmem:[%s1 + $0xf88] sm:$0xff]
    %v741 = vld [vmem:[%s1 + $0xf90] sm:$0xff]
    %v742 = vld [vmem:[%s1 + $0xf98] sm:$0xff]
    %v743 = vld [vmem:[%s1 + $0xfa0] sm:$0xff]
    %v744 = vld [vmem:[%s1 + $0xfa8] sm:$0xff]
    %v745 = vld [vmem:[%s1 + $0xfb0] sm:$0xff]
    %v746 = vld [vmem:[%s1 + $0xfb8] sm:$0xff]
    %v747 = vld [vmem:[%s1 + $0xfc0] sm:$0xff]
    %v748 = vld [vmem:[%s1 + $0xfc8] sm:$0xff]
    %v749 = vld [vmem:[%s1 + $0xfd0] sm:$0xff]
    %v750 = vld [vmem:[%s1 + $0xfd8] sm:$0xff]
    %v751 = vld [vmem:[%s1 + $0xfe0] sm:$0xff]
    %v752 = vld [vmem:[%s1 + $0xfe8] sm:$0xff]
    %v753 = vld [vmem:[%s1 + $0xff0] sm:$0xff]
    %v754 = vld [vmem:[%s1 + $0xff8] sm:$0xff]
    %v755 = vld [vmem:[%s2] sm:$0x3]
    %v757 = vlaneseq
    %v758 = vshrl.u32 %v757, 7
    %v759 = vsub.s32 0, %v758
    %v760 = vrot.slane %v755, %v759
    %v761 = vlaneseq
    %v762 = vshrl.u32 %v761, 7
    %v763 = vsub.s32 1, %v762
    %v764 = vrot.slane %v755, %v763
    %v1279 = vunpack.c.l.b16 %v243
    %v1280 = vunpack.c.h.b16 %v243
    %v1281 = vunpack.c.l.b16 %v244
    %v1282 = vunpack.c.h.b16 %v244
    %v1283 = vunpack.c.l.b16 %v245
    %v1284 = vunpack.c.h.b16 %v245
    %v1285 = vunpack.c.l.b16 %v246
    %v1286 = vunpack.c.h.b16 %v246
    %v1287 = vunpack.c.l.b16 %v247
    %v1288 = vunpack.c.h.b16 %v247
    %v1289 = vunpack.c.l.b16 %v248
    %v1290 = vunpack.c.h.b16 %v248
    %v1291 = vunpack.c.l.b16 %v249
    %v1292 = vunpack.c.h.b16 %v249
    %v1293 = vunpack.c.l.b16 %v250
    %v1294 = vunpack.c.h.b16 %v250
    %v1295 = vunpack.c.l.b16 %v251
    %v1296 = vunpack.c.h.b16 %v251
    %v1297 = vunpack.c.l.b16 %v252
    %v1298 = vunpack.c.h.b16 %v252
    %v1299 = vunpack.c.l.b16 %v253
    %v1300 = vunpack.c.h.b16 %v253
    %v1301 = vunpack.c.l.b16 %v254
    %v1302 = vunpack.c.h.b16 %v254
    %v1303 = vunpack.c.l.b16 %v255
    %v1304 = vunpack.c.h.b16 %v255
    %v1305 = vunpack.c.l.b16 %v256
    %v1306 = vunpack.c.h.b16 %v256
    %v1307 = vunpack.c.l.b16 %v257
    %v1308 = vunpack.c.h.b16 %v257
    %v1309 = vunpack.c.l.b16 %v258
    %v1310 = vunpack.c.h.b16 %v258
    %v1311 = vunpack.c.l.b16 %v259
    %v1312 = vunpack.c.h.b16 %v259
    %v1313 = vunpack.c.l.b16 %v260
    %v1314 = vunpack.c.h.b16 %v260
    %v1315 = vunpack.c.l.b16 %v261
    %v1316 = vunpack.c.h.b16 %v261
    %v1317 = vunpack.c.l.b16 %v262
    %v1318 = vunpack.c.h.b16 %v262
    %v1319 = vunpack.c.l.b16 %v263
    %v1320 = vunpack.c.h.b16 %v263
    %v1321 = vunpack.c.l.b16 %v264
    %v1322 = vunpack.c.h.b16 %v264
    %v1323 = vunpack.c.l.b16 %v265
    %v1324 = vunpack.c.h.b16 %v265
    %v1325 = vunpack.c.l.b16 %v266
    %v1326 = vunpack.c.h.b16 %v266
    %v1327 = vunpack.c.l.b16 %v267
    %v1328 = vunpack.c.h.b16 %v267
    %v1329 = vunpack.c.l.b16 %v268
    %v1330 = vunpack.c.h.b16 %v268
    %v1331 = vunpack.c.l.b16 %v269
    %v1332 = vunpack.c.h.b16 %v269
    %v1333 = vunpack.c.l.b16 %v270
    %v1334 = vunpack.c.h.b16 %v270
    %v1335 = vunpack.c.l.b16 %v271
    %v1336 = vunpack.c.h.b16 %v271
    %v1337 = vunpack.c.l.b16 %v272
    %v1338 = vunpack.c.h.b16 %v272
    %v1339 = vunpack.c.l.b16 %v273
    %v1340 = vunpack.c.h.b16 %v273
    %v1341 = vunpack.c.l.b16 %v274
    %v1342 = vunpack.c.h.b16 %v274
    %v1343 = vunpack.c.l.b16 %v275
    %v1344 = vunpack.c.h.b16 %v275
    %v1345 = vunpack.c.l.b16 %v276
    %v1346 = vunpack.c.h.b16 %v276
    %v1347 = vunpack.c.l.b16 %v277
    %v1348 = vunpack.c.h.b16 %v277
    %v1349 = vunpack.c.l.b16 %v278
    %v1350 = vunpack.c.h.b16 %v278
    %v1351 = vunpack.c.l.b16 %v279
    %v1352 = vunpack.c.h.b16 %v279
    %v1353 = vunpack.c.l.b16 %v280
    %v1354 = vunpack.c.h.b16 %v280
    %v1355 = vunpack.c.l.b16 %v281
    %v1356 = vunpack.c.h.b16 %v281
    %v1357 = vunpack.c.l.b16 %v282
    %v1358 = vunpack.c.h.b16 %v282
    %v1359 = vunpack.c.l.b16 %v283
    %v1360 = vunpack.c.h.b16 %v283
    %v1361 = vunpack.c.l.b16 %v284
    %v1362 = vunpack.c.h.b16 %v284
    %v1363 = vunpack.c.l.b16 %v285
    %v1364 = vunpack.c.h.b16 %v285
    %v1365 = vunpack.c.l.b16 %v286
    %v1366 = vunpack.c.h.b16 %v286
    %v1367 = vunpack.c.l.b16 %v287
    %v1368 = vunpack.c.h.b16 %v287
    %v1369 = vunpack.c.l.b16 %v288
    %v1370 = vunpack.c.h.b16 %v288
    %v1371 = vunpack.c.l.b16 %v289
    %v1372 = vunpack.c.h.b16 %v289
    %v1373 = vunpack.c.l.b16 %v290
    %v1374 = vunpack.c.h.b16 %v290
    %v1375 = vunpack.c.l.b16 %v291
    %v1376 = vunpack.c.h.b16 %v291
    %v1377 = vunpack.c.l.b16 %v292
    %v1378 = vunpack.c.h.b16 %v292
    %v1379 = vunpack.c.l.b16 %v293
    %v1380 = vunpack.c.h.b16 %v293
    %v1381 = vunpack.c.l.b16 %v294
    %v1382 = vunpack.c.h.b16 %v294
    %v1383 = vunpack.c.l.b16 %v295
    %v1384 = vunpack.c.h.b16 %v295
    %v1385 = vunpack.c.l.b16 %v296
    %v1386 = vunpack.c.h.b16 %v296
    %v1387 = vunpack.c.l.b16 %v297
    %v1388 = vunpack.c.h.b16 %v297
    %v1389 = vunpack.c.l.b16 %v298
    %v1390 = vunpack.c.h.b16 %v298
    %v1391 = vunpack.c.l.b16 %v299
    %v1392 = vunpack.c.h.b16 %v299
    %v1393 = vunpack.c.l.b16 %v300
    %v1394 = vunpack.c.h.b16 %v300
    %v1395 = vunpack.c.l.b16 %v301
    %v1396 = vunpack.c.h.b16 %v301
    %v1397 = vunpack.c.l.b16 %v302
    %v1398 = vunpack.c.h.b16 %v302
    %v1399 = vunpack.c.l.b16 %v303
    %v1400 = vunpack.c.h.b16 %v303
    %v1401 = vunpack.c.l.b16 %v304
    %v1402 = vunpack.c.h.b16 %v304
    %v1403 = vunpack.c.l.b16 %v305
    %v1404 = vunpack.c.h.b16 %v305
    %v1405 = vunpack.c.l.b16 %v306
    %v1406 = vunpack.c.h.b16 %v306
    %v1407 = vunpack.c.l.b16 %v307
    %v1408 = vunpack.c.h.b16 %v307
    %v1409 = vunpack.c.l.b16 %v308
    %v1410 = vunpack.c.h.b16 %v308
    %v1411 = vunpack.c.l.b16 %v309
    %v1412 = vunpack.c.h.b16 %v309
    %v1413 = vunpack.c.l.b16 %v310
    %v1414 = vunpack.c.h.b16 %v310
    %v1415 = vunpack.c.l.b16 %v311
    %v1416 = vunpack.c.h.b16 %v311
    %v1417 = vunpack.c.l.b16 %v312
    %v1418 = vunpack.c.h.b16 %v312
    %v1419 = vunpack.c.l.b16 %v313
    %v1420 = vunpack.c.h.b16 %v313
    %v1421 = vunpack.c.l.b16 %v314
    %v1422 = vunpack.c.h.b16 %v314
    %v1423 = vunpack.c.l.b16 %v315
    %v1424 = vunpack.c.h.b16 %v315
    %v1425 = vunpack.c.l.b16 %v316
    %v1426 = vunpack.c.h.b16 %v316
    %v1427 = vunpack.c.l.b16 %v317
    %v1428 = vunpack.c.h.b16 %v317
    %v1429 = vunpack.c.l.b16 %v318
    %v1430 = vunpack.c.h.b16 %v318
    %v1431 = vunpack.c.l.b16 %v319
    %v1432 = vunpack.c.h.b16 %v319
    %v1433 = vunpack.c.l.b16 %v320
    %v1434 = vunpack.c.h.b16 %v320
    %v1435 = vunpack.c.l.b16 %v321
    %v1436 = vunpack.c.h.b16 %v321
    %v1437 = vunpack.c.l.b16 %v322
    %v1438 = vunpack.c.h.b16 %v322
    %v1439 = vunpack.c.l.b16 %v323
    %v1440 = vunpack.c.h.b16 %v323
    %v1441 = vunpack.c.l.b16 %v324
    %v1442 = vunpack.c.h.b16 %v324
    %v1443 = vunpack.c.l.b16 %v325
    %v1444 = vunpack.c.h.b16 %v325
    %v1445 = vunpack.c.l.b16 %v326
    %v1446 = vunpack.c.h.b16 %v326
    %v1447 = vunpack.c.l.b16 %v327
    %v1448 = vunpack.c.h.b16 %v327
    %v1449 = vunpack.c.l.b16 %v328
    %v1450 = vunpack.c.h.b16 %v328
    %v1451 = vunpack.c.l.b16 %v329
    %v1452 = vunpack.c.h.b16 %v329
    %v1453 = vunpack.c.l.b16 %v330
    %v1454 = vunpack.c.h.b16 %v330
    %v1455 = vunpack.c.l.b16 %v331
    %v1456 = vunpack.c.h.b16 %v331
    %v1457 = vunpack.c.l.b16 %v332
    %v1458 = vunpack.c.h.b16 %v332
    %v1459 = vunpack.c.l.b16 %v333
    %v1460 = vunpack.c.h.b16 %v333
    %v1461 = vunpack.c.l.b16 %v334
    %v1462 = vunpack.c.h.b16 %v334
    %v1463 = vunpack.c.l.b16 %v335
    %v1464 = vunpack.c.h.b16 %v335
    %v1465 = vunpack.c.l.b16 %v336
    %v1466 = vunpack.c.h.b16 %v336
    %v1467 = vunpack.c.l.b16 %v337
    %v1468 = vunpack.c.h.b16 %v337
    %v1469 = vunpack.c.l.b16 %v338
    %v1470 = vunpack.c.h.b16 %v338
    %v1471 = vunpack.c.l.b16 %v339
    %v1472 = vunpack.c.h.b16 %v339
    %v1473 = vunpack.c.l.b16 %v340
    %v1474 = vunpack.c.h.b16 %v340
    %v1475 = vunpack.c.l.b16 %v341
    %v1476 = vunpack.c.h.b16 %v341
    %v1477 = vunpack.c.l.b16 %v342
    %v1478 = vunpack.c.h.b16 %v342
    %v1479 = vunpack.c.l.b16 %v343
    %v1480 = vunpack.c.h.b16 %v343
    %v1481 = vunpack.c.l.b16 %v344
    %v1482 = vunpack.c.h.b16 %v344
    %v1483 = vunpack.c.l.b16 %v345
    %v1484 = vunpack.c.h.b16 %v345
    %v1485 = vunpack.c.l.b16 %v346
    %v1486 = vunpack.c.h.b16 %v346
    %v1487 = vunpack.c.l.b16 %v347
    %v1488 = vunpack.c.h.b16 %v347
    %v1489 = vunpack.c.l.b16 %v348
    %v1490 = vunpack.c.h.b16 %v348
    %v1491 = vunpack.c.l.b16 %v349
    %v1492 = vunpack.c.h.b16 %v349
    %v1493 = vunpack.c.l.b16 %v350
    %v1494 = vunpack.c.h.b16 %v350
    %v1495 = vunpack.c.l.b16 %v351
    %v1496 = vunpack.c.h.b16 %v351
    %v1497 = vunpack.c.l.b16 %v352
    %v1498 = vunpack.c.h.b16 %v352
    %v1499 = vunpack.c.l.b16 %v353
    %v1500 = vunpack.c.h.b16 %v353
    %v1501 = vunpack.c.l.b16 %v354
    %v1502 = vunpack.c.h.b16 %v354
    %v1503 = vunpack.c.l.b16 %v355
    %v1504 = vunpack.c.h.b16 %v355
    %v1505 = vunpack.c.l.b16 %v356
    %v1506 = vunpack.c.h.b16 %v356
    %v1507 = vunpack.c.l.b16 %v357
    %v1508 = vunpack.c.h.b16 %v357
    %v1509 = vunpack.c.l.b16 %v358
    %v1510 = vunpack.c.h.b16 %v358
    %v1511 = vunpack.c.l.b16 %v359
    %v1512 = vunpack.c.h.b16 %v359
    %v1513 = vunpack.c.l.b16 %v360
    %v1514 = vunpack.c.h.b16 %v360
    %v1515 = vunpack.c.l.b16 %v361
    %v1516 = vunpack.c.h.b16 %v361
    %v1517 = vunpack.c.l.b16 %v362
    %v1518 = vunpack.c.h.b16 %v362
    %v1519 = vunpack.c.l.b16 %v363
    %v1520 = vunpack.c.h.b16 %v363
    %v1521 = vunpack.c.l.b16 %v364
    %v1522 = vunpack.c.h.b16 %v364
    %v1523 = vunpack.c.l.b16 %v365
    %v1524 = vunpack.c.h.b16 %v365
    %v1525 = vunpack.c.l.b16 %v366
    %v1526 = vunpack.c.h.b16 %v366
    %v1527 = vunpack.c.l.b16 %v367
    %v1528 = vunpack.c.h.b16 %v367
    %v1529 = vunpack.c.l.b16 %v368
    %v1530 = vunpack.c.h.b16 %v368
    %v1531 = vunpack.c.l.b16 %v369
    %v1532 = vunpack.c.h.b16 %v369
    %v1533 = vunpack.c.l.b16 %v370
    %v1534 = vunpack.c.h.b16 %v370
    %v1535 = vunpack.c.l.b16 %v371
    %v1536 = vunpack.c.h.b16 %v371
    %v1537 = vunpack.c.l.b16 %v372
    %v1538 = vunpack.c.h.b16 %v372
    %v1539 = vunpack.c.l.b16 %v373
    %v1540 = vunpack.c.h.b16 %v373
    %v1541 = vunpack.c.l.b16 %v374
    %v1542 = vunpack.c.h.b16 %v374
    %v1543 = vunpack.c.l.b16 %v375
    %v1544 = vunpack.c.h.b16 %v375
    %v1545 = vunpack.c.l.b16 %v376
    %v1546 = vunpack.c.h.b16 %v376
    %v1547 = vunpack.c.l.b16 %v377
    %v1548 = vunpack.c.h.b16 %v377
    %v1549 = vunpack.c.l.b16 %v378
    %v1550 = vunpack.c.h.b16 %v378
    %v1551 = vunpack.c.l.b16 %v379
    %v1552 = vunpack.c.h.b16 %v379
    %v1553 = vunpack.c.l.b16 %v380
    %v1554 = vunpack.c.h.b16 %v380
    %v1555 = vunpack.c.l.b16 %v381
    %v1556 = vunpack.c.h.b16 %v381
    %v1557 = vunpack.c.l.b16 %v382
    %v1558 = vunpack.c.h.b16 %v382
    %v1559 = vunpack.c.l.b16 %v383
    %v1560 = vunpack.c.h.b16 %v383
    %v1561 = vunpack.c.l.b16 %v384
    %v1562 = vunpack.c.h.b16 %v384
    %v1563 = vunpack.c.l.b16 %v385
    %v1564 = vunpack.c.h.b16 %v385
    %v1565 = vunpack.c.l.b16 %v386
    %v1566 = vunpack.c.h.b16 %v386
    %v1567 = vunpack.c.l.b16 %v387
    %v1568 = vunpack.c.h.b16 %v387
    %v1569 = vunpack.c.l.b16 %v388
    %v1570 = vunpack.c.h.b16 %v388
    %v1571 = vunpack.c.l.b16 %v389
    %v1572 = vunpack.c.h.b16 %v389
    %v1573 = vunpack.c.l.b16 %v390
    %v1574 = vunpack.c.h.b16 %v390
    %v1575 = vunpack.c.l.b16 %v391
    %v1576 = vunpack.c.h.b16 %v391
    %v1577 = vunpack.c.l.b16 %v392
    %v1578 = vunpack.c.h.b16 %v392
    %v1579 = vunpack.c.l.b16 %v393
    %v1580 = vunpack.c.h.b16 %v393
    %v1581 = vunpack.c.l.b16 %v394
    %v1582 = vunpack.c.h.b16 %v394
    %v1583 = vunpack.c.l.b16 %v395
    %v1584 = vunpack.c.h.b16 %v395
    %v1585 = vunpack.c.l.b16 %v396
    %v1586 = vunpack.c.h.b16 %v396
    %v1587 = vunpack.c.l.b16 %v397
    %v1588 = vunpack.c.h.b16 %v397
    %v1589 = vunpack.c.l.b16 %v398
    %v1590 = vunpack.c.h.b16 %v398
    %v1591 = vunpack.c.l.b16 %v399
    %v1592 = vunpack.c.h.b16 %v399
    %v1593 = vunpack.c.l.b16 %v400
    %v1594 = vunpack.c.h.b16 %v400
    %v1595 = vunpack.c.l.b16 %v401
    %v1596 = vunpack.c.h.b16 %v401
    %v1597 = vunpack.c.l.b16 %v402
    %v1598 = vunpack.c.h.b16 %v402
    %v1599 = vunpack.c.l.b16 %v403
    %v1600 = vunpack.c.h.b16 %v403
    %v1601 = vunpack.c.l.b16 %v404
    %v1602 = vunpack.c.h.b16 %v404
    %v1603 = vunpack.c.l.b16 %v405
    %v1604 = vunpack.c.h.b16 %v405
    %v1605 = vunpack.c.l.b16 %v406
    %v1606 = vunpack.c.h.b16 %v406
    %v1607 = vunpack.c.l.b16 %v407
    %v1608 = vunpack.c.h.b16 %v407
    %v1609 = vunpack.c.l.b16 %v408
    %v1610 = vunpack.c.h.b16 %v408
    %v1611 = vunpack.c.l.b16 %v409
    %v1612 = vunpack.c.h.b16 %v409
    %v1613 = vunpack.c.l.b16 %v410
    %v1614 = vunpack.c.h.b16 %v410
    %v1615 = vunpack.c.l.b16 %v411
    %v1616 = vunpack.c.h.b16 %v411
    %v1617 = vunpack.c.l.b16 %v412
    %v1618 = vunpack.c.h.b16 %v412
    %v1619 = vunpack.c.l.b16 %v413
    %v1620 = vunpack.c.h.b16 %v413
    %v1621 = vunpack.c.l.b16 %v414
    %v1622 = vunpack.c.h.b16 %v414
    %v1623 = vunpack.c.l.b16 %v415
    %v1624 = vunpack.c.h.b16 %v415
    %v1625 = vunpack.c.l.b16 %v416
    %v1626 = vunpack.c.h.b16 %v416
    %v1627 = vunpack.c.l.b16 %v417
    %v1628 = vunpack.c.h.b16 %v417
    %v1629 = vunpack.c.l.b16 %v418
    %v1630 = vunpack.c.h.b16 %v418
    %v1631 = vunpack.c.l.b16 %v419
    %v1632 = vunpack.c.h.b16 %v419
    %v1633 = vunpack.c.l.b16 %v420
    %v1634 = vunpack.c.h.b16 %v420
    %v1635 = vunpack.c.l.b16 %v421
    %v1636 = vunpack.c.h.b16 %v421
    %v1637 = vunpack.c.l.b16 %v422
    %v1638 = vunpack.c.h.b16 %v422
    %v1639 = vunpack.c.l.b16 %v423
    %v1640 = vunpack.c.h.b16 %v423
    %v1641 = vunpack.c.l.b16 %v424
    %v1642 = vunpack.c.h.b16 %v424
    %v1643 = vunpack.c.l.b16 %v425
    %v1644 = vunpack.c.h.b16 %v425
    %v1645 = vunpack.c.l.b16 %v426
    %v1646 = vunpack.c.h.b16 %v426
    %v1647 = vunpack.c.l.b16 %v427
    %v1648 = vunpack.c.h.b16 %v427
    %v1649 = vunpack.c.l.b16 %v428
    %v1650 = vunpack.c.h.b16 %v428
    %v1651 = vunpack.c.l.b16 %v429
    %v1652 = vunpack.c.h.b16 %v429
    %v1653 = vunpack.c.l.b16 %v430
    %v1654 = vunpack.c.h.b16 %v430
    %v1655 = vunpack.c.l.b16 %v431
    %v1656 = vunpack.c.h.b16 %v431
    %v1657 = vunpack.c.l.b16 %v432
    %v1658 = vunpack.c.h.b16 %v432
    %v1659 = vunpack.c.l.b16 %v433
    %v1660 = vunpack.c.h.b16 %v433
    %v1661 = vunpack.c.l.b16 %v434
    %v1662 = vunpack.c.h.b16 %v434
    %v1663 = vunpack.c.l.b16 %v435
    %v1664 = vunpack.c.h.b16 %v435
    %v1665 = vunpack.c.l.b16 %v436
    %v1666 = vunpack.c.h.b16 %v436
    %v1667 = vunpack.c.l.b16 %v437
    %v1668 = vunpack.c.h.b16 %v437
    %v1669 = vunpack.c.l.b16 %v438
    %v1670 = vunpack.c.h.b16 %v438
    %v1671 = vunpack.c.l.b16 %v439
    %v1672 = vunpack.c.h.b16 %v439
    %v1673 = vunpack.c.l.b16 %v440
    %v1674 = vunpack.c.h.b16 %v440
    %v1675 = vunpack.c.l.b16 %v441
    %v1676 = vunpack.c.h.b16 %v441
    %v1677 = vunpack.c.l.b16 %v442
    %v1678 = vunpack.c.h.b16 %v442
    %v1679 = vunpack.c.l.b16 %v443
    %v1680 = vunpack.c.h.b16 %v443
    %v1681 = vunpack.c.l.b16 %v444
    %v1682 = vunpack.c.h.b16 %v444
    %v1683 = vunpack.c.l.b16 %v445
    %v1684 = vunpack.c.h.b16 %v445
    %v1685 = vunpack.c.l.b16 %v446
    %v1686 = vunpack.c.h.b16 %v446
    %v1687 = vunpack.c.l.b16 %v447
    %v1688 = vunpack.c.h.b16 %v447
    %v1689 = vunpack.c.l.b16 %v448
    %v1690 = vunpack.c.h.b16 %v448
    %v1691 = vunpack.c.l.b16 %v449
    %v1692 = vunpack.c.h.b16 %v449
    %v1693 = vunpack.c.l.b16 %v450
    %v1694 = vunpack.c.h.b16 %v450
    %v1695 = vunpack.c.l.b16 %v451
    %v1696 = vunpack.c.h.b16 %v451
    %v1697 = vunpack.c.l.b16 %v452
    %v1698 = vunpack.c.h.b16 %v452
    %v1699 = vunpack.c.l.b16 %v453
    %v1700 = vunpack.c.h.b16 %v453
    %v1701 = vunpack.c.l.b16 %v454
    %v1702 = vunpack.c.h.b16 %v454
    %v1703 = vunpack.c.l.b16 %v455
    %v1704 = vunpack.c.h.b16 %v455
    %v1705 = vunpack.c.l.b16 %v456
    %v1706 = vunpack.c.h.b16 %v456
    %v1707 = vunpack.c.l.b16 %v457
    %v1708 = vunpack.c.h.b16 %v457
    %v1709 = vunpack.c.l.b16 %v458
    %v1710 = vunpack.c.h.b16 %v458
    %v1711 = vunpack.c.l.b16 %v459
    %v1712 = vunpack.c.h.b16 %v459
    %v1713 = vunpack.c.l.b16 %v460
    %v1714 = vunpack.c.h.b16 %v460
    %v1715 = vunpack.c.l.b16 %v461
    %v1716 = vunpack.c.h.b16 %v461
    %v1717 = vunpack.c.l.b16 %v462
    %v1718 = vunpack.c.h.b16 %v462
    %v1719 = vunpack.c.l.b16 %v463
    %v1720 = vunpack.c.h.b16 %v463
    %v1721 = vunpack.c.l.b16 %v464
    %v1722 = vunpack.c.h.b16 %v464
    %v1723 = vunpack.c.l.b16 %v465
    %v1724 = vunpack.c.h.b16 %v465
    %v1725 = vunpack.c.l.b16 %v466
    %v1726 = vunpack.c.h.b16 %v466
    %v1727 = vunpack.c.l.b16 %v467
    %v1728 = vunpack.c.h.b16 %v467
    %v1729 = vunpack.c.l.b16 %v468
    %v1730 = vunpack.c.h.b16 %v468
    %v1731 = vunpack.c.l.b16 %v469
    %v1732 = vunpack.c.h.b16 %v469
    %v1733 = vunpack.c.l.b16 %v470
    %v1734 = vunpack.c.h.b16 %v470
    %v1735 = vunpack.c.l.b16 %v471
    %v1736 = vunpack.c.h.b16 %v471
    %v1737 = vunpack.c.l.b16 %v472
    %v1738 = vunpack.c.h.b16 %v472
    %v1739 = vunpack.c.l.b16 %v473
    %v1740 = vunpack.c.h.b16 %v473
    %v1741 = vunpack.c.l.b16 %v474
    %v1742 = vunpack.c.h.b16 %v474
    %v1743 = vunpack.c.l.b16 %v475
    %v1744 = vunpack.c.h.b16 %v475
    %v1745 = vunpack.c.l.b16 %v476
    %v1746 = vunpack.c.h.b16 %v476
    %v1747 = vunpack.c.l.b16 %v477
    %v1748 = vunpack.c.h.b16 %v477
    %v1749 = vunpack.c.l.b16 %v478
    %v1750 = vunpack.c.h.b16 %v478
    %v1751 = vunpack.c.l.b16 %v479
    %v1752 = vunpack.c.h.b16 %v479
    %v1753 = vunpack.c.l.b16 %v480
    %v1754 = vunpack.c.h.b16 %v480
    %v1755 = vunpack.c.l.b16 %v481
    %v1756 = vunpack.c.h.b16 %v481
    %v1757 = vunpack.c.l.b16 %v482
    %v1758 = vunpack.c.h.b16 %v482
    %v1759 = vunpack.c.l.b16 %v483
    %v1760 = vunpack.c.h.b16 %v483
    %v1761 = vunpack.c.l.b16 %v484
    %v1762 = vunpack.c.h.b16 %v484
    %v1763 = vunpack.c.l.b16 %v485
    %v1764 = vunpack.c.h.b16 %v485
    %v1765 = vunpack.c.l.b16 %v486
    %v1766 = vunpack.c.h.b16 %v486
    %v1767 = vunpack.c.l.b16 %v487
    %v1768 = vunpack.c.h.b16 %v487
    %v1769 = vunpack.c.l.b16 %v488
    %v1770 = vunpack.c.h.b16 %v488
    %v1771 = vunpack.c.l.b16 %v489
    %v1772 = vunpack.c.h.b16 %v489
    %v1773 = vunpack.c.l.b16 %v490
    %v1774 = vunpack.c.h.b16 %v490
    %v1775 = vunpack.c.l.b16 %v491
    %v1776 = vunpack.c.h.b16 %v491
    %v1777 = vunpack.c.l.b16 %v492
    %v1778 = vunpack.c.h.b16 %v492
    %v1779 = vunpack.c.l.b16 %v493
    %v1780 = vunpack.c.h.b16 %v493
    %v1781 = vunpack.c.l.b16 %v494
    %v1782 = vunpack.c.h.b16 %v494
    %v1783 = vunpack.c.l.b16 %v495
    %v1784 = vunpack.c.h.b16 %v495
    %v1785 = vunpack.c.l.b16 %v496
    %v1786 = vunpack.c.h.b16 %v496
    %v1787 = vunpack.c.l.b16 %v497
    %v1788 = vunpack.c.h.b16 %v497
    %v1789 = vunpack.c.l.b16 %v498
    %v1790 = vunpack.c.h.b16 %v498
    %v1791 = vunpack.c.l.b16 %v499
    %v1792 = vunpack.c.h.b16 %v499
    %v1793 = vunpack.c.l.b16 %v500
    %v1794 = vunpack.c.h.b16 %v500
    %v1795 = vunpack.c.l.b16 %v501
    %v1796 = vunpack.c.h.b16 %v501
    %v1797 = vunpack.c.l.b16 %v502
    %v1798 = vunpack.c.h.b16 %v502
    %v1799 = vunpack.c.l.b16 %v503
    %v1800 = vunpack.c.h.b16 %v503
    %v1801 = vunpack.c.l.b16 %v504
    %v1802 = vunpack.c.h.b16 %v504
    %v1803 = vunpack.c.l.b16 %v505
    %v1804 = vunpack.c.h.b16 %v505
    %v1805 = vunpack.c.l.b16 %v506
    %v1806 = vunpack.c.h.b16 %v506
    %v1807 = vunpack.c.l.b16 %v507
    %v1808 = vunpack.c.h.b16 %v507
    %v1809 = vunpack.c.l.b16 %v508
    %v1810 = vunpack.c.h.b16 %v508
    %v1811 = vunpack.c.l.b16 %v509
    %v1812 = vunpack.c.h.b16 %v509
    %v1813 = vunpack.c.l.b16 %v510
    %v1814 = vunpack.c.h.b16 %v510
    %v1815 = vunpack.c.l.b16 %v511
    %v1816 = vunpack.c.h.b16 %v511
    %v1817 = vunpack.c.l.b16 %v512
    %v1818 = vunpack.c.h.b16 %v512
    %v1819 = vunpack.c.l.b16 %v513
    %v1820 = vunpack.c.h.b16 %v513
    %v1821 = vunpack.c.l.b16 %v514
    %v1822 = vunpack.c.h.b16 %v514
    %v1823 = vunpack.c.l.b16 %v515
    %v1824 = vunpack.c.h.b16 %v515
    %v1825 = vunpack.c.l.b16 %v516
    %v1826 = vunpack.c.h.b16 %v516
    %v1827 = vunpack.c.l.b16 %v517
    %v1828 = vunpack.c.h.b16 %v517
    %v1829 = vunpack.c.l.b16 %v518
    %v1830 = vunpack.c.h.b16 %v518
    %v1831 = vunpack.c.l.b16 %v519
    %v1832 = vunpack.c.h.b16 %v519
    %v1833 = vunpack.c.l.b16 %v520
    %v1834 = vunpack.c.h.b16 %v520
    %v1835 = vunpack.c.l.b16 %v521
    %v1836 = vunpack.c.h.b16 %v521
    %v1837 = vunpack.c.l.b16 %v522
    %v1838 = vunpack.c.h.b16 %v522
    %v1839 = vunpack.c.l.b16 %v523
    %v1840 = vunpack.c.h.b16 %v523
    %v1841 = vunpack.c.l.b16 %v524
    %v1842 = vunpack.c.h.b16 %v524
    %v1843 = vunpack.c.l.b16 %v525
    %v1844 = vunpack.c.h.b16 %v525
    %v1845 = vunpack.c.l.b16 %v526
    %v1846 = vunpack.c.h.b16 %v526
    %v1847 = vunpack.c.l.b16 %v527
    %v1848 = vunpack.c.h.b16 %v527
    %v1849 = vunpack.c.l.b16 %v528
    %v1850 = vunpack.c.h.b16 %v528
    %v1851 = vunpack.c.l.b16 %v529
    %v1852 = vunpack.c.h.b16 %v529
    %v1853 = vunpack.c.l.b16 %v530
    %v1854 = vunpack.c.h.b16 %v530
    %v1855 = vunpack.c.l.b16 %v531
    %v1856 = vunpack.c.h.b16 %v531
    %v1857 = vunpack.c.l.b16 %v532
    %v1858 = vunpack.c.h.b16 %v532
    %v1859 = vunpack.c.l.b16 %v533
    %v1860 = vunpack.c.h.b16 %v533
    %v1861 = vunpack.c.l.b16 %v534
    %v1862 = vunpack.c.h.b16 %v534
    %v1863 = vunpack.c.l.b16 %v535
    %v1864 = vunpack.c.h.b16 %v535
    %v1865 = vunpack.c.l.b16 %v536
    %v1866 = vunpack.c.h.b16 %v536
    %v1867 = vunpack.c.l.b16 %v537
    %v1868 = vunpack.c.h.b16 %v537
    %v1869 = vunpack.c.l.b16 %v538
    %v1870 = vunpack.c.h.b16 %v538
    %v1871 = vunpack.c.l.b16 %v539
    %v1872 = vunpack.c.h.b16 %v539
    %v1873 = vunpack.c.l.b16 %v540
    %v1874 = vunpack.c.h.b16 %v540
    %v1875 = vunpack.c.l.b16 %v541
    %v1876 = vunpack.c.h.b16 %v541
    %v1877 = vunpack.c.l.b16 %v542
    %v1878 = vunpack.c.h.b16 %v542
    %v1879 = vunpack.c.l.b16 %v543
    %v1880 = vunpack.c.h.b16 %v543
    %v1881 = vunpack.c.l.b16 %v544
    %v1882 = vunpack.c.h.b16 %v544
    %v1883 = vunpack.c.l.b16 %v545
    %v1884 = vunpack.c.h.b16 %v545
    %v1885 = vunpack.c.l.b16 %v546
    %v1886 = vunpack.c.h.b16 %v546
    %v1887 = vunpack.c.l.b16 %v547
    %v1888 = vunpack.c.h.b16 %v547
    %v1889 = vunpack.c.l.b16 %v548
    %v1890 = vunpack.c.h.b16 %v548
    %v1891 = vunpack.c.l.b16 %v549
    %v1892 = vunpack.c.h.b16 %v549
    %v1893 = vunpack.c.l.b16 %v550
    %v1894 = vunpack.c.h.b16 %v550
    %v1895 = vunpack.c.l.b16 %v551
    %v1896 = vunpack.c.h.b16 %v551
    %v1897 = vunpack.c.l.b16 %v552
    %v1898 = vunpack.c.h.b16 %v552
    %v1899 = vunpack.c.l.b16 %v553
    %v1900 = vunpack.c.h.b16 %v553
    %v1901 = vunpack.c.l.b16 %v554
    %v1902 = vunpack.c.h.b16 %v554
    %v1903 = vunpack.c.l.b16 %v555
    %v1904 = vunpack.c.h.b16 %v555
    %v1905 = vunpack.c.l.b16 %v556
    %v1906 = vunpack.c.h.b16 %v556
    %v1907 = vunpack.c.l.b16 %v557
    %v1908 = vunpack.c.h.b16 %v557
    %v1909 = vunpack.c.l.b16 %v558
    %v1910 = vunpack.c.h.b16 %v558
    %v1911 = vunpack.c.l.b16 %v559
    %v1912 = vunpack.c.h.b16 %v559
    %v1913 = vunpack.c.l.b16 %v560
    %v1914 = vunpack.c.h.b16 %v560
    %v1915 = vunpack.c.l.b16 %v561
    %v1916 = vunpack.c.h.b16 %v561
    %v1917 = vunpack.c.l.b16 %v562
    %v1918 = vunpack.c.h.b16 %v562
    %v1919 = vunpack.c.l.b16 %v563
    %v1920 = vunpack.c.h.b16 %v563
    %v1921 = vunpack.c.l.b16 %v564
    %v1922 = vunpack.c.h.b16 %v564
    %v1923 = vunpack.c.l.b16 %v565
    %v1924 = vunpack.c.h.b16 %v565
    %v1925 = vunpack.c.l.b16 %v566
    %v1926 = vunpack.c.h.b16 %v566
    %v1927 = vunpack.c.l.b16 %v567
    %v1928 = vunpack.c.h.b16 %v567
    %v1929 = vunpack.c.l.b16 %v568
    %v1930 = vunpack.c.h.b16 %v568
    %v1931 = vunpack.c.l.b16 %v569
    %v1932 = vunpack.c.h.b16 %v569
    %v1933 = vunpack.c.l.b16 %v570
    %v1934 = vunpack.c.h.b16 %v570
    %v1935 = vunpack.c.l.b16 %v571
    %v1936 = vunpack.c.h.b16 %v571
    %v1937 = vunpack.c.l.b16 %v572
    %v1938 = vunpack.c.h.b16 %v572
    %v1939 = vunpack.c.l.b16 %v573
    %v1940 = vunpack.c.h.b16 %v573
    %v1941 = vunpack.c.l.b16 %v574
    %v1942 = vunpack.c.h.b16 %v574
    %v1943 = vunpack.c.l.b16 %v575
    %v1944 = vunpack.c.h.b16 %v575
    %v1945 = vunpack.c.l.b16 %v576
    %v1946 = vunpack.c.h.b16 %v576
    %v1947 = vunpack.c.l.b16 %v577
    %v1948 = vunpack.c.h.b16 %v577
    %v1949 = vunpack.c.l.b16 %v578
    %v1950 = vunpack.c.h.b16 %v578
    %v1951 = vunpack.c.l.b16 %v579
    %v1952 = vunpack.c.h.b16 %v579
    %v1953 = vunpack.c.l.b16 %v580
    %v1954 = vunpack.c.h.b16 %v580
    %v1955 = vunpack.c.l.b16 %v581
    %v1956 = vunpack.c.h.b16 %v581
    %v1957 = vunpack.c.l.b16 %v582
    %v1958 = vunpack.c.h.b16 %v582
    %v1959 = vunpack.c.l.b16 %v583
    %v1960 = vunpack.c.h.b16 %v583
    %v1961 = vunpack.c.l.b16 %v584
    %v1962 = vunpack.c.h.b16 %v584
    %v1963 = vunpack.c.l.b16 %v585
    %v1964 = vunpack.c.h.b16 %v585
    %v1965 = vunpack.c.l.b16 %v586
    %v1966 = vunpack.c.h.b16 %v586
    %v1967 = vunpack.c.l.b16 %v587
    %v1968 = vunpack.c.h.b16 %v587
    %v1969 = vunpack.c.l.b16 %v588
    %v1970 = vunpack.c.h.b16 %v588
    %v1971 = vunpack.c.l.b16 %v589
    %v1972 = vunpack.c.h.b16 %v589
    %v1973 = vunpack.c.l.b16 %v590
    %v1974 = vunpack.c.h.b16 %v590
    %v1975 = vunpack.c.l.b16 %v591
    %v1976 = vunpack.c.h.b16 %v591
    %v1977 = vunpack.c.l.b16 %v592
    %v1978 = vunpack.c.h.b16 %v592
    %v1979 = vunpack.c.l.b16 %v593
    %v1980 = vunpack.c.h.b16 %v593
    %v1981 = vunpack.c.l.b16 %v594
    %v1982 = vunpack.c.h.b16 %v594
    %v1983 = vunpack.c.l.b16 %v595
    %v1984 = vunpack.c.h.b16 %v595
    %v1985 = vunpack.c.l.b16 %v596
    %v1986 = vunpack.c.h.b16 %v596
    %v1987 = vunpack.c.l.b16 %v597
    %v1988 = vunpack.c.h.b16 %v597
    %v1989 = vunpack.c.l.b16 %v598
    %v1990 = vunpack.c.h.b16 %v598
    %v1991 = vunpack.c.l.b16 %v599
    %v1992 = vunpack.c.h.b16 %v599
    %v1993 = vunpack.c.l.b16 %v600
    %v1994 = vunpack.c.h.b16 %v600
    %v1995 = vunpack.c.l.b16 %v601
    %v1996 = vunpack.c.h.b16 %v601
    %v1997 = vunpack.c.l.b16 %v602
    %v1998 = vunpack.c.h.b16 %v602
    %v1999 = vunpack.c.l.b16 %v603
    %v2000 = vunpack.c.h.b16 %v603
    %v2001 = vunpack.c.l.b16 %v604
    %v2002 = vunpack.c.h.b16 %v604
    %v2003 = vunpack.c.l.b16 %v605
    %v2004 = vunpack.c.h.b16 %v605
    %v2005 = vunpack.c.l.b16 %v606
    %v2006 = vunpack.c.h.b16 %v606
    %v2007 = vunpack.c.l.b16 %v607
    %v2008 = vunpack.c.h.b16 %v607
    %v2009 = vunpack.c.l.b16 %v608
    %v2010 = vunpack.c.h.b16 %v608
    %v2011 = vunpack.c.l.b16 %v609
    %v2012 = vunpack.c.h.b16 %v609
    %v2013 = vunpack.c.l.b16 %v610
    %v2014 = vunpack.c.h.b16 %v610
    %v2015 = vunpack.c.l.b16 %v611
    %v2016 = vunpack.c.h.b16 %v611
    %v2017 = vunpack.c.l.b16 %v612
    %v2018 = vunpack.c.h.b16 %v612
    %v2019 = vunpack.c.l.b16 %v613
    %v2020 = vunpack.c.h.b16 %v613
    %v2021 = vunpack.c.l.b16 %v614
    %v2022 = vunpack.c.h.b16 %v614
    %v2023 = vunpack.c.l.b16 %v615
    %v2024 = vunpack.c.h.b16 %v615
    %v2025 = vunpack.c.l.b16 %v616
    %v2026 = vunpack.c.h.b16 %v616
    %v2027 = vunpack.c.l.b16 %v617
    %v2028 = vunpack.c.h.b16 %v617
    %v2029 = vunpack.c.l.b16 %v618
    %v2030 = vunpack.c.h.b16 %v618
    %v2031 = vunpack.c.l.b16 %v619
    %v2032 = vunpack.c.h.b16 %v619
    %v2033 = vunpack.c.l.b16 %v620
    %v2034 = vunpack.c.h.b16 %v620
    %v2035 = vunpack.c.l.b16 %v621
    %v2036 = vunpack.c.h.b16 %v621
    %v2037 = vunpack.c.l.b16 %v622
    %v2038 = vunpack.c.h.b16 %v622
    %v2039 = vunpack.c.l.b16 %v623
    %v2040 = vunpack.c.h.b16 %v623
    %v2041 = vunpack.c.l.b16 %v624
    %v2042 = vunpack.c.h.b16 %v624
    %v2043 = vunpack.c.l.b16 %v625
    %v2044 = vunpack.c.h.b16 %v625
    %v2045 = vunpack.c.l.b16 %v626
    %v2046 = vunpack.c.h.b16 %v626
    %v2047 = vunpack.c.l.b16 %v627
    %v2048 = vunpack.c.h.b16 %v627
    %v2049 = vunpack.c.l.b16 %v628
    %v2050 = vunpack.c.h.b16 %v628
    %v2051 = vunpack.c.l.b16 %v629
    %v2052 = vunpack.c.h.b16 %v629
    %v2053 = vunpack.c.l.b16 %v630
    %v2054 = vunpack.c.h.b16 %v630
    %v2055 = vunpack.c.l.b16 %v631
    %v2056 = vunpack.c.h.b16 %v631
    %v2057 = vunpack.c.l.b16 %v632
    %v2058 = vunpack.c.h.b16 %v632
    %v2059 = vunpack.c.l.b16 %v633
    %v2060 = vunpack.c.h.b16 %v633
    %v2061 = vunpack.c.l.b16 %v634
    %v2062 = vunpack.c.h.b16 %v634
    %v2063 = vunpack.c.l.b16 %v635
    %v2064 = vunpack.c.h.b16 %v635
    %v2065 = vunpack.c.l.b16 %v636
    %v2066 = vunpack.c.h.b16 %v636
    %v2067 = vunpack.c.l.b16 %v637
    %v2068 = vunpack.c.h.b16 %v637
    %v2069 = vunpack.c.l.b16 %v638
    %v2070 = vunpack.c.h.b16 %v638
    %v2071 = vunpack.c.l.b16 %v639
    %v2072 = vunpack.c.h.b16 %v639
    %v2073 = vunpack.c.l.b16 %v640
    %v2074 = vunpack.c.h.b16 %v640
    %v2075 = vunpack.c.l.b16 %v641
    %v2076 = vunpack.c.h.b16 %v641
    %v2077 = vunpack.c.l.b16 %v642
    %v2078 = vunpack.c.h.b16 %v642
    %v2079 = vunpack.c.l.b16 %v643
    %v2080 = vunpack.c.h.b16 %v643
    %v2081 = vunpack.c.l.b16 %v644
    %v2082 = vunpack.c.h.b16 %v644
    %v2083 = vunpack.c.l.b16 %v645
    %v2084 = vunpack.c.h.b16 %v645
    %v2085 = vunpack.c.l.b16 %v646
    %v2086 = vunpack.c.h.b16 %v646
    %v2087 = vunpack.c.l.b16 %v647
    %v2088 = vunpack.c.h.b16 %v647
    %v2089 = vunpack.c.l.b16 %v648
    %v2090 = vunpack.c.h.b16 %v648
    %v2091 = vunpack.c.l.b16 %v649
    %v2092 = vunpack.c.h.b16 %v649
    %v2093 = vunpack.c.l.b16 %v650
    %v2094 = vunpack.c.h.b16 %v650
    %v2095 = vunpack.c.l.b16 %v651
    %v2096 = vunpack.c.h.b16 %v651
    %v2097 = vunpack.c.l.b16 %v652
    %v2098 = vunpack.c.h.b16 %v652
    %v2099 = vunpack.c.l.b16 %v653
    %v2100 = vunpack.c.h.b16 %v653
    %v2101 = vunpack.c.l.b16 %v654
    %v2102 = vunpack.c.h.b16 %v654
    %v2103 = vunpack.c.l.b16 %v655
    %v2104 = vunpack.c.h.b16 %v655
    %v2105 = vunpack.c.l.b16 %v656
    %v2106 = vunpack.c.h.b16 %v656
    %v2107 = vunpack.c.l.b16 %v657
    %v2108 = vunpack.c.h.b16 %v657
    %v2109 = vunpack.c.l.b16 %v658
    %v2110 = vunpack.c.h.b16 %v658
    %v2111 = vunpack.c.l.b16 %v659
    %v2112 = vunpack.c.h.b16 %v659
    %v2113 = vunpack.c.l.b16 %v660
    %v2114 = vunpack.c.h.b16 %v660
    %v2115 = vunpack.c.l.b16 %v661
    %v2116 = vunpack.c.h.b16 %v661
    %v2117 = vunpack.c.l.b16 %v662
    %v2118 = vunpack.c.h.b16 %v662
    %v2119 = vunpack.c.l.b16 %v663
    %v2120 = vunpack.c.h.b16 %v663
    %v2121 = vunpack.c.l.b16 %v664
    %v2122 = vunpack.c.h.b16 %v664
    %v2123 = vunpack.c.l.b16 %v665
    %v2124 = vunpack.c.h.b16 %v665
    %v2125 = vunpack.c.l.b16 %v666
    %v2126 = vunpack.c.h.b16 %v666
    %v2127 = vunpack.c.l.b16 %v667
    %v2128 = vunpack.c.h.b16 %v667
    %v2129 = vunpack.c.l.b16 %v668
    %v2130 = vunpack.c.h.b16 %v668
    %v2131 = vunpack.c.l.b16 %v669
    %v2132 = vunpack.c.h.b16 %v669
    %v2133 = vunpack.c.l.b16 %v670
    %v2134 = vunpack.c.h.b16 %v670
    %v2135 = vunpack.c.l.b16 %v671
    %v2136 = vunpack.c.h.b16 %v671
    %v2137 = vunpack.c.l.b16 %v672
    %v2138 = vunpack.c.h.b16 %v672
    %v2139 = vunpack.c.l.b16 %v673
    %v2140 = vunpack.c.h.b16 %v673
    %v2141 = vunpack.c.l.b16 %v674
    %v2142 = vunpack.c.h.b16 %v674
    %v2143 = vunpack.c.l.b16 %v675
    %v2144 = vunpack.c.h.b16 %v675
    %v2145 = vunpack.c.l.b16 %v676
    %v2146 = vunpack.c.h.b16 %v676
    %v2147 = vunpack.c.l.b16 %v677
    %v2148 = vunpack.c.h.b16 %v677
    %v2149 = vunpack.c.l.b16 %v678
    %v2150 = vunpack.c.h.b16 %v678
    %v2151 = vunpack.c.l.b16 %v679
    %v2152 = vunpack.c.h.b16 %v679
    %v2153 = vunpack.c.l.b16 %v680
    %v2154 = vunpack.c.h.b16 %v680
    %v2155 = vunpack.c.l.b16 %v681
    %v2156 = vunpack.c.h.b16 %v681
    %v2157 = vunpack.c.l.b16 %v682
    %v2158 = vunpack.c.h.b16 %v682
    %v2159 = vunpack.c.l.b16 %v683
    %v2160 = vunpack.c.h.b16 %v683
    %v2161 = vunpack.c.l.b16 %v684
    %v2162 = vunpack.c.h.b16 %v684
    %v2163 = vunpack.c.l.b16 %v685
    %v2164 = vunpack.c.h.b16 %v685
    %v2165 = vunpack.c.l.b16 %v686
    %v2166 = vunpack.c.h.b16 %v686
    %v2167 = vunpack.c.l.b16 %v687
    %v2168 = vunpack.c.h.b16 %v687
    %v2169 = vunpack.c.l.b16 %v688
    %v2170 = vunpack.c.h.b16 %v688
    %v2171 = vunpack.c.l.b16 %v689
    %v2172 = vunpack.c.h.b16 %v689
    %v2173 = vunpack.c.l.b16 %v690
    %v2174 = vunpack.c.h.b16 %v690
    %v2175 = vunpack.c.l.b16 %v691
    %v2176 = vunpack.c.h.b16 %v691
    %v2177 = vunpack.c.l.b16 %v692
    %v2178 = vunpack.c.h.b16 %v692
    %v2179 = vunpack.c.l.b16 %v693
    %v2180 = vunpack.c.h.b16 %v693
    %v2181 = vunpack.c.l.b16 %v694
    %v2182 = vunpack.c.h.b16 %v694
    %v2183 = vunpack.c.l.b16 %v695
    %v2184 = vunpack.c.h.b16 %v695
    %v2185 = vunpack.c.l.b16 %v696
    %v2186 = vunpack.c.h.b16 %v696
    %v2187 = vunpack.c.l.b16 %v697
    %v2188 = vunpack.c.h.b16 %v697
    %v2189 = vunpack.c.l.b16 %v698
    %v2190 = vunpack.c.h.b16 %v698
    %v2191 = vunpack.c.l.b16 %v699
    %v2192 = vunpack.c.h.b16 %v699
    %v2193 = vunpack.c.l.b16 %v700
    %v2194 = vunpack.c.h.b16 %v700
    %v2195 = vunpack.c.l.b16 %v701
    %v2196 = vunpack.c.h.b16 %v701
    %v2197 = vunpack.c.l.b16 %v702
    %v2198 = vunpack.c.h.b16 %v702
    %v2199 = vunpack.c.l.b16 %v703
    %v2200 = vunpack.c.h.b16 %v703
    %v2201 = vunpack.c.l.b16 %v704
    %v2202 = vunpack.c.h.b16 %v704
    %v2203 = vunpack.c.l.b16 %v705
    %v2204 = vunpack.c.h.b16 %v705
    %v2205 = vunpack.c.l.b16 %v706
    %v2206 = vunpack.c.h.b16 %v706
    %v2207 = vunpack.c.l.b16 %v707
    %v2208 = vunpack.c.h.b16 %v707
    %v2209 = vunpack.c.l.b16 %v708
    %v2210 = vunpack.c.h.b16 %v708
    %v2211 = vunpack.c.l.b16 %v709
    %v2212 = vunpack.c.h.b16 %v709
    %v2213 = vunpack.c.l.b16 %v710
    %v2214 = vunpack.c.h.b16 %v710
    %v2215 = vunpack.c.l.b16 %v711
    %v2216 = vunpack.c.h.b16 %v711
    %v2217 = vunpack.c.l.b16 %v712
    %v2218 = vunpack.c.h.b16 %v712
    %v2219 = vunpack.c.l.b16 %v713
    %v2220 = vunpack.c.h.b16 %v713
    %v2221 = vunpack.c.l.b16 %v714
    %v2222 = vunpack.c.h.b16 %v714
    %v2223 = vunpack.c.l.b16 %v715
    %v2224 = vunpack.c.h.b16 %v715
    %v2225 = vunpack.c.l.b16 %v716
    %v2226 = vunpack.c.h.b16 %v716
    %v2227 = vunpack.c.l.b16 %v717
    %v2228 = vunpack.c.h.b16 %v717
    %v2229 = vunpack.c.l.b16 %v718
    %v2230 = vunpack.c.h.b16 %v718
    %v2231 = vunpack.c.l.b16 %v719
    %v2232 = vunpack.c.h.b16 %v719
    %v2233 = vunpack.c.l.b16 %v720
    %v2234 = vunpack.c.h.b16 %v720
    %v2235 = vunpack.c.l.b16 %v721
    %v2236 = vunpack.c.h.b16 %v721
    %v2237 = vunpack.c.l.b16 %v722
    %v2238 = vunpack.c.h.b16 %v722
    %v2239 = vunpack.c.l.b16 %v723
    %v2240 = vunpack.c.h.b16 %v723
    %v2241 = vunpack.c.l.b16 %v724
    %v2242 = vunpack.c.h.b16 %v724
    %v2243 = vunpack.c.l.b16 %v725
    %v2244 = vunpack.c.h.b16 %v725
    %v2245 = vunpack.c.l.b16 %v726
    %v2246 = vunpack.c.h.b16 %v726
    %v2247 = vunpack.c.l.b16 %v727
    %v2248 = vunpack.c.h.b16 %v727
    %v2249 = vunpack.c.l.b16 %v728
    %v2250 = vunpack.c.h.b16 %v728
    %v2251 = vunpack.c.l.b16 %v729
    %v2252 = vunpack.c.h.b16 %v729
    %v2253 = vunpack.c.l.b16 %v730
    %v2254 = vunpack.c.h.b16 %v730
    %v2255 = vunpack.c.l.b16 %v731
    %v2256 = vunpack.c.h.b16 %v731
    %v2257 = vunpack.c.l.b16 %v732
    %v2258 = vunpack.c.h.b16 %v732
    %v2259 = vunpack.c.l.b16 %v733
    %v2260 = vunpack.c.h.b16 %v733
    %v2261 = vunpack.c.l.b16 %v734
    %v2262 = vunpack.c.h.b16 %v734
    %v2263 = vunpack.c.l.b16 %v735
    %v2264 = vunpack.c.h.b16 %v735
    %v2265 = vunpack.c.l.b16 %v736
    %v2266 = vunpack.c.h.b16 %v736
    %v2267 = vunpack.c.l.b16 %v737
    %v2268 = vunpack.c.h.b16 %v737
    %v2269 = vunpack.c.l.b16 %v738
    %v2270 = vunpack.c.h.b16 %v738
    %v2271 = vunpack.c.l.b16 %v739
    %v2272 = vunpack.c.h.b16 %v739
    %v2273 = vunpack.c.l.b16 %v740
    %v2274 = vunpack.c.h.b16 %v740
    %v2275 = vunpack.c.l.b16 %v741
    %v2276 = vunpack.c.h.b16 %v741
    %v2277 = vunpack.c.l.b16 %v742
    %v2278 = vunpack.c.h.b16 %v742
    %v2279 = vunpack.c.l.b16 %v743
    %v2280 = vunpack.c.h.b16 %v743
    %v2281 = vunpack.c.l.b16 %v744
    %v2282 = vunpack.c.h.b16 %v744
    %v2283 = vunpack.c.l.b16 %v745
    %v2284 = vunpack.c.h.b16 %v745
    %v2285 = vunpack.c.l.b16 %v746
    %v2286 = vunpack.c.h.b16 %v746
    %v2287 = vunpack.c.l.b16 %v747
    %v2288 = vunpack.c.h.b16 %v747
    %v2289 = vunpack.c.l.b16 %v748
    %v2290 = vunpack.c.h.b16 %v748
    %v2291 = vunpack.c.l.b16 %v749
    %v2292 = vunpack.c.h.b16 %v749
    %v2293 = vunpack.c.l.b16 %v750
    %v2294 = vunpack.c.h.b16 %v750
    %v2295 = vunpack.c.l.b16 %v751
    %v2296 = vunpack.c.h.b16 %v751
    %v2297 = vunpack.c.l.b16 %v752
    %v2298 = vunpack.c.h.b16 %v752
    %v2299 = vunpack.c.l.b16 %v753
    %v2300 = vunpack.c.h.b16 %v753
    %v2301 = vunpack.c.l.b16 %v754
    %v2302 = vunpack.c.h.b16 %v754
    %v2303 = vpack.c.b16 %v1281, %v1279
    %v2304 = vpack.c.b16 %v1282, %v1280
    %v2305 = vpack.c.b16 %v1285, %v1283
    %v2306 = vpack.c.b16 %v1286, %v1284
    %v2307 = vpack.c.b16 %v1289, %v1287
    %v2308 = vpack.c.b16 %v1290, %v1288
    %v2309 = vpack.c.b16 %v1293, %v1291
    %v2310 = vpack.c.b16 %v1294, %v1292
    %v2311 = vpack.c.b16 %v1297, %v1295
    %v2312 = vpack.c.b16 %v1298, %v1296
    %v2313 = vpack.c.b16 %v1301, %v1299
    %v2314 = vpack.c.b16 %v1302, %v1300
    %v2315 = vpack.c.b16 %v1305, %v1303
    %v2316 = vpack.c.b16 %v1306, %v1304
    %v2317 = vpack.c.b16 %v1309, %v1307
    %v2318 = vpack.c.b16 %v1310, %v1308
    %v2319 = vpack.c.b16 %v1313, %v1311
    %v2320 = vpack.c.b16 %v1314, %v1312
    %v2321 = vpack.c.b16 %v1317, %v1315
    %v2322 = vpack.c.b16 %v1318, %v1316
    %v2323 = vpack.c.b16 %v1321, %v1319
    %v2324 = vpack.c.b16 %v1322, %v1320
    %v2325 = vpack.c.b16 %v1325, %v1323
    %v2326 = vpack.c.b16 %v1326, %v1324
    %v2327 = vpack.c.b16 %v1329, %v1327
    %v2328 = vpack.c.b16 %v1330, %v1328
    %v2329 = vpack.c.b16 %v1333, %v1331
    %v2330 = vpack.c.b16 %v1334, %v1332
    %v2331 = vpack.c.b16 %v1337, %v1335
    %v2332 = vpack.c.b16 %v1338, %v1336
    %v2333 = vpack.c.b16 %v1341, %v1339
    %v2334 = vpack.c.b16 %v1342, %v1340
    %v2335 = vpack.c.b16 %v1345, %v1343
    %v2336 = vpack.c.b16 %v1346, %v1344
    %v2337 = vpack.c.b16 %v1349, %v1347
    %v2338 = vpack.c.b16 %v1350, %v1348
    %v2339 = vpack.c.b16 %v1353, %v1351
    %v2340 = vpack.c.b16 %v1354, %v1352
    %v2341 = vpack.c.b16 %v1357, %v1355
    %v2342 = vpack.c.b16 %v1358, %v1356
    %v2343 = vpack.c.b16 %v1361, %v1359
    %v2344 = vpack.c.b16 %v1362, %v1360
    %v2345 = vpack.c.b16 %v1365, %v1363
    %v2346 = vpack.c.b16 %v1366, %v1364
    %v2347 = vpack.c.b16 %v1369, %v1367
    %v2348 = vpack.c.b16 %v1370, %v1368
    %v2349 = vpack.c.b16 %v1373, %v1371
    %v2350 = vpack.c.b16 %v1374, %v1372
    %v2351 = vpack.c.b16 %v1377, %v1375
    %v2352 = vpack.c.b16 %v1378, %v1376
    %v2353 = vpack.c.b16 %v1381, %v1379
    %v2354 = vpack.c.b16 %v1382, %v1380
    %v2355 = vpack.c.b16 %v1385, %v1383
    %v2356 = vpack.c.b16 %v1386, %v1384
    %v2357 = vpack.c.b16 %v1389, %v1387
    %v2358 = vpack.c.b16 %v1390, %v1388
    %v2359 = vpack.c.b16 %v1393, %v1391
    %v2360 = vpack.c.b16 %v1394, %v1392
    %v2361 = vpack.c.b16 %v1397, %v1395
    %v2362 = vpack.c.b16 %v1398, %v1396
    %v2363 = vpack.c.b16 %v1401, %v1399
    %v2364 = vpack.c.b16 %v1402, %v1400
    %v2365 = vpack.c.b16 %v1405, %v1403
    %v2366 = vpack.c.b16 %v1406, %v1404
    %v2367 = vpack.c.b16 %v1409, %v1407
    %v2368 = vpack.c.b16 %v1410, %v1408
    %v2369 = vpack.c.b16 %v1413, %v1411
    %v2370 = vpack.c.b16 %v1414, %v1412
    %v2371 = vpack.c.b16 %v1417, %v1415
    %v2372 = vpack.c.b16 %v1418, %v1416
    %v2373 = vpack.c.b16 %v1421, %v1419
    %v2374 = vpack.c.b16 %v1422, %v1420
    %v2375 = vpack.c.b16 %v1425, %v1423
    %v2376 = vpack.c.b16 %v1426, %v1424
    %v2377 = vpack.c.b16 %v1429, %v1427
    %v2378 = vpack.c.b16 %v1430, %v1428
    %v2379 = vpack.c.b16 %v1433, %v1431
    %v2380 = vpack.c.b16 %v1434, %v1432
    %v2381 = vpack.c.b16 %v1437, %v1435
    %v2382 = vpack.c.b16 %v1438, %v1436
    %v2383 = vpack.c.b16 %v1441, %v1439
    %v2384 = vpack.c.b16 %v1442, %v1440
    %v2385 = vpack.c.b16 %v1445, %v1443
    %v2386 = vpack.c.b16 %v1446, %v1444
    %v2387 = vpack.c.b16 %v1449, %v1447
    %v2388 = vpack.c.b16 %v1450, %v1448
    %v2389 = vpack.c.b16 %v1453, %v1451
    %v2390 = vpack.c.b16 %v1454, %v1452
    %v2391 = vpack.c.b16 %v1457, %v1455
    %v2392 = vpack.c.b16 %v1458, %v1456
    %v2393 = vpack.c.b16 %v1461, %v1459
    %v2394 = vpack.c.b16 %v1462, %v1460
    %v2395 = vpack.c.b16 %v1465, %v1463
    %v2396 = vpack.c.b16 %v1466, %v1464
    %v2397 = vpack.c.b16 %v1469, %v1467
    %v2398 = vpack.c.b16 %v1470, %v1468
    %v2399 = vpack.c.b16 %v1473, %v1471
    %v2400 = vpack.c.b16 %v1474, %v1472
    %v2401 = vpack.c.b16 %v1477, %v1475
    %v2402 = vpack.c.b16 %v1478, %v1476
    %v2403 = vpack.c.b16 %v1481, %v1479
    %v2404 = vpack.c.b16 %v1482, %v1480
    %v2405 = vpack.c.b16 %v1485, %v1483
    %v2406 = vpack.c.b16 %v1486, %v1484
    %v2407 = vpack.c.b16 %v1489, %v1487
    %v2408 = vpack.c.b16 %v1490, %v1488
    %v2409 = vpack.c.b16 %v1493, %v1491
    %v2410 = vpack.c.b16 %v1494, %v1492
    %v2411 = vpack.c.b16 %v1497, %v1495
    %v2412 = vpack.c.b16 %v1498, %v1496
    %v2413 = vpack.c.b16 %v1501, %v1499
    %v2414 = vpack.c.b16 %v1502, %v1500
    %v2415 = vpack.c.b16 %v1505, %v1503
    %v2416 = vpack.c.b16 %v1506, %v1504
    %v2417 = vpack.c.b16 %v1509, %v1507
    %v2418 = vpack.c.b16 %v1510, %v1508
    %v2419 = vpack.c.b16 %v1513, %v1511
    %v2420 = vpack.c.b16 %v1514, %v1512
    %v2421 = vpack.c.b16 %v1517, %v1515
    %v2422 = vpack.c.b16 %v1518, %v1516
    %v2423 = vpack.c.b16 %v1521, %v1519
    %v2424 = vpack.c.b16 %v1522, %v1520
    %v2425 = vpack.c.b16 %v1525, %v1523
    %v2426 = vpack.c.b16 %v1526, %v1524
    %v2427 = vpack.c.b16 %v1529, %v1527
    %v2428 = vpack.c.b16 %v1530, %v1528
    %v2429 = vpack.c.b16 %v1533, %v1531
    %v2430 = vpack.c.b16 %v1534, %v1532
    %v2431 = vpack.c.b16 %v1537, %v1535
    %v2432 = vpack.c.b16 %v1538, %v1536
    %v2433 = vpack.c.b16 %v1541, %v1539
    %v2434 = vpack.c.b16 %v1542, %v1540
    %v2435 = vpack.c.b16 %v1545, %v1543
    %v2436 = vpack.c.b16 %v1546, %v1544
    %v2437 = vpack.c.b16 %v1549, %v1547
    %v2438 = vpack.c.b16 %v1550, %v1548
    %v2439 = vpack.c.b16 %v1553, %v1551
    %v2440 = vpack.c.b16 %v1554, %v1552
    %v2441 = vpack.c.b16 %v1557, %v1555
    %v2442 = vpack.c.b16 %v1558, %v1556
    %v2443 = vpack.c.b16 %v1561, %v1559
    %v2444 = vpack.c.b16 %v1562, %v1560
    %v2445 = vpack.c.b16 %v1565, %v1563
    %v2446 = vpack.c.b16 %v1566, %v1564
    %v2447 = vpack.c.b16 %v1569, %v1567
    %v2448 = vpack.c.b16 %v1570, %v1568
    %v2449 = vpack.c.b16 %v1573, %v1571
    %v2450 = vpack.c.b16 %v1574, %v1572
    %v2451 = vpack.c.b16 %v1577, %v1575
    %v2452 = vpack.c.b16 %v1578, %v1576
    %v2453 = vpack.c.b16 %v1581, %v1579
    %v2454 = vpack.c.b16 %v1582, %v1580
    %v2455 = vpack.c.b16 %v1585, %v1583
    %v2456 = vpack.c.b16 %v1586, %v1584
    %v2457 = vpack.c.b16 %v1589, %v1587
    %v2458 = vpack.c.b16 %v1590, %v1588
    %v2459 = vpack.c.b16 %v1593, %v1591
    %v2460 = vpack.c.b16 %v1594, %v1592
    %v2461 = vpack.c.b16 %v1597, %v1595
    %v2462 = vpack.c.b16 %v1598, %v1596
    %v2463 = vpack.c.b16 %v1601, %v1599
    %v2464 = vpack.c.b16 %v1602, %v1600
    %v2465 = vpack.c.b16 %v1605, %v1603
    %v2466 = vpack.c.b16 %v1606, %v1604
    %v2467 = vpack.c.b16 %v1609, %v1607
    %v2468 = vpack.c.b16 %v1610, %v1608
    %v2469 = vpack.c.b16 %v1613, %v1611
    %v2470 = vpack.c.b16 %v1614, %v1612
    %v2471 = vpack.c.b16 %v1617, %v1615
    %v2472 = vpack.c.b16 %v1618, %v1616
    %v2473 = vpack.c.b16 %v1621, %v1619
    %v2474 = vpack.c.b16 %v1622, %v1620
    %v2475 = vpack.c.b16 %v1625, %v1623
    %v2476 = vpack.c.b16 %v1626, %v1624
    %v2477 = vpack.c.b16 %v1629, %v1627
    %v2478 = vpack.c.b16 %v1630, %v1628
    %v2479 = vpack.c.b16 %v1633, %v1631
    %v2480 = vpack.c.b16 %v1634, %v1632
    %v2481 = vpack.c.b16 %v1637, %v1635
    %v2482 = vpack.c.b16 %v1638, %v1636
    %v2483 = vpack.c.b16 %v1641, %v1639
    %v2484 = vpack.c.b16 %v1642, %v1640
    %v2485 = vpack.c.b16 %v1645, %v1643
    %v2486 = vpack.c.b16 %v1646, %v1644
    %v2487 = vpack.c.b16 %v1649, %v1647
    %v2488 = vpack.c.b16 %v1650, %v1648
    %v2489 = vpack.c.b16 %v1653, %v1651
    %v2490 = vpack.c.b16 %v1654, %v1652
    %v2491 = vpack.c.b16 %v1657, %v1655
    %v2492 = vpack.c.b16 %v1658, %v1656
    %v2493 = vpack.c.b16 %v1661, %v1659
    %v2494 = vpack.c.b16 %v1662, %v1660
    %v2495 = vpack.c.b16 %v1665, %v1663
    %v2496 = vpack.c.b16 %v1666, %v1664
    %v2497 = vpack.c.b16 %v1669, %v1667
    %v2498 = vpack.c.b16 %v1670, %v1668
    %v2499 = vpack.c.b16 %v1673, %v1671
    %v2500 = vpack.c.b16 %v1674, %v1672
    %v2501 = vpack.c.b16 %v1677, %v1675
    %v2502 = vpack.c.b16 %v1678, %v1676
    %v2503 = vpack.c.b16 %v1681, %v1679
    %v2504 = vpack.c.b16 %v1682, %v1680
    %v2505 = vpack.c.b16 %v1685, %v1683
    %v2506 = vpack.c.b16 %v1686, %v1684
    %v2507 = vpack.c.b16 %v1689, %v1687
    %v2508 = vpack.c.b16 %v1690, %v1688
    %v2509 = vpack.c.b16 %v1693, %v1691
    %v2510 = vpack.c.b16 %v1694, %v1692
    %v2511 = vpack.c.b16 %v1697, %v1695
    %v2512 = vpack.c.b16 %v1698, %v1696
    %v2513 = vpack.c.b16 %v1701, %v1699
    %v2514 = vpack.c.b16 %v1702, %v1700
    %v2515 = vpack.c.b16 %v1705, %v1703
    %v2516 = vpack.c.b16 %v1706, %v1704
    %v2517 = vpack.c.b16 %v1709, %v1707
    %v2518 = vpack.c.b16 %v1710, %v1708
    %v2519 = vpack.c.b16 %v1713, %v1711
    %v2520 = vpack.c.b16 %v1714, %v1712
    %v2521 = vpack.c.b16 %v1717, %v1715
    %v2522 = vpack.c.b16 %v1718, %v1716
    %v2523 = vpack.c.b16 %v1721, %v1719
    %v2524 = vpack.c.b16 %v1722, %v1720
    %v2525 = vpack.c.b16 %v1725, %v1723
    %v2526 = vpack.c.b16 %v1726, %v1724
    %v2527 = vpack.c.b16 %v1729, %v1727
    %v2528 = vpack.c.b16 %v1730, %v1728
    %v2529 = vpack.c.b16 %v1733, %v1731
    %v2530 = vpack.c.b16 %v1734, %v1732
    %v2531 = vpack.c.b16 %v1737, %v1735
    %v2532 = vpack.c.b16 %v1738, %v1736
    %v2533 = vpack.c.b16 %v1741, %v1739
    %v2534 = vpack.c.b16 %v1742, %v1740
    %v2535 = vpack.c.b16 %v1745, %v1743
    %v2536 = vpack.c.b16 %v1746, %v1744
    %v2537 = vpack.c.b16 %v1749, %v1747
    %v2538 = vpack.c.b16 %v1750, %v1748
    %v2539 = vpack.c.b16 %v1753, %v1751
    %v2540 = vpack.c.b16 %v1754, %v1752
    %v2541 = vpack.c.b16 %v1757, %v1755
    %v2542 = vpack.c.b16 %v1758, %v1756
    %v2543 = vpack.c.b16 %v1761, %v1759
    %v2544 = vpack.c.b16 %v1762, %v1760
    %v2545 = vpack.c.b16 %v1765, %v1763
    %v2546 = vpack.c.b16 %v1766, %v1764
    %v2547 = vpack.c.b16 %v1769, %v1767
    %v2548 = vpack.c.b16 %v1770, %v1768
    %v2549 = vpack.c.b16 %v1773, %v1771
    %v2550 = vpack.c.b16 %v1774, %v1772
    %v2551 = vpack.c.b16 %v1777, %v1775
    %v2552 = vpack.c.b16 %v1778, %v1776
    %v2553 = vpack.c.b16 %v1781, %v1779
    %v2554 = vpack.c.b16 %v1782, %v1780
    %v2555 = vpack.c.b16 %v1785, %v1783
    %v2556 = vpack.c.b16 %v1786, %v1784
    %v2557 = vpack.c.b16 %v1789, %v1787
    %v2558 = vpack.c.b16 %v1790, %v1788
    %v2559 = vpack.c.b16 %v1793, %v1791
    %v2560 = vpack.c.b16 %v1794, %v1792
    %v2561 = vpack.c.b16 %v1797, %v1795
    %v2562 = vpack.c.b16 %v1798, %v1796
    %v2563 = vpack.c.b16 %v1801, %v1799
    %v2564 = vpack.c.b16 %v1802, %v1800
    %v2565 = vpack.c.b16 %v1805, %v1803
    %v2566 = vpack.c.b16 %v1806, %v1804
    %v2567 = vpack.c.b16 %v1809, %v1807
    %v2568 = vpack.c.b16 %v1810, %v1808
    %v2569 = vpack.c.b16 %v1813, %v1811
    %v2570 = vpack.c.b16 %v1814, %v1812
    %v2571 = vpack.c.b16 %v1817, %v1815
    %v2572 = vpack.c.b16 %v1818, %v1816
    %v2573 = vpack.c.b16 %v1821, %v1819
    %v2574 = vpack.c.b16 %v1822, %v1820
    %v2575 = vpack.c.b16 %v1825, %v1823
    %v2576 = vpack.c.b16 %v1826, %v1824
    %v2577 = vpack.c.b16 %v1829, %v1827
    %v2578 = vpack.c.b16 %v1830, %v1828
    %v2579 = vpack.c.b16 %v1833, %v1831
    %v2580 = vpack.c.b16 %v1834, %v1832
    %v2581 = vpack.c.b16 %v1837, %v1835
    %v2582 = vpack.c.b16 %v1838, %v1836
    %v2583 = vpack.c.b16 %v1841, %v1839
    %v2584 = vpack.c.b16 %v1842, %v1840
    %v2585 = vpack.c.b16 %v1845, %v1843
    %v2586 = vpack.c.b16 %v1846, %v1844
    %v2587 = vpack.c.b16 %v1849, %v1847
    %v2588 = vpack.c.b16 %v1850, %v1848
    %v2589 = vpack.c.b16 %v1853, %v1851
    %v2590 = vpack.c.b16 %v1854, %v1852
    %v2591 = vpack.c.b16 %v1857, %v1855
    %v2592 = vpack.c.b16 %v1858, %v1856
    %v2593 = vpack.c.b16 %v1861, %v1859
    %v2594 = vpack.c.b16 %v1862, %v1860
    %v2595 = vpack.c.b16 %v1865, %v1863
    %v2596 = vpack.c.b16 %v1866, %v1864
    %v2597 = vpack.c.b16 %v1869, %v1867
    %v2598 = vpack.c.b16 %v1870, %v1868
    %v2599 = vpack.c.b16 %v1873, %v1871
    %v2600 = vpack.c.b16 %v1874, %v1872
    %v2601 = vpack.c.b16 %v1877, %v1875
    %v2602 = vpack.c.b16 %v1878, %v1876
    %v2603 = vpack.c.b16 %v1881, %v1879
    %v2604 = vpack.c.b16 %v1882, %v1880
    %v2605 = vpack.c.b16 %v1885, %v1883
    %v2606 = vpack.c.b16 %v1886, %v1884
    %v2607 = vpack.c.b16 %v1889, %v1887
    %v2608 = vpack.c.b16 %v1890, %v1888
    %v2609 = vpack.c.b16 %v1893, %v1891
    %v2610 = vpack.c.b16 %v1894, %v1892
    %v2611 = vpack.c.b16 %v1897, %v1895
    %v2612 = vpack.c.b16 %v1898, %v1896
    %v2613 = vpack.c.b16 %v1901, %v1899
    %v2614 = vpack.c.b16 %v1902, %v1900
    %v2615 = vpack.c.b16 %v1905, %v1903
    %v2616 = vpack.c.b16 %v1906, %v1904
    %v2617 = vpack.c.b16 %v1909, %v1907
    %v2618 = vpack.c.b16 %v1910, %v1908
    %v2619 = vpack.c.b16 %v1913, %v1911
    %v2620 = vpack.c.b16 %v1914, %v1912
    %v2621 = vpack.c.b16 %v1917, %v1915
    %v2622 = vpack.c.b16 %v1918, %v1916
    %v2623 = vpack.c.b16 %v1921, %v1919
    %v2624 = vpack.c.b16 %v1922, %v1920
    %v2625 = vpack.c.b16 %v1925, %v1923
    %v2626 = vpack.c.b16 %v1926, %v1924
    %v2627 = vpack.c.b16 %v1929, %v1927
    %v2628 = vpack.c.b16 %v1930, %v1928
    %v2629 = vpack.c.b16 %v1933, %v1931
    %v2630 = vpack.c.b16 %v1934, %v1932
    %v2631 = vpack.c.b16 %v1937, %v1935
    %v2632 = vpack.c.b16 %v1938, %v1936
    %v2633 = vpack.c.b16 %v1941, %v1939
    %v2634 = vpack.c.b16 %v1942, %v1940
    %v2635 = vpack.c.b16 %v1945, %v1943
    %v2636 = vpack.c.b16 %v1946, %v1944
    %v2637 = vpack.c.b16 %v1949, %v1947
    %v2638 = vpack.c.b16 %v1950, %v1948
    %v2639 = vpack.c.b16 %v1953, %v1951
    %v2640 = vpack.c.b16 %v1954, %v1952
    %v2641 = vpack.c.b16 %v1957, %v1955
    %v2642 = vpack.c.b16 %v1958, %v1956
    %v2643 = vpack.c.b16 %v1961, %v1959
    %v2644 = vpack.c.b16 %v1962, %v1960
    %v2645 = vpack.c.b16 %v1965, %v1963
    %v2646 = vpack.c.b16 %v1966, %v1964
    %v2647 = vpack.c.b16 %v1969, %v1967
    %v2648 = vpack.c.b16 %v1970, %v1968
    %v2649 = vpack.c.b16 %v1973, %v1971
    %v2650 = vpack.c.b16 %v1974, %v1972
    %v2651 = vpack.c.b16 %v1977, %v1975
    %v2652 = vpack.c.b16 %v1978, %v1976
    %v2653 = vpack.c.b16 %v1981, %v1979
    %v2654 = vpack.c.b16 %v1982, %v1980
    %v2655 = vpack.c.b16 %v1985, %v1983
    %v2656 = vpack.c.b16 %v1986, %v1984
    %v2657 = vpack.c.b16 %v1989, %v1987
    %v2658 = vpack.c.b16 %v1990, %v1988
    %v2659 = vpack.c.b16 %v1993, %v1991
    %v2660 = vpack.c.b16 %v1994, %v1992
    %v2661 = vpack.c.b16 %v1997, %v1995
    %v2662 = vpack.c.b16 %v1998, %v1996
    %v2663 = vpack.c.b16 %v2001, %v1999
    %v2664 = vpack.c.b16 %v2002, %v2000
    %v2665 = vpack.c.b16 %v2005, %v2003
    %v2666 = vpack.c.b16 %v2006, %v2004
    %v2667 = vpack.c.b16 %v2009, %v2007
    %v2668 = vpack.c.b16 %v2010, %v2008
    %v2669 = vpack.c.b16 %v2013, %v2011
    %v2670 = vpack.c.b16 %v2014, %v2012
    %v2671 = vpack.c.b16 %v2017, %v2015
    %v2672 = vpack.c.b16 %v2018, %v2016
    %v2673 = vpack.c.b16 %v2021, %v2019
    %v2674 = vpack.c.b16 %v2022, %v2020
    %v2675 = vpack.c.b16 %v2025, %v2023
    %v2676 = vpack.c.b16 %v2026, %v2024
    %v2677 = vpack.c.b16 %v2029, %v2027
    %v2678 = vpack.c.b16 %v2030, %v2028
    %v2679 = vpack.c.b16 %v2033, %v2031
    %v2680 = vpack.c.b16 %v2034, %v2032
    %v2681 = vpack.c.b16 %v2037, %v2035
    %v2682 = vpack.c.b16 %v2038, %v2036
    %v2683 = vpack.c.b16 %v2041, %v2039
    %v2684 = vpack.c.b16 %v2042, %v2040
    %v2685 = vpack.c.b16 %v2045, %v2043
    %v2686 = vpack.c.b16 %v2046, %v2044
    %v2687 = vpack.c.b16 %v2049, %v2047
    %v2688 = vpack.c.b16 %v2050, %v2048
    %v2689 = vpack.c.b16 %v2053, %v2051
    %v2690 = vpack.c.b16 %v2054, %v2052
    %v2691 = vpack.c.b16 %v2057, %v2055
    %v2692 = vpack.c.b16 %v2058, %v2056
    %v2693 = vpack.c.b16 %v2061, %v2059
    %v2694 = vpack.c.b16 %v2062, %v2060
    %v2695 = vpack.c.b16 %v2065, %v2063
    %v2696 = vpack.c.b16 %v2066, %v2064
    %v2697 = vpack.c.b16 %v2069, %v2067
    %v2698 = vpack.c.b16 %v2070, %v2068
    %v2699 = vpack.c.b16 %v2073, %v2071
    %v2700 = vpack.c.b16 %v2074, %v2072
    %v2701 = vpack.c.b16 %v2077, %v2075
    %v2702 = vpack.c.b16 %v2078, %v2076
    %v2703 = vpack.c.b16 %v2081, %v2079
    %v2704 = vpack.c.b16 %v2082, %v2080
    %v2705 = vpack.c.b16 %v2085, %v2083
    %v2706 = vpack.c.b16 %v2086, %v2084
    %v2707 = vpack.c.b16 %v2089, %v2087
    %v2708 = vpack.c.b16 %v2090, %v2088
    %v2709 = vpack.c.b16 %v2093, %v2091
    %v2710 = vpack.c.b16 %v2094, %v2092
    %v2711 = vpack.c.b16 %v2097, %v2095
    %v2712 = vpack.c.b16 %v2098, %v2096
    %v2713 = vpack.c.b16 %v2101, %v2099
    %v2714 = vpack.c.b16 %v2102, %v2100
    %v2715 = vpack.c.b16 %v2105, %v2103
    %v2716 = vpack.c.b16 %v2106, %v2104
    %v2717 = vpack.c.b16 %v2109, %v2107
    %v2718 = vpack.c.b16 %v2110, %v2108
    %v2719 = vpack.c.b16 %v2113, %v2111
    %v2720 = vpack.c.b16 %v2114, %v2112
    %v2721 = vpack.c.b16 %v2117, %v2115
    %v2722 = vpack.c.b16 %v2118, %v2116
    %v2723 = vpack.c.b16 %v2121, %v2119
    %v2724 = vpack.c.b16 %v2122, %v2120
    %v2725 = vpack.c.b16 %v2125, %v2123
    %v2726 = vpack.c.b16 %v2126, %v2124
    %v2727 = vpack.c.b16 %v2129, %v2127
    %v2728 = vpack.c.b16 %v2130, %v2128
    %v2729 = vpack.c.b16 %v2133, %v2131
    %v2730 = vpack.c.b16 %v2134, %v2132
    %v2731 = vpack.c.b16 %v2137, %v2135
    %v2732 = vpack.c.b16 %v2138, %v2136
    %v2733 = vpack.c.b16 %v2141, %v2139
    %v2734 = vpack.c.b16 %v2142, %v2140
    %v2735 = vpack.c.b16 %v2145, %v2143
    %v2736 = vpack.c.b16 %v2146, %v2144
    %v2737 = vpack.c.b16 %v2149, %v2147
    %v2738 = vpack.c.b16 %v2150, %v2148
    %v2739 = vpack.c.b16 %v2153, %v2151
    %v2740 = vpack.c.b16 %v2154, %v2152
    %v2741 = vpack.c.b16 %v2157, %v2155
    %v2742 = vpack.c.b16 %v2158, %v2156
    %v2743 = vpack.c.b16 %v2161, %v2159
    %v2744 = vpack.c.b16 %v2162, %v2160
    %v2745 = vpack.c.b16 %v2165, %v2163
    %v2746 = vpack.c.b16 %v2166, %v2164
    %v2747 = vpack.c.b16 %v2169, %v2167
    %v2748 = vpack.c.b16 %v2170, %v2168
    %v2749 = vpack.c.b16 %v2173, %v2171
    %v2750 = vpack.c.b16 %v2174, %v2172
    %v2751 = vpack.c.b16 %v2177, %v2175
    %v2752 = vpack.c.b16 %v2178, %v2176
    %v2753 = vpack.c.b16 %v2181, %v2179
    %v2754 = vpack.c.b16 %v2182, %v2180
    %v2755 = vpack.c.b16 %v2185, %v2183
    %v2756 = vpack.c.b16 %v2186, %v2184
    %v2757 = vpack.c.b16 %v2189, %v2187
    %v2758 = vpack.c.b16 %v2190, %v2188
    %v2759 = vpack.c.b16 %v2193, %v2191
    %v2760 = vpack.c.b16 %v2194, %v2192
    %v2761 = vpack.c.b16 %v2197, %v2195
    %v2762 = vpack.c.b16 %v2198, %v2196
    %v2763 = vpack.c.b16 %v2201, %v2199
    %v2764 = vpack.c.b16 %v2202, %v2200
    %v2765 = vpack.c.b16 %v2205, %v2203
    %v2766 = vpack.c.b16 %v2206, %v2204
    %v2767 = vpack.c.b16 %v2209, %v2207
    %v2768 = vpack.c.b16 %v2210, %v2208
    %v2769 = vpack.c.b16 %v2213, %v2211
    %v2770 = vpack.c.b16 %v2214, %v2212
    %v2771 = vpack.c.b16 %v2217, %v2215
    %v2772 = vpack.c.b16 %v2218, %v2216
    %v2773 = vpack.c.b16 %v2221, %v2219
    %v2774 = vpack.c.b16 %v2222, %v2220
    %v2775 = vpack.c.b16 %v2225, %v2223
    %v2776 = vpack.c.b16 %v2226, %v2224
    %v2777 = vpack.c.b16 %v2229, %v2227
    %v2778 = vpack.c.b16 %v2230, %v2228
    %v2779 = vpack.c.b16 %v2233, %v2231
    %v2780 = vpack.c.b16 %v2234, %v2232
    %v2781 = vpack.c.b16 %v2237, %v2235
    %v2782 = vpack.c.b16 %v2238, %v2236
    %v2783 = vpack.c.b16 %v2241, %v2239
    %v2784 = vpack.c.b16 %v2242, %v2240
    %v2785 = vpack.c.b16 %v2245, %v2243
    %v2786 = vpack.c.b16 %v2246, %v2244
    %v2787 = vpack.c.b16 %v2249, %v2247
    %v2788 = vpack.c.b16 %v2250, %v2248
    %v2789 = vpack.c.b16 %v2253, %v2251
    %v2790 = vpack.c.b16 %v2254, %v2252
    %v2791 = vpack.c.b16 %v2257, %v2255
    %v2792 = vpack.c.b16 %v2258, %v2256
    %v2793 = vpack.c.b16 %v2261, %v2259
    %v2794 = vpack.c.b16 %v2262, %v2260
    %v2795 = vpack.c.b16 %v2265, %v2263
    %v2796 = vpack.c.b16 %v2266, %v2264
    %v2797 = vpack.c.b16 %v2269, %v2267
    %v2798 = vpack.c.b16 %v2270, %v2268
    %v2799 = vpack.c.b16 %v2273, %v2271
    %v2800 = vpack.c.b16 %v2274, %v2272
    %v2801 = vpack.c.b16 %v2277, %v2275
    %v2802 = vpack.c.b16 %v2278, %v2276
    %v2803 = vpack.c.b16 %v2281, %v2279
    %v2804 = vpack.c.b16 %v2282, %v2280
    %v2805 = vpack.c.b16 %v2285, %v2283
    %v2806 = vpack.c.b16 %v2286, %v2284
    %v2807 = vpack.c.b16 %v2289, %v2287
    %v2808 = vpack.c.b16 %v2290, %v2288
    %v2809 = vpack.c.b16 %v2293, %v2291
    %v2810 = vpack.c.b16 %v2294, %v2292
    %v2811 = vpack.c.b16 %v2297, %v2295
    %v2812 = vpack.c.b16 %v2298, %v2296
    %v2813 = vpack.c.b16 %v2301, %v2299
    %v2814 = vpack.c.b16 %v2302, %v2300
    %3327 = vmatprep.subr.bf16.mxu0 %v2304
    %3328 = vmatpush1.bf16.msra.mxu0 %v2303
    %3329 = vmatprep.subr.bf16.mxu0 %v2306
    %3330 = vmatpush1.bf16.msra.mxu0 %v2305
    %3331 = vmatprep.subr.bf16.mxu0 %v2308
    %3332 = vmatpush1.bf16.msra.mxu0 %v2307
    %3333 = vmatprep.subr.bf16.mxu0 %v2310
    %3334 = vmatpush1.bf16.msra.mxu0 %v2309
    %3335 = vmatprep.subr.bf16.mxu0 %v2312
    %3336 = vmatpush1.bf16.msra.mxu0 %v2311
    %3337 = vmatprep.subr.bf16.mxu0 %v2314
    %3338 = vmatpush1.bf16.msra.mxu0 %v2313
    %3339 = vmatprep.subr.bf16.mxu0 %v2316
    %3340 = vmatpush1.bf16.msra.mxu0 %v2315
    %3341 = vmatprep.subr.bf16.mxu0 %v2318
    %3342 = vmatpush1.bf16.msra.mxu0 %v2317
    %3343 = vmatprep.subr.bf16.mxu0 %v2320
    %3344 = vmatpush1.bf16.msra.mxu0 %v2319
    %3345 = vmatprep.subr.bf16.mxu0 %v2322
    %3346 = vmatpush1.bf16.msra.mxu0 %v2321
    %3347 = vmatprep.subr.bf16.mxu0 %v2324
    %3348 = vmatpush1.bf16.msra.mxu0 %v2323
    %3349 = vmatprep.subr.bf16.mxu0 %v2326
    %3350 = vmatpush1.bf16.msra.mxu0 %v2325
    %3351 = vmatprep.subr.bf16.mxu0 %v2328
    %3352 = vmatpush1.bf16.msra.mxu0 %v2327
    %3353 = vmatprep.subr.bf16.mxu0 %v2330
    %3354 = vmatpush1.bf16.msra.mxu0 %v2329
    %3355 = vmatprep.subr.bf16.mxu0 %v2332
    %3356 = vmatpush1.bf16.msra.mxu0 %v2331
    %3357 = vmatprep.subr.bf16.mxu0 %v2334
    %3358 = vmatpush1.bf16.msra.mxu0 %v2333
    %3359 = vmatprep.mubr.bf16.mxu0 %v212
    %3360 = vmatmul.mubr.bf16.gmra.mrb[0].mxu0 %v211
    %v3361 = vpop.f32.mrb[0].mxu0
    %v3362 = vadd.f32 %v760, %v3361
    %v3363 = vpop.f32.mrb[0].mxu0
    %v3364 = vadd.f32 %v764, %v3363
    %v3365 = vpop.f32.mrb[0].mxu0
    %v3366 = vpop.f32.mrb[0].mxu0
    %3367 = vdwg.mxu0
    %3368 = vmatprep.subr.bf16.mxu0 %v2336
    %3369 = vmatpush1.bf16.msra.mxu0 %v2335
    %3370 = vmatprep.subr.bf16.mxu0 %v2338
    %3371 = vmatpush1.bf16.msra.mxu0 %v2337
    %3372 = vmatprep.subr.bf16.mxu0 %v2340
    %3373 = vmatpush1.bf16.msra.mxu0 %v2339
    %3374 = vmatprep.subr.bf16.mxu0 %v2342
    %3375 = vmatpush1.bf16.msra.mxu0 %v2341
    %3376 = vmatprep.subr.bf16.mxu0 %v2344
    %3377 = vmatpush1.bf16.msra.mxu0 %v2343
    %3378 = vmatprep.subr.bf16.mxu0 %v2346
    %3379 = vmatpush1.bf16.msra.mxu0 %v2345
    %3380 = vmatprep.subr.bf16.mxu0 %v2348
    %3381 = vmatpush1.bf16.msra.mxu0 %v2347
    %3382 = vmatprep.subr.bf16.mxu0 %v2350
    %3383 = vmatpush1.bf16.msra.mxu0 %v2349
    %3384 = vmatprep.subr.bf16.mxu0 %v2352
    %3385 = vmatpush1.bf16.msra.mxu0 %v2351
    %3386 = vmatprep.subr.bf16.mxu0 %v2354
    %3387 = vmatpush1.bf16.msra.mxu0 %v2353
    %3388 = vmatprep.subr.bf16.mxu0 %v2356
    %3389 = vmatpush1.bf16.msra.mxu0 %v2355
    %3390 = vmatprep.subr.bf16.mxu0 %v2358
    %3391 = vmatpush1.bf16.msra.mxu0 %v2357
    %3392 = vmatprep.subr.bf16.mxu0 %v2360
    %3393 = vmatpush1.bf16.msra.mxu0 %v2359
    %3394 = vmatprep.subr.bf16.mxu0 %v2362
    %3395 = vmatpush1.bf16.msra.mxu0 %v2361
    %3396 = vmatprep.subr.bf16.mxu0 %v2364
    %3397 = vmatpush1.bf16.msra.mxu0 %v2363
    %3398 = vmatprep.subr.bf16.mxu0 %v2366
    %3399 = vmatpush1.bf16.msra.mxu0 %v2365
    %3400 = vmatprep.mubr.bf16.mxu0 %v214
    %3401 = vmatmul.mubr.bf16.gmra.mrb[0].mxu0 %v213
    %v3402 = vpop.f32.mrb[0].mxu0
    %v3403 = vadd.f32 %v3362, %v3402
    %v3404 = vpop.f32.mrb[0].mxu0
    %v3405 = vadd.f32 %v3364, %v3404
    %v3406 = vpop.f32.mrb[0].mxu0
    %v3407 = vpop.f32.mrb[0].mxu0
    %3408 = vdwg.mxu0
    %3409 = vmatprep.subr.bf16.mxu0 %v2368
    %3410 = vmatpush1.bf16.msra.mxu0 %v2367
    %3411 = vmatprep.subr.bf16.mxu0 %v2370
    %3412 = vmatpush1.bf16.msra.mxu0 %v2369
    %3413 = vmatprep.subr.bf16.mxu0 %v2372
    %3414 = vmatpush1.bf16.msra.mxu0 %v2371
    %3415 = vmatprep.subr.bf16.mxu0 %v2374
    %3416 = vmatpush1.bf16.msra.mxu0 %v2373
    %3417 = vmatprep.subr.bf16.mxu0 %v2376
    %3418 = vmatpush1.bf16.msra.mxu0 %v2375
    %3419 = vmatprep.subr.bf16.mxu0 %v2378
    %3420 = vmatpush1.bf16.msra.mxu0 %v2377
    %3421 = vmatprep.subr.bf16.mxu0 %v2380
    %3422 = vmatpush1.bf16.msra.mxu0 %v2379
    %3423 = vmatprep.subr.bf16.mxu0 %v2382
    %3424 = vmatpush1.bf16.msra.mxu0 %v2381
    %3425 = vmatprep.subr.bf16.mxu0 %v2384
    %3426 = vmatpush1.bf16.msra.mxu0 %v2383
    %3427 = vmatprep.subr.bf16.mxu0 %v2386
    %3428 = vmatpush1.bf16.msra.mxu0 %v2385
    %3429 = vmatprep.subr.bf16.mxu0 %v2388
    %3430 = vmatpush1.bf16.msra.mxu0 %v2387
    %3431 = vmatprep.subr.bf16.mxu0 %v2390
    %3432 = vmatpush1.bf16.msra.mxu0 %v2389
    %3433 = vmatprep.subr.bf16.mxu0 %v2392
    %3434 = vmatpush1.bf16.msra.mxu0 %v2391
    %3435 = vmatprep.subr.bf16.mxu0 %v2394
    %3436 = vmatpush1.bf16.msra.mxu0 %v2393
    %3437 = vmatprep.subr.bf16.mxu0 %v2396
    %3438 = vmatpush1.bf16.msra.mxu0 %v2395
    %3439 = vmatprep.subr.bf16.mxu0 %v2398
    %3440 = vmatpush1.bf16.msra.mxu0 %v2397
    %3441 = vmatprep.mubr.bf16.mxu0 %v216
    %3442 = vmatmul.mubr.bf16.gmra.mrb[0].mxu0 %v215
    %v3443 = vpop.f32.mrb[0].mxu0
    %v3444 = vadd.f32 %v3403, %v3443
    %v3445 = vpop.f32.mrb[0].mxu0
    %v3446 = vadd.f32 %v3405, %v3445
    %v3447 = vpop.f32.mrb[0].mxu0
    %v3448 = vpop.f32.mrb[0].mxu0
    %3449 = vdwg.mxu0
    %3450 = vmatprep.subr.bf16.mxu0 %v2400
    %3451 = vmatpush1.bf16.msra.mxu0 %v2399
    %3452 = vmatprep.subr.bf16.mxu0 %v2402
    %3453 = vmatpush1.bf16.msra.mxu0 %v2401
    %3454 = vmatprep.subr.bf16.mxu0 %v2404
    %3455 = vmatpush1.bf16.msra.mxu0 %v2403
    %3456 = vmatprep.subr.bf16.mxu0 %v2406
    %3457 = vmatpush1.bf16.msra.mxu0 %v2405
    %3458 = vmatprep.subr.bf16.mxu0 %v2408
    %3459 = vmatpush1.bf16.msra.mxu0 %v2407
    %3460 = vmatprep.subr.bf16.mxu0 %v2410
    %3461 = vmatpush1.bf16.msra.mxu0 %v2409
    %3462 = vmatprep.subr.bf16.mxu0 %v2412
    %3463 = vmatpush1.bf16.msra.mxu0 %v2411
    %3464 = vmatprep.subr.bf16.mxu0 %v2414
    %3465 = vmatpush1.bf16.msra.mxu0 %v2413
    %3466 = vmatprep.subr.bf16.mxu0 %v2416
    %3467 = vmatpush1.bf16.msra.mxu0 %v2415
    %3468 = vmatprep.subr.bf16.mxu0 %v2418
    %3469 = vmatpush1.bf16.msra.mxu0 %v2417
    %3470 = vmatprep.subr.bf16.mxu0 %v2420
    %3471 = vmatpush1.bf16.msra.mxu0 %v2419
    %3472 = vmatprep.subr.bf16.mxu0 %v2422
    %3473 = vmatpush1.bf16.msra.mxu0 %v2421
    %3474 = vmatprep.subr.bf16.mxu0 %v2424
    %3475 = vmatpush1.bf16.msra.mxu0 %v2423
    %3476 = vmatprep.subr.bf16.mxu0 %v2426
    %3477 = vmatpush1.bf16.msra.mxu0 %v2425
    %3478 = vmatprep.subr.bf16.mxu0 %v2428
    %3479 = vmatpush1.bf16.msra.mxu0 %v2427
    %3480 = vmatprep.subr.bf16.mxu0 %v2430
    %3481 = vmatpush1.bf16.msra.mxu0 %v2429
    %3482 = vmatprep.mubr.bf16.mxu0 %v218
    %3483 = vmatmul.mubr.bf16.gmra.mrb[0].mxu0 %v217
    %v3484 = vpop.f32.mrb[0].mxu0
    %v3485 = vadd.f32 %v3444, %v3484
    %v3486 = vpop.f32.mrb[0].mxu0
    %v3487 = vadd.f32 %v3446, %v3486
    %v3488 = vpop.f32.mrb[0].mxu0
    %v3489 = vpop.f32.mrb[0].mxu0
    %3490 = vdwg.mxu0
    %3491 = vmatprep.subr.bf16.mxu0 %v2432
    %3492 = vmatpush1.bf16.msra.mxu0 %v2431
    %3493 = vmatprep.subr.bf16.mxu0 %v2434
    %3494 = vmatpush1.bf16.msra.mxu0 %v2433
    %3495 = vmatprep.subr.bf16.mxu0 %v2436
    %3496 = vmatpush1.bf16.msra.mxu0 %v2435
    %3497 = vmatprep.subr.bf16.mxu0 %v2438
    %3498 = vmatpush1.bf16.msra.mxu0 %v2437
    %3499 = vmatprep.subr.bf16.mxu0 %v2440
    %3500 = vmatpush1.bf16.msra.mxu0 %v2439
    %3501 = vmatprep.subr.bf16.mxu0 %v2442
    %3502 = vmatpush1.bf16.msra.mxu0 %v2441
    %3503 = vmatprep.subr.bf16.mxu0 %v2444
    %3504 = vmatpush1.bf16.msra.mxu0 %v2443
    %3505 = vmatprep.subr.bf16.mxu0 %v2446
    %3506 = vmatpush1.bf16.msra.mxu0 %v2445
    %3507 = vmatprep.subr.bf16.mxu0 %v2448
    %3508 = vmatpush1.bf16.msra.mxu0 %v2447
    %3509 = vmatprep.subr.bf16.mxu0 %v2450
    %3510 = vmatpush1.bf16.msra.mxu0 %v2449
    %3511 = vmatprep.subr.bf16.mxu0 %v2452
    %3512 = vmatpush1.bf16.msra.mxu0 %v2451
    %3513 = vmatprep.subr.bf16.mxu0 %v2454
    %3514 = vmatpush1.bf16.msra.mxu0 %v2453
    %3515 = vmatprep.subr.bf16.mxu0 %v2456
    %3516 = vmatpush1.bf16.msra.mxu0 %v2455
    %3517 = vmatprep.subr.bf16.mxu0 %v2458
    %3518 = vmatpush1.bf16.msra.mxu0 %v2457
    %3519 = vmatprep.subr.bf16.mxu0 %v2460
    %3520 = vmatpush1.bf16.msra.mxu0 %v2459
    %3521 = vmatprep.subr.bf16.mxu0 %v2462
    %3522 = vmatpush1.bf16.msra.mxu0 %v2461
    %3523 = vmatprep.mubr.bf16.mxu0 %v220
    %3524 = vmatmul.mubr.bf16.gmra.mrb[0].mxu0 %v219
    %v3525 = vpop.f32.mrb[0].mxu0
    %v3526 = vadd.f32 %v3485, %v3525
    %v3527 = vpop.f32.mrb[0].mxu0
    %v3528 = vadd.f32 %v3487, %v3527
    %v3529 = vpop.f32.mrb[0].mxu0
    %v3530 = vpop.f32.mrb[0].mxu0
    %3531 = vdwg.mxu0
    %3532 = vmatprep.subr.bf16.mxu0 %v2464
    %3533 = vmatpush1.bf16.msra.mxu0 %v2463
    %3534 = vmatprep.subr.bf16.mxu0 %v2466
    %3535 = vmatpush1.bf16.msra.mxu0 %v2465
    %3536 = vmatprep.subr.bf16.mxu0 %v2468
    %3537 = vmatpush1.bf16.msra.mxu0 %v2467
    %3538 = vmatprep.subr.bf16.mxu0 %v2470
    %3539 = vmatpush1.bf16.msra.mxu0 %v2469
    %3540 = vmatprep.subr.bf16.mxu0 %v2472
    %3541 = vmatpush1.bf16.msra.mxu0 %v2471
    %3542 = vmatprep.subr.bf16.mxu0 %v2474
    %3543 = vmatpush1.bf16.msra.mxu0 %v2473
    %3544 = vmatprep.subr.bf16.mxu0 %v2476
    %3545 = vmatpush1.bf16.msra.mxu0 %v2475
    %3546 = vmatprep.subr.bf16.mxu0 %v2478
    %3547 = vmatpush1.bf16.msra.mxu0 %v2477
    %3548 = vmatprep.subr.bf16.mxu0 %v2480
    %3549 = vmatpush1.bf16.msra.mxu0 %v2479
    %3550 = vmatprep.subr.bf16.mxu0 %v2482
    %3551 = vmatpush1.bf16.msra.mxu0 %v2481
    %3552 = vmatprep.subr.bf16.mxu0 %v2484
    %3553 = vmatpush1.bf16.msra.mxu0 %v2483
    %3554 = vmatprep.subr.bf16.mxu0 %v2486
    %3555 = vmatpush1.bf16.msra.mxu0 %v2485
    %3556 = vmatprep.subr.bf16.mxu0 %v2488
    %3557 = vmatpush1.bf16.msra.mxu0 %v2487
    %3558 = vmatprep.subr.bf16.mxu0 %v2490
    %3559 = vmatpush1.bf16.msra.mxu0 %v2489
    %3560 = vmatprep.subr.bf16.mxu0 %v2492
    %3561 = vmatpush1.bf16.msra.mxu0 %v2491
    %3562 = vmatprep.subr.bf16.mxu0 %v2494
    %3563 = vmatpush1.bf16.msra.mxu0 %v2493
    %3564 = vmatprep.mubr.bf16.mxu0 %v222
    %3565 = vmatmul.mubr.bf16.gmra.mrb[0].mxu0 %v221
    %v3566 = vpop.f32.mrb[0].mxu0
    %v3567 = vadd.f32 %v3526, %v3566
    %v3568 = vpop.f32.mrb[0].mxu0
    %v3569 = vadd.f32 %v3528, %v3568
    %v3570 = vpop.f32.mrb[0].mxu0
    %v3571 = vpop.f32.mrb[0].mxu0
    %3572 = vdwg.mxu0
    %3573 = vmatprep.subr.bf16.mxu0 %v2496
    %3574 = vmatpush1.bf16.msra.mxu0 %v2495
    %3575 = vmatprep.subr.bf16.mxu0 %v2498
    %3576 = vmatpush1.bf16.msra.mxu0 %v2497
    %3577 = vmatprep.subr.bf16.mxu0 %v2500
    %3578 = vmatpush1.bf16.msra.mxu0 %v2499
    %3579 = vmatprep.subr.bf16.mxu0 %v2502
    %3580 = vmatpush1.bf16.msra.mxu0 %v2501
    %3581 = vmatprep.subr.bf16.mxu0 %v2504
    %3582 = vmatpush1.bf16.msra.mxu0 %v2503
    %3583 = vmatprep.subr.bf16.mxu0 %v2506
    %3584 = vmatpush1.bf16.msra.mxu0 %v2505
    %3585 = vmatprep.subr.bf16.mxu0 %v2508
    %3586 = vmatpush1.bf16.msra.mxu0 %v2507
    %3587 = vmatprep.subr.bf16.mxu0 %v2510
    %3588 = vmatpush1.bf16.msra.mxu0 %v2509
    %3589 = vmatprep.subr.bf16.mxu0 %v2512
    %3590 = vmatpush1.bf16.msra.mxu0 %v2511
    %3591 = vmatprep.subr.bf16.mxu0 %v2514
    %3592 = vmatpush1.bf16.msra.mxu0 %v2513
    %3593 = vmatprep.subr.bf16.mxu0 %v2516
    %3594 = vmatpush1.bf16.msra.mxu0 %v2515
    %3595 = vmatprep.subr.bf16.mxu0 %v2518
    %3596 = vmatpush1.bf16.msra.mxu0 %v2517
    %3597 = vmatprep.subr.bf16.mxu0 %v2520
    %3598 = vmatpush1.bf16.msra.mxu0 %v2519
    %3599 = vmatprep.subr.bf16.mxu0 %v2522
    %3600 = vmatpush1.bf16.msra.mxu0 %v2521
    %3601 = vmatprep.subr.bf16.mxu0 %v2524
    %3602 = vmatpush1.bf16.msra.mxu0 %v2523
    %3603 = vmatprep.subr.bf16.mxu0 %v2526
    %3604 = vmatpush1.bf16.msra.mxu0 %v2525
    %3605 = vmatprep.mubr.bf16.mxu0 %v224
    %3606 = vmatmul.mubr.bf16.gmra.mrb[0].mxu0 %v223
    %v3607 = vpop.f32.mrb[0].mxu0
    %v3608 = vadd.f32 %v3567, %v3607
    %v3609 = vpop.f32.mrb[0].mxu0
    %v3610 = vadd.f32 %v3569, %v3609
    %v3611 = vpop.f32.mrb[0].mxu0
    %v3612 = vpop.f32.mrb[0].mxu0
    %3613 = vdwg.mxu0
    %3614 = vmatprep.subr.bf16.mxu0 %v2528
    %3615 = vmatpush1.bf16.msra.mxu0 %v2527
    %3616 = vmatprep.subr.bf16.mxu0 %v2530
    %3617 = vmatpush1.bf16.msra.mxu0 %v2529
    %3618 = vmatprep.subr.bf16.mxu0 %v2532
    %3619 = vmatpush1.bf16.msra.mxu0 %v2531
    %3620 = vmatprep.subr.bf16.mxu0 %v2534
    %3621 = vmatpush1.bf16.msra.mxu0 %v2533
    %3622 = vmatprep.subr.bf16.mxu0 %v2536
    %3623 = vmatpush1.bf16.msra.mxu0 %v2535
    %3624 = vmatprep.subr.bf16.mxu0 %v2538
    %3625 = vmatpush1.bf16.msra.mxu0 %v2537
    %3626 = vmatprep.subr.bf16.mxu0 %v2540
    %3627 = vmatpush1.bf16.msra.mxu0 %v2539
    %3628 = vmatprep.subr.bf16.mxu0 %v2542
    %3629 = vmatpush1.bf16.msra.mxu0 %v2541
    %3630 = vmatprep.subr.bf16.mxu0 %v2544
    %3631 = vmatpush1.bf16.msra.mxu0 %v2543
    %3632 = vmatprep.subr.bf16.mxu0 %v2546
    %3633 = vmatpush1.bf16.msra.mxu0 %v2545
    %3634 = vmatprep.subr.bf16.mxu0 %v2548
    %3635 = vmatpush1.bf16.msra.mxu0 %v2547
    %3636 = vmatprep.subr.bf16.mxu0 %v2550
    %3637 = vmatpush1.bf16.msra.mxu0 %v2549
    %3638 = vmatprep.subr.bf16.mxu0 %v2552
    %3639 = vmatpush1.bf16.msra.mxu0 %v2551
    %3640 = vmatprep.subr.bf16.mxu0 %v2554
    %3641 = vmatpush1.bf16.msra.mxu0 %v2553
    %3642 = vmatprep.subr.bf16.mxu0 %v2556
    %3643 = vmatpush1.bf16.msra.mxu0 %v2555
    %3644 = vmatprep.subr.bf16.mxu0 %v2558
    %3645 = vmatpush1.bf16.msra.mxu0 %v2557
    %3646 = vmatprep.mubr.bf16.mxu0 %v226
    %3647 = vmatmul.mubr.bf16.gmra.mrb[0].mxu0 %v225
    %v3648 = vpop.f32.mrb[0].mxu0
    %v3649 = vadd.f32 %v3608, %v3648
    %v3650 = vpop.f32.mrb[0].mxu0
    %v3651 = vadd.f32 %v3610, %v3650
    %v3652 = vpop.f32.mrb[0].mxu0
    %v3653 = vpop.f32.mrb[0].mxu0
    %3654 = vdwg.mxu0
    %3655 = vmatprep.subr.bf16.mxu0 %v2560
    %3656 = vmatpush1.bf16.msra.mxu0 %v2559
    %3657 = vmatprep.subr.bf16.mxu0 %v2562
    %3658 = vmatpush1.bf16.msra.mxu0 %v2561
    %3659 = vmatprep.subr.bf16.mxu0 %v2564
    %3660 = vmatpush1.bf16.msra.mxu0 %v2563
    %3661 = vmatprep.subr.bf16.mxu0 %v2566
    %3662 = vmatpush1.bf16.msra.mxu0 %v2565
    %3663 = vmatprep.subr.bf16.mxu0 %v2568
    %3664 = vmatpush1.bf16.msra.mxu0 %v2567
    %3665 = vmatprep.subr.bf16.mxu0 %v2570
    %3666 = vmatpush1.bf16.msra.mxu0 %v2569
    %3667 = vmatprep.subr.bf16.mxu0 %v2572
    %3668 = vmatpush1.bf16.msra.mxu0 %v2571
    %3669 = vmatprep.subr.bf16.mxu0 %v2574
    %3670 = vmatpush1.bf16.msra.mxu0 %v2573
    %3671 = vmatprep.subr.bf16.mxu0 %v2576
    %3672 = vmatpush1.bf16.msra.mxu0 %v2575
    %3673 = vmatprep.subr.bf16.mxu0 %v2578
    %3674 = vmatpush1.bf16.msra.mxu0 %v2577
    %3675 = vmatprep.subr.bf16.mxu0 %v2580
    %3676 = vmatpush1.bf16.msra.mxu0 %v2579
    %3677 = vmatprep.subr.bf16.mxu0 %v2582
    %3678 = vmatpush1.bf16.msra.mxu0 %v2581
    %3679 = vmatprep.subr.bf16.mxu0 %v2584
    %3680 = vmatpush1.bf16.msra.mxu0 %v2583
    %3681 = vmatprep.subr.bf16.mxu0 %v2586
    %3682 = vmatpush1.bf16.msra.mxu0 %v2585
    %3683 = vmatprep.subr.bf16.mxu0 %v2588
    %3684 = vmatpush1.bf16.msra.mxu0 %v2587
    %3685 = vmatprep.subr.bf16.mxu0 %v2590
    %3686 = vmatpush1.bf16.msra.mxu0 %v2589
    %3687 = vmatprep.mubr.bf16.mxu0 %v228
    %3688 = vmatmul.mubr.bf16.gmra.mrb[0].mxu0 %v227
    %v3689 = vpop.f32.mrb[0].mxu0
    %v3690 = vadd.f32 %v3649, %v3689
    %v3691 = vpop.f32.mrb[0].mxu0
    %v3692 = vadd.f32 %v3651, %v3691
    %v3693 = vpop.f32.mrb[0].mxu0
    %v3694 = vpop.f32.mrb[0].mxu0
    %3695 = vdwg.mxu0
    %3696 = vmatprep.subr.bf16.mxu0 %v2592
    %3697 = vmatpush1.bf16.msra.mxu0 %v2591
    %3698 = vmatprep.subr.bf16.mxu0 %v2594
    %3699 = vmatpush1.bf16.msra.mxu0 %v2593
    %3700 = vmatprep.subr.bf16.mxu0 %v2596
    %3701 = vmatpush1.bf16.msra.mxu0 %v2595
    %3702 = vmatprep.subr.bf16.mxu0 %v2598
    %3703 = vmatpush1.bf16.msra.mxu0 %v2597
    %3704 = vmatprep.subr.bf16.mxu0 %v2600
    %3705 = vmatpush1.bf16.msra.mxu0 %v2599
    %3706 = vmatprep.subr.bf16.mxu0 %v2602
    %3707 = vmatpush1.bf16.msra.mxu0 %v2601
    %3708 = vmatprep.subr.bf16.mxu0 %v2604
    %3709 = vmatpush1.bf16.msra.mxu0 %v2603
    %3710 = vmatprep.subr.bf16.mxu0 %v2606
    %3711 = vmatpush1.bf16.msra.mxu0 %v2605
    %3712 = vmatprep.subr.bf16.mxu0 %v2608
    %3713 = vmatpush1.bf16.msra.mxu0 %v2607
    %3714 = vmatprep.subr.bf16.mxu0 %v2610
    %3715 = vmatpush1.bf16.msra.mxu0 %v2609
    %3716 = vmatprep.subr.bf16.mxu0 %v2612
    %3717 = vmatpush1.bf16.msra.mxu0 %v2611
    %3718 = vmatprep.subr.bf16.mxu0 %v2614
    %3719 = vmatpush1.bf16.msra.mxu0 %v2613
    %3720 = vmatprep.subr.bf16.mxu0 %v2616
    %3721 = vmatpush1.bf16.msra.mxu0 %v2615
    %3722 = vmatprep.subr.bf16.mxu0 %v2618
    %3723 = vmatpush1.bf16.msra.mxu0 %v2617
    %3724 = vmatprep.subr.bf16.mxu0 %v2620
    %3725 = vmatpush1.bf16.msra.mxu0 %v2619
    %3726 = vmatprep.subr.bf16.mxu0 %v2622
    %3727 = vmatpush1.bf16.msra.mxu0 %v2621
    %3728 = vmatprep.mubr.bf16.mxu0 %v230
    %3729 = vmatmul.mubr.bf16.gmra.mrb[0].mxu0 %v229
    %v3730 = vpop.f32.mrb[0].mxu0
    %v3731 = vadd.f32 %v3690, %v3730
    %v3732 = vpop.f32.mrb[0].mxu0
    %v3733 = vadd.f32 %v3692, %v3732
    %v3734 = vpop.f32.mrb[0].mxu0
    %v3735 = vpop.f32.mrb[0].mxu0
    %3736 = vdwg.mxu0
    %3737 = vmatprep.subr.bf16.mxu0 %v2624
    %3738 = vmatpush1.bf16.msra.mxu0 %v2623
    %3739 = vmatprep.subr.bf16.mxu0 %v2626
    %3740 = vmatpush1.bf16.msra.mxu0 %v2625
    %3741 = vmatprep.subr.bf16.mxu0 %v2628
    %3742 = vmatpush1.bf16.msra.mxu0 %v2627
    %3743 = vmatprep.subr.bf16.mxu0 %v2630
    %3744 = vmatpush1.bf16.msra.mxu0 %v2629
    %3745 = vmatprep.subr.bf16.mxu0 %v2632
    %3746 = vmatpush1.bf16.msra.mxu0 %v2631
    %3747 = vmatprep.subr.bf16.mxu0 %v2634
    %3748 = vmatpush1.bf16.msra.mxu0 %v2633
    %3749 = vmatprep.subr.bf16.mxu0 %v2636
    %3750 = vmatpush1.bf16.msra.mxu0 %v2635
    %3751 = vmatprep.subr.bf16.mxu0 %v2638
    %3752 = vmatpush1.bf16.msra.mxu0 %v2637
    %3753 = vmatprep.subr.bf16.mxu0 %v2640
    %3754 = vmatpush1.bf16.msra.mxu0 %v2639
    %3755 = vmatprep.subr.bf16.mxu0 %v2642
    %3756 = vmatpush1.bf16.msra.mxu0 %v2641
    %3757 = vmatprep.subr.bf16.mxu0 %v2644
    %3758 = vmatpush1.bf16.msra.mxu0 %v2643
    %3759 = vmatprep.subr.bf16.mxu0 %v2646
    %3760 = vmatpush1.bf16.msra.mxu0 %v2645
    %3761 = vmatprep.subr.bf16.mxu0 %v2648
    %3762 = vmatpush1.bf16.msra.mxu0 %v2647
    %3763 = vmatprep.subr.bf16.mxu0 %v2650
    %3764 = vmatpush1.bf16.msra.mxu0 %v2649
    %3765 = vmatprep.subr.bf16.mxu0 %v2652
    %3766 = vmatpush1.bf16.msra.mxu0 %v2651
    %3767 = vmatprep.subr.bf16.mxu0 %v2654
    %3768 = vmatpush1.bf16.msra.mxu0 %v2653
    %3769 = vmatprep.mubr.bf16.mxu0 %v232
    %3770 = vmatmul.mubr.bf16.gmra.mrb[0].mxu0 %v231
    %v3771 = vpop.f32.mrb[0].mxu0
    %v3772 = vadd.f32 %v3731, %v3771
    %v3773 = vpop.f32.mrb[0].mxu0
    %v3774 = vadd.f32 %v3733, %v3773
    %v3775 = vpop.f32.mrb[0].mxu0
    %v3776 = vpop.f32.mrb[0].mxu0
    %3777 = vdwg.mxu0
    %3778 = vmatprep.subr.bf16.mxu0 %v2656
    %3779 = vmatpush1.bf16.msra.mxu0 %v2655
    %3780 = vmatprep.subr.bf16.mxu0 %v2658
    %3781 = vmatpush1.bf16.msra.mxu0 %v2657
    %3782 = vmatprep.subr.bf16.mxu0 %v2660
    %3783 = vmatpush1.bf16.msra.mxu0 %v2659
    %3784 = vmatprep.subr.bf16.mxu0 %v2662
    %3785 = vmatpush1.bf16.msra.mxu0 %v2661
    %3786 = vmatprep.subr.bf16.mxu0 %v2664
    %3787 = vmatpush1.bf16.msra.mxu0 %v2663
    %3788 = vmatprep.subr.bf16.mxu0 %v2666
    %3789 = vmatpush1.bf16.msra.mxu0 %v2665
    %3790 = vmatprep.subr.bf16.mxu0 %v2668
    %3791 = vmatpush1.bf16.msra.mxu0 %v2667
    %3792 = vmatprep.subr.bf16.mxu0 %v2670
    %3793 = vmatpush1.bf16.msra.mxu0 %v2669
    %3794 = vmatprep.subr.bf16.mxu0 %v2672
    %3795 = vmatpush1.bf16.msra.mxu0 %v2671
    %3796 = vmatprep.subr.bf16.mxu0 %v2674
    %3797 = vmatpush1.bf16.msra.mxu0 %v2673
    %3798 = vmatprep.subr.bf16.mxu0 %v2676
    %3799 = vmatpush1.bf16.msra.mxu0 %v2675
    %3800 = vmatprep.subr.bf16.mxu0 %v2678
    %3801 = vmatpush1.bf16.msra.mxu0 %v2677
    %3802 = vmatprep.subr.bf16.mxu0 %v2680
    %3803 = vmatpush1.bf16.msra.mxu0 %v2679
    %3804 = vmatprep.subr.bf16.mxu0 %v2682
    %3805 = vmatpush1.bf16.msra.mxu0 %v2681
    %3806 = vmatprep.subr.bf16.mxu0 %v2684
    %3807 = vmatpush1.bf16.msra.mxu0 %v2683
    %3808 = vmatprep.subr.bf16.mxu0 %v2686
    %3809 = vmatpush1.bf16.msra.mxu0 %v2685
    %3810 = vmatprep.mubr.bf16.mxu0 %v234
    %3811 = vmatmul.mubr.bf16.gmra.mrb[0].mxu0 %v233
    %v3812 = vpop.f32.mrb[0].mxu0
    %v3813 = vadd.f32 %v3772, %v3812
    %v3814 = vpop.f32.mrb[0].mxu0
    %v3815 = vadd.f32 %v3774, %v3814
    %v3816 = vpop.f32.mrb[0].mxu0
    %v3817 = vpop.f32.mrb[0].mxu0
    %3818 = vdwg.mxu0
    %3819 = vmatprep.subr.bf16.mxu0 %v2688
    %3820 = vmatpush1.bf16.msra.mxu0 %v2687
    %3821 = vmatprep.subr.bf16.mxu0 %v2690
    %3822 = vmatpush1.bf16.msra.mxu0 %v2689
    %3823 = vmatprep.subr.bf16.mxu0 %v2692
    %3824 = vmatpush1.bf16.msra.mxu0 %v2691
    %3825 = vmatprep.subr.bf16.mxu0 %v2694
    %3826 = vmatpush1.bf16.msra.mxu0 %v2693
    %3827 = vmatprep.subr.bf16.mxu0 %v2696
    %3828 = vmatpush1.bf16.msra.mxu0 %v2695
    %3829 = vmatprep.subr.bf16.mxu0 %v2698
    %3830 = vmatpush1.bf16.msra.mxu0 %v2697
    %3831 = vmatprep.subr.bf16.mxu0 %v2700
    %3832 = vmatpush1.bf16.msra.mxu0 %v2699
    %3833 = vmatprep.subr.bf16.mxu0 %v2702
    %3834 = vmatpush1.bf16.msra.mxu0 %v2701
    %3835 = vmatprep.subr.bf16.mxu0 %v2704
    %3836 = vmatpush1.bf16.msra.mxu0 %v2703
    %3837 = vmatprep.subr.bf16.mxu0 %v2706
    %3838 = vmatpush1.bf16.msra.mxu0 %v2705
    %3839 = vmatprep.subr.bf16.mxu0 %v2708
    %3840 = vmatpush1.bf16.msra.mxu0 %v2707
    %3841 = vmatprep.subr.bf16.mxu0 %v2710
    %3842 = vmatpush1.bf16.msra.mxu0 %v2709
    %3843 = vmatprep.subr.bf16.mxu0 %v2712
    %3844 = vmatpush1.bf16.msra.mxu0 %v2711
    %3845 = vmatprep.subr.bf16.mxu0 %v2714
    %3846 = vmatpush1.bf16.msra.mxu0 %v2713
    %3847 = vmatprep.subr.bf16.mxu0 %v2716
    %3848 = vmatpush1.bf16.msra.mxu0 %v2715
    %3849 = vmatprep.subr.bf16.mxu0 %v2718
    %3850 = vmatpush1.bf16.msra.mxu0 %v2717
    %3851 = vmatprep.mubr.bf16.mxu0 %v236
    %3852 = vmatmul.mubr.bf16.gmra.mrb[0].mxu0 %v235
    %v3853 = vpop.f32.mrb[0].mxu0
    %v3854 = vadd.f32 %v3813, %v3853
    %v3855 = vpop.f32.mrb[0].mxu0
    %v3856 = vadd.f32 %v3815, %v3855
    %v3857 = vpop.f32.mrb[0].mxu0
    %v3858 = vpop.f32.mrb[0].mxu0
    %3859 = vdwg.mxu0
    %3860 = vmatprep.subr.bf16.mxu0 %v2720
    %3861 = vmatpush1.bf16.msra.mxu0 %v2719
    %3862 = vmatprep.subr.bf16.mxu0 %v2722
    %3863 = vmatpush1.bf16.msra.mxu0 %v2721
    %3864 = vmatprep.subr.bf16.mxu0 %v2724
    %3865 = vmatpush1.bf16.msra.mxu0 %v2723
    %3866 = vmatprep.subr.bf16.mxu0 %v2726
    %3867 = vmatpush1.bf16.msra.mxu0 %v2725
    %3868 = vmatprep.subr.bf16.mxu0 %v2728
    %3869 = vmatpush1.bf16.msra.mxu0 %v2727
    %3870 = vmatprep.subr.bf16.mxu0 %v2730
    %3871 = vmatpush1.bf16.msra.mxu0 %v2729
    %3872 = vmatprep.subr.bf16.mxu0 %v2732
    %3873 = vmatpush1.bf16.msra.mxu0 %v2731
    %3874 = vmatprep.subr.bf16.mxu0 %v2734
    %3875 = vmatpush1.bf16.msra.mxu0 %v2733
    %3876 = vmatprep.subr.bf16.mxu0 %v2736
    %3877 = vmatpush1.bf16.msra.mxu0 %v2735
    %3878 = vmatprep.subr.bf16.mxu0 %v2738
    %3879 = vmatpush1.bf16.msra.mxu0 %v2737
    %3880 = vmatprep.subr.bf16.mxu0 %v2740
    %3881 = vmatpush1.bf16.msra.mxu0 %v2739
    %3882 = vmatprep.subr.bf16.mxu0 %v2742
    %3883 = vmatpush1.bf16.msra.mxu0 %v2741
    %3884 = vmatprep.subr.bf16.mxu0 %v2744
    %3885 = vmatpush1.bf16.msra.mxu0 %v2743
    %3886 = vmatprep.subr.bf16.mxu0 %v2746
    %3887 = vmatpush1.bf16.msra.mxu0 %v2745
    %3888 = vmatprep.subr.bf16.mxu0 %v2748
    %3889 = vmatpush1.bf16.msra.mxu0 %v2747
    %3890 = vmatprep.subr.bf16.mxu0 %v2750
    %3891 = vmatpush1.bf16.msra.mxu0 %v2749
    %3892 = vmatprep.mubr.bf16.mxu0 %v238
    %3893 = vmatmul.mubr.bf16.gmra.mrb[0].mxu0 %v237
    %v3894 = vpop.f32.mrb[0].mxu0
    %v3895 = vadd.f32 %v3854, %v3894
    %v3896 = vpop.f32.mrb[0].mxu0
    %v3897 = vadd.f32 %v3856, %v3896
    %v3898 = vpop.f32.mrb[0].mxu0
    %v3899 = vpop.f32.mrb[0].mxu0
    %3900 = vdwg.mxu0
    %3901 = vmatprep.subr.bf16.mxu0 %v2752
    %3902 = vmatpush1.bf16.msra.mxu0 %v2751
    %3903 = vmatprep.subr.bf16.mxu0 %v2754
    %3904 = vmatpush1.bf16.msra.mxu0 %v2753
    %3905 = vmatprep.subr.bf16.mxu0 %v2756
    %3906 = vmatpush1.bf16.msra.mxu0 %v2755
    %3907 = vmatprep.subr.bf16.mxu0 %v2758
    %3908 = vmatpush1.bf16.msra.mxu0 %v2757
    %3909 = vmatprep.subr.bf16.mxu0 %v2760
    %3910 = vmatpush1.bf16.msra.mxu0 %v2759
    %3911 = vmatprep.subr.bf16.mxu0 %v2762
    %3912 = vmatpush1.bf16.msra.mxu0 %v2761
    %3913 = vmatprep.subr.bf16.mxu0 %v2764
    %3914 = vmatpush1.bf16.msra.mxu0 %v2763
    %3915 = vmatprep.subr.bf16.mxu0 %v2766
    %3916 = vmatpush1.bf16.msra.mxu0 %v2765
    %3917 = vmatprep.subr.bf16.mxu0 %v2768
    %3918 = vmatpush1.bf16.msra.mxu0 %v2767
    %3919 = vmatprep.subr.bf16.mxu0 %v2770
    %3920 = vmatpush1.bf16.msra.mxu0 %v2769
    %3921 = vmatprep.subr.bf16.mxu0 %v2772
    %3922 = vmatpush1.bf16.msra.mxu0 %v2771
    %3923 = vmatprep.subr.bf16.mxu0 %v2774
    %3924 = vmatpush1.bf16.msra.mxu0 %v2773
    %3925 = vmatprep.subr.bf16.mxu0 %v2776
    %3926 = vmatpush1.bf16.msra.mxu0 %v2775
    %3927 = vmatprep.subr.bf16.mxu0 %v2778
    %3928 = vmatpush1.bf16.msra.mxu0 %v2777
    %3929 = vmatprep.subr.bf16.mxu0 %v2780
    %3930 = vmatpush1.bf16.msra.mxu0 %v2779
    %3931 = vmatprep.subr.bf16.mxu0 %v2782
    %3932 = vmatpush1.bf16.msra.mxu0 %v2781
    %3933 = vmatprep.mubr.bf16.mxu0 %v240
    %3934 = vmatmul.mubr.bf16.gmra.mrb[0].mxu0 %v239
    %v3935 = vpop.f32.mrb[0].mxu0
    %v3936 = vadd.f32 %v3895, %v3935
    %v3937 = vpop.f32.mrb[0].mxu0
    %v3938 = vadd.f32 %v3897, %v3937
    %v3939 = vpop.f32.mrb[0].mxu0
    %v3940 = vpop.f32.mrb[0].mxu0
    %3941 = vdwg.mxu0
    %3942 = vmatprep.subr.bf16.mxu0 %v2784
    %3943 = vmatpush1.bf16.msra.mxu0 %v2783
    %3944 = vmatprep.subr.bf16.mxu0 %v2786
    %3945 = vmatpush1.bf16.msra.mxu0 %v2785
    %3946 = vmatprep.subr.bf16.mxu0 %v2788
    %3947 = vmatpush1.bf16.msra.mxu0 %v2787
    %3948 = vmatprep.subr.bf16.mxu0 %v2790
    %3949 = vmatpush1.bf16.msra.mxu0 %v2789
    %3950 = vmatprep.subr.bf16.mxu0 %v2792
    %3951 = vmatpush1.bf16.msra.mxu0 %v2791
    %3952 = vmatprep.subr.bf16.mxu0 %v2794
    %3953 = vmatpush1.bf16.msra.mxu0 %v2793
    %3954 = vmatprep.subr.bf16.mxu0 %v2796
    %3955 = vmatpush1.bf16.msra.mxu0 %v2795
    %3956 = vmatprep.subr.bf16.mxu0 %v2798
    %3957 = vmatpush1.bf16.msra.mxu0 %v2797
    %3958 = vmatprep.subr.bf16.mxu0 %v2800
    %3959 = vmatpush1.bf16.msra.mxu0 %v2799
    %3960 = vmatprep.subr.bf16.mxu0 %v2802
    %3961 = vmatpush1.bf16.msra.mxu0 %v2801
    %3962 = vmatprep.subr.bf16.mxu0 %v2804
    %3963 = vmatpush1.bf16.msra.mxu0 %v2803
    %3964 = vmatprep.subr.bf16.mxu0 %v2806
    %3965 = vmatpush1.bf16.msra.mxu0 %v2805
    %3966 = vmatprep.subr.bf16.mxu0 %v2808
    %3967 = vmatpush1.bf16.msra.mxu0 %v2807
    %3968 = vmatprep.subr.bf16.mxu0 %v2810
    %3969 = vmatpush1.bf16.msra.mxu0 %v2809
    %3970 = vmatprep.subr.bf16.mxu0 %v2812
    %3971 = vmatpush1.bf16.msra.mxu0 %v2811
    %3972 = vmatprep.subr.bf16.mxu0 %v2814
    %3973 = vmatpush1.bf16.msra.mxu0 %v2813
    %3974 = vmatprep.mubr.bf16.mxu0 %v242
    %3975 = vmatmul.mubr.bf16.gmra.mrb[0].mxu0 %v241
    %v3976 = vpop.f32.mrb[0].mxu0
    %v3977 = vadd.f32 %v3936, %v3976
    %v3978 = vpop.f32.mrb[0].mxu0
    %v3979 = vadd.f32 %v3938, %v3978
    %v3980 = vpop.f32.mrb[0].mxu0
    %v3981 = vpop.f32.mrb[0].mxu0
    %3982 = vdwg.mxu0
    %v3983 = vmax.f32 %v3977, 0.0
    %v3984 = vmax.f32 %v3979, 0.0
    %v3985 = vld [vmem:[%s3] sm:$0xff]
    %v3986 = vld [vmem:[%s3 + $0x8] sm:$0xff]
    %v3987 = vld [vmem:[%s3 + $0x10] sm:$0xff]
    %v3988 = vld [vmem:[%s3 + $0x18] sm:$0xff]
    %v3989 = vld [vmem:[%s3 + $0x20] sm:$0xff]
    %v3990 = vld [vmem:[%s3 + $0x28] sm:$0xff]
    %v3991 = vld [vmem:[%s3 + $0x30] sm:$0xff]
    %v3992 = vld [vmem:[%s3 + $0x38] sm:$0xff]
    %v3993 = vld [vmem:[%s3 + $0x40] sm:$0xff]
    %v3994 = vld [vmem:[%s3 + $0x48] sm:$0xff]
    %v3995 = vld [vmem:[%s3 + $0x50] sm:$0xff]
    %v3996 = vld [vmem:[%s3 + $0x58] sm:$0xff]
    %v3997 = vld [vmem:[%s3 + $0x60] sm:$0xff]
    %v3998 = vld [vmem:[%s3 + $0x68] sm:$0xff]
    %v3999 = vld [vmem:[%s3 + $0x70] sm:$0xff]
    %v4000 = vld [vmem:[%s3 + $0x78] sm:$0xff]
    %v4001 = vld [vmem:[%s3 + $0x80] sm:$0xff]
    %v4002 = vld [vmem:[%s3 + $0x88] sm:$0xff]
    %v4003 = vld [vmem:[%s3 + $0x90] sm:$0xff]
    %v4004 = vld [vmem:[%s3 + $0x98] sm:$0xff]
    %v4005 = vld [vmem:[%s3 + $0xa0] sm:$0xff]
    %v4006 = vld [vmem:[%s3 + $0xa8] sm:$0xff]
    %v4007 = vld [vmem:[%s3 + $0xb0] sm:$0xff]
    %v4008 = vld [vmem:[%s3 + $0xb8] sm:$0xff]
    %v4009 = vld [vmem:[%s3 + $0xc0] sm:$0xff]
    %v4010 = vld [vmem:[%s3 + $0xc8] sm:$0xff]
    %v4011 = vld [vmem:[%s3 + $0xd0] sm:$0xff]
    %v4012 = vld [vmem:[%s3 + $0xd8] sm:$0xff]
    %v4013 = vld [vmem:[%s3 + $0xe0] sm:$0xff]
    %v4014 = vld [vmem:[%s3 + $0xe8] sm:$0xff]
    %v4015 = vld [vmem:[%s3 + $0xf0] sm:$0xff]
    %v4016 = vld [vmem:[%s3 + $0xf8] sm:$0xff]
    %v4017 = vld [vmem:[%s4] sm:$0x1]
    %v4019 = vlaneseq
    %v4020 = vshrl.u32 %v4019, 7
    %v4021 = vsub.s32 0, %v4020
    %v4022 = vrot.slane %v4017, %v4021
    %4024 = vmatprep.subr.mxu0 0.0
    %4025 = vmatpush1.msra.mxu0 %v3985
    %4026 = vmatprep.subr.mxu0 0.0
    %4027 = vmatpush1.msra.mxu0 %v3986
    %4028 = vmatprep.subr.mxu0 0.0
    %4029 = vmatpush1.msra.mxu0 %v3987
    %4030 = vmatprep.subr.mxu0 0.0
    %4031 = vmatpush1.msra.mxu0 %v3988
    %4032 = vmatprep.subr.mxu0 0.0
    %4033 = vmatpush1.msra.mxu0 %v3989
    %4034 = vmatprep.subr.mxu0 0.0
    %4035 = vmatpush1.msra.mxu0 %v3990
    %4036 = vmatprep.subr.mxu0 0.0
    %4037 = vmatpush1.msra.mxu0 %v3991
    %4038 = vmatprep.subr.mxu0 0.0
    %4039 = vmatpush1.msra.mxu0 %v3992
    %4040 = vmatprep.subr.mxu0 0.0
    %4041 = vmatpush1.msra.mxu0 %v3993
    %4042 = vmatprep.subr.mxu0 0.0
    %4043 = vmatpush1.msra.mxu0 %v3994
    %4044 = vmatprep.subr.mxu0 0.0
    %4045 = vmatpush1.msra.mxu0 %v3995
    %4046 = vmatprep.subr.mxu0 0.0
    %4047 = vmatpush1.msra.mxu0 %v3996
    %4048 = vmatprep.subr.mxu0 0.0
    %4049 = vmatpush1.msra.mxu0 %v3997
    %4050 = vmatprep.subr.mxu0 0.0
    %4051 = vmatpush1.msra.mxu0 %v3998
    %4052 = vmatprep.subr.mxu0 0.0
    %4053 = vmatpush1.msra.mxu0 %v3999
    %4054 = vmatprep.subr.mxu0 0.0
    %4055 = vmatpush1.msra.mxu0 %v4000
    %4056 = vmatprep.subr.mxu0 0.0
    %4057 = vmatpush1.msra.mxu0 %v4001
    %4058 = vmatprep.subr.mxu0 0.0
    %4059 = vmatpush1.msra.mxu0 %v4002
    %4060 = vmatprep.subr.mxu0 0.0
    %4061 = vmatpush1.msra.mxu0 %v4003
    %4062 = vmatprep.subr.mxu0 0.0
    %4063 = vmatpush1.msra.mxu0 %v4004
    %4064 = vmatprep.subr.mxu0 0.0
    %4065 = vmatpush1.msra.mxu0 %v4005
    %4066 = vmatprep.subr.mxu0 0.0
    %4067 = vmatpush1.msra.mxu0 %v4006
    %4068 = vmatprep.subr.mxu0 0.0
    %4069 = vmatpush1.msra.mxu0 %v4007
    %4070 = vmatprep.subr.mxu0 0.0
    %4071 = vmatpush1.msra.mxu0 %v4008
    %4072 = vmatprep.subr.mxu0 0.0
    %4073 = vmatpush1.msra.mxu0 %v4009
    %4074 = vmatprep.subr.mxu0 0.0
    %4075 = vmatpush1.msra.mxu0 %v4010
    %4076 = vmatprep.subr.mxu0 0.0
    %4077 = vmatpush1.msra.mxu0 %v4011
    %4078 = vmatprep.subr.mxu0 0.0
    %4079 = vmatpush1.msra.mxu0 %v4012
    %4080 = vmatprep.subr.mxu0 0.0
    %4081 = vmatpush1.msra.mxu0 %v4013
    %4082 = vmatprep.subr.mxu0 0.0
    %4083 = vmatpush1.msra.mxu0 %v4014
    %4084 = vmatprep.subr.mxu0 0.0
    %4085 = vmatpush1.msra.mxu0 %v4015
    %4086 = vmatprep.subr.mxu0 0.0
    %4087 = vmatpush1.msra.mxu0 %v4016
    %4088 = vmatprep.mubr.f32.mxu0 %v3984
    %4089 = vmatmul.mubr.f32.gmra.mrb[0].mxu0 %v3983
    %v4090 = vpop.f32.mrb[0].mxu0
    %v4091 = vadd.f32 %v4022, %v4090
    %v4092 = vpop.f32.mrb[0].mxu0
    %4093 = vdwg.mxu0
    %v4094 = vmax.f32 %v4091, 0.0
    %v4095 = vld [vmem:[%s5] sm:$0xff]
    %v4096 = vld [vmem:[%s5 + $0x8] sm:$0xff]
    %v4097 = vld [vmem:[%s5 + $0x10] sm:$0xff]
    %v4098 = vld [vmem:[%s5 + $0x18] sm:$0xff]
    %v4099 = vld [vmem:[%s5 + $0x20] sm:$0xff]
    %v4100 = vld [vmem:[%s5 + $0x28] sm:$0xff]
    %v4101 = vld [vmem:[%s5 + $0x30] sm:$0xff]
    %v4102 = vld [vmem:[%s5 + $0x38] sm:$0xff]
    %v4103 = vld [vmem:[%s6] sm:$0x1]
    %v4105 = vlaneseq
    %v4106 = vshrl.u32 %v4105, 7
    %v4107 = vsub.s32 0, %v4106
    %v4108 = vrot.slane %v4103, %v4107
    %vm4110 = vcmask 523264
    %v4112 = vsel %vm4110, %v4094, 0
    %4114 = vmatprep.subr.mxu0 0.0
    %4115 = vmatpush1.msra.mxu0 %v4095
    %4116 = vmatprep.subr.mxu0 0.0
    %4117 = vmatpush1.msra.mxu0 %v4096
    %4118 = vmatprep.subr.mxu0 0.0
    %4119 = vmatpush1.msra.mxu0 %v4097
    %4120 = vmatprep.subr.mxu0 0.0
    %4121 = vmatpush1.msra.mxu0 %v4098
    %4122 = vmatprep.subr.mxu0 0.0
    %4123 = vmatpush1.msra.mxu0 %v4099
    %4124 = vmatprep.subr.mxu0 0.0
    %4125 = vmatpush1.msra.mxu0 %v4100
    %4126 = vmatprep.subr.mxu0 0.0
    %4127 = vmatpush1.msra.mxu0 %v4101
    %4128 = vmatprep.subr.mxu0 0.0
    %4129 = vmatpush1.msra.mxu0 %v4102
    %4130 = vmatprep.subr.mxu0 0.0
    %4131 = vmatpush1.msra.mxu0 0.0
    %4132 = vmatprep.subr.mxu0 0.0
    %4133 = vmatpush1.msra.mxu0 0.0
    %4134 = vmatprep.subr.mxu0 0.0
    %4135 = vmatpush1.msra.mxu0 0.0
    %4136 = vmatprep.subr.mxu0 0.0
    %4137 = vmatpush1.msra.mxu0 0.0
    %4138 = vmatprep.subr.mxu0 0.0
    %4139 = vmatpush1.msra.mxu0 0.0
    %4140 = vmatprep.subr.mxu0 0.0
    %4141 = vmatpush1.msra.mxu0 0.0
    %4142 = vmatprep.subr.mxu0 0.0
    %4143 = vmatpush1.msra.mxu0 0.0
    %4144 = vmatprep.subr.mxu0 0.0
    %4145 = vmatpush1.msra.mxu0 0.0
    %4146 = vmatprep.subr.mxu0 0.0
    %4147 = vmatpush1.msra.mxu0 0.0
    %4148 = vmatprep.subr.mxu0 0.0
    %4149 = vmatpush1.msra.mxu0 0.0
    %4150 = vmatprep.subr.mxu0 0.0
    %4151 = vmatpush1.msra.mxu0 0.0
    %4152 = vmatprep.subr.mxu0 0.0
    %4153 = vmatpush1.msra.mxu0 0.0
    %4154 = vmatprep.subr.mxu0 0.0
    %4155 = vmatpush1.msra.mxu0 0.0
    %4156 = vmatprep.subr.mxu0 0.0
    %4157 = vmatpush1.msra.mxu0 0.0
    %4158 = vmatprep.subr.mxu0 0.0
    %4159 = vmatpush1.msra.mxu0 0.0
    %4160 = vmatprep.subr.mxu0 0.0
    %4161 = vmatpush1.msra.mxu0 0.0
    %4162 = vmatprep.subr.mxu0 0.0
    %4163 = vmatpush1.msra.mxu0 0.0
    %4164 = vmatprep.subr.mxu0 0.0
    %4165 = vmatpush1.msra.mxu0 0.0
    %4166 = vmatprep.subr.mxu0 0.0
    %4167 = vmatpush1.msra.mxu0 0.0
    %4168 = vmatprep.subr.mxu0 0.0
    %4169 = vmatpush1.msra.mxu0 0.0
    %4170 = vmatprep.subr.mxu0 0.0
    %4171 = vmatpush1.msra.mxu0 0.0
    %4172 = vmatprep.subr.mxu0 0.0
    %4173 = vmatpush1.msra.mxu0 0.0
    %4174 = vmatprep.subr.mxu0 0.0
    %4175 = vmatpush1.msra.mxu0 0.0
    %4176 = vmatprep.subr.mxu0 0.0
    %4177 = vmatpush1.msra.mxu0 0.0
    %4178 = vmatprep.mubr.f32.mxu0 0.0
    %4179 = vmatmul.mubr.f32.gmra.mrb[0].mxu0 %v4112
    %v4180 = vpop.f32.mrb[0].mxu0
    %v4181 = vadd.f32 %v4108, %v4180
    %v4182 = vpop.f32.mrb[0].mxu0
    %4183 = vdwg.mxu0
    %vm4184 = vcmask 9216
    %4185 = vst.msk [vmem:[#allocation2] sm:$0x3] %vm4184, %v4181
    // Predicated region
    $region30: #{transformer_forward.3} parent=1 // pred_check
      _
    $region31: #{transformer_forward.3} parent=1 // pred_check_branch
      %4187 = sbr.rel (0) target = $region33
    $region32: #{transformer_forward.3} parent=1 // pred_region
      %s4189 = ssub.s32 32, 32
      %4190 = vsyncadd [#allocation3], %s4189
      %s4192 = sshll.u32 [#allocation2], 4
      %s4193 = int_to_ptr.vmem [resolvable:$true] %s4192
      %4195 = dma.vmem_to_hbm [thread:$0]  %s4193, 32, %s7, [#allocation3]
    $region33: #{transformer_forward.3} parent=1 // pred_fallthru
      _
    // Predicated region
    $region34: #{transformer_forward.3} parent=1 // pred_check
      _
    $region35: #{transformer_forward.3} parent=1 // pred_check_branch
      %4197 = sbr.rel (0) target = $region37
    $region36: #{transformer_forward.3} parent=1 // pred_region
      %4198 = dma.done [#allocation3], 32
    $region37: #{transformer_forward.3} parent=1 // pred_fallthru
      _
    %4199 = vsyncpa [#allocation3], 1

</llo_original>
